<compile_context>
chip_gen: v7x
topology: tpu7x:2x2x1
jax: 0.10.0
libtpu: 0.0.40
codegen_flags: <defaults>
</compile_context>

<pallas_src>
import functools

import jax
import jax.numpy as jnp
from jax.experimental import pallas as pl
from jax.experimental.pallas import tpu as pltpu


# ----------------------------------------------------------------------------
# Fused Conv(5x5, Cin=1) + bias + ReLU + 2x2/2 max-pool, batch on the lane axis
# ----------------------------------------------------------------------------
def _conv_relu_pool_kernel(w_ref, b_ref, x_ref, o_ref, *, cout, k, ph, pw):
    """One batch block (b_tile images) per grid step.

    w_ref: SMEM (cout*k*k,) f32 -- PyTorch conv weight (Cout, 1, k, k) flattened
    b_ref: SMEM (cout,)     f32 -- conv bias
    x_ref: VMEM (2, 2, hp, wp, B) f32, parity-split & batch-last:
           x_ref[a, b, p, q, n] == x[n, 0, 2p + a, 2q + b]
    o_ref: VMEM (cout, ph, pw, B) f32 -- pooled output, batch on lanes
    """
    kk = k * k

    # One output channel per (non-unrolled) loop iteration: keeps the lowered
    # body ~6x smaller and bounds live ranges. Weights / bias are dynamic SMEM
    # scalar reads at the use site (scalar-load slots have plenty of slack).
    @pl.loop(0, cout)
    def _(c):
        wbase = c * kk
        pooled = None
        # Pool parity (di, dj) selects conv-output positions (2i+di, 2j+dj);
        # the parity-split input turns every stride-2 access into a static,
        # lane-aligned slice (pure addressing, no shuffles).
        for di in range(2):
            for dj in range(2):
                acc = None                       # first tap folds into init
                for kh in range(k):
                    s = di + kh
                    for kw in range(k):
                        t = dj + kw
                        # x[2i+di+kh, 2j+dj+kw] == x_par[s%2, t%2, i+s//2, j+t//2]
                        xst = x_ref[s % 2, t % 2,
                                    s // 2: s // 2 + ph,
                                    t // 2: t // 2 + pw, :]      # (ph, pw, B)
                        term = w_ref[wbase + kh * k + kw] * xst
                        acc = term if acc is None else acc + term
                pooled = acc if pooled is None else jnp.maximum(pooled, acc)
        # Bias commutes with max and ReLU is monotone: apply both once after
        # pooling, then write one dense (ph, pw, 128-lane) slab for channel c.
        o_ref[c] = jnp.maximum(pooled + b_ref[c], 0.0)


# ----------------------------------------------------------------------------
# Wrapper: Feature_Extractor('lenet') forward
# ----------------------------------------------------------------------------
def feature_extractor_forward(x_nchw, params, *, b_tile=128):
    """(N, 1, H, W) -> (N, 6, (H-4)//2, (W-4)//2) == MaxPool2x2(ReLU(Conv1(x)))."""
    w = params["conv1_w"]                     # (6, 1, 5, 5)
    b = params["conv1_b"]                     # (6,)
    cout, cin, k, k2 = w.shape
    assert cin == 1 and k == k2
    N, c_in, H, W = x_nchw.shape
    assert c_in == 1 and H % 2 == 0 and W % 2 == 0
    oh, ow = H - (k - 1), W - (k - 1)
    assert oh % 2 == 0 and ow % 2 == 0
    ph, pw = oh // 2, ow // 2
    hp, wp = H // 2, W // 2

    # Batch-block the grid. Per-step VMEM (in + out, double buffered) at
    # b_tile=128 is ~2.2 MiB -> far under v7x's 64 MiB physical VMEM; large N
    # gives a multi-step grid so both v7x TensorCores get batch slices.
    n_blocks = -(-N // b_tile)
    n_pad = n_blocks * b_tile
    if n_pad != N:
        x_nchw = jnp.pad(x_nchw, ((0, n_pad - N), (0, 0), (0, 0), (0, 0)))

    # Wrapper-side layout plumbing (one cheap XLA transpose, ~4 KiB/image):
    # parity-split the spatial dims and put batch on the last (lane) axis.
    #   x_par[a, b, p, q, n] == x[n, 0, 2p + a, 2q + b]
    x_par = x_nchw.reshape(n_pad, hp, 2, wp, 2).transpose(2, 4, 1, 3, 0)

    kern = functools.partial(_conv_relu_pool_kernel,
                             cout=cout, k=k, ph=ph, pw=pw)
    smem = pl.BlockSpec(memory_space=pltpu.MemorySpace.SMEM)   # scalar params

    out = pl.pallas_call(
        kern,
        out_shape=jax.ShapeDtypeStruct((cout, ph, pw, n_pad), jnp.float32),
        grid=(n_blocks,),
        in_specs=[
            smem,                                              # conv weight
            smem,                                              # conv bias
            # Last two block dims (wp, b_tile) = (16, 128): (8,128)-aligned.
            pl.BlockSpec((2, 2, hp, wp, b_tile), lambda g: (0, 0, 0, 0, g)),
        ],
        # Last two block dims (pw == full extent, 128): legal and lane-dense.
        out_specs=pl.BlockSpec((cout, ph, pw, b_tile), lambda g: (0, 0, 0, g)),
        compiler_params=pltpu.CompilerParams(
            # Shard batch blocks across v7x's two TensorCores (no-op on v5e/v6e).
            dimension_semantics=("parallel",)),
    )(w.reshape(-1), b, x_par)

    # Back to NCHW; drop the batch padding.
    return out.transpose(3, 0, 1, 2)[:N]


# ----------------------------------------------------------------------------
# Pure-JAX reference (for correctness check)
# ----------------------------------------------------------------------------
def feature_extractor_reference(x, params):
    y = jax.lax.conv_general_dilated(
        x, params["conv1_w"], (1, 1), "VALID",
        dimension_numbers=("NCHW", "OIHW", "NCHW"))
    y = jnp.maximum(y + params["conv1_b"][None, :, None, None], 0.0)
    return jax.lax.reduce_window(
        y, -jnp.inf, jax.lax.max, (1, 1, 2, 2), (1, 1, 2, 2), "VALID")


# ----------------------------------------------------------------------------
# Deterministic parameter init (PyTorch-default-style uniform bounds)
# ----------------------------------------------------------------------------
def init_params(key):
    def uinit(k, shape, fan_in):
        bound = 1.0 / jnp.sqrt(jnp.asarray(fan_in, jnp.float32))
        return jax.random.uniform(k, shape, jnp.float32, -bound, bound)

    kw, kb = jax.random.split(key)
    return {
        "conv1_w": uinit(kw, (6, 1, 5, 5), 1 * 5 * 5),
        "conv1_b": uinit(kb, (6,), 1 * 5 * 5),
    }


if __name__ == "__main__":
    key = jax.random.PRNGKey(0)
    pkey, xkey = jax.random.split(key)
    params = init_params(pkey)
    # LeNet-style 32x32 single-channel input -> (N, 6, 14, 14) feature maps.
    x = jax.random.normal(xkey, (2, 1, 32, 32), jnp.float32)

    out = jax.block_until_ready(jax.jit(feature_extractor_forward)(x, params))
    assert out.shape == (2, 6, 14, 14), out.shape

    ref = jax.block_until_ready(feature_extractor_reference(x, params))
    assert jnp.allclose(out, ref, rtol=1e-4, atol=1e-4), (
        float(jnp.max(jnp.abs(out - ref))))

    print("KERNEL_OK")
</pallas_src>

<mosaic_0001>
module attributes {stable_mosaic.version = 11 : i64} {
  func.func @_conv_relu_pool_kernel(%arg0: i32, %arg1: memref<150xf32, #tpu.memory_space<smem>>, %arg2: memref<6xf32, #tpu.memory_space<smem>>, %arg3: memref<2x2x16x16x128xf32, #tpu.memory_space<vmem>>, %arg4: memref<6x14x14x128xf32, #tpu.memory_space<vmem>>) attributes {dimension_semantics = [#tpu.dimension_semantics<parallel>], iteration_bounds = array<i64: 1>, scalar_prefetch = 0 : i64, scratch_operands = 0 : i64, tpu.core_type = #tpu.core_type<tc>, window_params = [{transform_indices = @transform_0, window_bounds = array<i64: 150>}, {transform_indices = @transform_1, window_bounds = array<i64: 6>}, {transform_indices = @transform_2, window_bounds = array<i64: 2, 2, 16, 16, 128>}, {transform_indices = @transform_3, window_bounds = array<i64: 6, 14, 14, 128>}]} {
    %c0_i32 = arith.constant 0 : i32
    %c6_i32 = arith.constant 6 : i32
    %0 = arith.addi %c0_i32, %c6_i32 : i32
    %c1_i32 = arith.constant 1 : i32
    scf.for %arg5 = %c0_i32 to %0 step %c1_i32  : i32 {
      %c1_i32_1 = arith.constant 1 : i32
      %1 = arith.muli %arg5, %c1_i32_1 : i32
      %c0_i32_2 = arith.constant 0 : i32
      %2 = arith.addi %c0_i32_2, %1 : i32
      %c25_i32 = arith.constant 25 : i32
      %3 = arith.muli %2, %c25_i32 : i32
      %c0 = arith.constant 0 : index
      %c0_3 = arith.constant 0 : index
      %c0_4 = arith.constant 0 : index
      %c0_5 = arith.constant 0 : index
      %c0_6 = arith.constant 0 : index
      %4 = vector.load %arg3[%c0, %c0_3, %c0_4, %c0_5, %c0_6] : memref<2x2x16x16x128xf32, #tpu.memory_space<vmem>>, vector<1x1x14x14x128xf32>
      %5 = vector.shape_cast %4 : vector<1x1x14x14x128xf32> to vector<14x14x128xf32>
      %c0_i32_7 = arith.constant 0 : i32
      %6 = arith.addi %3, %c0_i32_7 : i32
      %c0_i32_8 = arith.constant 0 : i32
      %7 = arith.addi %6, %c0_i32_8 : i32
      %8 = arith.index_cast %7 : i32 to index
      %9 = memref.load %arg1[%8] : memref<150xf32, #tpu.memory_space<smem>>
      %10 = vector.broadcast %9 : f32 to vector<14x14x128xf32>
      %11 = arith.mulf %10, %5 : vector<14x14x128xf32>
      %c0_9 = arith.constant 0 : index
      %c1 = arith.constant 1 : index
      %c0_10 = arith.constant 0 : index
      %c0_11 = arith.constant 0 : index
      %c0_12 = arith.constant 0 : index
      %12 = vector.load %arg3[%c0_9, %c1, %c0_10, %c0_11, %c0_12] : memref<2x2x16x16x128xf32, #tpu.memory_space<vmem>>, vector<1x1x14x14x128xf32>
      %13 = vector.shape_cast %12 : vector<1x1x14x14x128xf32> to vector<14x14x128xf32>
      %c0_i32_13 = arith.constant 0 : i32
      %14 = arith.addi %3, %c0_i32_13 : i32
      %c1_i32_14 = arith.constant 1 : i32
      %15 = arith.addi %14, %c1_i32_14 : i32
      %16 = arith.index_cast %15 : i32 to index
      %17 = memref.load %arg1[%16] : memref<150xf32, #tpu.memory_space<smem>>
      %18 = vector.broadcast %17 : f32 to vector<14x14x128xf32>
      %19 = arith.mulf %18, %13 : vector<14x14x128xf32>
      %20 = arith.addf %11, %19 : vector<14x14x128xf32>
      %c0_15 = arith.constant 0 : index
      %c0_16 = arith.constant 0 : index
      %c0_17 = arith.constant 0 : index
      %c1_18 = arith.constant 1 : index
      %c0_19 = arith.constant 0 : index
      %21 = vector.load %arg3[%c0_15, %c0_16, %c0_17, %c1_18, %c0_19] : memref<2x2x16x16x128xf32, #tpu.memory_space<vmem>>, vector<1x1x14x14x128xf32>
      %22 = vector.shape_cast %21 : vector<1x1x14x14x128xf32> to vector<14x14x128xf32>
      %c0_i32_20 = arith.constant 0 : i32
      %23 = arith.addi %3, %c0_i32_20 : i32
      %c2_i32 = arith.constant 2 : i32
      %24 = arith.addi %23, %c2_i32 : i32
      %25 = arith.index_cast %24 : i32 to index
      %26 = memref.load %arg1[%25] : memref<150xf32, #tpu.memory_space<smem>>
      %27 = vector.broadcast %26 : f32 to vector<14x14x128xf32>
      %28 = arith.mulf %27, %22 : vector<14x14x128xf32>
      %29 = arith.addf %20, %28 : vector<14x14x128xf32>
      %c0_21 = arith.constant 0 : index
      %c1_22 = arith.constant 1 : index
      %c0_23 = arith.constant 0 : index
      %c1_24 = arith.constant 1 : index
      %c0_25 = arith.constant 0 : index
      %30 = vector.load %arg3[%c0_21, %c1_22, %c0_23, %c1_24, %c0_25] : memref<2x2x16x16x128xf32, #tpu.memory_space<vmem>>, vector<1x1x14x14x128xf32>
      %31 = vector.shape_cast %30 : vector<1x1x14x14x128xf32> to vector<14x14x128xf32>
      %c0_i32_26 = arith.constant 0 : i32
      %32 = arith.addi %3, %c0_i32_26 : i32
      %c3_i32 = arith.constant 3 : i32
      %33 = arith.addi %32, %c3_i32 : i32
      %34 = arith.index_cast %33 : i32 to index
      %35 = memref.load %arg1[%34] : memref<150xf32, #tpu.memory_space<smem>>
      %36 = vector.broadcast %35 : f32 to vector<14x14x128xf32>
      %37 = arith.mulf %36, %31 : vector<14x14x128xf32>
      %38 = arith.addf %29, %37 : vector<14x14x128xf32>
      %c0_27 = arith.constant 0 : index
      %c0_28 = arith.constant 0 : index
      %c0_29 = arith.constant 0 : index
      %c2 = arith.constant 2 : index
      %c0_30 = arith.constant 0 : index
      %39 = vector.load %arg3[%c0_27, %c0_28, %c0_29, %c2, %c0_30] : memref<2x2x16x16x128xf32, #tpu.memory_space<vmem>>, vector<1x1x14x14x128xf32>
      %40 = vector.shape_cast %39 : vector<1x1x14x14x128xf32> to vector<14x14x128xf32>
      %c0_i32_31 = arith.constant 0 : i32
      %41 = arith.addi %3, %c0_i32_31 : i32
      %c4_i32 = arith.constant 4 : i32
      %42 = arith.addi %41, %c4_i32 : i32
      %43 = arith.index_cast %42 : i32 to index
      %44 = memref.load %arg1[%43] : memref<150xf32, #tpu.memory_space<smem>>
      %45 = vector.broadcast %44 : f32 to vector<14x14x128xf32>
      %46 = arith.mulf %45, %40 : vector<14x14x128xf32>
      %47 = arith.addf %38, %46 : vector<14x14x128xf32>
      %c1_32 = arith.constant 1 : index
      %c0_33 = arith.constant 0 : index
      %c0_34 = arith.constant 0 : index
      %c0_35 = arith.constant 0 : index
      %c0_36 = arith.constant 0 : index
      %48 = vector.load %arg3[%c1_32, %c0_33, %c0_34, %c0_35, %c0_36] : memref<2x2x16x16x128xf32, #tpu.memory_space<vmem>>, vector<1x1x14x14x128xf32>
      %49 = vector.shape_cast %48 : vector<1x1x14x14x128xf32> to vector<14x14x128xf32>
      %c5_i32 = arith.constant 5 : i32
      %50 = arith.addi %3, %c5_i32 : i32
      %c0_i32_37 = arith.constant 0 : i32
      %51 = arith.addi %50, %c0_i32_37 : i32
      %52 = arith.index_cast %51 : i32 to index
      %53 = memref.load %arg1[%52] : memref<150xf32, #tpu.memory_space<smem>>
      %54 = vector.broadcast %53 : f32 to vector<14x14x128xf32>
      %55 = arith.mulf %54, %49 : vector<14x14x128xf32>
      %56 = arith.addf %47, %55 : vector<14x14x128xf32>
      %c1_38 = arith.constant 1 : index
      %c1_39 = arith.constant 1 : index
      %c0_40 = arith.constant 0 : index
      %c0_41 = arith.constant 0 : index
      %c0_42 = arith.constant 0 : index
      %57 = vector.load %arg3[%c1_38, %c1_39, %c0_40, %c0_41, %c0_42] : memref<2x2x16x16x128xf32, #tpu.memory_space<vmem>>, vector<1x1x14x14x128xf32>
      %58 = vector.shape_cast %57 : vector<1x1x14x14x128xf32> to vector<14x14x128xf32>
      %c5_i32_43 = arith.constant 5 : i32
      %59 = arith.addi %3, %c5_i32_43 : i32
      %c1_i32_44 = arith.constant 1 : i32
      %60 = arith.addi %59, %c1_i32_44 : i32
      %61 = arith.index_cast %60 : i32 to index
      %62 = memref.load %arg1[%61] : memref<150xf32, #tpu.memory_space<smem>>
      %63 = vector.broadcast %62 : f32 to vector<14x14x128xf32>
      %64 = arith.mulf %63, %58 : vector<14x14x128xf32>
      %65 = arith.addf %56, %64 : vector<14x14x128xf32>
      %c1_45 = arith.constant 1 : index
      %c0_46 = arith.constant 0 : index
      %c0_47 = arith.constant 0 : index
      %c1_48 = arith.constant 1 : index
      %c0_49 = arith.constant 0 : index
      %66 = vector.load %arg3[%c1_45, %c0_46, %c0_47, %c1_48, %c0_49] : memref<2x2x16x16x128xf32, #tpu.memory_space<vmem>>, vector<1x1x14x14x128xf32>
      %67 = vector.shape_cast %66 : vector<1x1x14x14x128xf32> to vector<14x14x128xf32>
      %c5_i32_50 = arith.constant 5 : i32
      %68 = arith.addi %3, %c5_i32_50 : i32
      %c2_i32_51 = arith.constant 2 : i32
      %69 = arith.addi %68, %c2_i32_51 : i32
      %70 = arith.index_cast %69 : i32 to index
      %71 = memref.load %arg1[%70] : memref<150xf32, #tpu.memory_space<smem>>
      %72 = vector.broadcast %71 : f32 to vector<14x14x128xf32>
      %73 = arith.mulf %72, %67 : vector<14x14x128xf32>
      %74 = arith.addf %65, %73 : vector<14x14x128xf32>
      %c1_52 = arith.constant 1 : index
      %c1_53 = arith.constant 1 : index
      %c0_54 = arith.constant 0 : index
      %c1_55 = arith.constant 1 : index
      %c0_56 = arith.constant 0 : index
      %75 = vector.load %arg3[%c1_52, %c1_53, %c0_54, %c1_55, %c0_56] : memref<2x2x16x16x128xf32, #tpu.memory_space<vmem>>, vector<1x1x14x14x128xf32>
      %76 = vector.shape_cast %75 : vector<1x1x14x14x128xf32> to vector<14x14x128xf32>
      %c5_i32_57 = arith.constant 5 : i32
      %77 = arith.addi %3, %c5_i32_57 : i32
      %c3_i32_58 = arith.constant 3 : i32
      %78 = arith.addi %77, %c3_i32_58 : i32
      %79 = arith.index_cast %78 : i32 to index
      %80 = memref.load %arg1[%79] : memref<150xf32, #tpu.memory_space<smem>>
      %81 = vector.broadcast %80 : f32 to vector<14x14x128xf32>
      %82 = arith.mulf %81, %76 : vector<14x14x128xf32>
      %83 = arith.addf %74, %82 : vector<14x14x128xf32>
      %c1_59 = arith.constant 1 : index
      %c0_60 = arith.constant 0 : index
      %c0_61 = arith.constant 0 : index
      %c2_62 = arith.constant 2 : index
      %c0_63 = arith.constant 0 : index
      %84 = vector.load %arg3[%c1_59, %c0_60, %c0_61, %c2_62, %c0_63] : memref<2x2x16x16x128xf32, #tpu.memory_space<vmem>>, vector<1x1x14x14x128xf32>
      %85 = vector.shape_cast %84 : vector<1x1x14x14x128xf32> to vector<14x14x128xf32>
      %c5_i32_64 = arith.constant 5 : i32
      %86 = arith.addi %3, %c5_i32_64 : i32
      %c4_i32_65 = arith.constant 4 : i32
      %87 = arith.addi %86, %c4_i32_65 : i32
      %88 = arith.index_cast %87 : i32 to index
      %89 = memref.load %arg1[%88] : memref<150xf32, #tpu.memory_space<smem>>
      %90 = vector.broadcast %89 : f32 to vector<14x14x128xf32>
      %91 = arith.mulf %90, %85 : vector<14x14x128xf32>
      %92 = arith.addf %83, %91 : vector<14x14x128xf32>
      %c0_66 = arith.constant 0 : index
      %c0_67 = arith.constant 0 : index
      %c1_68 = arith.constant 1 : index
      %c0_69 = arith.constant 0 : index
      %c0_70 = arith.constant 0 : index
      %93 = vector.load %arg3[%c0_66, %c0_67, %c1_68, %c0_69, %c0_70] : memref<2x2x16x16x128xf32, #tpu.memory_space<vmem>>, vector<1x1x14x14x128xf32>
      %94 = vector.shape_cast %93 : vector<1x1x14x14x128xf32> to vector<14x14x128xf32>
      %c10_i32 = arith.constant 10 : i32
      %95 = arith.addi %3, %c10_i32 : i32
      %c0_i32_71 = arith.constant 0 : i32
      %96 = arith.addi %95, %c0_i32_71 : i32
      %97 = arith.index_cast %96 : i32 to index
      %98 = memref.load %arg1[%97] : memref<150xf32, #tpu.memory_space<smem>>
      %99 = vector.broadcast %98 : f32 to vector<14x14x128xf32>
      %100 = arith.mulf %99, %94 : vector<14x14x128xf32>
      %101 = arith.addf %92, %100 : vector<14x14x128xf32>
      %c0_72 = arith.constant 0 : index
      %c1_73 = arith.constant 1 : index
      %c1_74 = arith.constant 1 : index
      %c0_75 = arith.constant 0 : index
      %c0_76 = arith.constant 0 : index
      %102 = vector.load %arg3[%c0_72, %c1_73, %c1_74, %c0_75, %c0_76] : memref<2x2x16x16x128xf32, #tpu.memory_space<vmem>>, vector<1x1x14x14x128xf32>
      %103 = vector.shape_cast %102 : vector<1x1x14x14x128xf32> to vector<14x14x128xf32>
      %c10_i32_77 = arith.constant 10 : i32
      %104 = arith.addi %3, %c10_i32_77 : i32
      %c1_i32_78 = arith.constant 1 : i32
      %105 = arith.addi %104, %c1_i32_78 : i32
      %106 = arith.index_cast %105 : i32 to index
      %107 = memref.load %arg1[%106] : memref<150xf32, #tpu.memory_space<smem>>
      %108 = vector.broadcast %107 : f32 to vector<14x14x128xf32>
      %109 = arith.mulf %108, %103 : vector<14x14x128xf32>
      %110 = arith.addf %101, %109 : vector<14x14x128xf32>
      %c0_79 = arith.constant 0 : index
      %c0_80 = arith.constant 0 : index
      %c1_81 = arith.constant 1 : index
      %c1_82 = arith.constant 1 : index
      %c0_83 = arith.constant 0 : index
      %111 = vector.load %arg3[%c0_79, %c0_80, %c1_81, %c1_82, %c0_83] : memref<2x2x16x16x128xf32, #tpu.memory_space<vmem>>, vector<1x1x14x14x128xf32>
      %112 = vector.shape_cast %111 : vector<1x1x14x14x128xf32> to vector<14x14x128xf32>
      %c10_i32_84 = arith.constant 10 : i32
      %113 = arith.addi %3, %c10_i32_84 : i32
      %c2_i32_85 = arith.constant 2 : i32
      %114 = arith.addi %113, %c2_i32_85 : i32
      %115 = arith.index_cast %114 : i32 to index
      %116 = memref.load %arg1[%115] : memref<150xf32, #tpu.memory_space<smem>>
      %117 = vector.broadcast %116 : f32 to vector<14x14x128xf32>
      %118 = arith.mulf %117, %112 : vector<14x14x128xf32>
      %119 = arith.addf %110, %118 : vector<14x14x128xf32>
      %c0_86 = arith.constant 0 : index
      %c1_87 = arith.constant 1 : index
      %c1_88 = arith.constant 1 : index
      %c1_89 = arith.constant 1 : index
      %c0_90 = arith.constant 0 : index
      %120 = vector.load %arg3[%c0_86, %c1_87, %c1_88, %c1_89, %c0_90] : memref<2x2x16x16x128xf32, #tpu.memory_space<vmem>>, vector<1x1x14x14x128xf32>
      %121 = vector.shape_cast %120 : vector<1x1x14x14x128xf32> to vector<14x14x128xf32>
      %c10_i32_91 = arith.constant 10 : i32
      %122 = arith.addi %3, %c10_i32_91 : i32
      %c3_i32_92 = arith.constant 3 : i32
      %123 = arith.addi %122, %c3_i32_92 : i32
      %124 = arith.index_cast %123 : i32 to index
      %125 = memref.load %arg1[%124] : memref<150xf32, #tpu.memory_space<smem>>
      %126 = vector.broadcast %125 : f32 to vector<14x14x128xf32>
      %127 = arith.mulf %126, %121 : vector<14x14x128xf32>
      %128 = arith.addf %119, %127 : vector<14x14x128xf32>
      %c0_93 = arith.constant 0 : index
      %c0_94 = arith.constant 0 : index
      %c1_95 = arith.constant 1 : index
      %c2_96 = arith.constant 2 : index
      %c0_97 = arith.constant 0 : index
      %129 = vector.load %arg3[%c0_93, %c0_94, %c1_95, %c2_96, %c0_97] : memref<2x2x16x16x128xf32, #tpu.memory_space<vmem>>, vector<1x1x14x14x128xf32>
      %130 = vector.shape_cast %129 : vector<1x1x14x14x128xf32> to vector<14x14x128xf32>
      %c10_i32_98 = arith.constant 10 : i32
      %131 = arith.addi %3, %c10_i32_98 : i32
      %c4_i32_99 = arith.constant 4 : i32
      %132 = arith.addi %131, %c4_i32_99 : i32
      %133 = arith.index_cast %132 : i32 to index
      %134 = memref.load %arg1[%133] : memref<150xf32, #tpu.memory_space<smem>>
      %135 = vector.broadcast %134 : f32 to vector<14x14x128xf32>
      %136 = arith.mulf %135, %130 : vector<14x14x128xf32>
      %137 = arith.addf %128, %136 : vector<14x14x128xf32>
      %c1_100 = arith.constant 1 : index
      %c0_101 = arith.constant 0 : index
      %c1_102 = arith.constant 1 : index
      %c0_103 = arith.constant 0 : index
      %c0_104 = arith.constant 0 : index
      %138 = vector.load %arg3[%c1_100, %c0_101, %c1_102, %c0_103, %c0_104] : memref<2x2x16x16x128xf32, #tpu.memory_space<vmem>>, vector<1x1x14x14x128xf32>
      %139 = vector.shape_cast %138 : vector<1x1x14x14x128xf32> to vector<14x14x128xf32>
      %c15_i32 = arith.constant 15 : i32
      %140 = arith.addi %3, %c15_i32 : i32
      %c0_i32_105 = arith.constant 0 : i32
      %141 = arith.addi %140, %c0_i32_105 : i32
      %142 = arith.index_cast %141 : i32 to index
      %143 = memref.load %arg1[%142] : memref<150xf32, #tpu.memory_space<smem>>
      %144 = vector.broadcast %143 : f32 to vector<14x14x128xf32>
      %145 = arith.mulf %144, %139 : vector<14x14x128xf32>
      %146 = arith.addf %137, %145 : vector<14x14x128xf32>
      %c1_106 = arith.constant 1 : index
      %c1_107 = arith.constant 1 : index
      %c1_108 = arith.constant 1 : index
      %c0_109 = arith.constant 0 : index
      %c0_110 = arith.constant 0 : index
      %147 = vector.load %arg3[%c1_106, %c1_107, %c1_108, %c0_109, %c0_110] : memref<2x2x16x16x128xf32, #tpu.memory_space<vmem>>, vector<1x1x14x14x128xf32>
      %148 = vector.shape_cast %147 : vector<1x1x14x14x128xf32> to vector<14x14x128xf32>
      %c15_i32_111 = arith.constant 15 : i32
      %149 = arith.addi %3, %c15_i32_111 : i32
      %c1_i32_112 = arith.constant 1 : i32
      %150 = arith.addi %149, %c1_i32_112 : i32
      %151 = arith.index_cast %150 : i32 to index
      %152 = memref.load %arg1[%151] : memref<150xf32, #tpu.memory_space<smem>>
      %153 = vector.broadcast %152 : f32 to vector<14x14x128xf32>
      %154 = arith.mulf %153, %148 : vector<14x14x128xf32>
      %155 = arith.addf %146, %154 : vector<14x14x128xf32>
      %c1_113 = arith.constant 1 : index
      %c0_114 = arith.constant 0 : index
      %c1_115 = arith.constant 1 : index
      %c1_116 = arith.constant 1 : index
      %c0_117 = arith.constant 0 : index
      %156 = vector.load %arg3[%c1_113, %c0_114, %c1_115, %c1_116, %c0_117] : memref<2x2x16x16x128xf32, #tpu.memory_space<vmem>>, vector<1x1x14x14x128xf32>
      %157 = vector.shape_cast %156 : vector<1x1x14x14x128xf32> to vector<14x14x128xf32>
      %c15_i32_118 = arith.constant 15 : i32
      %158 = arith.addi %3, %c15_i32_118 : i32
      %c2_i32_119 = arith.constant 2 : i32
      %159 = arith.addi %158, %c2_i32_119 : i32
      %160 = arith.index_cast %159 : i32 to index
      %161 = memref.load %arg1[%160] : memref<150xf32, #tpu.memory_space<smem>>
      %162 = vector.broadcast %161 : f32 to vector<14x14x128xf32>
      %163 = arith.mulf %162, %157 : vector<14x14x128xf32>
      %164 = arith.addf %155, %163 : vector<14x14x128xf32>
      %c1_120 = arith.constant 1 : index
      %c1_121 = arith.constant 1 : index
      %c1_122 = arith.constant 1 : index
      %c1_123 = arith.constant 1 : index
      %c0_124 = arith.constant 0 : index
      %165 = vector.load %arg3[%c1_120, %c1_121, %c1_122, %c1_123, %c0_124] : memref<2x2x16x16x128xf32, #tpu.memory_space<vmem>>, vector<1x1x14x14x128xf32>
      %166 = vector.shape_cast %165 : vector<1x1x14x14x128xf32> to vector<14x14x128xf32>
      %c15_i32_125 = arith.constant 15 : i32
      %167 = arith.addi %3, %c15_i32_125 : i32
      %c3_i32_126 = arith.constant 3 : i32
      %168 = arith.addi %167, %c3_i32_126 : i32
      %169 = arith.index_cast %168 : i32 to index
      %170 = memref.load %arg1[%169] : memref<150xf32, #tpu.memory_space<smem>>
      %171 = vector.broadcast %170 : f32 to vector<14x14x128xf32>
      %172 = arith.mulf %171, %166 : vector<14x14x128xf32>
      %173 = arith.addf %164, %172 : vector<14x14x128xf32>
      %c1_127 = arith.constant 1 : index
      %c0_128 = arith.constant 0 : index
      %c1_129 = arith.constant 1 : index
      %c2_130 = arith.constant 2 : index
      %c0_131 = arith.constant 0 : index
      %174 = vector.load %arg3[%c1_127, %c0_128, %c1_129, %c2_130, %c0_131] : memref<2x2x16x16x128xf32, #tpu.memory_space<vmem>>, vector<1x1x14x14x128xf32>
      %175 = vector.shape_cast %174 : vector<1x1x14x14x128xf32> to vector<14x14x128xf32>
      %c15_i32_132 = arith.constant 15 : i32
      %176 = arith.addi %3, %c15_i32_132 : i32
      %c4_i32_133 = arith.constant 4 : i32
      %177 = arith.addi %176, %c4_i32_133 : i32
      %178 = arith.index_cast %177 : i32 to index
      %179 = memref.load %arg1[%178] : memref<150xf32, #tpu.memory_space<smem>>
      %180 = vector.broadcast %179 : f32 to vector<14x14x128xf32>
      %181 = arith.mulf %180, %175 : vector<14x14x128xf32>
      %182 = arith.addf %173, %181 : vector<14x14x128xf32>
      %c0_134 = arith.constant 0 : index
      %c0_135 = arith.constant 0 : index
      %c2_136 = arith.constant 2 : index
      %c0_137 = arith.constant 0 : index
      %c0_138 = arith.constant 0 : index
      %183 = vector.load %arg3[%c0_134, %c0_135, %c2_136, %c0_137, %c0_138] : memref<2x2x16x16x128xf32, #tpu.memory_space<vmem>>, vector<1x1x14x14x128xf32>
      %184 = vector.shape_cast %183 : vector<1x1x14x14x128xf32> to vector<14x14x128xf32>
      %c20_i32 = arith.constant 20 : i32
      %185 = arith.addi %3, %c20_i32 : i32
      %c0_i32_139 = arith.constant 0 : i32
      %186 = arith.addi %185, %c0_i32_139 : i32
      %187 = arith.index_cast %186 : i32 to index
      %188 = memref.load %arg1[%187] : memref<150xf32, #tpu.memory_space<smem>>
      %189 = vector.broadcast %188 : f32 to vector<14x14x128xf32>
      %190 = arith.mulf %189, %184 : vector<14x14x128xf32>
      %191 = arith.addf %182, %190 : vector<14x14x128xf32>
      %c0_140 = arith.constant 0 : index
      %c1_141 = arith.constant 1 : index
      %c2_142 = arith.constant 2 : index
      %c0_143 = arith.constant 0 : index
      %c0_144 = arith.constant 0 : index
      %192 = vector.load %arg3[%c0_140, %c1_141, %c2_142, %c0_143, %c0_144] : memref<2x2x16x16x128xf32, #tpu.memory_space<vmem>>, vector<1x1x14x14x128xf32>
      %193 = vector.shape_cast %192 : vector<1x1x14x14x128xf32> to vector<14x14x128xf32>
      %c20_i32_145 = arith.constant 20 : i32
      %194 = arith.addi %3, %c20_i32_145 : i32
      %c1_i32_146 = arith.constant 1 : i32
      %195 = arith.addi %194, %c1_i32_146 : i32
      %196 = arith.index_cast %195 : i32 to index
      %197 = memref.load %arg1[%196] : memref<150xf32, #tpu.memory_space<smem>>
      %198 = vector.broadcast %197 : f32 to vector<14x14x128xf32>
      %199 = arith.mulf %198, %193 : vector<14x14x128xf32>
      %200 = arith.addf %191, %199 : vector<14x14x128xf32>
      %c0_147 = arith.constant 0 : index
      %c0_148 = arith.constant 0 : index
      %c2_149 = arith.constant 2 : index
      %c1_150 = arith.constant 1 : index
      %c0_151 = arith.constant 0 : index
      %201 = vector.load %arg3[%c0_147, %c0_148, %c2_149, %c1_150, %c0_151] : memref<2x2x16x16x128xf32, #tpu.memory_space<vmem>>, vector<1x1x14x14x128xf32>
      %202 = vector.shape_cast %201 : vector<1x1x14x14x128xf32> to vector<14x14x128xf32>
      %c20_i32_152 = arith.constant 20 : i32
      %203 = arith.addi %3, %c20_i32_152 : i32
      %c2_i32_153 = arith.constant 2 : i32
      %204 = arith.addi %203, %c2_i32_153 : i32
      %205 = arith.index_cast %204 : i32 to index
      %206 = memref.load %arg1[%205] : memref<150xf32, #tpu.memory_space<smem>>
      %207 = vector.broadcast %206 : f32 to vector<14x14x128xf32>
      %208 = arith.mulf %207, %202 : vector<14x14x128xf32>
      %209 = arith.addf %200, %208 : vector<14x14x128xf32>
      %c0_154 = arith.constant 0 : index
      %c1_155 = arith.constant 1 : index
      %c2_156 = arith.constant 2 : index
      %c1_157 = arith.constant 1 : index
      %c0_158 = arith.constant 0 : index
      %210 = vector.load %arg3[%c0_154, %c1_155, %c2_156, %c1_157, %c0_158] : memref<2x2x16x16x128xf32, #tpu.memory_space<vmem>>, vector<1x1x14x14x128xf32>
      %211 = vector.shape_cast %210 : vector<1x1x14x14x128xf32> to vector<14x14x128xf32>
      %c20_i32_159 = arith.constant 20 : i32
      %212 = arith.addi %3, %c20_i32_159 : i32
      %c3_i32_160 = arith.constant 3 : i32
      %213 = arith.addi %212, %c3_i32_160 : i32
      %214 = arith.index_cast %213 : i32 to index
      %215 = memref.load %arg1[%214] : memref<150xf32, #tpu.memory_space<smem>>
      %216 = vector.broadcast %215 : f32 to vector<14x14x128xf32>
      %217 = arith.mulf %216, %211 : vector<14x14x128xf32>
      %218 = arith.addf %209, %217 : vector<14x14x128xf32>
      %c0_161 = arith.constant 0 : index
      %c0_162 = arith.constant 0 : index
      %c2_163 = arith.constant 2 : index
      %c2_164 = arith.constant 2 : index
      %c0_165 = arith.constant 0 : index
      %219 = vector.load %arg3[%c0_161, %c0_162, %c2_163, %c2_164, %c0_165] : memref<2x2x16x16x128xf32, #tpu.memory_space<vmem>>, vector<1x1x14x14x128xf32>
      %220 = vector.shape_cast %219 : vector<1x1x14x14x128xf32> to vector<14x14x128xf32>
      %c20_i32_166 = arith.constant 20 : i32
      %221 = arith.addi %3, %c20_i32_166 : i32
      %c4_i32_167 = arith.constant 4 : i32
      %222 = arith.addi %221, %c4_i32_167 : i32
      %223 = arith.index_cast %222 : i32 to index
      %224 = memref.load %arg1[%223] : memref<150xf32, #tpu.memory_space<smem>>
      %225 = vector.broadcast %224 : f32 to vector<14x14x128xf32>
      %226 = arith.mulf %225, %220 : vector<14x14x128xf32>
      %227 = arith.addf %218, %226 : vector<14x14x128xf32>
      %c0_168 = arith.constant 0 : index
      %c1_169 = arith.constant 1 : index
      %c0_170 = arith.constant 0 : index
      %c0_171 = arith.constant 0 : index
      %c0_172 = arith.constant 0 : index
      %228 = vector.load %arg3[%c0_168, %c1_169, %c0_170, %c0_171, %c0_172] : memref<2x2x16x16x128xf32, #tpu.memory_space<vmem>>, vector<1x1x14x14x128xf32>
      %229 = vector.shape_cast %228 : vector<1x1x14x14x128xf32> to vector<14x14x128xf32>
      %c0_i32_173 = arith.constant 0 : i32
      %230 = arith.addi %3, %c0_i32_173 : i32
      %c0_i32_174 = arith.constant 0 : i32
      %231 = arith.addi %230, %c0_i32_174 : i32
      %232 = arith.index_cast %231 : i32 to index
      %233 = memref.load %arg1[%232] : memref<150xf32, #tpu.memory_space<smem>>
      %234 = vector.broadcast %233 : f32 to vector<14x14x128xf32>
      %235 = arith.mulf %234, %229 : vector<14x14x128xf32>
      %c0_175 = arith.constant 0 : index
      %c0_176 = arith.constant 0 : index
      %c0_177 = arith.constant 0 : index
      %c1_178 = arith.constant 1 : index
      %c0_179 = arith.constant 0 : index
      %236 = vector.load %arg3[%c0_175, %c0_176, %c0_177, %c1_178, %c0_179] : memref<2x2x16x16x128xf32, #tpu.memory_space<vmem>>, vector<1x1x14x14x128xf32>
      %237 = vector.shape_cast %236 : vector<1x1x14x14x128xf32> to vector<14x14x128xf32>
      %c0_i32_180 = arith.constant 0 : i32
      %238 = arith.addi %3, %c0_i32_180 : i32
      %c1_i32_181 = arith.constant 1 : i32
      %239 = arith.addi %238, %c1_i32_181 : i32
      %240 = arith.index_cast %239 : i32 to index
      %241 = memref.load %arg1[%240] : memref<150xf32, #tpu.memory_space<smem>>
      %242 = vector.broadcast %241 : f32 to vector<14x14x128xf32>
      %243 = arith.mulf %242, %237 : vector<14x14x128xf32>
      %244 = arith.addf %235, %243 : vector<14x14x128xf32>
      %c0_182 = arith.constant 0 : index
      %c1_183 = arith.constant 1 : index
      %c0_184 = arith.constant 0 : index
      %c1_185 = arith.constant 1 : index
      %c0_186 = arith.constant 0 : index
      %245 = vector.load %arg3[%c0_182, %c1_183, %c0_184, %c1_185, %c0_186] : memref<2x2x16x16x128xf32, #tpu.memory_space<vmem>>, vector<1x1x14x14x128xf32>
      %246 = vector.shape_cast %245 : vector<1x1x14x14x128xf32> to vector<14x14x128xf32>
      %c0_i32_187 = arith.constant 0 : i32
      %247 = arith.addi %3, %c0_i32_187 : i32
      %c2_i32_188 = arith.constant 2 : i32
      %248 = arith.addi %247, %c2_i32_188 : i32
      %249 = arith.index_cast %248 : i32 to index
      %250 = memref.load %arg1[%249] : memref<150xf32, #tpu.memory_space<smem>>
      %251 = vector.broadcast %250 : f32 to vector<14x14x128xf32>
      %252 = arith.mulf %251, %246 : vector<14x14x128xf32>
      %253 = arith.addf %244, %252 : vector<14x14x128xf32>
      %c0_189 = arith.constant 0 : index
      %c0_190 = arith.constant 0 : index
      %c0_191 = arith.constant 0 : index
      %c2_192 = arith.constant 2 : index
      %c0_193 = arith.constant 0 : index
      %254 = vector.load %arg3[%c0_189, %c0_190, %c0_191, %c2_192, %c0_193] : memref<2x2x16x16x128xf32, #tpu.memory_space<vmem>>, vector<1x1x14x14x128xf32>
      %255 = vector.shape_cast %254 : vector<1x1x14x14x128xf32> to vector<14x14x128xf32>
      %c0_i32_194 = arith.constant 0 : i32
      %256 = arith.addi %3, %c0_i32_194 : i32
      %c3_i32_195 = arith.constant 3 : i32
      %257 = arith.addi %256, %c3_i32_195 : i32
      %258 = arith.index_cast %257 : i32 to index
      %259 = memref.load %arg1[%258] : memref<150xf32, #tpu.memory_space<smem>>
      %260 = vector.broadcast %259 : f32 to vector<14x14x128xf32>
      %261 = arith.mulf %260, %255 : vector<14x14x128xf32>
      %262 = arith.addf %253, %261 : vector<14x14x128xf32>
      %c0_196 = arith.constant 0 : index
      %c1_197 = arith.constant 1 : index
      %c0_198 = arith.constant 0 : index
      %c2_199 = arith.constant 2 : index
      %c0_200 = arith.constant 0 : index
      %263 = vector.load %arg3[%c0_196, %c1_197, %c0_198, %c2_199, %c0_200] : memref<2x2x16x16x128xf32, #tpu.memory_space<vmem>>, vector<1x1x14x14x128xf32>
      %264 = vector.shape_cast %263 : vector<1x1x14x14x128xf32> to vector<14x14x128xf32>
      %c0_i32_201 = arith.constant 0 : i32
      %265 = arith.addi %3, %c0_i32_201 : i32
      %c4_i32_202 = arith.constant 4 : i32
      %266 = arith.addi %265, %c4_i32_202 : i32
      %267 = arith.index_cast %266 : i32 to index
      %268 = memref.load %arg1[%267] : memref<150xf32, #tpu.memory_space<smem>>
      %269 = vector.broadcast %268 : f32 to vector<14x14x128xf32>
      %270 = arith.mulf %269, %264 : vector<14x14x128xf32>
      %271 = arith.addf %262, %270 : vector<14x14x128xf32>
      %c1_203 = arith.constant 1 : index
      %c1_204 = arith.constant 1 : index
      %c0_205 = arith.constant 0 : index
      %c0_206 = arith.constant 0 : index
      %c0_207 = arith.constant 0 : index
      %272 = vector.load %arg3[%c1_203, %c1_204, %c0_205, %c0_206, %c0_207] : memref<2x2x16x16x128xf32, #tpu.memory_space<vmem>>, vector<1x1x14x14x128xf32>
      %273 = vector.shape_cast %272 : vector<1x1x14x14x128xf32> to vector<14x14x128xf32>
      %c5_i32_208 = arith.constant 5 : i32
      %274 = arith.addi %3, %c5_i32_208 : i32
      %c0_i32_209 = arith.constant 0 : i32
      %275 = arith.addi %274, %c0_i32_209 : i32
      %276 = arith.index_cast %275 : i32 to index
      %277 = memref.load %arg1[%276] : memref<150xf32, #tpu.memory_space<smem>>
      %278 = vector.broadcast %277 : f32 to vector<14x14x128xf32>
      %279 = arith.mulf %278, %273 : vector<14x14x128xf32>
      %280 = arith.addf %271, %279 : vector<14x14x128xf32>
      %c1_210 = arith.constant 1 : index
      %c0_211 = arith.constant 0 : index
      %c0_212 = arith.constant 0 : index
      %c1_213 = arith.constant 1 : index
      %c0_214 = arith.constant 0 : index
      %281 = vector.load %arg3[%c1_210, %c0_211, %c0_212, %c1_213, %c0_214] : memref<2x2x16x16x128xf32, #tpu.memory_space<vmem>>, vector<1x1x14x14x128xf32>
      %282 = vector.shape_cast %281 : vector<1x1x14x14x128xf32> to vector<14x14x128xf32>
      %c5_i32_215 = arith.constant 5 : i32
      %283 = arith.addi %3, %c5_i32_215 : i32
      %c1_i32_216 = arith.constant 1 : i32
      %284 = arith.addi %283, %c1_i32_216 : i32
      %285 = arith.index_cast %284 : i32 to index
      %286 = memref.load %arg1[%285] : memref<150xf32, #tpu.memory_space<smem>>
      %287 = vector.broadcast %286 : f32 to vector<14x14x128xf32>
      %288 = arith.mulf %287, %282 : vector<14x14x128xf32>
      %289 = arith.addf %280, %288 : vector<14x14x128xf32>
      %c1_217 = arith.constant 1 : index
      %c1_218 = arith.constant 1 : index
      %c0_219 = arith.constant 0 : index
      %c1_220 = arith.constant 1 : index
      %c0_221 = arith.constant 0 : index
      %290 = vector.load %arg3[%c1_217, %c1_218, %c0_219, %c1_220, %c0_221] : memref<2x2x16x16x128xf32, #tpu.memory_space<vmem>>, vector<1x1x14x14x128xf32>
      %291 = vector.shape_cast %290 : vector<1x1x14x14x128xf32> to vector<14x14x128xf32>
      %c5_i32_222 = arith.constant 5 : i32
      %292 = arith.addi %3, %c5_i32_222 : i32
      %c2_i32_223 = arith.constant 2 : i32
      %293 = arith.addi %292, %c2_i32_223 : i32
      %294 = arith.index_cast %293 : i32 to index
      %295 = memref.load %arg1[%294] : memref<150xf32, #tpu.memory_space<smem>>
      %296 = vector.broadcast %295 : f32 to vector<14x14x128xf32>
      %297 = arith.mulf %296, %291 : vector<14x14x128xf32>
      %298 = arith.addf %289, %297 : vector<14x14x128xf32>
      %c1_224 = arith.constant 1 : index
      %c0_225 = arith.constant 0 : index
      %c0_226 = arith.constant 0 : index
      %c2_227 = arith.constant 2 : index
      %c0_228 = arith.constant 0 : index
      %299 = vector.load %arg3[%c1_224, %c0_225, %c0_226, %c2_227, %c0_228] : memref<2x2x16x16x128xf32, #tpu.memory_space<vmem>>, vector<1x1x14x14x128xf32>
      %300 = vector.shape_cast %299 : vector<1x1x14x14x128xf32> to vector<14x14x128xf32>
      %c5_i32_229 = arith.constant 5 : i32
      %301 = arith.addi %3, %c5_i32_229 : i32
      %c3_i32_230 = arith.constant 3 : i32
      %302 = arith.addi %301, %c3_i32_230 : i32
      %303 = arith.index_cast %302 : i32 to index
      %304 = memref.load %arg1[%303] : memref<150xf32, #tpu.memory_space<smem>>
      %305 = vector.broadcast %304 : f32 to vector<14x14x128xf32>
      %306 = arith.mulf %305, %300 : vector<14x14x128xf32>
      %307 = arith.addf %298, %306 : vector<14x14x128xf32>
      %c1_231 = arith.constant 1 : index
      %c1_232 = arith.constant 1 : index
      %c0_233 = arith.constant 0 : index
      %c2_234 = arith.constant 2 : index
      %c0_235 = arith.constant 0 : index
      %308 = vector.load %arg3[%c1_231, %c1_232, %c0_233, %c2_234, %c0_235] : memref<2x2x16x16x128xf32, #tpu.memory_space<vmem>>, vector<1x1x14x14x128xf32>
      %309 = vector.shape_cast %308 : vector<1x1x14x14x128xf32> to vector<14x14x128xf32>
      %c5_i32_236 = arith.constant 5 : i32
      %310 = arith.addi %3, %c5_i32_236 : i32
      %c4_i32_237 = arith.constant 4 : i32
      %311 = arith.addi %310, %c4_i32_237 : i32
      %312 = arith.index_cast %311 : i32 to index
      %313 = memref.load %arg1[%312] : memref<150xf32, #tpu.memory_space<smem>>
      %314 = vector.broadcast %313 : f32 to vector<14x14x128xf32>
      %315 = arith.mulf %314, %309 : vector<14x14x128xf32>
      %316 = arith.addf %307, %315 : vector<14x14x128xf32>
      %c0_238 = arith.constant 0 : index
      %c1_239 = arith.constant 1 : index
      %c1_240 = arith.constant 1 : index
      %c0_241 = arith.constant 0 : index
      %c0_242 = arith.constant 0 : index
      %317 = vector.load %arg3[%c0_238, %c1_239, %c1_240, %c0_241, %c0_242] : memref<2x2x16x16x128xf32, #tpu.memory_space<vmem>>, vector<1x1x14x14x128xf32>
      %318 = vector.shape_cast %317 : vector<1x1x14x14x128xf32> to vector<14x14x128xf32>
      %c10_i32_243 = arith.constant 10 : i32
      %319 = arith.addi %3, %c10_i32_243 : i32
      %c0_i32_244 = arith.constant 0 : i32
      %320 = arith.addi %319, %c0_i32_244 : i32
      %321 = arith.index_cast %320 : i32 to index
      %322 = memref.load %arg1[%321] : memref<150xf32, #tpu.memory_space<smem>>
      %323 = vector.broadcast %322 : f32 to vector<14x14x128xf32>
      %324 = arith.mulf %323, %318 : vector<14x14x128xf32>
      %325 = arith.addf %316, %324 : vector<14x14x128xf32>
      %c0_245 = arith.constant 0 : index
      %c0_246 = arith.constant 0 : index
      %c1_247 = arith.constant 1 : index
      %c1_248 = arith.constant 1 : index
      %c0_249 = arith.constant 0 : index
      %326 = vector.load %arg3[%c0_245, %c0_246, %c1_247, %c1_248, %c0_249] : memref<2x2x16x16x128xf32, #tpu.memory_space<vmem>>, vector<1x1x14x14x128xf32>
      %327 = vector.shape_cast %326 : vector<1x1x14x14x128xf32> to vector<14x14x128xf32>
      %c10_i32_250 = arith.constant 10 : i32
      %328 = arith.addi %3, %c10_i32_250 : i32
      %c1_i32_251 = arith.constant 1 : i32
      %329 = arith.addi %328, %c1_i32_251 : i32
      %330 = arith.index_cast %329 : i32 to index
      %331 = memref.load %arg1[%330] : memref<150xf32, #tpu.memory_space<smem>>
      %332 = vector.broadcast %331 : f32 to vector<14x14x128xf32>
      %333 = arith.mulf %332, %327 : vector<14x14x128xf32>
      %334 = arith.addf %325, %333 : vector<14x14x128xf32>
      %c0_252 = arith.constant 0 : index
      %c1_253 = arith.constant 1 : index
      %c1_254 = arith.constant 1 : index
      %c1_255 = arith.constant 1 : index
      %c0_256 = arith.constant 0 : index
      %335 = vector.load %arg3[%c0_252, %c1_253, %c1_254, %c1_255, %c0_256] : memref<2x2x16x16x128xf32, #tpu.memory_space<vmem>>, vector<1x1x14x14x128xf32>
      %336 = vector.shape_cast %335 : vector<1x1x14x14x128xf32> to vector<14x14x128xf32>
      %c10_i32_257 = arith.constant 10 : i32
      %337 = arith.addi %3, %c10_i32_257 : i32
      %c2_i32_258 = arith.constant 2 : i32
      %338 = arith.addi %337, %c2_i32_258 : i32
      %339 = arith.index_cast %338 : i32 to index
      %340 = memref.load %arg1[%339] : memref<150xf32, #tpu.memory_space<smem>>
      %341 = vector.broadcast %340 : f32 to vector<14x14x128xf32>
      %342 = arith.mulf %341, %336 : vector<14x14x128xf32>
      %343 = arith.addf %334, %342 : vector<14x14x128xf32>
      %c0_259 = arith.constant 0 : index
      %c0_260 = arith.constant 0 : index
      %c1_261 = arith.constant 1 : index
      %c2_262 = arith.constant 2 : index
      %c0_263 = arith.constant 0 : index
      %344 = vector.load %arg3[%c0_259, %c0_260, %c1_261, %c2_262, %c0_263] : memref<2x2x16x16x128xf32, #tpu.memory_space<vmem>>, vector<1x1x14x14x128xf32>
      %345 = vector.shape_cast %344 : vector<1x1x14x14x128xf32> to vector<14x14x128xf32>
      %c10_i32_264 = arith.constant 10 : i32
      %346 = arith.addi %3, %c10_i32_264 : i32
      %c3_i32_265 = arith.constant 3 : i32
      %347 = arith.addi %346, %c3_i32_265 : i32
      %348 = arith.index_cast %347 : i32 to index
      %349 = memref.load %arg1[%348] : memref<150xf32, #tpu.memory_space<smem>>
      %350 = vector.broadcast %349 : f32 to vector<14x14x128xf32>
      %351 = arith.mulf %350, %345 : vector<14x14x128xf32>
      %352 = arith.addf %343, %351 : vector<14x14x128xf32>
      %c0_266 = arith.constant 0 : index
      %c1_267 = arith.constant 1 : index
      %c1_268 = arith.constant 1 : index
      %c2_269 = arith.constant 2 : index
      %c0_270 = arith.constant 0 : index
      %353 = vector.load %arg3[%c0_266, %c1_267, %c1_268, %c2_269, %c0_270] : memref<2x2x16x16x128xf32, #tpu.memory_space<vmem>>, vector<1x1x14x14x128xf32>
      %354 = vector.shape_cast %353 : vector<1x1x14x14x128xf32> to vector<14x14x128xf32>
      %c10_i32_271 = arith.constant 10 : i32
      %355 = arith.addi %3, %c10_i32_271 : i32
      %c4_i32_272 = arith.constant 4 : i32
      %356 = arith.addi %355, %c4_i32_272 : i32
      %357 = arith.index_cast %356 : i32 to index
      %358 = memref.load %arg1[%357] : memref<150xf32, #tpu.memory_space<smem>>
      %359 = vector.broadcast %358 : f32 to vector<14x14x128xf32>
      %360 = arith.mulf %359, %354 : vector<14x14x128xf32>
      %361 = arith.addf %352, %360 : vector<14x14x128xf32>
      %c1_273 = arith.constant 1 : index
      %c1_274 = arith.constant 1 : index
      %c1_275 = arith.constant 1 : index
      %c0_276 = arith.constant 0 : index
      %c0_277 = arith.constant 0 : index
      %362 = vector.load %arg3[%c1_273, %c1_274, %c1_275, %c0_276, %c0_277] : memref<2x2x16x16x128xf32, #tpu.memory_space<vmem>>, vector<1x1x14x14x128xf32>
      %363 = vector.shape_cast %362 : vector<1x1x14x14x128xf32> to vector<14x14x128xf32>
      %c15_i32_278 = arith.constant 15 : i32
      %364 = arith.addi %3, %c15_i32_278 : i32
      %c0_i32_279 = arith.constant 0 : i32
      %365 = arith.addi %364, %c0_i32_279 : i32
      %366 = arith.index_cast %365 : i32 to index
      %367 = memref.load %arg1[%366] : memref<150xf32, #tpu.memory_space<smem>>
      %368 = vector.broadcast %367 : f32 to vector<14x14x128xf32>
      %369 = arith.mulf %368, %363 : vector<14x14x128xf32>
      %370 = arith.addf %361, %369 : vector<14x14x128xf32>
      %c1_280 = arith.constant 1 : index
      %c0_281 = arith.constant 0 : index
      %c1_282 = arith.constant 1 : index
      %c1_283 = arith.constant 1 : index
      %c0_284 = arith.constant 0 : index
      %371 = vector.load %arg3[%c1_280, %c0_281, %c1_282, %c1_283, %c0_284] : memref<2x2x16x16x128xf32, #tpu.memory_space<vmem>>, vector<1x1x14x14x128xf32>
      %372 = vector.shape_cast %371 : vector<1x1x14x14x128xf32> to vector<14x14x128xf32>
      %c15_i32_285 = arith.constant 15 : i32
      %373 = arith.addi %3, %c15_i32_285 : i32
      %c1_i32_286 = arith.constant 1 : i32
      %374 = arith.addi %373, %c1_i32_286 : i32
      %375 = arith.index_cast %374 : i32 to index
      %376 = memref.load %arg1[%375] : memref<150xf32, #tpu.memory_space<smem>>
      %377 = vector.broadcast %376 : f32 to vector<14x14x128xf32>
      %378 = arith.mulf %377, %372 : vector<14x14x128xf32>
      %379 = arith.addf %370, %378 : vector<14x14x128xf32>
      %c1_287 = arith.constant 1 : index
      %c1_288 = arith.constant 1 : index
      %c1_289 = arith.constant 1 : index
      %c1_290 = arith.constant 1 : index
      %c0_291 = arith.constant 0 : index
      %380 = vector.load %arg3[%c1_287, %c1_288, %c1_289, %c1_290, %c0_291] : memref<2x2x16x16x128xf32, #tpu.memory_space<vmem>>, vector<1x1x14x14x128xf32>
      %381 = vector.shape_cast %380 : vector<1x1x14x14x128xf32> to vector<14x14x128xf32>
      %c15_i32_292 = arith.constant 15 : i32
      %382 = arith.addi %3, %c15_i32_292 : i32
      %c2_i32_293 = arith.constant 2 : i32
      %383 = arith.addi %382, %c2_i32_293 : i32
      %384 = arith.index_cast %383 : i32 to index
      %385 = memref.load %arg1[%384] : memref<150xf32, #tpu.memory_space<smem>>
      %386 = vector.broadcast %385 : f32 to vector<14x14x128xf32>
      %387 = arith.mulf %386, %381 : vector<14x14x128xf32>
      %388 = arith.addf %379, %387 : vector<14x14x128xf32>
      %c1_294 = arith.constant 1 : index
      %c0_295 = arith.constant 0 : index
      %c1_296 = arith.constant 1 : index
      %c2_297 = arith.constant 2 : index
      %c0_298 = arith.constant 0 : index
      %389 = vector.load %arg3[%c1_294, %c0_295, %c1_296, %c2_297, %c0_298] : memref<2x2x16x16x128xf32, #tpu.memory_space<vmem>>, vector<1x1x14x14x128xf32>
      %390 = vector.shape_cast %389 : vector<1x1x14x14x128xf32> to vector<14x14x128xf32>
      %c15_i32_299 = arith.constant 15 : i32
      %391 = arith.addi %3, %c15_i32_299 : i32
      %c3_i32_300 = arith.constant 3 : i32
      %392 = arith.addi %391, %c3_i32_300 : i32
      %393 = arith.index_cast %392 : i32 to index
      %394 = memref.load %arg1[%393] : memref<150xf32, #tpu.memory_space<smem>>
      %395 = vector.broadcast %394 : f32 to vector<14x14x128xf32>
      %396 = arith.mulf %395, %390 : vector<14x14x128xf32>
      %397 = arith.addf %388, %396 : vector<14x14x128xf32>
      %c1_301 = arith.constant 1 : index
      %c1_302 = arith.constant 1 : index
      %c1_303 = arith.constant 1 : index
      %c2_304 = arith.constant 2 : index
      %c0_305 = arith.constant 0 : index
      %398 = vector.load %arg3[%c1_301, %c1_302, %c1_303, %c2_304, %c0_305] : memref<2x2x16x16x128xf32, #tpu.memory_space<vmem>>, vector<1x1x14x14x128xf32>
      %399 = vector.shape_cast %398 : vector<1x1x14x14x128xf32> to vector<14x14x128xf32>
      %c15_i32_306 = arith.constant 15 : i32
      %400 = arith.addi %3, %c15_i32_306 : i32
      %c4_i32_307 = arith.constant 4 : i32
      %401 = arith.addi %400, %c4_i32_307 : i32
      %402 = arith.index_cast %401 : i32 to index
      %403 = memref.load %arg1[%402] : memref<150xf32, #tpu.memory_space<smem>>
      %404 = vector.broadcast %403 : f32 to vector<14x14x128xf32>
      %405 = arith.mulf %404, %399 : vector<14x14x128xf32>
      %406 = arith.addf %397, %405 : vector<14x14x128xf32>
      %c0_308 = arith.constant 0 : index
      %c1_309 = arith.constant 1 : index
      %c2_310 = arith.constant 2 : index
      %c0_311 = arith.constant 0 : index
      %c0_312 = arith.constant 0 : index
      %407 = vector.load %arg3[%c0_308, %c1_309, %c2_310, %c0_311, %c0_312] : memref<2x2x16x16x128xf32, #tpu.memory_space<vmem>>, vector<1x1x14x14x128xf32>
      %408 = vector.shape_cast %407 : vector<1x1x14x14x128xf32> to vector<14x14x128xf32>
      %c20_i32_313 = arith.constant 20 : i32
      %409 = arith.addi %3, %c20_i32_313 : i32
      %c0_i32_314 = arith.constant 0 : i32
      %410 = arith.addi %409, %c0_i32_314 : i32
      %411 = arith.index_cast %410 : i32 to index
      %412 = memref.load %arg1[%411] : memref<150xf32, #tpu.memory_space<smem>>
      %413 = vector.broadcast %412 : f32 to vector<14x14x128xf32>
      %414 = arith.mulf %413, %408 : vector<14x14x128xf32>
      %415 = arith.addf %406, %414 : vector<14x14x128xf32>
      %c0_315 = arith.constant 0 : index
      %c0_316 = arith.constant 0 : index
      %c2_317 = arith.constant 2 : index
      %c1_318 = arith.constant 1 : index
      %c0_319 = arith.constant 0 : index
      %416 = vector.load %arg3[%c0_315, %c0_316, %c2_317, %c1_318, %c0_319] : memref<2x2x16x16x128xf32, #tpu.memory_space<vmem>>, vector<1x1x14x14x128xf32>
      %417 = vector.shape_cast %416 : vector<1x1x14x14x128xf32> to vector<14x14x128xf32>
      %c20_i32_320 = arith.constant 20 : i32
      %418 = arith.addi %3, %c20_i32_320 : i32
      %c1_i32_321 = arith.constant 1 : i32
      %419 = arith.addi %418, %c1_i32_321 : i32
      %420 = arith.index_cast %419 : i32 to index
      %421 = memref.load %arg1[%420] : memref<150xf32, #tpu.memory_space<smem>>
      %422 = vector.broadcast %421 : f32 to vector<14x14x128xf32>
      %423 = arith.mulf %422, %417 : vector<14x14x128xf32>
      %424 = arith.addf %415, %423 : vector<14x14x128xf32>
      %c0_322 = arith.constant 0 : index
      %c1_323 = arith.constant 1 : index
      %c2_324 = arith.constant 2 : index
      %c1_325 = arith.constant 1 : index
      %c0_326 = arith.constant 0 : index
      %425 = vector.load %arg3[%c0_322, %c1_323, %c2_324, %c1_325, %c0_326] : memref<2x2x16x16x128xf32, #tpu.memory_space<vmem>>, vector<1x1x14x14x128xf32>
      %426 = vector.shape_cast %425 : vector<1x1x14x14x128xf32> to vector<14x14x128xf32>
      %c20_i32_327 = arith.constant 20 : i32
      %427 = arith.addi %3, %c20_i32_327 : i32
      %c2_i32_328 = arith.constant 2 : i32
      %428 = arith.addi %427, %c2_i32_328 : i32
      %429 = arith.index_cast %428 : i32 to index
      %430 = memref.load %arg1[%429] : memref<150xf32, #tpu.memory_space<smem>>
      %431 = vector.broadcast %430 : f32 to vector<14x14x128xf32>
      %432 = arith.mulf %431, %426 : vector<14x14x128xf32>
      %433 = arith.addf %424, %432 : vector<14x14x128xf32>
      %c0_329 = arith.constant 0 : index
      %c0_330 = arith.constant 0 : index
      %c2_331 = arith.constant 2 : index
      %c2_332 = arith.constant 2 : index
      %c0_333 = arith.constant 0 : index
      %434 = vector.load %arg3[%c0_329, %c0_330, %c2_331, %c2_332, %c0_333] : memref<2x2x16x16x128xf32, #tpu.memory_space<vmem>>, vector<1x1x14x14x128xf32>
      %435 = vector.shape_cast %434 : vector<1x1x14x14x128xf32> to vector<14x14x128xf32>
      %c20_i32_334 = arith.constant 20 : i32
      %436 = arith.addi %3, %c20_i32_334 : i32
      %c3_i32_335 = arith.constant 3 : i32
      %437 = arith.addi %436, %c3_i32_335 : i32
      %438 = arith.index_cast %437 : i32 to index
      %439 = memref.load %arg1[%438] : memref<150xf32, #tpu.memory_space<smem>>
      %440 = vector.broadcast %439 : f32 to vector<14x14x128xf32>
      %441 = arith.mulf %440, %435 : vector<14x14x128xf32>
      %442 = arith.addf %433, %441 : vector<14x14x128xf32>
      %c0_336 = arith.constant 0 : index
      %c1_337 = arith.constant 1 : index
      %c2_338 = arith.constant 2 : index
      %c2_339 = arith.constant 2 : index
      %c0_340 = arith.constant 0 : index
      %443 = vector.load %arg3[%c0_336, %c1_337, %c2_338, %c2_339, %c0_340] : memref<2x2x16x16x128xf32, #tpu.memory_space<vmem>>, vector<1x1x14x14x128xf32>
      %444 = vector.shape_cast %443 : vector<1x1x14x14x128xf32> to vector<14x14x128xf32>
      %c20_i32_341 = arith.constant 20 : i32
      %445 = arith.addi %3, %c20_i32_341 : i32
      %c4_i32_342 = arith.constant 4 : i32
      %446 = arith.addi %445, %c4_i32_342 : i32
      %447 = arith.index_cast %446 : i32 to index
      %448 = memref.load %arg1[%447] : memref<150xf32, #tpu.memory_space<smem>>
      %449 = vector.broadcast %448 : f32 to vector<14x14x128xf32>
      %450 = arith.mulf %449, %444 : vector<14x14x128xf32>
      %451 = arith.addf %442, %450 : vector<14x14x128xf32>
      %452 = arith.maximumf %227, %451 : vector<14x14x128xf32>
      %c1_343 = arith.constant 1 : index
      %c0_344 = arith.constant 0 : index
      %c0_345 = arith.constant 0 : index
      %c0_346 = arith.constant 0 : index
      %c0_347 = arith.constant 0 : index
      %453 = vector.load %arg3[%c1_343, %c0_344, %c0_345, %c0_346, %c0_347] : memref<2x2x16x16x128xf32, #tpu.memory_space<vmem>>, vector<1x1x14x14x128xf32>
      %454 = vector.shape_cast %453 : vector<1x1x14x14x128xf32> to vector<14x14x128xf32>
      %c0_i32_348 = arith.constant 0 : i32
      %455 = arith.addi %3, %c0_i32_348 : i32
      %c0_i32_349 = arith.constant 0 : i32
      %456 = arith.addi %455, %c0_i32_349 : i32
      %457 = arith.index_cast %456 : i32 to index
      %458 = memref.load %arg1[%457] : memref<150xf32, #tpu.memory_space<smem>>
      %459 = vector.broadcast %458 : f32 to vector<14x14x128xf32>
      %460 = arith.mulf %459, %454 : vector<14x14x128xf32>
      %c1_350 = arith.constant 1 : index
      %c1_351 = arith.constant 1 : index
      %c0_352 = arith.constant 0 : index
      %c0_353 = arith.constant 0 : index
      %c0_354 = arith.constant 0 : index
      %461 = vector.load %arg3[%c1_350, %c1_351, %c0_352, %c0_353, %c0_354] : memref<2x2x16x16x128xf32, #tpu.memory_space<vmem>>, vector<1x1x14x14x128xf32>
      %462 = vector.shape_cast %461 : vector<1x1x14x14x128xf32> to vector<14x14x128xf32>
      %c0_i32_355 = arith.constant 0 : i32
      %463 = arith.addi %3, %c0_i32_355 : i32
      %c1_i32_356 = arith.constant 1 : i32
      %464 = arith.addi %463, %c1_i32_356 : i32
      %465 = arith.index_cast %464 : i32 to index
      %466 = memref.load %arg1[%465] : memref<150xf32, #tpu.memory_space<smem>>
      %467 = vector.broadcast %466 : f32 to vector<14x14x128xf32>
      %468 = arith.mulf %467, %462 : vector<14x14x128xf32>
      %469 = arith.addf %460, %468 : vector<14x14x128xf32>
      %c1_357 = arith.constant 1 : index
      %c0_358 = arith.constant 0 : index
      %c0_359 = arith.constant 0 : index
      %c1_360 = arith.constant 1 : index
      %c0_361 = arith.constant 0 : index
      %470 = vector.load %arg3[%c1_357, %c0_358, %c0_359, %c1_360, %c0_361] : memref<2x2x16x16x128xf32, #tpu.memory_space<vmem>>, vector<1x1x14x14x128xf32>
      %471 = vector.shape_cast %470 : vector<1x1x14x14x128xf32> to vector<14x14x128xf32>
      %c0_i32_362 = arith.constant 0 : i32
      %472 = arith.addi %3, %c0_i32_362 : i32
      %c2_i32_363 = arith.constant 2 : i32
      %473 = arith.addi %472, %c2_i32_363 : i32
      %474 = arith.index_cast %473 : i32 to index
      %475 = memref.load %arg1[%474] : memref<150xf32, #tpu.memory_space<smem>>
      %476 = vector.broadcast %475 : f32 to vector<14x14x128xf32>
      %477 = arith.mulf %476, %471 : vector<14x14x128xf32>
      %478 = arith.addf %469, %477 : vector<14x14x128xf32>
      %c1_364 = arith.constant 1 : index
      %c1_365 = arith.constant 1 : index
      %c0_366 = arith.constant 0 : index
      %c1_367 = arith.constant 1 : index
      %c0_368 = arith.constant 0 : index
      %479 = vector.load %arg3[%c1_364, %c1_365, %c0_366, %c1_367, %c0_368] : memref<2x2x16x16x128xf32, #tpu.memory_space<vmem>>, vector<1x1x14x14x128xf32>
      %480 = vector.shape_cast %479 : vector<1x1x14x14x128xf32> to vector<14x14x128xf32>
      %c0_i32_369 = arith.constant 0 : i32
      %481 = arith.addi %3, %c0_i32_369 : i32
      %c3_i32_370 = arith.constant 3 : i32
      %482 = arith.addi %481, %c3_i32_370 : i32
      %483 = arith.index_cast %482 : i32 to index
      %484 = memref.load %arg1[%483] : memref<150xf32, #tpu.memory_space<smem>>
      %485 = vector.broadcast %484 : f32 to vector<14x14x128xf32>
      %486 = arith.mulf %485, %480 : vector<14x14x128xf32>
      %487 = arith.addf %478, %486 : vector<14x14x128xf32>
      %c1_371 = arith.constant 1 : index
      %c0_372 = arith.constant 0 : index
      %c0_373 = arith.constant 0 : index
      %c2_374 = arith.constant 2 : index
      %c0_375 = arith.constant 0 : index
      %488 = vector.load %arg3[%c1_371, %c0_372, %c0_373, %c2_374, %c0_375] : memref<2x2x16x16x128xf32, #tpu.memory_space<vmem>>, vector<1x1x14x14x128xf32>
      %489 = vector.shape_cast %488 : vector<1x1x14x14x128xf32> to vector<14x14x128xf32>
      %c0_i32_376 = arith.constant 0 : i32
      %490 = arith.addi %3, %c0_i32_376 : i32
      %c4_i32_377 = arith.constant 4 : i32
      %491 = arith.addi %490, %c4_i32_377 : i32
      %492 = arith.index_cast %491 : i32 to index
      %493 = memref.load %arg1[%492] : memref<150xf32, #tpu.memory_space<smem>>
      %494 = vector.broadcast %493 : f32 to vector<14x14x128xf32>
      %495 = arith.mulf %494, %489 : vector<14x14x128xf32>
      %496 = arith.addf %487, %495 : vector<14x14x128xf32>
      %c0_378 = arith.constant 0 : index
      %c0_379 = arith.constant 0 : index
      %c1_380 = arith.constant 1 : index
      %c0_381 = arith.constant 0 : index
      %c0_382 = arith.constant 0 : index
      %497 = vector.load %arg3[%c0_378, %c0_379, %c1_380, %c0_381, %c0_382] : memref<2x2x16x16x128xf32, #tpu.memory_space<vmem>>, vector<1x1x14x14x128xf32>
      %498 = vector.shape_cast %497 : vector<1x1x14x14x128xf32> to vector<14x14x128xf32>
      %c5_i32_383 = arith.constant 5 : i32
      %499 = arith.addi %3, %c5_i32_383 : i32
      %c0_i32_384 = arith.constant 0 : i32
      %500 = arith.addi %499, %c0_i32_384 : i32
      %501 = arith.index_cast %500 : i32 to index
      %502 = memref.load %arg1[%501] : memref<150xf32, #tpu.memory_space<smem>>
      %503 = vector.broadcast %502 : f32 to vector<14x14x128xf32>
      %504 = arith.mulf %503, %498 : vector<14x14x128xf32>
      %505 = arith.addf %496, %504 : vector<14x14x128xf32>
      %c0_385 = arith.constant 0 : index
      %c1_386 = arith.constant 1 : index
      %c1_387 = arith.constant 1 : index
      %c0_388 = arith.constant 0 : index
      %c0_389 = arith.constant 0 : index
      %506 = vector.load %arg3[%c0_385, %c1_386, %c1_387, %c0_388, %c0_389] : memref<2x2x16x16x128xf32, #tpu.memory_space<vmem>>, vector<1x1x14x14x128xf32>
      %507 = vector.shape_cast %506 : vector<1x1x14x14x128xf32> to vector<14x14x128xf32>
      %c5_i32_390 = arith.constant 5 : i32
      %508 = arith.addi %3, %c5_i32_390 : i32
      %c1_i32_391 = arith.constant 1 : i32
      %509 = arith.addi %508, %c1_i32_391 : i32
      %510 = arith.index_cast %509 : i32 to index
      %511 = memref.load %arg1[%510] : memref<150xf32, #tpu.memory_space<smem>>
      %512 = vector.broadcast %511 : f32 to vector<14x14x128xf32>
      %513 = arith.mulf %512, %507 : vector<14x14x128xf32>
      %514 = arith.addf %505, %513 : vector<14x14x128xf32>
      %c0_392 = arith.constant 0 : index
      %c0_393 = arith.constant 0 : index
      %c1_394 = arith.constant 1 : index
      %c1_395 = arith.constant 1 : index
      %c0_396 = arith.constant 0 : index
      %515 = vector.load %arg3[%c0_392, %c0_393, %c1_394, %c1_395, %c0_396] : memref<2x2x16x16x128xf32, #tpu.memory_space<vmem>>, vector<1x1x14x14x128xf32>
      %516 = vector.shape_cast %515 : vector<1x1x14x14x128xf32> to vector<14x14x128xf32>
      %c5_i32_397 = arith.constant 5 : i32
      %517 = arith.addi %3, %c5_i32_397 : i32
      %c2_i32_398 = arith.constant 2 : i32
      %518 = arith.addi %517, %c2_i32_398 : i32
      %519 = arith.index_cast %518 : i32 to index
      %520 = memref.load %arg1[%519] : memref<150xf32, #tpu.memory_space<smem>>
      %521 = vector.broadcast %520 : f32 to vector<14x14x128xf32>
      %522 = arith.mulf %521, %516 : vector<14x14x128xf32>
      %523 = arith.addf %514, %522 : vector<14x14x128xf32>
      %c0_399 = arith.constant 0 : index
      %c1_400 = arith.constant 1 : index
      %c1_401 = arith.constant 1 : index
      %c1_402 = arith.constant 1 : index
      %c0_403 = arith.constant 0 : index
      %524 = vector.load %arg3[%c0_399, %c1_400, %c1_401, %c1_402, %c0_403] : memref<2x2x16x16x128xf32, #tpu.memory_space<vmem>>, vector<1x1x14x14x128xf32>
      %525 = vector.shape_cast %524 : vector<1x1x14x14x128xf32> to vector<14x14x128xf32>
      %c5_i32_404 = arith.constant 5 : i32
      %526 = arith.addi %3, %c5_i32_404 : i32
      %c3_i32_405 = arith.constant 3 : i32
      %527 = arith.addi %526, %c3_i32_405 : i32
      %528 = arith.index_cast %527 : i32 to index
      %529 = memref.load %arg1[%528] : memref<150xf32, #tpu.memory_space<smem>>
      %530 = vector.broadcast %529 : f32 to vector<14x14x128xf32>
      %531 = arith.mulf %530, %525 : vector<14x14x128xf32>
      %532 = arith.addf %523, %531 : vector<14x14x128xf32>
      %c0_406 = arith.constant 0 : index
      %c0_407 = arith.constant 0 : index
      %c1_408 = arith.constant 1 : index
      %c2_409 = arith.constant 2 : index
      %c0_410 = arith.constant 0 : index
      %533 = vector.load %arg3[%c0_406, %c0_407, %c1_408, %c2_409, %c0_410] : memref<2x2x16x16x128xf32, #tpu.memory_space<vmem>>, vector<1x1x14x14x128xf32>
      %534 = vector.shape_cast %533 : vector<1x1x14x14x128xf32> to vector<14x14x128xf32>
      %c5_i32_411 = arith.constant 5 : i32
      %535 = arith.addi %3, %c5_i32_411 : i32
      %c4_i32_412 = arith.constant 4 : i32
      %536 = arith.addi %535, %c4_i32_412 : i32
      %537 = arith.index_cast %536 : i32 to index
      %538 = memref.load %arg1[%537] : memref<150xf32, #tpu.memory_space<smem>>
      %539 = vector.broadcast %538 : f32 to vector<14x14x128xf32>
      %540 = arith.mulf %539, %534 : vector<14x14x128xf32>
      %541 = arith.addf %532, %540 : vector<14x14x128xf32>
      %c1_413 = arith.constant 1 : index
      %c0_414 = arith.constant 0 : index
      %c1_415 = arith.constant 1 : index
      %c0_416 = arith.constant 0 : index
      %c0_417 = arith.constant 0 : index
      %542 = vector.load %arg3[%c1_413, %c0_414, %c1_415, %c0_416, %c0_417] : memref<2x2x16x16x128xf32, #tpu.memory_space<vmem>>, vector<1x1x14x14x128xf32>
      %543 = vector.shape_cast %542 : vector<1x1x14x14x128xf32> to vector<14x14x128xf32>
      %c10_i32_418 = arith.constant 10 : i32
      %544 = arith.addi %3, %c10_i32_418 : i32
      %c0_i32_419 = arith.constant 0 : i32
      %545 = arith.addi %544, %c0_i32_419 : i32
      %546 = arith.index_cast %545 : i32 to index
      %547 = memref.load %arg1[%546] : memref<150xf32, #tpu.memory_space<smem>>
      %548 = vector.broadcast %547 : f32 to vector<14x14x128xf32>
      %549 = arith.mulf %548, %543 : vector<14x14x128xf32>
      %550 = arith.addf %541, %549 : vector<14x14x128xf32>
      %c1_420 = arith.constant 1 : index
      %c1_421 = arith.constant 1 : index
      %c1_422 = arith.constant 1 : index
      %c0_423 = arith.constant 0 : index
      %c0_424 = arith.constant 0 : index
      %551 = vector.load %arg3[%c1_420, %c1_421, %c1_422, %c0_423, %c0_424] : memref<2x2x16x16x128xf32, #tpu.memory_space<vmem>>, vector<1x1x14x14x128xf32>
      %552 = vector.shape_cast %551 : vector<1x1x14x14x128xf32> to vector<14x14x128xf32>
      %c10_i32_425 = arith.constant 10 : i32
      %553 = arith.addi %3, %c10_i32_425 : i32
      %c1_i32_426 = arith.constant 1 : i32
      %554 = arith.addi %553, %c1_i32_426 : i32
      %555 = arith.index_cast %554 : i32 to index
      %556 = memref.load %arg1[%555] : memref<150xf32, #tpu.memory_space<smem>>
      %557 = vector.broadcast %556 : f32 to vector<14x14x128xf32>
      %558 = arith.mulf %557, %552 : vector<14x14x128xf32>
      %559 = arith.addf %550, %558 : vector<14x14x128xf32>
      %c1_427 = arith.constant 1 : index
      %c0_428 = arith.constant 0 : index
      %c1_429 = arith.constant 1 : index
      %c1_430 = arith.constant 1 : index
      %c0_431 = arith.constant 0 : index
      %560 = vector.load %arg3[%c1_427, %c0_428, %c1_429, %c1_430, %c0_431] : memref<2x2x16x16x128xf32, #tpu.memory_space<vmem>>, vector<1x1x14x14x128xf32>
      %561 = vector.shape_cast %560 : vector<1x1x14x14x128xf32> to vector<14x14x128xf32>
      %c10_i32_432 = arith.constant 10 : i32
      %562 = arith.addi %3, %c10_i32_432 : i32
      %c2_i32_433 = arith.constant 2 : i32
      %563 = arith.addi %562, %c2_i32_433 : i32
      %564 = arith.index_cast %563 : i32 to index
      %565 = memref.load %arg1[%564] : memref<150xf32, #tpu.memory_space<smem>>
      %566 = vector.broadcast %565 : f32 to vector<14x14x128xf32>
      %567 = arith.mulf %566, %561 : vector<14x14x128xf32>
      %568 = arith.addf %559, %567 : vector<14x14x128xf32>
      %c1_434 = arith.constant 1 : index
      %c1_435 = arith.constant 1 : index
      %c1_436 = arith.constant 1 : index
      %c1_437 = arith.constant 1 : index
      %c0_438 = arith.constant 0 : index
      %569 = vector.load %arg3[%c1_434, %c1_435, %c1_436, %c1_437, %c0_438] : memref<2x2x16x16x128xf32, #tpu.memory_space<vmem>>, vector<1x1x14x14x128xf32>
      %570 = vector.shape_cast %569 : vector<1x1x14x14x128xf32> to vector<14x14x128xf32>
      %c10_i32_439 = arith.constant 10 : i32
      %571 = arith.addi %3, %c10_i32_439 : i32
      %c3_i32_440 = arith.constant 3 : i32
      %572 = arith.addi %571, %c3_i32_440 : i32
      %573 = arith.index_cast %572 : i32 to index
      %574 = memref.load %arg1[%573] : memref<150xf32, #tpu.memory_space<smem>>
      %575 = vector.broadcast %574 : f32 to vector<14x14x128xf32>
      %576 = arith.mulf %575, %570 : vector<14x14x128xf32>
      %577 = arith.addf %568, %576 : vector<14x14x128xf32>
      %c1_441 = arith.constant 1 : index
      %c0_442 = arith.constant 0 : index
      %c1_443 = arith.constant 1 : index
      %c2_444 = arith.constant 2 : index
      %c0_445 = arith.constant 0 : index
      %578 = vector.load %arg3[%c1_441, %c0_442, %c1_443, %c2_444, %c0_445] : memref<2x2x16x16x128xf32, #tpu.memory_space<vmem>>, vector<1x1x14x14x128xf32>
      %579 = vector.shape_cast %578 : vector<1x1x14x14x128xf32> to vector<14x14x128xf32>
      %c10_i32_446 = arith.constant 10 : i32
      %580 = arith.addi %3, %c10_i32_446 : i32
      %c4_i32_447 = arith.constant 4 : i32
      %581 = arith.addi %580, %c4_i32_447 : i32
      %582 = arith.index_cast %581 : i32 to index
      %583 = memref.load %arg1[%582] : memref<150xf32, #tpu.memory_space<smem>>
      %584 = vector.broadcast %583 : f32 to vector<14x14x128xf32>
      %585 = arith.mulf %584, %579 : vector<14x14x128xf32>
      %586 = arith.addf %577, %585 : vector<14x14x128xf32>
      %c0_448 = arith.constant 0 : index
      %c0_449 = arith.constant 0 : index
      %c2_450 = arith.constant 2 : index
      %c0_451 = arith.constant 0 : index
      %c0_452 = arith.constant 0 : index
      %587 = vector.load %arg3[%c0_448, %c0_449, %c2_450, %c0_451, %c0_452] : memref<2x2x16x16x128xf32, #tpu.memory_space<vmem>>, vector<1x1x14x14x128xf32>
      %588 = vector.shape_cast %587 : vector<1x1x14x14x128xf32> to vector<14x14x128xf32>
      %c15_i32_453 = arith.constant 15 : i32
      %589 = arith.addi %3, %c15_i32_453 : i32
      %c0_i32_454 = arith.constant 0 : i32
      %590 = arith.addi %589, %c0_i32_454 : i32
      %591 = arith.index_cast %590 : i32 to index
      %592 = memref.load %arg1[%591] : memref<150xf32, #tpu.memory_space<smem>>
      %593 = vector.broadcast %592 : f32 to vector<14x14x128xf32>
      %594 = arith.mulf %593, %588 : vector<14x14x128xf32>
      %595 = arith.addf %586, %594 : vector<14x14x128xf32>
      %c0_455 = arith.constant 0 : index
      %c1_456 = arith.constant 1 : index
      %c2_457 = arith.constant 2 : index
      %c0_458 = arith.constant 0 : index
      %c0_459 = arith.constant 0 : index
      %596 = vector.load %arg3[%c0_455, %c1_456, %c2_457, %c0_458, %c0_459] : memref<2x2x16x16x128xf32, #tpu.memory_space<vmem>>, vector<1x1x14x14x128xf32>
      %597 = vector.shape_cast %596 : vector<1x1x14x14x128xf32> to vector<14x14x128xf32>
      %c15_i32_460 = arith.constant 15 : i32
      %598 = arith.addi %3, %c15_i32_460 : i32
      %c1_i32_461 = arith.constant 1 : i32
      %599 = arith.addi %598, %c1_i32_461 : i32
      %600 = arith.index_cast %599 : i32 to index
      %601 = memref.load %arg1[%600] : memref<150xf32, #tpu.memory_space<smem>>
      %602 = vector.broadcast %601 : f32 to vector<14x14x128xf32>
      %603 = arith.mulf %602, %597 : vector<14x14x128xf32>
      %604 = arith.addf %595, %603 : vector<14x14x128xf32>
      %c0_462 = arith.constant 0 : index
      %c0_463 = arith.constant 0 : index
      %c2_464 = arith.constant 2 : index
      %c1_465 = arith.constant 1 : index
      %c0_466 = arith.constant 0 : index
      %605 = vector.load %arg3[%c0_462, %c0_463, %c2_464, %c1_465, %c0_466] : memref<2x2x16x16x128xf32, #tpu.memory_space<vmem>>, vector<1x1x14x14x128xf32>
      %606 = vector.shape_cast %605 : vector<1x1x14x14x128xf32> to vector<14x14x128xf32>
      %c15_i32_467 = arith.constant 15 : i32
      %607 = arith.addi %3, %c15_i32_467 : i32
      %c2_i32_468 = arith.constant 2 : i32
      %608 = arith.addi %607, %c2_i32_468 : i32
      %609 = arith.index_cast %608 : i32 to index
      %610 = memref.load %arg1[%609] : memref<150xf32, #tpu.memory_space<smem>>
      %611 = vector.broadcast %610 : f32 to vector<14x14x128xf32>
      %612 = arith.mulf %611, %606 : vector<14x14x128xf32>
      %613 = arith.addf %604, %612 : vector<14x14x128xf32>
      %c0_469 = arith.constant 0 : index
      %c1_470 = arith.constant 1 : index
      %c2_471 = arith.constant 2 : index
      %c1_472 = arith.constant 1 : index
      %c0_473 = arith.constant 0 : index
      %614 = vector.load %arg3[%c0_469, %c1_470, %c2_471, %c1_472, %c0_473] : memref<2x2x16x16x128xf32, #tpu.memory_space<vmem>>, vector<1x1x14x14x128xf32>
      %615 = vector.shape_cast %614 : vector<1x1x14x14x128xf32> to vector<14x14x128xf32>
      %c15_i32_474 = arith.constant 15 : i32
      %616 = arith.addi %3, %c15_i32_474 : i32
      %c3_i32_475 = arith.constant 3 : i32
      %617 = arith.addi %616, %c3_i32_475 : i32
      %618 = arith.index_cast %617 : i32 to index
      %619 = memref.load %arg1[%618] : memref<150xf32, #tpu.memory_space<smem>>
      %620 = vector.broadcast %619 : f32 to vector<14x14x128xf32>
      %621 = arith.mulf %620, %615 : vector<14x14x128xf32>
      %622 = arith.addf %613, %621 : vector<14x14x128xf32>
      %c0_476 = arith.constant 0 : index
      %c0_477 = arith.constant 0 : index
      %c2_478 = arith.constant 2 : index
      %c2_479 = arith.constant 2 : index
      %c0_480 = arith.constant 0 : index
      %623 = vector.load %arg3[%c0_476, %c0_477, %c2_478, %c2_479, %c0_480] : memref<2x2x16x16x128xf32, #tpu.memory_space<vmem>>, vector<1x1x14x14x128xf32>
      %624 = vector.shape_cast %623 : vector<1x1x14x14x128xf32> to vector<14x14x128xf32>
      %c15_i32_481 = arith.constant 15 : i32
      %625 = arith.addi %3, %c15_i32_481 : i32
      %c4_i32_482 = arith.constant 4 : i32
      %626 = arith.addi %625, %c4_i32_482 : i32
      %627 = arith.index_cast %626 : i32 to index
      %628 = memref.load %arg1[%627] : memref<150xf32, #tpu.memory_space<smem>>
      %629 = vector.broadcast %628 : f32 to vector<14x14x128xf32>
      %630 = arith.mulf %629, %624 : vector<14x14x128xf32>
      %631 = arith.addf %622, %630 : vector<14x14x128xf32>
      %c1_483 = arith.constant 1 : index
      %c0_484 = arith.constant 0 : index
      %c2_485 = arith.constant 2 : index
      %c0_486 = arith.constant 0 : index
      %c0_487 = arith.constant 0 : index
      %632 = vector.load %arg3[%c1_483, %c0_484, %c2_485, %c0_486, %c0_487] : memref<2x2x16x16x128xf32, #tpu.memory_space<vmem>>, vector<1x1x14x14x128xf32>
      %633 = vector.shape_cast %632 : vector<1x1x14x14x128xf32> to vector<14x14x128xf32>
      %c20_i32_488 = arith.constant 20 : i32
      %634 = arith.addi %3, %c20_i32_488 : i32
      %c0_i32_489 = arith.constant 0 : i32
      %635 = arith.addi %634, %c0_i32_489 : i32
      %636 = arith.index_cast %635 : i32 to index
      %637 = memref.load %arg1[%636] : memref<150xf32, #tpu.memory_space<smem>>
      %638 = vector.broadcast %637 : f32 to vector<14x14x128xf32>
      %639 = arith.mulf %638, %633 : vector<14x14x128xf32>
      %640 = arith.addf %631, %639 : vector<14x14x128xf32>
      %c1_490 = arith.constant 1 : index
      %c1_491 = arith.constant 1 : index
      %c2_492 = arith.constant 2 : index
      %c0_493 = arith.constant 0 : index
      %c0_494 = arith.constant 0 : index
      %641 = vector.load %arg3[%c1_490, %c1_491, %c2_492, %c0_493, %c0_494] : memref<2x2x16x16x128xf32, #tpu.memory_space<vmem>>, vector<1x1x14x14x128xf32>
      %642 = vector.shape_cast %641 : vector<1x1x14x14x128xf32> to vector<14x14x128xf32>
      %c20_i32_495 = arith.constant 20 : i32
      %643 = arith.addi %3, %c20_i32_495 : i32
      %c1_i32_496 = arith.constant 1 : i32
      %644 = arith.addi %643, %c1_i32_496 : i32
      %645 = arith.index_cast %644 : i32 to index
      %646 = memref.load %arg1[%645] : memref<150xf32, #tpu.memory_space<smem>>
      %647 = vector.broadcast %646 : f32 to vector<14x14x128xf32>
      %648 = arith.mulf %647, %642 : vector<14x14x128xf32>
      %649 = arith.addf %640, %648 : vector<14x14x128xf32>
      %c1_497 = arith.constant 1 : index
      %c0_498 = arith.constant 0 : index
      %c2_499 = arith.constant 2 : index
      %c1_500 = arith.constant 1 : index
      %c0_501 = arith.constant 0 : index
      %650 = vector.load %arg3[%c1_497, %c0_498, %c2_499, %c1_500, %c0_501] : memref<2x2x16x16x128xf32, #tpu.memory_space<vmem>>, vector<1x1x14x14x128xf32>
      %651 = vector.shape_cast %650 : vector<1x1x14x14x128xf32> to vector<14x14x128xf32>
      %c20_i32_502 = arith.constant 20 : i32
      %652 = arith.addi %3, %c20_i32_502 : i32
      %c2_i32_503 = arith.constant 2 : i32
      %653 = arith.addi %652, %c2_i32_503 : i32
      %654 = arith.index_cast %653 : i32 to index
      %655 = memref.load %arg1[%654] : memref<150xf32, #tpu.memory_space<smem>>
      %656 = vector.broadcast %655 : f32 to vector<14x14x128xf32>
      %657 = arith.mulf %656, %651 : vector<14x14x128xf32>
      %658 = arith.addf %649, %657 : vector<14x14x128xf32>
      %c1_504 = arith.constant 1 : index
      %c1_505 = arith.constant 1 : index
      %c2_506 = arith.constant 2 : index
      %c1_507 = arith.constant 1 : index
      %c0_508 = arith.constant 0 : index
      %659 = vector.load %arg3[%c1_504, %c1_505, %c2_506, %c1_507, %c0_508] : memref<2x2x16x16x128xf32, #tpu.memory_space<vmem>>, vector<1x1x14x14x128xf32>
      %660 = vector.shape_cast %659 : vector<1x1x14x14x128xf32> to vector<14x14x128xf32>
      %c20_i32_509 = arith.constant 20 : i32
      %661 = arith.addi %3, %c20_i32_509 : i32
      %c3_i32_510 = arith.constant 3 : i32
      %662 = arith.addi %661, %c3_i32_510 : i32
      %663 = arith.index_cast %662 : i32 to index
      %664 = memref.load %arg1[%663] : memref<150xf32, #tpu.memory_space<smem>>
      %665 = vector.broadcast %664 : f32 to vector<14x14x128xf32>
      %666 = arith.mulf %665, %660 : vector<14x14x128xf32>
      %667 = arith.addf %658, %666 : vector<14x14x128xf32>
      %c1_511 = arith.constant 1 : index
      %c0_512 = arith.constant 0 : index
      %c2_513 = arith.constant 2 : index
      %c2_514 = arith.constant 2 : index
      %c0_515 = arith.constant 0 : index
      %668 = vector.load %arg3[%c1_511, %c0_512, %c2_513, %c2_514, %c0_515] : memref<2x2x16x16x128xf32, #tpu.memory_space<vmem>>, vector<1x1x14x14x128xf32>
      %669 = vector.shape_cast %668 : vector<1x1x14x14x128xf32> to vector<14x14x128xf32>
      %c20_i32_516 = arith.constant 20 : i32
      %670 = arith.addi %3, %c20_i32_516 : i32
      %c4_i32_517 = arith.constant 4 : i32
      %671 = arith.addi %670, %c4_i32_517 : i32
      %672 = arith.index_cast %671 : i32 to index
      %673 = memref.load %arg1[%672] : memref<150xf32, #tpu.memory_space<smem>>
      %674 = vector.broadcast %673 : f32 to vector<14x14x128xf32>
      %675 = arith.mulf %674, %669 : vector<14x14x128xf32>
      %676 = arith.addf %667, %675 : vector<14x14x128xf32>
      %677 = arith.maximumf %452, %676 : vector<14x14x128xf32>
      %c1_518 = arith.constant 1 : index
      %c1_519 = arith.constant 1 : index
      %c0_520 = arith.constant 0 : index
      %c0_521 = arith.constant 0 : index
      %c0_522 = arith.constant 0 : index
      %678 = vector.load %arg3[%c1_518, %c1_519, %c0_520, %c0_521, %c0_522] : memref<2x2x16x16x128xf32, #tpu.memory_space<vmem>>, vector<1x1x14x14x128xf32>
      %679 = vector.shape_cast %678 : vector<1x1x14x14x128xf32> to vector<14x14x128xf32>
      %c0_i32_523 = arith.constant 0 : i32
      %680 = arith.addi %3, %c0_i32_523 : i32
      %c0_i32_524 = arith.constant 0 : i32
      %681 = arith.addi %680, %c0_i32_524 : i32
      %682 = arith.index_cast %681 : i32 to index
      %683 = memref.load %arg1[%682] : memref<150xf32, #tpu.memory_space<smem>>
      %684 = vector.broadcast %683 : f32 to vector<14x14x128xf32>
      %685 = arith.mulf %684, %679 : vector<14x14x128xf32>
      %c1_525 = arith.constant 1 : index
      %c0_526 = arith.constant 0 : index
      %c0_527 = arith.constant 0 : index
      %c1_528 = arith.constant 1 : index
      %c0_529 = arith.constant 0 : index
      %686 = vector.load %arg3[%c1_525, %c0_526, %c0_527, %c1_528, %c0_529] : memref<2x2x16x16x128xf32, #tpu.memory_space<vmem>>, vector<1x1x14x14x128xf32>
      %687 = vector.shape_cast %686 : vector<1x1x14x14x128xf32> to vector<14x14x128xf32>
      %c0_i32_530 = arith.constant 0 : i32
      %688 = arith.addi %3, %c0_i32_530 : i32
      %c1_i32_531 = arith.constant 1 : i32
      %689 = arith.addi %688, %c1_i32_531 : i32
      %690 = arith.index_cast %689 : i32 to index
      %691 = memref.load %arg1[%690] : memref<150xf32, #tpu.memory_space<smem>>
      %692 = vector.broadcast %691 : f32 to vector<14x14x128xf32>
      %693 = arith.mulf %692, %687 : vector<14x14x128xf32>
      %694 = arith.addf %685, %693 : vector<14x14x128xf32>
      %c1_532 = arith.constant 1 : index
      %c1_533 = arith.constant 1 : index
      %c0_534 = arith.constant 0 : index
      %c1_535 = arith.constant 1 : index
      %c0_536 = arith.constant 0 : index
      %695 = vector.load %arg3[%c1_532, %c1_533, %c0_534, %c1_535, %c0_536] : memref<2x2x16x16x128xf32, #tpu.memory_space<vmem>>, vector<1x1x14x14x128xf32>
      %696 = vector.shape_cast %695 : vector<1x1x14x14x128xf32> to vector<14x14x128xf32>
      %c0_i32_537 = arith.constant 0 : i32
      %697 = arith.addi %3, %c0_i32_537 : i32
      %c2_i32_538 = arith.constant 2 : i32
      %698 = arith.addi %697, %c2_i32_538 : i32
      %699 = arith.index_cast %698 : i32 to index
      %700 = memref.load %arg1[%699] : memref<150xf32, #tpu.memory_space<smem>>
      %701 = vector.broadcast %700 : f32 to vector<14x14x128xf32>
      %702 = arith.mulf %701, %696 : vector<14x14x128xf32>
      %703 = arith.addf %694, %702 : vector<14x14x128xf32>
      %c1_539 = arith.constant 1 : index
      %c0_540 = arith.constant 0 : index
      %c0_541 = arith.constant 0 : index
      %c2_542 = arith.constant 2 : index
      %c0_543 = arith.constant 0 : index
      %704 = vector.load %arg3[%c1_539, %c0_540, %c0_541, %c2_542, %c0_543] : memref<2x2x16x16x128xf32, #tpu.memory_space<vmem>>, vector<1x1x14x14x128xf32>
      %705 = vector.shape_cast %704 : vector<1x1x14x14x128xf32> to vector<14x14x128xf32>
      %c0_i32_544 = arith.constant 0 : i32
      %706 = arith.addi %3, %c0_i32_544 : i32
      %c3_i32_545 = arith.constant 3 : i32
      %707 = arith.addi %706, %c3_i32_545 : i32
      %708 = arith.index_cast %707 : i32 to index
      %709 = memref.load %arg1[%708] : memref<150xf32, #tpu.memory_space<smem>>
      %710 = vector.broadcast %709 : f32 to vector<14x14x128xf32>
      %711 = arith.mulf %710, %705 : vector<14x14x128xf32>
      %712 = arith.addf %703, %711 : vector<14x14x128xf32>
      %c1_546 = arith.constant 1 : index
      %c1_547 = arith.constant 1 : index
      %c0_548 = arith.constant 0 : index
      %c2_549 = arith.constant 2 : index
      %c0_550 = arith.constant 0 : index
      %713 = vector.load %arg3[%c1_546, %c1_547, %c0_548, %c2_549, %c0_550] : memref<2x2x16x16x128xf32, #tpu.memory_space<vmem>>, vector<1x1x14x14x128xf32>
      %714 = vector.shape_cast %713 : vector<1x1x14x14x128xf32> to vector<14x14x128xf32>
      %c0_i32_551 = arith.constant 0 : i32
      %715 = arith.addi %3, %c0_i32_551 : i32
      %c4_i32_552 = arith.constant 4 : i32
      %716 = arith.addi %715, %c4_i32_552 : i32
      %717 = arith.index_cast %716 : i32 to index
      %718 = memref.load %arg1[%717] : memref<150xf32, #tpu.memory_space<smem>>
      %719 = vector.broadcast %718 : f32 to vector<14x14x128xf32>
      %720 = arith.mulf %719, %714 : vector<14x14x128xf32>
      %721 = arith.addf %712, %720 : vector<14x14x128xf32>
      %c0_553 = arith.constant 0 : index
      %c1_554 = arith.constant 1 : index
      %c1_555 = arith.constant 1 : index
      %c0_556 = arith.constant 0 : index
      %c0_557 = arith.constant 0 : index
      %722 = vector.load %arg3[%c0_553, %c1_554, %c1_555, %c0_556, %c0_557] : memref<2x2x16x16x128xf32, #tpu.memory_space<vmem>>, vector<1x1x14x14x128xf32>
      %723 = vector.shape_cast %722 : vector<1x1x14x14x128xf32> to vector<14x14x128xf32>
      %c5_i32_558 = arith.constant 5 : i32
      %724 = arith.addi %3, %c5_i32_558 : i32
      %c0_i32_559 = arith.constant 0 : i32
      %725 = arith.addi %724, %c0_i32_559 : i32
      %726 = arith.index_cast %725 : i32 to index
      %727 = memref.load %arg1[%726] : memref<150xf32, #tpu.memory_space<smem>>
      %728 = vector.broadcast %727 : f32 to vector<14x14x128xf32>
      %729 = arith.mulf %728, %723 : vector<14x14x128xf32>
      %730 = arith.addf %721, %729 : vector<14x14x128xf32>
      %c0_560 = arith.constant 0 : index
      %c0_561 = arith.constant 0 : index
      %c1_562 = arith.constant 1 : index
      %c1_563 = arith.constant 1 : index
      %c0_564 = arith.constant 0 : index
      %731 = vector.load %arg3[%c0_560, %c0_561, %c1_562, %c1_563, %c0_564] : memref<2x2x16x16x128xf32, #tpu.memory_space<vmem>>, vector<1x1x14x14x128xf32>
      %732 = vector.shape_cast %731 : vector<1x1x14x14x128xf32> to vector<14x14x128xf32>
      %c5_i32_565 = arith.constant 5 : i32
      %733 = arith.addi %3, %c5_i32_565 : i32
      %c1_i32_566 = arith.constant 1 : i32
      %734 = arith.addi %733, %c1_i32_566 : i32
      %735 = arith.index_cast %734 : i32 to index
      %736 = memref.load %arg1[%735] : memref<150xf32, #tpu.memory_space<smem>>
      %737 = vector.broadcast %736 : f32 to vector<14x14x128xf32>
      %738 = arith.mulf %737, %732 : vector<14x14x128xf32>
      %739 = arith.addf %730, %738 : vector<14x14x128xf32>
      %c0_567 = arith.constant 0 : index
      %c1_568 = arith.constant 1 : index
      %c1_569 = arith.constant 1 : index
      %c1_570 = arith.constant 1 : index
      %c0_571 = arith.constant 0 : index
      %740 = vector.load %arg3[%c0_567, %c1_568, %c1_569, %c1_570, %c0_571] : memref<2x2x16x16x128xf32, #tpu.memory_space<vmem>>, vector<1x1x14x14x128xf32>
      %741 = vector.shape_cast %740 : vector<1x1x14x14x128xf32> to vector<14x14x128xf32>
      %c5_i32_572 = arith.constant 5 : i32
      %742 = arith.addi %3, %c5_i32_572 : i32
      %c2_i32_573 = arith.constant 2 : i32
      %743 = arith.addi %742, %c2_i32_573 : i32
      %744 = arith.index_cast %743 : i32 to index
      %745 = memref.load %arg1[%744] : memref<150xf32, #tpu.memory_space<smem>>
      %746 = vector.broadcast %745 : f32 to vector<14x14x128xf32>
      %747 = arith.mulf %746, %741 : vector<14x14x128xf32>
      %748 = arith.addf %739, %747 : vector<14x14x128xf32>
      %c0_574 = arith.constant 0 : index
      %c0_575 = arith.constant 0 : index
      %c1_576 = arith.constant 1 : index
      %c2_577 = arith.constant 2 : index
      %c0_578 = arith.constant 0 : index
      %749 = vector.load %arg3[%c0_574, %c0_575, %c1_576, %c2_577, %c0_578] : memref<2x2x16x16x128xf32, #tpu.memory_space<vmem>>, vector<1x1x14x14x128xf32>
      %750 = vector.shape_cast %749 : vector<1x1x14x14x128xf32> to vector<14x14x128xf32>
      %c5_i32_579 = arith.constant 5 : i32
      %751 = arith.addi %3, %c5_i32_579 : i32
      %c3_i32_580 = arith.constant 3 : i32
      %752 = arith.addi %751, %c3_i32_580 : i32
      %753 = arith.index_cast %752 : i32 to index
      %754 = memref.load %arg1[%753] : memref<150xf32, #tpu.memory_space<smem>>
      %755 = vector.broadcast %754 : f32 to vector<14x14x128xf32>
      %756 = arith.mulf %755, %750 : vector<14x14x128xf32>
      %757 = arith.addf %748, %756 : vector<14x14x128xf32>
      %c0_581 = arith.constant 0 : index
      %c1_582 = arith.constant 1 : index
      %c1_583 = arith.constant 1 : index
      %c2_584 = arith.constant 2 : index
      %c0_585 = arith.constant 0 : index
      %758 = vector.load %arg3[%c0_581, %c1_582, %c1_583, %c2_584, %c0_585] : memref<2x2x16x16x128xf32, #tpu.memory_space<vmem>>, vector<1x1x14x14x128xf32>
      %759 = vector.shape_cast %758 : vector<1x1x14x14x128xf32> to vector<14x14x128xf32>
      %c5_i32_586 = arith.constant 5 : i32
      %760 = arith.addi %3, %c5_i32_586 : i32
      %c4_i32_587 = arith.constant 4 : i32
      %761 = arith.addi %760, %c4_i32_587 : i32
      %762 = arith.index_cast %761 : i32 to index
      %763 = memref.load %arg1[%762] : memref<150xf32, #tpu.memory_space<smem>>
      %764 = vector.broadcast %763 : f32 to vector<14x14x128xf32>
      %765 = arith.mulf %764, %759 : vector<14x14x128xf32>
      %766 = arith.addf %757, %765 : vector<14x14x128xf32>
      %c1_588 = arith.constant 1 : index
      %c1_589 = arith.constant 1 : index
      %c1_590 = arith.constant 1 : index
      %c0_591 = arith.constant 0 : index
      %c0_592 = arith.constant 0 : index
      %767 = vector.load %arg3[%c1_588, %c1_589, %c1_590, %c0_591, %c0_592] : memref<2x2x16x16x128xf32, #tpu.memory_space<vmem>>, vector<1x1x14x14x128xf32>
      %768 = vector.shape_cast %767 : vector<1x1x14x14x128xf32> to vector<14x14x128xf32>
      %c10_i32_593 = arith.constant 10 : i32
      %769 = arith.addi %3, %c10_i32_593 : i32
      %c0_i32_594 = arith.constant 0 : i32
      %770 = arith.addi %769, %c0_i32_594 : i32
      %771 = arith.index_cast %770 : i32 to index
      %772 = memref.load %arg1[%771] : memref<150xf32, #tpu.memory_space<smem>>
      %773 = vector.broadcast %772 : f32 to vector<14x14x128xf32>
      %774 = arith.mulf %773, %768 : vector<14x14x128xf32>
      %775 = arith.addf %766, %774 : vector<14x14x128xf32>
      %c1_595 = arith.constant 1 : index
      %c0_596 = arith.constant 0 : index
      %c1_597 = arith.constant 1 : index
      %c1_598 = arith.constant 1 : index
      %c0_599 = arith.constant 0 : index
      %776 = vector.load %arg3[%c1_595, %c0_596, %c1_597, %c1_598, %c0_599] : memref<2x2x16x16x128xf32, #tpu.memory_space<vmem>>, vector<1x1x14x14x128xf32>
      %777 = vector.shape_cast %776 : vector<1x1x14x14x128xf32> to vector<14x14x128xf32>
      %c10_i32_600 = arith.constant 10 : i32
      %778 = arith.addi %3, %c10_i32_600 : i32
      %c1_i32_601 = arith.constant 1 : i32
      %779 = arith.addi %778, %c1_i32_601 : i32
      %780 = arith.index_cast %779 : i32 to index
      %781 = memref.load %arg1[%780] : memref<150xf32, #tpu.memory_space<smem>>
      %782 = vector.broadcast %781 : f32 to vector<14x14x128xf32>
      %783 = arith.mulf %782, %777 : vector<14x14x128xf32>
      %784 = arith.addf %775, %783 : vector<14x14x128xf32>
      %c1_602 = arith.constant 1 : index
      %c1_603 = arith.constant 1 : index
      %c1_604 = arith.constant 1 : index
      %c1_605 = arith.constant 1 : index
      %c0_606 = arith.constant 0 : index
      %785 = vector.load %arg3[%c1_602, %c1_603, %c1_604, %c1_605, %c0_606] : memref<2x2x16x16x128xf32, #tpu.memory_space<vmem>>, vector<1x1x14x14x128xf32>
      %786 = vector.shape_cast %785 : vector<1x1x14x14x128xf32> to vector<14x14x128xf32>
      %c10_i32_607 = arith.constant 10 : i32
      %787 = arith.addi %3, %c10_i32_607 : i32
      %c2_i32_608 = arith.constant 2 : i32
      %788 = arith.addi %787, %c2_i32_608 : i32
      %789 = arith.index_cast %788 : i32 to index
      %790 = memref.load %arg1[%789] : memref<150xf32, #tpu.memory_space<smem>>
      %791 = vector.broadcast %790 : f32 to vector<14x14x128xf32>
      %792 = arith.mulf %791, %786 : vector<14x14x128xf32>
      %793 = arith.addf %784, %792 : vector<14x14x128xf32>
      %c1_609 = arith.constant 1 : index
      %c0_610 = arith.constant 0 : index
      %c1_611 = arith.constant 1 : index
      %c2_612 = arith.constant 2 : index
      %c0_613 = arith.constant 0 : index
      %794 = vector.load %arg3[%c1_609, %c0_610, %c1_611, %c2_612, %c0_613] : memref<2x2x16x16x128xf32, #tpu.memory_space<vmem>>, vector<1x1x14x14x128xf32>
      %795 = vector.shape_cast %794 : vector<1x1x14x14x128xf32> to vector<14x14x128xf32>
      %c10_i32_614 = arith.constant 10 : i32
      %796 = arith.addi %3, %c10_i32_614 : i32
      %c3_i32_615 = arith.constant 3 : i32
      %797 = arith.addi %796, %c3_i32_615 : i32
      %798 = arith.index_cast %797 : i32 to index
      %799 = memref.load %arg1[%798] : memref<150xf32, #tpu.memory_space<smem>>
      %800 = vector.broadcast %799 : f32 to vector<14x14x128xf32>
      %801 = arith.mulf %800, %795 : vector<14x14x128xf32>
      %802 = arith.addf %793, %801 : vector<14x14x128xf32>
      %c1_616 = arith.constant 1 : index
      %c1_617 = arith.constant 1 : index
      %c1_618 = arith.constant 1 : index
      %c2_619 = arith.constant 2 : index
      %c0_620 = arith.constant 0 : index
      %803 = vector.load %arg3[%c1_616, %c1_617, %c1_618, %c2_619, %c0_620] : memref<2x2x16x16x128xf32, #tpu.memory_space<vmem>>, vector<1x1x14x14x128xf32>
      %804 = vector.shape_cast %803 : vector<1x1x14x14x128xf32> to vector<14x14x128xf32>
      %c10_i32_621 = arith.constant 10 : i32
      %805 = arith.addi %3, %c10_i32_621 : i32
      %c4_i32_622 = arith.constant 4 : i32
      %806 = arith.addi %805, %c4_i32_622 : i32
      %807 = arith.index_cast %806 : i32 to index
      %808 = memref.load %arg1[%807] : memref<150xf32, #tpu.memory_space<smem>>
      %809 = vector.broadcast %808 : f32 to vector<14x14x128xf32>
      %810 = arith.mulf %809, %804 : vector<14x14x128xf32>
      %811 = arith.addf %802, %810 : vector<14x14x128xf32>
      %c0_623 = arith.constant 0 : index
      %c1_624 = arith.constant 1 : index
      %c2_625 = arith.constant 2 : index
      %c0_626 = arith.constant 0 : index
      %c0_627 = arith.constant 0 : index
      %812 = vector.load %arg3[%c0_623, %c1_624, %c2_625, %c0_626, %c0_627] : memref<2x2x16x16x128xf32, #tpu.memory_space<vmem>>, vector<1x1x14x14x128xf32>
      %813 = vector.shape_cast %812 : vector<1x1x14x14x128xf32> to vector<14x14x128xf32>
      %c15_i32_628 = arith.constant 15 : i32
      %814 = arith.addi %3, %c15_i32_628 : i32
      %c0_i32_629 = arith.constant 0 : i32
      %815 = arith.addi %814, %c0_i32_629 : i32
      %816 = arith.index_cast %815 : i32 to index
      %817 = memref.load %arg1[%816] : memref<150xf32, #tpu.memory_space<smem>>
      %818 = vector.broadcast %817 : f32 to vector<14x14x128xf32>
      %819 = arith.mulf %818, %813 : vector<14x14x128xf32>
      %820 = arith.addf %811, %819 : vector<14x14x128xf32>
      %c0_630 = arith.constant 0 : index
      %c0_631 = arith.constant 0 : index
      %c2_632 = arith.constant 2 : index
      %c1_633 = arith.constant 1 : index
      %c0_634 = arith.constant 0 : index
      %821 = vector.load %arg3[%c0_630, %c0_631, %c2_632, %c1_633, %c0_634] : memref<2x2x16x16x128xf32, #tpu.memory_space<vmem>>, vector<1x1x14x14x128xf32>
      %822 = vector.shape_cast %821 : vector<1x1x14x14x128xf32> to vector<14x14x128xf32>
      %c15_i32_635 = arith.constant 15 : i32
      %823 = arith.addi %3, %c15_i32_635 : i32
      %c1_i32_636 = arith.constant 1 : i32
      %824 = arith.addi %823, %c1_i32_636 : i32
      %825 = arith.index_cast %824 : i32 to index
      %826 = memref.load %arg1[%825] : memref<150xf32, #tpu.memory_space<smem>>
      %827 = vector.broadcast %826 : f32 to vector<14x14x128xf32>
      %828 = arith.mulf %827, %822 : vector<14x14x128xf32>
      %829 = arith.addf %820, %828 : vector<14x14x128xf32>
      %c0_637 = arith.constant 0 : index
      %c1_638 = arith.constant 1 : index
      %c2_639 = arith.constant 2 : index
      %c1_640 = arith.constant 1 : index
      %c0_641 = arith.constant 0 : index
      %830 = vector.load %arg3[%c0_637, %c1_638, %c2_639, %c1_640, %c0_641] : memref<2x2x16x16x128xf32, #tpu.memory_space<vmem>>, vector<1x1x14x14x128xf32>
      %831 = vector.shape_cast %830 : vector<1x1x14x14x128xf32> to vector<14x14x128xf32>
      %c15_i32_642 = arith.constant 15 : i32
      %832 = arith.addi %3, %c15_i32_642 : i32
      %c2_i32_643 = arith.constant 2 : i32
      %833 = arith.addi %832, %c2_i32_643 : i32
      %834 = arith.index_cast %833 : i32 to index
      %835 = memref.load %arg1[%834] : memref<150xf32, #tpu.memory_space<smem>>
      %836 = vector.broadcast %835 : f32 to vector<14x14x128xf32>
      %837 = arith.mulf %836, %831 : vector<14x14x128xf32>
      %838 = arith.addf %829, %837 : vector<14x14x128xf32>
      %c0_644 = arith.constant 0 : index
      %c0_645 = arith.constant 0 : index
      %c2_646 = arith.constant 2 : index
      %c2_647 = arith.constant 2 : index
      %c0_648 = arith.constant 0 : index
      %839 = vector.load %arg3[%c0_644, %c0_645, %c2_646, %c2_647, %c0_648] : memref<2x2x16x16x128xf32, #tpu.memory_space<vmem>>, vector<1x1x14x14x128xf32>
      %840 = vector.shape_cast %839 : vector<1x1x14x14x128xf32> to vector<14x14x128xf32>
      %c15_i32_649 = arith.constant 15 : i32
      %841 = arith.addi %3, %c15_i32_649 : i32
      %c3_i32_650 = arith.constant 3 : i32
      %842 = arith.addi %841, %c3_i32_650 : i32
      %843 = arith.index_cast %842 : i32 to index
      %844 = memref.load %arg1[%843] : memref<150xf32, #tpu.memory_space<smem>>
      %845 = vector.broadcast %844 : f32 to vector<14x14x128xf32>
      %846 = arith.mulf %845, %840 : vector<14x14x128xf32>
      %847 = arith.addf %838, %846 : vector<14x14x128xf32>
      %c0_651 = arith.constant 0 : index
      %c1_652 = arith.constant 1 : index
      %c2_653 = arith.constant 2 : index
      %c2_654 = arith.constant 2 : index
      %c0_655 = arith.constant 0 : index
      %848 = vector.load %arg3[%c0_651, %c1_652, %c2_653, %c2_654, %c0_655] : memref<2x2x16x16x128xf32, #tpu.memory_space<vmem>>, vector<1x1x14x14x128xf32>
      %849 = vector.shape_cast %848 : vector<1x1x14x14x128xf32> to vector<14x14x128xf32>
      %c15_i32_656 = arith.constant 15 : i32
      %850 = arith.addi %3, %c15_i32_656 : i32
      %c4_i32_657 = arith.constant 4 : i32
      %851 = arith.addi %850, %c4_i32_657 : i32
      %852 = arith.index_cast %851 : i32 to index
      %853 = memref.load %arg1[%852] : memref<150xf32, #tpu.memory_space<smem>>
      %854 = vector.broadcast %853 : f32 to vector<14x14x128xf32>
      %855 = arith.mulf %854, %849 : vector<14x14x128xf32>
      %856 = arith.addf %847, %855 : vector<14x14x128xf32>
      %c1_658 = arith.constant 1 : index
      %c1_659 = arith.constant 1 : index
      %c2_660 = arith.constant 2 : index
      %c0_661 = arith.constant 0 : index
      %c0_662 = arith.constant 0 : index
      %857 = vector.load %arg3[%c1_658, %c1_659, %c2_660, %c0_661, %c0_662] : memref<2x2x16x16x128xf32, #tpu.memory_space<vmem>>, vector<1x1x14x14x128xf32>
      %858 = vector.shape_cast %857 : vector<1x1x14x14x128xf32> to vector<14x14x128xf32>
      %c20_i32_663 = arith.constant 20 : i32
      %859 = arith.addi %3, %c20_i32_663 : i32
      %c0_i32_664 = arith.constant 0 : i32
      %860 = arith.addi %859, %c0_i32_664 : i32
      %861 = arith.index_cast %860 : i32 to index
      %862 = memref.load %arg1[%861] : memref<150xf32, #tpu.memory_space<smem>>
      %863 = vector.broadcast %862 : f32 to vector<14x14x128xf32>
      %864 = arith.mulf %863, %858 : vector<14x14x128xf32>
      %865 = arith.addf %856, %864 : vector<14x14x128xf32>
      %c1_665 = arith.constant 1 : index
      %c0_666 = arith.constant 0 : index
      %c2_667 = arith.constant 2 : index
      %c1_668 = arith.constant 1 : index
      %c0_669 = arith.constant 0 : index
      %866 = vector.load %arg3[%c1_665, %c0_666, %c2_667, %c1_668, %c0_669] : memref<2x2x16x16x128xf32, #tpu.memory_space<vmem>>, vector<1x1x14x14x128xf32>
      %867 = vector.shape_cast %866 : vector<1x1x14x14x128xf32> to vector<14x14x128xf32>
      %c20_i32_670 = arith.constant 20 : i32
      %868 = arith.addi %3, %c20_i32_670 : i32
      %c1_i32_671 = arith.constant 1 : i32
      %869 = arith.addi %868, %c1_i32_671 : i32
      %870 = arith.index_cast %869 : i32 to index
      %871 = memref.load %arg1[%870] : memref<150xf32, #tpu.memory_space<smem>>
      %872 = vector.broadcast %871 : f32 to vector<14x14x128xf32>
      %873 = arith.mulf %872, %867 : vector<14x14x128xf32>
      %874 = arith.addf %865, %873 : vector<14x14x128xf32>
      %c1_672 = arith.constant 1 : index
      %c1_673 = arith.constant 1 : index
      %c2_674 = arith.constant 2 : index
      %c1_675 = arith.constant 1 : index
      %c0_676 = arith.constant 0 : index
      %875 = vector.load %arg3[%c1_672, %c1_673, %c2_674, %c1_675, %c0_676] : memref<2x2x16x16x128xf32, #tpu.memory_space<vmem>>, vector<1x1x14x14x128xf32>
      %876 = vector.shape_cast %875 : vector<1x1x14x14x128xf32> to vector<14x14x128xf32>
      %c20_i32_677 = arith.constant 20 : i32
      %877 = arith.addi %3, %c20_i32_677 : i32
      %c2_i32_678 = arith.constant 2 : i32
      %878 = arith.addi %877, %c2_i32_678 : i32
      %879 = arith.index_cast %878 : i32 to index
      %880 = memref.load %arg1[%879] : memref<150xf32, #tpu.memory_space<smem>>
      %881 = vector.broadcast %880 : f32 to vector<14x14x128xf32>
      %882 = arith.mulf %881, %876 : vector<14x14x128xf32>
      %883 = arith.addf %874, %882 : vector<14x14x128xf32>
      %c1_679 = arith.constant 1 : index
      %c0_680 = arith.constant 0 : index
      %c2_681 = arith.constant 2 : index
      %c2_682 = arith.constant 2 : index
      %c0_683 = arith.constant 0 : index
      %884 = vector.load %arg3[%c1_679, %c0_680, %c2_681, %c2_682, %c0_683] : memref<2x2x16x16x128xf32, #tpu.memory_space<vmem>>, vector<1x1x14x14x128xf32>
      %885 = vector.shape_cast %884 : vector<1x1x14x14x128xf32> to vector<14x14x128xf32>
      %c20_i32_684 = arith.constant 20 : i32
      %886 = arith.addi %3, %c20_i32_684 : i32
      %c3_i32_685 = arith.constant 3 : i32
      %887 = arith.addi %886, %c3_i32_685 : i32
      %888 = arith.index_cast %887 : i32 to index
      %889 = memref.load %arg1[%888] : memref<150xf32, #tpu.memory_space<smem>>
      %890 = vector.broadcast %889 : f32 to vector<14x14x128xf32>
      %891 = arith.mulf %890, %885 : vector<14x14x128xf32>
      %892 = arith.addf %883, %891 : vector<14x14x128xf32>
      %c1_686 = arith.constant 1 : index
      %c1_687 = arith.constant 1 : index
      %c2_688 = arith.constant 2 : index
      %c2_689 = arith.constant 2 : index
      %c0_690 = arith.constant 0 : index
      %893 = vector.load %arg3[%c1_686, %c1_687, %c2_688, %c2_689, %c0_690] : memref<2x2x16x16x128xf32, #tpu.memory_space<vmem>>, vector<1x1x14x14x128xf32>
      %894 = vector.shape_cast %893 : vector<1x1x14x14x128xf32> to vector<14x14x128xf32>
      %c20_i32_691 = arith.constant 20 : i32
      %895 = arith.addi %3, %c20_i32_691 : i32
      %c4_i32_692 = arith.constant 4 : i32
      %896 = arith.addi %895, %c4_i32_692 : i32
      %897 = arith.index_cast %896 : i32 to index
      %898 = memref.load %arg1[%897] : memref<150xf32, #tpu.memory_space<smem>>
      %899 = vector.broadcast %898 : f32 to vector<14x14x128xf32>
      %900 = arith.mulf %899, %894 : vector<14x14x128xf32>
      %901 = arith.addf %892, %900 : vector<14x14x128xf32>
      %902 = arith.maximumf %677, %901 : vector<14x14x128xf32>
      %903 = arith.index_cast %2 : i32 to index
      %904 = memref.load %arg2[%903] : memref<6xf32, #tpu.memory_space<smem>>
      %905 = vector.broadcast %904 : f32 to vector<14x14x128xf32>
      %906 = arith.addf %902, %905 : vector<14x14x128xf32>
      %cst = arith.constant 0.000000e+00 : f32
      %907 = vector.broadcast %cst : f32 to vector<14x14x128xf32>
      %908 = arith.maximumf %906, %907 : vector<14x14x128xf32>
      %909 = arith.index_cast %2 : i32 to index
      %c0_693 = arith.constant 0 : index
      %c0_694 = arith.constant 0 : index
      %c0_695 = arith.constant 0 : index
      %910 = vector.load %arg4[%909, %c0_693, %c0_694, %c0_695] : memref<6x14x14x128xf32, #tpu.memory_space<vmem>>, vector<1x14x14x128xf32>
      %911 = vector.shape_cast %910 : vector<1x14x14x128xf32> to vector<14x14x128xf32>
      %912 = vector.shape_cast %908 : vector<14x14x128xf32> to vector<1x14x14x128xf32>
      tpu.vector_store %arg4[%909, %c0_693, %c0_694, %c0_695], %912 {strides = array<i32>} : memref<6x14x14x128xf32, #tpu.memory_space<vmem>>, vector<1x14x14x128xf32>,
    }
    %c6_i32_0 = arith.constant 6 : i32
    return
  }
  func.func @transform_0(%arg0: i32) -> i32 {
    %c0_i32 = arith.constant 0 : i32
    %c0_i32_0 = arith.constant 0 : i32
    return %c0_i32 : i32
  }
  func.func @transform_1(%arg0: i32) -> i32 {
    %c0_i32 = arith.constant 0 : i32
    %c0_i32_0 = arith.constant 0 : i32
    return %c0_i32 : i32
  }
  func.func @transform_2(%arg0: i32) -> (i32, i32, i32, i32, i32) {
    %c0_i32 = arith.constant 0 : i32
    %c0_i32_0 = arith.constant 0 : i32
    %c0_i32_1 = arith.constant 0 : i32
    %c0_i32_2 = arith.constant 0 : i32
    %c0_i32_3 = arith.constant 0 : i32
    return %c0_i32, %c0_i32_0, %c0_i32_1, %c0_i32_2, %arg0 : i32, i32, i32, i32, i32
  }
  func.func @transform_3(%arg0: i32) -> (i32, i32, i32, i32) {
    %c0_i32 = arith.constant 0 : i32
    %c0_i32_0 = arith.constant 0 : i32
    %c0_i32_1 = arith.constant 0 : i32
    %c0_i32_2 = arith.constant 0 : i32
    return %c0_i32, %c0_i32_0, %c0_i32_1, %arg0 : i32, i32, i32, i32
  }
}

</mosaic_0001>

<llo_original>
// kernel: feature_extractor_forward.1
$region0: #{feature_extractor_forward.1}
  #allocation0 [shape = 'u32[]', space=smem, size = 0x4, offset = 0x4, fixed_abs, tag = 'smem constant byte address 0x4 - core index']
  #allocation1 [shape = 'u32[144,128]{1,0:T(1,128)}', space=vmem, size = 0x12000, scoped, tag = 'internal scratch']
  %s0 = inlined_call_operand.vmem [shape: f32[150], index: 0, kind: input, shape index: {}]
  %s1 = inlined_call_operand.vmem [shape: f32[6], index: 1, kind: input, shape index: {}]
  %s2 = inlined_call_operand.vmem [shape: f32[2,2,16,16,128], index: 2, kind: input, shape index: {}]
  %s3 = inlined_call_operand.vmem [shape: f32[6,14,14,128], index: 3, kind: output, shape index: {}]
  %s4 = sld [smem:[#allocation0]]
  $region37: #{feature_extractor_forward.1} parent=0
    _
  %s6 = ssub.s32 1, %s4
  %s7 = scalar_select 0, %s6, %s4
  $region1: #{feature_extractor_forward.1} parent=0
    #allocation2 [shape = 'u8[1024]{0}', space=smem, size = 0x400, scoped, tag = 'input window, operand 0, single buffered']
    #allocation3 [shape = 's32[1]{0}', space=sflag, size = 0x4, scoped, tag = 'scoped memory for feature_extractor_forward.1']
    #allocation4 [shape = 'u8[512]{0}', space=smem, size = 0x200, scoped, tag = 'input window, operand 1, single buffered']
    #allocation5 [shape = 's32[1]{0}', space=sflag, size = 0x4, scoped, tag = 'scoped memory for feature_extractor_forward.1']
    %8 = vsyncpa [#allocation3], 0
    %9 = vsyncpa [#allocation5], 0
    // Predicated region
    $region2: #{feature_extractor_forward.1} parent=1 // pred_check
      _
    $region3: #{feature_extractor_forward.1} parent=1 // pred_check_branch
      %11 = sbr.rel (0) target = $region5
    $region4: #{feature_extractor_forward.1} parent=1 // pred_region
      %s13 = ssub.s32 32, 32
      %14 = vsyncadd [#allocation3], %s13
      %s16 = sshll.u32 %s0, 4
      %s17 = int_to_ptr.vmem [resolvable:$true] %s16
      %19 = dma.vmem_to_smem %s17, 32, [#allocation2], [#allocation3]
    $region5: #{feature_extractor_forward.1} parent=1 // pred_fallthru
      _
    // Predicated region
    $region6: #{feature_extractor_forward.1} parent=1 // pred_check
      _
    $region7: #{feature_extractor_forward.1} parent=1 // pred_check_branch
      %21 = sbr.rel (0) target = $region9
    $region8: #{feature_extractor_forward.1} parent=1 // pred_region
      %s23 = ssub.s32 16, 16
      %24 = vsyncadd [#allocation5], %s23
      %s26 = sshll.u32 %s1, 4
      %s27 = int_to_ptr.vmem [resolvable:$true] %s26
      %29 = dma.vmem_to_smem %s27, 16, [#allocation4], [#allocation5]
    $region9: #{feature_extractor_forward.1} parent=1 // pred_fallthru
      _
    // Predicated region
    $region10: #{feature_extractor_forward.1} parent=1 // pred_check
      _
    $region11: #{feature_extractor_forward.1} parent=1 // pred_check_branch
      %31 = sbr.rel (0) target = $region13
    $region12: #{feature_extractor_forward.1} parent=1 // pred_region
      _
    $region13: #{feature_extractor_forward.1} parent=1 // pred_fallthru
      _
    // Predicated region
    $region14: #{feature_extractor_forward.1} parent=1 // pred_check
      _
    $region15: #{feature_extractor_forward.1} parent=1 // pred_check_branch
      %33 = sbr.rel (0) target = $region17
    $region16: #{feature_extractor_forward.1} parent=1 // pred_region
      %34 = dma.done [#allocation3], 32
    $region17: #{feature_extractor_forward.1} parent=1 // pred_fallthru
      _
    // Predicated region
    $region18: #{feature_extractor_forward.1} parent=1 // pred_check
      _
    $region19: #{feature_extractor_forward.1} parent=1 // pred_check_branch
      %36 = sbr.rel (0) target = $region21
    $region20: #{feature_extractor_forward.1} parent=1 // pred_region
      %37 = dma.done [#allocation5], 16
    $region21: #{feature_extractor_forward.1} parent=1 // pred_fallthru
      _
    %38 = sfence
    loop: start=0, step=1, limit=6
    $region22: #{feature_extractor_forward.1} parent=1 // loop_pre_header
      _
    $region23: #{feature_extractor_forward.1} parent=1 // loop_header
      %s40 = sphi 0, %s44
      %p41 = scmp.ge.s32.totalorder %s40, 6
    $region24: #{feature_extractor_forward.1} parent=1 // loop_header_branch
      %43 = sbr.rel (%p41) target = $region28
    $region25: #{feature_extractor_forward.1} parent=1 // loop_body
      %s45 = smul.u32 %s40, 25
      %v46 = vld [vmem:[%s2] sm:$0xff]
      %v47 = vld [vmem:[%s2 + $0x8] sm:$0x3f]
      %v48 = vld [vmem:[%s2 + $0x10] sm:$0xff]
      %v49 = vld [vmem:[%s2 + $0x18] sm:$0x3f]
      %v50 = vld [vmem:[%s2 + $0x20] sm:$0xff]
      %v51 = vld [vmem:[%s2 + $0x28] sm:$0x3f]
      %v52 = vld [vmem:[%s2 + $0x30] sm:$0xff]
      %v53 = vld [vmem:[%s2 + $0x38] sm:$0x3f]
      %v54 = vld [vmem:[%s2 + $0x40] sm:$0xff]
      %v55 = vld [vmem:[%s2 + $0x48] sm:$0x3f]
      %v56 = vld [vmem:[%s2 + $0x50] sm:$0xff]
      %v57 = vld [vmem:[%s2 + $0x58] sm:$0x3f]
      %v58 = vld [vmem:[%s2 + $0x60] sm:$0xff]
      %v59 = vld [vmem:[%s2 + $0x68] sm:$0x3f]
      %v60 = vld [vmem:[%s2 + $0x70] sm:$0xff]
      %v61 = vld [vmem:[%s2 + $0x78] sm:$0x3f]
      %v62 = vld [vmem:[%s2 + $0x80] sm:$0xff]
      %v63 = vld [vmem:[%s2 + $0x88] sm:$0x3f]
      %v64 = vld [vmem:[%s2 + $0x90] sm:$0xff]
      %v65 = vld [vmem:[%s2 + $0x98] sm:$0x3f]
      %v66 = vld [vmem:[%s2 + $0xa0] sm:$0xff]
      %v67 = vld [vmem:[%s2 + $0xa8] sm:$0x3f]
      %v68 = vld [vmem:[%s2 + $0xb0] sm:$0xff]
      %v69 = vld [vmem:[%s2 + $0xb8] sm:$0x3f]
      %v70 = vld [vmem:[%s2 + $0xc0] sm:$0xff]
      %v71 = vld [vmem:[%s2 + $0xc8] sm:$0x3f]
      %v72 = vld [vmem:[%s2 + $0xd0] sm:$0xff]
      %v73 = vld [vmem:[%s2 + $0xd8] sm:$0x3f]
      %s74 = sld [smem:[#allocation2 + %s45]]
      %v75 = vstv %s74
      %v76 = vmul.f32 %v75, %v46
      %v77 = vmul.f32 %v75, %v47
      %v78 = vmul.f32 %v75, %v48
      %v79 = vmul.f32 %v75, %v49
      %v80 = vmul.f32 %v75, %v50
      %v81 = vmul.f32 %v75, %v51
      %v82 = vmul.f32 %v75, %v52
      %v83 = vmul.f32 %v75, %v53
      %v84 = vmul.f32 %v75, %v54
      %v85 = vmul.f32 %v75, %v55
      %v86 = vmul.f32 %v75, %v56
      %v87 = vmul.f32 %v75, %v57
      %v88 = vmul.f32 %v75, %v58
      %v89 = vmul.f32 %v75, %v59
      %v90 = vmul.f32 %v75, %v60
      %v91 = vmul.f32 %v75, %v61
      %v92 = vmul.f32 %v75, %v62
      %v93 = vmul.f32 %v75, %v63
      %v94 = vmul.f32 %v75, %v64
      %v95 = vmul.f32 %v75, %v65
      %v96 = vmul.f32 %v75, %v66
      %v97 = vmul.f32 %v75, %v67
      %v98 = vmul.f32 %v75, %v68
      %v99 = vmul.f32 %v75, %v69
      %v100 = vmul.f32 %v75, %v70
      %v101 = vmul.f32 %v75, %v71
      %v102 = vmul.f32 %v75, %v72
      %v103 = vmul.f32 %v75, %v73
      %s104 = scalar_lea.vmem %s2, 256
      %v105 = vld [vmem:[%s104] sm:$0xff]
      %v106 = vld [vmem:[%s104 + $0x8] sm:$0x3f]
      %v107 = vld [vmem:[%s104 + $0x10] sm:$0xff]
      %v108 = vld [vmem:[%s104 + $0x18] sm:$0x3f]
      %v109 = vld [vmem:[%s104 + $0x20] sm:$0xff]
      %v110 = vld [vmem:[%s104 + $0x28] sm:$0x3f]
      %v111 = vld [vmem:[%s104 + $0x30] sm:$0xff]
      %v112 = vld [vmem:[%s104 + $0x38] sm:$0x3f]
      %v113 = vld [vmem:[%s104 + $0x40] sm:$0xff]
      %v114 = vld [vmem:[%s104 + $0x48] sm:$0x3f]
      %v115 = vld [vmem:[%s104 + $0x50] sm:$0xff]
      %v116 = vld [vmem:[%s104 + $0x58] sm:$0x3f]
      %v117 = vld [vmem:[%s104 + $0x60] sm:$0xff]
      %v118 = vld [vmem:[%s104 + $0x68] sm:$0x3f]
      %v119 = vld [vmem:[%s104 + $0x70] sm:$0xff]
      %v120 = vld [vmem:[%s104 + $0x78] sm:$0x3f]
      %v121 = vld [vmem:[%s104 + $0x80] sm:$0xff]
      %v122 = vld [vmem:[%s104 + $0x88] sm:$0x3f]
      %v123 = vld [vmem:[%s104 + $0x90] sm:$0xff]
      %v124 = vld [vmem:[%s104 + $0x98] sm:$0x3f]
      %v125 = vld [vmem:[%s104 + $0xa0] sm:$0xff]
      %v126 = vld [vmem:[%s104 + $0xa8] sm:$0x3f]
      %v127 = vld [vmem:[%s104 + $0xb0] sm:$0xff]
      %v128 = vld [vmem:[%s104 + $0xb8] sm:$0x3f]
      %v129 = vld [vmem:[%s104 + $0xc0] sm:$0xff]
      %v130 = vld [vmem:[%s104 + $0xc8] sm:$0x3f]
      %v131 = vld [vmem:[%s104 + $0xd0] sm:$0xff]
      %v132 = vld [vmem:[%s104 + $0xd8] sm:$0x3f]
      %s133 = sadd.s32 %s45, 1
      %s134 = sld [smem:[#allocation2 + %s133]]
      %v135 = vstv %s134
      %v136 = vmul.f32 %v135, %v105
      %v137 = vmul.f32 %v135, %v106
      %v138 = vmul.f32 %v135, %v107
      %v139 = vmul.f32 %v135, %v108
      %v140 = vmul.f32 %v135, %v109
      %v141 = vmul.f32 %v135, %v110
      %v142 = vmul.f32 %v135, %v111
      %v143 = vmul.f32 %v135, %v112
      %v144 = vmul.f32 %v135, %v113
      %v145 = vmul.f32 %v135, %v114
      %v146 = vmul.f32 %v135, %v115
      %v147 = vmul.f32 %v135, %v116
      %v148 = vmul.f32 %v135, %v117
      %v149 = vmul.f32 %v135, %v118
      %v150 = vmul.f32 %v135, %v119
      %v151 = vmul.f32 %v135, %v120
      %v152 = vmul.f32 %v135, %v121
      %v153 = vmul.f32 %v135, %v122
      %v154 = vmul.f32 %v135, %v123
      %v155 = vmul.f32 %v135, %v124
      %v156 = vmul.f32 %v135, %v125
      %v157 = vmul.f32 %v135, %v126
      %v158 = vmul.f32 %v135, %v127
      %v159 = vmul.f32 %v135, %v128
      %v160 = vmul.f32 %v135, %v129
      %v161 = vmul.f32 %v135, %v130
      %v162 = vmul.f32 %v135, %v131
      %v163 = vmul.f32 %v135, %v132
      %v164 = vadd.f32 %v76, %v136
      %v165 = vadd.f32 %v77, %v137
      %v166 = vadd.f32 %v78, %v138
      %v167 = vadd.f32 %v79, %v139
      %v168 = vadd.f32 %v80, %v140
      %v169 = vadd.f32 %v81, %v141
      %v170 = vadd.f32 %v82, %v142
      %v171 = vadd.f32 %v83, %v143
      %v172 = vadd.f32 %v84, %v144
      %v173 = vadd.f32 %v85, %v145
      %v174 = vadd.f32 %v86, %v146
      %v175 = vadd.f32 %v87, %v147
      %v176 = vadd.f32 %v88, %v148
      %v177 = vadd.f32 %v89, %v149
      %v178 = vadd.f32 %v90, %v150
      %v179 = vadd.f32 %v91, %v151
      %v180 = vadd.f32 %v92, %v152
      %v181 = vadd.f32 %v93, %v153
      %v182 = vadd.f32 %v94, %v154
      %v183 = vadd.f32 %v95, %v155
      %v184 = vadd.f32 %v96, %v156
      %v185 = vadd.f32 %v97, %v157
      %v186 = vadd.f32 %v98, %v158
      %v187 = vadd.f32 %v99, %v159
      %v188 = vadd.f32 %v100, %v160
      %v189 = vadd.f32 %v101, %v161
      %v190 = vadd.f32 %v102, %v162
      %v191 = vadd.f32 %v103, %v163
      %v192 = vld [vmem:[%s2 + $0x1] sm:$0xff]
      %v193 = vld [vmem:[%s2 + $0x9] sm:$0x3f]
      %v194 = vld [vmem:[%s2 + $0x11] sm:$0xff]
      %v195 = vld [vmem:[%s2 + $0x19] sm:$0x3f]
      %v196 = vld [vmem:[%s2 + $0x21] sm:$0xff]
      %v197 = vld [vmem:[%s2 + $0x29] sm:$0x3f]
      %v198 = vld [vmem:[%s2 + $0x31] sm:$0xff]
      %v199 = vld [vmem:[%s2 + $0x39] sm:$0x3f]
      %v200 = vld [vmem:[%s2 + $0x41] sm:$0xff]
      %v201 = vld [vmem:[%s2 + $0x49] sm:$0x3f]
      %v202 = vld [vmem:[%s2 + $0x51] sm:$0xff]
      %v203 = vld [vmem:[%s2 + $0x59] sm:$0x3f]
      %v204 = vld [vmem:[%s2 + $0x61] sm:$0xff]
      %v205 = vld [vmem:[%s2 + $0x69] sm:$0x3f]
      %v206 = vld [vmem:[%s2 + $0x71] sm:$0xff]
      %v207 = vld [vmem:[%s2 + $0x79] sm:$0x3f]
      %v208 = vld [vmem:[%s2 + $0x81] sm:$0xff]
      %v209 = vld [vmem:[%s2 + $0x89] sm:$0x3f]
      %v210 = vld [vmem:[%s2 + $0x91] sm:$0xff]
      %v211 = vld [vmem:[%s2 + $0x99] sm:$0x3f]
      %v212 = vld [vmem:[%s2 + $0xa1] sm:$0xff]
      %v213 = vld [vmem:[%s2 + $0xa9] sm:$0x3f]
      %v214 = vld [vmem:[%s2 + $0xb1] sm:$0xff]
      %v215 = vld [vmem:[%s2 + $0xb9] sm:$0x3f]
      %v216 = vld [vmem:[%s2 + $0xc1] sm:$0xff]
      %v217 = vld [vmem:[%s2 + $0xc9] sm:$0x3f]
      %v218 = vld [vmem:[%s2 + $0xd1] sm:$0xff]
      %v219 = vld [vmem:[%s2 + $0xd9] sm:$0x3f]
      %s220 = sadd.s32 %s45, 2
      %s221 = sld [smem:[#allocation2 + %s220]]
      %v222 = vstv %s221
      %v223 = vmul.f32 %v222, %v192
      %v224 = vmul.f32 %v222, %v193
      %v225 = vmul.f32 %v222, %v194
      %v226 = vmul.f32 %v222, %v195
      %v227 = vmul.f32 %v222, %v196
      %v228 = vmul.f32 %v222, %v197
      %v229 = vmul.f32 %v222, %v198
      %v230 = vmul.f32 %v222, %v199
      %v231 = vmul.f32 %v222, %v200
      %v232 = vmul.f32 %v222, %v201
      %v233 = vmul.f32 %v222, %v202
      %v234 = vmul.f32 %v222, %v203
      %v235 = vmul.f32 %v222, %v204
      %v236 = vmul.f32 %v222, %v205
      %v237 = vmul.f32 %v222, %v206
      %v238 = vmul.f32 %v222, %v207
      %v239 = vmul.f32 %v222, %v208
      %v240 = vmul.f32 %v222, %v209
      %v241 = vmul.f32 %v222, %v210
      %v242 = vmul.f32 %v222, %v211
      %v243 = vmul.f32 %v222, %v212
      %v244 = vmul.f32 %v222, %v213
      %v245 = vmul.f32 %v222, %v214
      %v246 = vmul.f32 %v222, %v215
      %v247 = vmul.f32 %v222, %v216
      %v248 = vmul.f32 %v222, %v217
      %v249 = vmul.f32 %v222, %v218
      %v250 = vmul.f32 %v222, %v219
      %v251 = vadd.f32 %v164, %v223
      %v252 = vadd.f32 %v165, %v224
      %v253 = vadd.f32 %v166, %v225
      %v254 = vadd.f32 %v167, %v226
      %v255 = vadd.f32 %v168, %v227
      %v256 = vadd.f32 %v169, %v228
      %v257 = vadd.f32 %v170, %v229
      %v258 = vadd.f32 %v171, %v230
      %v259 = vadd.f32 %v172, %v231
      %v260 = vadd.f32 %v173, %v232
      %v261 = vadd.f32 %v174, %v233
      %v262 = vadd.f32 %v175, %v234
      %v263 = vadd.f32 %v176, %v235
      %v264 = vadd.f32 %v177, %v236
      %v265 = vadd.f32 %v178, %v237
      %v266 = vadd.f32 %v179, %v238
      %v267 = vadd.f32 %v180, %v239
      %v268 = vadd.f32 %v181, %v240
      %v269 = vadd.f32 %v182, %v241
      %v270 = vadd.f32 %v183, %v242
      %v271 = vadd.f32 %v184, %v243
      %v272 = vadd.f32 %v185, %v244
      %v273 = vadd.f32 %v186, %v245
      %v274 = vadd.f32 %v187, %v246
      %v275 = vadd.f32 %v188, %v247
      %v276 = vadd.f32 %v189, %v248
      %v277 = vadd.f32 %v190, %v249
      %v278 = vadd.f32 %v191, %v250
      %v279 = vld [vmem:[%s104 + $0x1] sm:$0xff]
      %v280 = vld [vmem:[%s104 + $0x9] sm:$0x3f]
      %v281 = vld [vmem:[%s104 + $0x11] sm:$0xff]
      %v282 = vld [vmem:[%s104 + $0x19] sm:$0x3f]
      %v283 = vld [vmem:[%s104 + $0x21] sm:$0xff]
      %v284 = vld [vmem:[%s104 + $0x29] sm:$0x3f]
      %v285 = vld [vmem:[%s104 + $0x31] sm:$0xff]
      %v286 = vld [vmem:[%s104 + $0x39] sm:$0x3f]
      %v287 = vld [vmem:[%s104 + $0x41] sm:$0xff]
      %v288 = vld [vmem:[%s104 + $0x49] sm:$0x3f]
      %v289 = vld [vmem:[%s104 + $0x51] sm:$0xff]
      %v290 = vld [vmem:[%s104 + $0x59] sm:$0x3f]
      %v291 = vld [vmem:[%s104 + $0x61] sm:$0xff]
      %v292 = vld [vmem:[%s104 + $0x69] sm:$0x3f]
      %v293 = vld [vmem:[%s104 + $0x71] sm:$0xff]
      %v294 = vld [vmem:[%s104 + $0x79] sm:$0x3f]
      %v295 = vld [vmem:[%s104 + $0x81] sm:$0xff]
      %v296 = vld [vmem:[%s104 + $0x89] sm:$0x3f]
      %v297 = vld [vmem:[%s104 + $0x91] sm:$0xff]
      %v298 = vld [vmem:[%s104 + $0x99] sm:$0x3f]
      %v299 = vld [vmem:[%s104 + $0xa1] sm:$0xff]
      %v300 = vld [vmem:[%s104 + $0xa9] sm:$0x3f]
      %v301 = vld [vmem:[%s104 + $0xb1] sm:$0xff]
      %v302 = vld [vmem:[%s104 + $0xb9] sm:$0x3f]
      %v303 = vld [vmem:[%s104 + $0xc1] sm:$0xff]
      %v304 = vld [vmem:[%s104 + $0xc9] sm:$0x3f]
      %v305 = vld [vmem:[%s104 + $0xd1] sm:$0xff]
      %v306 = vld [vmem:[%s104 + $0xd9] sm:$0x3f]
      %s307 = sadd.s32 %s45, 3
      %s308 = sld [smem:[#allocation2 + %s307]]
      %v309 = vstv %s308
      %v310 = vmul.f32 %v309, %v279
      %v311 = vmul.f32 %v309, %v280
      %v312 = vmul.f32 %v309, %v281
      %v313 = vmul.f32 %v309, %v282
      %v314 = vmul.f32 %v309, %v283
      %v315 = vmul.f32 %v309, %v284
      %v316 = vmul.f32 %v309, %v285
      %v317 = vmul.f32 %v309, %v286
      %v318 = vmul.f32 %v309, %v287
      %v319 = vmul.f32 %v309, %v288
      %v320 = vmul.f32 %v309, %v289
      %v321 = vmul.f32 %v309, %v290
      %v322 = vmul.f32 %v309, %v291
      %v323 = vmul.f32 %v309, %v292
      %v324 = vmul.f32 %v309, %v293
      %v325 = vmul.f32 %v309, %v294
      %v326 = vmul.f32 %v309, %v295
      %v327 = vmul.f32 %v309, %v296
      %v328 = vmul.f32 %v309, %v297
      %v329 = vmul.f32 %v309, %v298
      %v330 = vmul.f32 %v309, %v299
      %v331 = vmul.f32 %v309, %v300
      %v332 = vmul.f32 %v309, %v301
      %v333 = vmul.f32 %v309, %v302
      %v334 = vmul.f32 %v309, %v303
      %v335 = vmul.f32 %v309, %v304
      %v336 = vmul.f32 %v309, %v305
      %v337 = vmul.f32 %v309, %v306
      %v338 = vadd.f32 %v251, %v310
      %v339 = vadd.f32 %v252, %v311
      %v340 = vadd.f32 %v253, %v312
      %v341 = vadd.f32 %v254, %v313
      %v342 = vadd.f32 %v255, %v314
      %v343 = vadd.f32 %v256, %v315
      %v344 = vadd.f32 %v257, %v316
      %v345 = vadd.f32 %v258, %v317
      %v346 = vadd.f32 %v259, %v318
      %v347 = vadd.f32 %v260, %v319
      %v348 = vadd.f32 %v261, %v320
      %v349 = vadd.f32 %v262, %v321
      %v350 = vadd.f32 %v263, %v322
      %v351 = vadd.f32 %v264, %v323
      %v352 = vadd.f32 %v265, %v324
      %v353 = vadd.f32 %v266, %v325
      %v354 = vadd.f32 %v267, %v326
      %v355 = vadd.f32 %v268, %v327
      %v356 = vadd.f32 %v269, %v328
      %v357 = vadd.f32 %v270, %v329
      %v358 = vadd.f32 %v271, %v330
      %v359 = vadd.f32 %v272, %v331
      %v360 = vadd.f32 %v273, %v332
      %v361 = vadd.f32 %v274, %v333
      %v362 = vadd.f32 %v275, %v334
      %v363 = vadd.f32 %v276, %v335
      %v364 = vadd.f32 %v277, %v336
      %v365 = vadd.f32 %v278, %v337
      %v366 = vld [vmem:[%s2 + $0x2] sm:$0xff]
      %v367 = vld [vmem:[%s2 + $0xa] sm:$0x3f]
      %v368 = vld [vmem:[%s2 + $0x12] sm:$0xff]
      %v369 = vld [vmem:[%s2 + $0x1a] sm:$0x3f]
      %v370 = vld [vmem:[%s2 + $0x22] sm:$0xff]
      %v371 = vld [vmem:[%s2 + $0x2a] sm:$0x3f]
      %v372 = vld [vmem:[%s2 + $0x32] sm:$0xff]
      %v373 = vld [vmem:[%s2 + $0x3a] sm:$0x3f]
      %v374 = vld [vmem:[%s2 + $0x42] sm:$0xff]
      %v375 = vld [vmem:[%s2 + $0x4a] sm:$0x3f]
      %v376 = vld [vmem:[%s2 + $0x52] sm:$0xff]
      %v377 = vld [vmem:[%s2 + $0x5a] sm:$0x3f]
      %v378 = vld [vmem:[%s2 + $0x62] sm:$0xff]
      %v379 = vld [vmem:[%s2 + $0x6a] sm:$0x3f]
      %v380 = vld [vmem:[%s2 + $0x72] sm:$0xff]
      %v381 = vld [vmem:[%s2 + $0x7a] sm:$0x3f]
      %v382 = vld [vmem:[%s2 + $0x82] sm:$0xff]
      %v383 = vld [vmem:[%s2 + $0x8a] sm:$0x3f]
      %v384 = vld [vmem:[%s2 + $0x92] sm:$0xff]
      %v385 = vld [vmem:[%s2 + $0x9a] sm:$0x3f]
      %v386 = vld [vmem:[%s2 + $0xa2] sm:$0xff]
      %v387 = vld [vmem:[%s2 + $0xaa] sm:$0x3f]
      %v388 = vld [vmem:[%s2 + $0xb2] sm:$0xff]
      %v389 = vld [vmem:[%s2 + $0xba] sm:$0x3f]
      %v390 = vld [vmem:[%s2 + $0xc2] sm:$0xff]
      %v391 = vld [vmem:[%s2 + $0xca] sm:$0x3f]
      %v392 = vld [vmem:[%s2 + $0xd2] sm:$0xff]
      %v393 = vld [vmem:[%s2 + $0xda] sm:$0x3f]
      %s394 = sadd.s32 %s45, 4
      %s395 = sld [smem:[#allocation2 + %s394]]
      %v396 = vstv %s395
      %v397 = vmul.f32 %v396, %v366
      %v398 = vmul.f32 %v396, %v367
      %v399 = vmul.f32 %v396, %v368
      %v400 = vmul.f32 %v396, %v369
      %v401 = vmul.f32 %v396, %v370
      %v402 = vmul.f32 %v396, %v371
      %v403 = vmul.f32 %v396, %v372
      %v404 = vmul.f32 %v396, %v373
      %v405 = vmul.f32 %v396, %v374
      %v406 = vmul.f32 %v396, %v375
      %v407 = vmul.f32 %v396, %v376
      %v408 = vmul.f32 %v396, %v377
      %v409 = vmul.f32 %v396, %v378
      %v410 = vmul.f32 %v396, %v379
      %v411 = vmul.f32 %v396, %v380
      %v412 = vmul.f32 %v396, %v381
      %v413 = vmul.f32 %v396, %v382
      %v414 = vmul.f32 %v396, %v383
      %v415 = vmul.f32 %v396, %v384
      %v416 = vmul.f32 %v396, %v385
      %v417 = vmul.f32 %v396, %v386
      %v418 = vmul.f32 %v396, %v387
      %v419 = vmul.f32 %v396, %v388
      %v420 = vmul.f32 %v396, %v389
      %v421 = vmul.f32 %v396, %v390
      %v422 = vmul.f32 %v396, %v391
      %v423 = vmul.f32 %v396, %v392
      %v424 = vmul.f32 %v396, %v393
      %v425 = vadd.f32 %v338, %v397
      %v426 = vadd.f32 %v339, %v398
      %v427 = vadd.f32 %v340, %v399
      %v428 = vadd.f32 %v341, %v400
      %v429 = vadd.f32 %v342, %v401
      %v430 = vadd.f32 %v343, %v402
      %v431 = vadd.f32 %v344, %v403
      %v432 = vadd.f32 %v345, %v404
      %v433 = vadd.f32 %v346, %v405
      %v434 = vadd.f32 %v347, %v406
      %v435 = vadd.f32 %v348, %v407
      %v436 = vadd.f32 %v349, %v408
      %v437 = vadd.f32 %v350, %v409
      %v438 = vadd.f32 %v351, %v410
      %v439 = vadd.f32 %v352, %v411
      %v440 = vadd.f32 %v353, %v412
      %v441 = vadd.f32 %v354, %v413
      %v442 = vadd.f32 %v355, %v414
      %v443 = vadd.f32 %v356, %v415
      %v444 = vadd.f32 %v357, %v416
      %v445 = vadd.f32 %v358, %v417
      %v446 = vadd.f32 %v359, %v418
      %v447 = vadd.f32 %v360, %v419
      %v448 = vadd.f32 %v361, %v420
      %v449 = vadd.f32 %v362, %v421
      %v450 = vadd.f32 %v363, %v422
      %v451 = vadd.f32 %v364, %v423
      %v452 = vadd.f32 %v365, %v424
      %s453 = scalar_lea.vmem %s2, 512
      %v454 = vld [vmem:[%s453] sm:$0xff]
      %v455 = vld [vmem:[%s453 + $0x8] sm:$0x3f]
      %v456 = vld [vmem:[%s453 + $0x10] sm:$0xff]
      %v457 = vld [vmem:[%s453 + $0x18] sm:$0x3f]
      %v458 = vld [vmem:[%s453 + $0x20] sm:$0xff]
      %v459 = vld [vmem:[%s453 + $0x28] sm:$0x3f]
      %v460 = vld [vmem:[%s453 + $0x30] sm:$0xff]
      %v461 = vld [vmem:[%s453 + $0x38] sm:$0x3f]
      %v462 = vld [vmem:[%s453 + $0x40] sm:$0xff]
      %v463 = vld [vmem:[%s453 + $0x48] sm:$0x3f]
      %v464 = vld [vmem:[%s453 + $0x50] sm:$0xff]
      %v465 = vld [vmem:[%s453 + $0x58] sm:$0x3f]
      %v466 = vld [vmem:[%s453 + $0x60] sm:$0xff]
      %v467 = vld [vmem:[%s453 + $0x68] sm:$0x3f]
      %v468 = vld [vmem:[%s453 + $0x70] sm:$0xff]
      %v469 = vld [vmem:[%s453 + $0x78] sm:$0x3f]
      %v470 = vld [vmem:[%s453 + $0x80] sm:$0xff]
      %v471 = vld [vmem:[%s453 + $0x88] sm:$0x3f]
      %v472 = vld [vmem:[%s453 + $0x90] sm:$0xff]
      %v473 = vld [vmem:[%s453 + $0x98] sm:$0x3f]
      %v474 = vld [vmem:[%s453 + $0xa0] sm:$0xff]
      %v475 = vld [vmem:[%s453 + $0xa8] sm:$0x3f]
      %v476 = vld [vmem:[%s453 + $0xb0] sm:$0xff]
      %v477 = vld [vmem:[%s453 + $0xb8] sm:$0x3f]
      %v478 = vld [vmem:[%s453 + $0xc0] sm:$0xff]
      %v479 = vld [vmem:[%s453 + $0xc8] sm:$0x3f]
      %v480 = vld [vmem:[%s453 + $0xd0] sm:$0xff]
      %v481 = vld [vmem:[%s453 + $0xd8] sm:$0x3f]
      %s482 = sadd.s32 %s45, 5
      %s483 = sld [smem:[#allocation2 + %s482]]
      %v484 = vstv %s483
      %v485 = vmul.f32 %v484, %v454
      %v486 = vmul.f32 %v484, %v455
      %v487 = vmul.f32 %v484, %v456
      %v488 = vmul.f32 %v484, %v457
      %v489 = vmul.f32 %v484, %v458
      %v490 = vmul.f32 %v484, %v459
      %v491 = vmul.f32 %v484, %v460
      %v492 = vmul.f32 %v484, %v461
      %v493 = vmul.f32 %v484, %v462
      %v494 = vmul.f32 %v484, %v463
      %v495 = vmul.f32 %v484, %v464
      %v496 = vmul.f32 %v484, %v465
      %v497 = vmul.f32 %v484, %v466
      %v498 = vmul.f32 %v484, %v467
      %v499 = vmul.f32 %v484, %v468
      %v500 = vmul.f32 %v484, %v469
      %v501 = vmul.f32 %v484, %v470
      %v502 = vmul.f32 %v484, %v471
      %v503 = vmul.f32 %v484, %v472
      %v504 = vmul.f32 %v484, %v473
      %v505 = vmul.f32 %v484, %v474
      %v506 = vmul.f32 %v484, %v475
      %v507 = vmul.f32 %v484, %v476
      %v508 = vmul.f32 %v484, %v477
      %v509 = vmul.f32 %v484, %v478
      %v510 = vmul.f32 %v484, %v479
      %v511 = vmul.f32 %v484, %v480
      %v512 = vmul.f32 %v484, %v481
      %v513 = vadd.f32 %v425, %v485
      %v514 = vadd.f32 %v426, %v486
      %v515 = vadd.f32 %v427, %v487
      %v516 = vadd.f32 %v428, %v488
      %v517 = vadd.f32 %v429, %v489
      %v518 = vadd.f32 %v430, %v490
      %v519 = vadd.f32 %v431, %v491
      %v520 = vadd.f32 %v432, %v492
      %v521 = vadd.f32 %v433, %v493
      %v522 = vadd.f32 %v434, %v494
      %v523 = vadd.f32 %v435, %v495
      %v524 = vadd.f32 %v436, %v496
      %v525 = vadd.f32 %v437, %v497
      %v526 = vadd.f32 %v438, %v498
      %v527 = vadd.f32 %v439, %v499
      %v528 = vadd.f32 %v440, %v500
      %v529 = vadd.f32 %v441, %v501
      %v530 = vadd.f32 %v442, %v502
      %v531 = vadd.f32 %v443, %v503
      %v532 = vadd.f32 %v444, %v504
      %v533 = vadd.f32 %v445, %v505
      %v534 = vadd.f32 %v446, %v506
      %v535 = vadd.f32 %v447, %v507
      %v536 = vadd.f32 %v448, %v508
      %v537 = vadd.f32 %v449, %v509
      %v538 = vadd.f32 %v450, %v510
      %v539 = vadd.f32 %v451, %v511
      %v540 = vadd.f32 %v452, %v512
      %s541 = scalar_lea.vmem %s2, 768
      %v542 = vld [vmem:[%s541] sm:$0xff]
      %v543 = vld [vmem:[%s541 + $0x8] sm:$0x3f]
      %v544 = vld [vmem:[%s541 + $0x10] sm:$0xff]
      %v545 = vld [vmem:[%s541 + $0x18] sm:$0x3f]
      %v546 = vld [vmem:[%s541 + $0x20] sm:$0xff]
      %v547 = vld [vmem:[%s541 + $0x28] sm:$0x3f]
      %v548 = vld [vmem:[%s541 + $0x30] sm:$0xff]
      %v549 = vld [vmem:[%s541 + $0x38] sm:$0x3f]
      %v550 = vld [vmem:[%s541 + $0x40] sm:$0xff]
      %v551 = vld [vmem:[%s541 + $0x48] sm:$0x3f]
      %v552 = vld [vmem:[%s541 + $0x50] sm:$0xff]
      %v553 = vld [vmem:[%s541 + $0x58] sm:$0x3f]
      %v554 = vld [vmem:[%s541 + $0x60] sm:$0xff]
      %v555 = vld [vmem:[%s541 + $0x68] sm:$0x3f]
      %v556 = vld [vmem:[%s541 + $0x70] sm:$0xff]
      %v557 = vld [vmem:[%s541 + $0x78] sm:$0x3f]
      %v558 = vld [vmem:[%s541 + $0x80] sm:$0xff]
      %v559 = vld [vmem:[%s541 + $0x88] sm:$0x3f]
      %v560 = vld [vmem:[%s541 + $0x90] sm:$0xff]
      %v561 = vld [vmem:[%s541 + $0x98] sm:$0x3f]
      %v562 = vld [vmem:[%s541 + $0xa0] sm:$0xff]
      %v563 = vld [vmem:[%s541 + $0xa8] sm:$0x3f]
      %v564 = vld [vmem:[%s541 + $0xb0] sm:$0xff]
      %v565 = vld [vmem:[%s541 + $0xb8] sm:$0x3f]
      %v566 = vld [vmem:[%s541 + $0xc0] sm:$0xff]
      %v567 = vld [vmem:[%s541 + $0xc8] sm:$0x3f]
      %v568 = vld [vmem:[%s541 + $0xd0] sm:$0xff]
      %v569 = vld [vmem:[%s541 + $0xd8] sm:$0x3f]
      %s570 = sadd.s32 %s45, 6
      %s571 = sld [smem:[#allocation2 + %s570]]
      %v572 = vstv %s571
      %v573 = vmul.f32 %v572, %v542
      %v574 = vmul.f32 %v572, %v543
      %v575 = vmul.f32 %v572, %v544
      %v576 = vmul.f32 %v572, %v545
      %v577 = vmul.f32 %v572, %v546
      %v578 = vmul.f32 %v572, %v547
      %v579 = vmul.f32 %v572, %v548
      %v580 = vmul.f32 %v572, %v549
      %v581 = vmul.f32 %v572, %v550
      %v582 = vmul.f32 %v572, %v551
      %v583 = vmul.f32 %v572, %v552
      %v584 = vmul.f32 %v572, %v553
      %v585 = vmul.f32 %v572, %v554
      %v586 = vmul.f32 %v572, %v555
      %v587 = vmul.f32 %v572, %v556
      %v588 = vmul.f32 %v572, %v557
      %v589 = vmul.f32 %v572, %v558
      %v590 = vmul.f32 %v572, %v559
      %v591 = vmul.f32 %v572, %v560
      %v592 = vmul.f32 %v572, %v561
      %v593 = vmul.f32 %v572, %v562
      %v594 = vmul.f32 %v572, %v563
      %v595 = vmul.f32 %v572, %v564
      %v596 = vmul.f32 %v572, %v565
      %v597 = vmul.f32 %v572, %v566
      %v598 = vmul.f32 %v572, %v567
      %v599 = vmul.f32 %v572, %v568
      %v600 = vmul.f32 %v572, %v569
      %v601 = vadd.f32 %v513, %v573
      %v602 = vadd.f32 %v514, %v574
      %v603 = vadd.f32 %v515, %v575
      %v604 = vadd.f32 %v516, %v576
      %v605 = vadd.f32 %v517, %v577
      %v606 = vadd.f32 %v518, %v578
      %v607 = vadd.f32 %v519, %v579
      %v608 = vadd.f32 %v520, %v580
      %v609 = vadd.f32 %v521, %v581
      %v610 = vadd.f32 %v522, %v582
      %v611 = vadd.f32 %v523, %v583
      %v612 = vadd.f32 %v524, %v584
      %v613 = vadd.f32 %v525, %v585
      %v614 = vadd.f32 %v526, %v586
      %v615 = vadd.f32 %v527, %v587
      %v616 = vadd.f32 %v528, %v588
      %v617 = vadd.f32 %v529, %v589
      %v618 = vadd.f32 %v530, %v590
      %v619 = vadd.f32 %v531, %v591
      %v620 = vadd.f32 %v532, %v592
      %v621 = vadd.f32 %v533, %v593
      %v622 = vadd.f32 %v534, %v594
      %v623 = vadd.f32 %v535, %v595
      %v624 = vadd.f32 %v536, %v596
      %v625 = vadd.f32 %v537, %v597
      %v626 = vadd.f32 %v538, %v598
      %v627 = vadd.f32 %v539, %v599
      %v628 = vadd.f32 %v540, %v600
      %v629 = vld [vmem:[%s453 + $0x1] sm:$0xff]
      %v630 = vld [vmem:[%s453 + $0x9] sm:$0x3f]
      %v631 = vld [vmem:[%s453 + $0x11] sm:$0xff]
      %v632 = vld [vmem:[%s453 + $0x19] sm:$0x3f]
      %v633 = vld [vmem:[%s453 + $0x21] sm:$0xff]
      %v634 = vld [vmem:[%s453 + $0x29] sm:$0x3f]
      %v635 = vld [vmem:[%s453 + $0x31] sm:$0xff]
      %v636 = vld [vmem:[%s453 + $0x39] sm:$0x3f]
      %v637 = vld [vmem:[%s453 + $0x41] sm:$0xff]
      %v638 = vld [vmem:[%s453 + $0x49] sm:$0x3f]
      %v639 = vld [vmem:[%s453 + $0x51] sm:$0xff]
      %v640 = vld [vmem:[%s453 + $0x59] sm:$0x3f]
      %v641 = vld [vmem:[%s453 + $0x61] sm:$0xff]
      %v642 = vld [vmem:[%s453 + $0x69] sm:$0x3f]
      %v643 = vld [vmem:[%s453 + $0x71] sm:$0xff]
      %v644 = vld [vmem:[%s453 + $0x79] sm:$0x3f]
      %v645 = vld [vmem:[%s453 + $0x81] sm:$0xff]
      %v646 = vld [vmem:[%s453 + $0x89] sm:$0x3f]
      %v647 = vld [vmem:[%s453 + $0x91] sm:$0xff]
      %v648 = vld [vmem:[%s453 + $0x99] sm:$0x3f]
      %v649 = vld [vmem:[%s453 + $0xa1] sm:$0xff]
      %v650 = vld [vmem:[%s453 + $0xa9] sm:$0x3f]
      %v651 = vld [vmem:[%s453 + $0xb1] sm:$0xff]
      %v652 = vld [vmem:[%s453 + $0xb9] sm:$0x3f]
      %v653 = vld [vmem:[%s453 + $0xc1] sm:$0xff]
      %v654 = vld [vmem:[%s453 + $0xc9] sm:$0x3f]
      %v655 = vld [vmem:[%s453 + $0xd1] sm:$0xff]
      %v656 = vld [vmem:[%s453 + $0xd9] sm:$0x3f]
      %s657 = sadd.s32 %s45, 7
      %s658 = sld [smem:[#allocation2 + %s657]]
      %v659 = vstv %s658
      %v660 = vmul.f32 %v659, %v629
      %v661 = vmul.f32 %v659, %v630
      %v662 = vmul.f32 %v659, %v631
      %v663 = vmul.f32 %v659, %v632
      %v664 = vmul.f32 %v659, %v633
      %v665 = vmul.f32 %v659, %v634
      %v666 = vmul.f32 %v659, %v635
      %v667 = vmul.f32 %v659, %v636
      %v668 = vmul.f32 %v659, %v637
      %v669 = vmul.f32 %v659, %v638
      %v670 = vmul.f32 %v659, %v639
      %v671 = vmul.f32 %v659, %v640
      %v672 = vmul.f32 %v659, %v641
      %v673 = vmul.f32 %v659, %v642
      %v674 = vmul.f32 %v659, %v643
      %v675 = vmul.f32 %v659, %v644
      %v676 = vmul.f32 %v659, %v645
      %v677 = vmul.f32 %v659, %v646
      %v678 = vmul.f32 %v659, %v647
      %v679 = vmul.f32 %v659, %v648
      %v680 = vmul.f32 %v659, %v649
      %v681 = vmul.f32 %v659, %v650
      %v682 = vmul.f32 %v659, %v651
      %v683 = vmul.f32 %v659, %v652
      %v684 = vmul.f32 %v659, %v653
      %v685 = vmul.f32 %v659, %v654
      %v686 = vmul.f32 %v659, %v655
      %v687 = vmul.f32 %v659, %v656
      %v688 = vadd.f32 %v601, %v660
      %v689 = vadd.f32 %v602, %v661
      %v690 = vadd.f32 %v603, %v662
      %v691 = vadd.f32 %v604, %v663
      %v692 = vadd.f32 %v605, %v664
      %v693 = vadd.f32 %v606, %v665
      %v694 = vadd.f32 %v607, %v666
      %v695 = vadd.f32 %v608, %v667
      %v696 = vadd.f32 %v609, %v668
      %v697 = vadd.f32 %v610, %v669
      %v698 = vadd.f32 %v611, %v670
      %v699 = vadd.f32 %v612, %v671
      %v700 = vadd.f32 %v613, %v672
      %v701 = vadd.f32 %v614, %v673
      %v702 = vadd.f32 %v615, %v674
      %v703 = vadd.f32 %v616, %v675
      %v704 = vadd.f32 %v617, %v676
      %v705 = vadd.f32 %v618, %v677
      %v706 = vadd.f32 %v619, %v678
      %v707 = vadd.f32 %v620, %v679
      %v708 = vadd.f32 %v621, %v680
      %v709 = vadd.f32 %v622, %v681
      %v710 = vadd.f32 %v623, %v682
      %v711 = vadd.f32 %v624, %v683
      %v712 = vadd.f32 %v625, %v684
      %v713 = vadd.f32 %v626, %v685
      %v714 = vadd.f32 %v627, %v686
      %v715 = vadd.f32 %v628, %v687
      %v716 = vld [vmem:[%s541 + $0x1] sm:$0xff]
      %v717 = vld [vmem:[%s541 + $0x9] sm:$0x3f]
      %v718 = vld [vmem:[%s541 + $0x11] sm:$0xff]
      %v719 = vld [vmem:[%s541 + $0x19] sm:$0x3f]
      %v720 = vld [vmem:[%s541 + $0x21] sm:$0xff]
      %v721 = vld [vmem:[%s541 + $0x29] sm:$0x3f]
      %v722 = vld [vmem:[%s541 + $0x31] sm:$0xff]
      %v723 = vld [vmem:[%s541 + $0x39] sm:$0x3f]
      %v724 = vld [vmem:[%s541 + $0x41] sm:$0xff]
      %v725 = vld [vmem:[%s541 + $0x49] sm:$0x3f]
      %v726 = vld [vmem:[%s541 + $0x51] sm:$0xff]
      %v727 = vld [vmem:[%s541 + $0x59] sm:$0x3f]
      %v728 = vld [vmem:[%s541 + $0x61] sm:$0xff]
      %v729 = vld [vmem:[%s541 + $0x69] sm:$0x3f]
      %v730 = vld [vmem:[%s541 + $0x71] sm:$0xff]
      %v731 = vld [vmem:[%s541 + $0x79] sm:$0x3f]
      %v732 = vld [vmem:[%s541 + $0x81] sm:$0xff]
      %v733 = vld [vmem:[%s541 + $0x89] sm:$0x3f]
      %v734 = vld [vmem:[%s541 + $0x91] sm:$0xff]
      %v735 = vld [vmem:[%s541 + $0x99] sm:$0x3f]
      %v736 = vld [vmem:[%s541 + $0xa1] sm:$0xff]
      %v737 = vld [vmem:[%s541 + $0xa9] sm:$0x3f]
      %v738 = vld [vmem:[%s541 + $0xb1] sm:$0xff]
      %v739 = vld [vmem:[%s541 + $0xb9] sm:$0x3f]
      %v740 = vld [vmem:[%s541 + $0xc1] sm:$0xff]
      %v741 = vld [vmem:[%s541 + $0xc9] sm:$0x3f]
      %v742 = vld [vmem:[%s541 + $0xd1] sm:$0xff]
      %v743 = vld [vmem:[%s541 + $0xd9] sm:$0x3f]
      %s744 = sadd.s32 %s45, 8
      %s745 = sld [smem:[#allocation2 + %s744]]
      %v746 = vstv %s745
      %v747 = vmul.f32 %v746, %v716
      %v748 = vmul.f32 %v746, %v717
      %v749 = vmul.f32 %v746, %v718
      %v750 = vmul.f32 %v746, %v719
      %v751 = vmul.f32 %v746, %v720
      %v752 = vmul.f32 %v746, %v721
      %v753 = vmul.f32 %v746, %v722
      %v754 = vmul.f32 %v746, %v723
      %v755 = vmul.f32 %v746, %v724
      %v756 = vmul.f32 %v746, %v725
      %v757 = vmul.f32 %v746, %v726
      %v758 = vmul.f32 %v746, %v727
      %v759 = vmul.f32 %v746, %v728
      %v760 = vmul.f32 %v746, %v729
      %v761 = vmul.f32 %v746, %v730
      %v762 = vmul.f32 %v746, %v731
      %v763 = vmul.f32 %v746, %v732
      %v764 = vmul.f32 %v746, %v733
      %v765 = vmul.f32 %v746, %v734
      %v766 = vmul.f32 %v746, %v735
      %v767 = vmul.f32 %v746, %v736
      %v768 = vmul.f32 %v746, %v737
      %v769 = vmul.f32 %v746, %v738
      %v770 = vmul.f32 %v746, %v739
      %v771 = vmul.f32 %v746, %v740
      %v772 = vmul.f32 %v746, %v741
      %v773 = vmul.f32 %v746, %v742
      %v774 = vmul.f32 %v746, %v743
      %v775 = vadd.f32 %v688, %v747
      %v776 = vadd.f32 %v689, %v748
      %v777 = vadd.f32 %v690, %v749
      %v778 = vadd.f32 %v691, %v750
      %v779 = vadd.f32 %v692, %v751
      %v780 = vadd.f32 %v693, %v752
      %v781 = vadd.f32 %v694, %v753
      %v782 = vadd.f32 %v695, %v754
      %v783 = vadd.f32 %v696, %v755
      %v784 = vadd.f32 %v697, %v756
      %v785 = vadd.f32 %v698, %v757
      %v786 = vadd.f32 %v699, %v758
      %v787 = vadd.f32 %v700, %v759
      %v788 = vadd.f32 %v701, %v760
      %v789 = vadd.f32 %v702, %v761
      %v790 = vadd.f32 %v703, %v762
      %v791 = vadd.f32 %v704, %v763
      %v792 = vadd.f32 %v705, %v764
      %v793 = vadd.f32 %v706, %v765
      %v794 = vadd.f32 %v707, %v766
      %v795 = vadd.f32 %v708, %v767
      %v796 = vadd.f32 %v709, %v768
      %v797 = vadd.f32 %v710, %v769
      %v798 = vadd.f32 %v711, %v770
      %v799 = vadd.f32 %v712, %v771
      %v800 = vadd.f32 %v713, %v772
      %v801 = vadd.f32 %v714, %v773
      %v802 = vadd.f32 %v715, %v774
      %v803 = vld [vmem:[%s453 + $0x2] sm:$0xff]
      %v804 = vld [vmem:[%s453 + $0xa] sm:$0x3f]
      %v805 = vld [vmem:[%s453 + $0x12] sm:$0xff]
      %v806 = vld [vmem:[%s453 + $0x1a] sm:$0x3f]
      %v807 = vld [vmem:[%s453 + $0x22] sm:$0xff]
      %v808 = vld [vmem:[%s453 + $0x2a] sm:$0x3f]
      %v809 = vld [vmem:[%s453 + $0x32] sm:$0xff]
      %v810 = vld [vmem:[%s453 + $0x3a] sm:$0x3f]
      %v811 = vld [vmem:[%s453 + $0x42] sm:$0xff]
      %v812 = vld [vmem:[%s453 + $0x4a] sm:$0x3f]
      %v813 = vld [vmem:[%s453 + $0x52] sm:$0xff]
      %v814 = vld [vmem:[%s453 + $0x5a] sm:$0x3f]
      %v815 = vld [vmem:[%s453 + $0x62] sm:$0xff]
      %v816 = vld [vmem:[%s453 + $0x6a] sm:$0x3f]
      %v817 = vld [vmem:[%s453 + $0x72] sm:$0xff]
      %v818 = vld [vmem:[%s453 + $0x7a] sm:$0x3f]
      %v819 = vld [vmem:[%s453 + $0x82] sm:$0xff]
      %v820 = vld [vmem:[%s453 + $0x8a] sm:$0x3f]
      %v821 = vld [vmem:[%s453 + $0x92] sm:$0xff]
      %v822 = vld [vmem:[%s453 + $0x9a] sm:$0x3f]
      %v823 = vld [vmem:[%s453 + $0xa2] sm:$0xff]
      %v824 = vld [vmem:[%s453 + $0xaa] sm:$0x3f]
      %v825 = vld [vmem:[%s453 + $0xb2] sm:$0xff]
      %v826 = vld [vmem:[%s453 + $0xba] sm:$0x3f]
      %v827 = vld [vmem:[%s453 + $0xc2] sm:$0xff]
      %v828 = vld [vmem:[%s453 + $0xca] sm:$0x3f]
      %v829 = vld [vmem:[%s453 + $0xd2] sm:$0xff]
      %v830 = vld [vmem:[%s453 + $0xda] sm:$0x3f]
      %s831 = sadd.s32 %s45, 9
      %s832 = sld [smem:[#allocation2 + %s831]]
      %v833 = vstv %s832
      %v834 = vmul.f32 %v833, %v803
      %v835 = vmul.f32 %v833, %v804
      %v836 = vmul.f32 %v833, %v805
      %v837 = vmul.f32 %v833, %v806
      %v838 = vmul.f32 %v833, %v807
      %v839 = vmul.f32 %v833, %v808
      %v840 = vmul.f32 %v833, %v809
      %v841 = vmul.f32 %v833, %v810
      %v842 = vmul.f32 %v833, %v811
      %v843 = vmul.f32 %v833, %v812
      %v844 = vmul.f32 %v833, %v813
      %v845 = vmul.f32 %v833, %v814
      %v846 = vmul.f32 %v833, %v815
      %v847 = vmul.f32 %v833, %v816
      %v848 = vmul.f32 %v833, %v817
      %v849 = vmul.f32 %v833, %v818
      %v850 = vmul.f32 %v833, %v819
      %v851 = vmul.f32 %v833, %v820
      %v852 = vmul.f32 %v833, %v821
      %v853 = vmul.f32 %v833, %v822
      %v854 = vmul.f32 %v833, %v823
      %v855 = vmul.f32 %v833, %v824
      %v856 = vmul.f32 %v833, %v825
      %v857 = vmul.f32 %v833, %v826
      %v858 = vmul.f32 %v833, %v827
      %v859 = vmul.f32 %v833, %v828
      %v860 = vmul.f32 %v833, %v829
      %v861 = vmul.f32 %v833, %v830
      %v862 = vadd.f32 %v775, %v834
      %v863 = vadd.f32 %v776, %v835
      %v864 = vadd.f32 %v777, %v836
      %v865 = vadd.f32 %v778, %v837
      %v866 = vadd.f32 %v779, %v838
      %v867 = vadd.f32 %v780, %v839
      %v868 = vadd.f32 %v781, %v840
      %v869 = vadd.f32 %v782, %v841
      %v870 = vadd.f32 %v783, %v842
      %v871 = vadd.f32 %v784, %v843
      %v872 = vadd.f32 %v785, %v844
      %v873 = vadd.f32 %v786, %v845
      %v874 = vadd.f32 %v787, %v846
      %v875 = vadd.f32 %v788, %v847
      %v876 = vadd.f32 %v789, %v848
      %v877 = vadd.f32 %v790, %v849
      %v878 = vadd.f32 %v791, %v850
      %v879 = vadd.f32 %v792, %v851
      %v880 = vadd.f32 %v793, %v852
      %v881 = vadd.f32 %v794, %v853
      %v882 = vadd.f32 %v795, %v854
      %v883 = vadd.f32 %v796, %v855
      %v884 = vadd.f32 %v797, %v856
      %v885 = vadd.f32 %v798, %v857
      %v886 = vadd.f32 %v799, %v858
      %v887 = vadd.f32 %v800, %v859
      %v888 = vadd.f32 %v801, %v860
      %v889 = vadd.f32 %v802, %v861
      %s890 = scalar_lea.vmem %s2, 16
      %v891 = vld [vmem:[%s890] sm:$0xff]
      %v892 = vld [vmem:[%s890 + $0x8] sm:$0x3f]
      %v893 = vld [vmem:[%s890 + $0x10] sm:$0xff]
      %v894 = vld [vmem:[%s890 + $0x18] sm:$0x3f]
      %v895 = vld [vmem:[%s890 + $0x20] sm:$0xff]
      %v896 = vld [vmem:[%s890 + $0x28] sm:$0x3f]
      %v897 = vld [vmem:[%s890 + $0x30] sm:$0xff]
      %v898 = vld [vmem:[%s890 + $0x38] sm:$0x3f]
      %v899 = vld [vmem:[%s890 + $0x40] sm:$0xff]
      %v900 = vld [vmem:[%s890 + $0x48] sm:$0x3f]
      %v901 = vld [vmem:[%s890 + $0x50] sm:$0xff]
      %v902 = vld [vmem:[%s890 + $0x58] sm:$0x3f]
      %v903 = vld [vmem:[%s890 + $0x60] sm:$0xff]
      %v904 = vld [vmem:[%s890 + $0x68] sm:$0x3f]
      %v905 = vld [vmem:[%s890 + $0x70] sm:$0xff]
      %v906 = vld [vmem:[%s890 + $0x78] sm:$0x3f]
      %v907 = vld [vmem:[%s890 + $0x80] sm:$0xff]
      %v908 = vld [vmem:[%s890 + $0x88] sm:$0x3f]
      %v909 = vld [vmem:[%s890 + $0x90] sm:$0xff]
      %v910 = vld [vmem:[%s890 + $0x98] sm:$0x3f]
      %v911 = vld [vmem:[%s890 + $0xa0] sm:$0xff]
      %v912 = vld [vmem:[%s890 + $0xa8] sm:$0x3f]
      %v913 = vld [vmem:[%s890 + $0xb0] sm:$0xff]
      %v914 = vld [vmem:[%s890 + $0xb8] sm:$0x3f]
      %v915 = vld [vmem:[%s890 + $0xc0] sm:$0xff]
      %v916 = vld [vmem:[%s890 + $0xc8] sm:$0x3f]
      %v917 = vld [vmem:[%s890 + $0xd0] sm:$0xff]
      %v918 = vld [vmem:[%s890 + $0xd8] sm:$0x3f]
      %s919 = sadd.s32 %s45, 10
      %s920 = sld [smem:[#allocation2 + %s919]]
      %v921 = vstv %s920
      %v922 = vmul.f32 %v921, %v891
      %v923 = vmul.f32 %v921, %v892
      %v924 = vmul.f32 %v921, %v893
      %v925 = vmul.f32 %v921, %v894
      %v926 = vmul.f32 %v921, %v895
      %v927 = vmul.f32 %v921, %v896
      %v928 = vmul.f32 %v921, %v897
      %v929 = vmul.f32 %v921, %v898
      %v930 = vmul.f32 %v921, %v899
      %v931 = vmul.f32 %v921, %v900
      %v932 = vmul.f32 %v921, %v901
      %v933 = vmul.f32 %v921, %v902
      %v934 = vmul.f32 %v921, %v903
      %v935 = vmul.f32 %v921, %v904
      %v936 = vmul.f32 %v921, %v905
      %v937 = vmul.f32 %v921, %v906
      %v938 = vmul.f32 %v921, %v907
      %v939 = vmul.f32 %v921, %v908
      %v940 = vmul.f32 %v921, %v909
      %v941 = vmul.f32 %v921, %v910
      %v942 = vmul.f32 %v921, %v911
      %v943 = vmul.f32 %v921, %v912
      %v944 = vmul.f32 %v921, %v913
      %v945 = vmul.f32 %v921, %v914
      %v946 = vmul.f32 %v921, %v915
      %v947 = vmul.f32 %v921, %v916
      %v948 = vmul.f32 %v921, %v917
      %v949 = vmul.f32 %v921, %v918
      %v950 = vadd.f32 %v862, %v922
      %v951 = vadd.f32 %v863, %v923
      %v952 = vadd.f32 %v864, %v924
      %v953 = vadd.f32 %v865, %v925
      %v954 = vadd.f32 %v866, %v926
      %v955 = vadd.f32 %v867, %v927
      %v956 = vadd.f32 %v868, %v928
      %v957 = vadd.f32 %v869, %v929
      %v958 = vadd.f32 %v870, %v930
      %v959 = vadd.f32 %v871, %v931
      %v960 = vadd.f32 %v872, %v932
      %v961 = vadd.f32 %v873, %v933
      %v962 = vadd.f32 %v874, %v934
      %v963 = vadd.f32 %v875, %v935
      %v964 = vadd.f32 %v876, %v936
      %v965 = vadd.f32 %v877, %v937
      %v966 = vadd.f32 %v878, %v938
      %v967 = vadd.f32 %v879, %v939
      %v968 = vadd.f32 %v880, %v940
      %v969 = vadd.f32 %v881, %v941
      %v970 = vadd.f32 %v882, %v942
      %v971 = vadd.f32 %v883, %v943
      %v972 = vadd.f32 %v884, %v944
      %v973 = vadd.f32 %v885, %v945
      %v974 = vadd.f32 %v886, %v946
      %v975 = vadd.f32 %v887, %v947
      %v976 = vadd.f32 %v888, %v948
      %v977 = vadd.f32 %v889, %v949
      %s978 = scalar_lea.vmem %s2, 272
      %v979 = vld [vmem:[%s978] sm:$0xff]
      %v980 = vld [vmem:[%s978 + $0x8] sm:$0x3f]
      %v981 = vld [vmem:[%s978 + $0x10] sm:$0xff]
      %v982 = vld [vmem:[%s978 + $0x18] sm:$0x3f]
      %v983 = vld [vmem:[%s978 + $0x20] sm:$0xff]
      %v984 = vld [vmem:[%s978 + $0x28] sm:$0x3f]
      %v985 = vld [vmem:[%s978 + $0x30] sm:$0xff]
      %v986 = vld [vmem:[%s978 + $0x38] sm:$0x3f]
      %v987 = vld [vmem:[%s978 + $0x40] sm:$0xff]
      %v988 = vld [vmem:[%s978 + $0x48] sm:$0x3f]
      %v989 = vld [vmem:[%s978 + $0x50] sm:$0xff]
      %v990 = vld [vmem:[%s978 + $0x58] sm:$0x3f]
      %v991 = vld [vmem:[%s978 + $0x60] sm:$0xff]
      %v992 = vld [vmem:[%s978 + $0x68] sm:$0x3f]
      %v993 = vld [vmem:[%s978 + $0x70] sm:$0xff]
      %v994 = vld [vmem:[%s978 + $0x78] sm:$0x3f]
      %v995 = vld [vmem:[%s978 + $0x80] sm:$0xff]
      %v996 = vld [vmem:[%s978 + $0x88] sm:$0x3f]
      %v997 = vld [vmem:[%s978 + $0x90] sm:$0xff]
      %v998 = vld [vmem:[%s978 + $0x98] sm:$0x3f]
      %v999 = vld [vmem:[%s978 + $0xa0] sm:$0xff]
      %v1000 = vld [vmem:[%s978 + $0xa8] sm:$0x3f]
      %v1001 = vld [vmem:[%s978 + $0xb0] sm:$0xff]
      %v1002 = vld [vmem:[%s978 + $0xb8] sm:$0x3f]
      %v1003 = vld [vmem:[%s978 + $0xc0] sm:$0xff]
      %v1004 = vld [vmem:[%s978 + $0xc8] sm:$0x3f]
      %v1005 = vld [vmem:[%s978 + $0xd0] sm:$0xff]
      %v1006 = vld [vmem:[%s978 + $0xd8] sm:$0x3f]
      %s1007 = sadd.s32 %s45, 11
      %s1008 = sld [smem:[#allocation2 + %s1007]]
      %v1009 = vstv %s1008
      %v1010 = vmul.f32 %v1009, %v979
      %v1011 = vmul.f32 %v1009, %v980
      %v1012 = vmul.f32 %v1009, %v981
      %v1013 = vmul.f32 %v1009, %v982
      %v1014 = vmul.f32 %v1009, %v983
      %v1015 = vmul.f32 %v1009, %v984
      %v1016 = vmul.f32 %v1009, %v985
      %v1017 = vmul.f32 %v1009, %v986
      %v1018 = vmul.f32 %v1009, %v987
      %v1019 = vmul.f32 %v1009, %v988
      %v1020 = vmul.f32 %v1009, %v989
      %v1021 = vmul.f32 %v1009, %v990
      %v1022 = vmul.f32 %v1009, %v991
      %v1023 = vmul.f32 %v1009, %v992
      %v1024 = vmul.f32 %v1009, %v993
      %v1025 = vmul.f32 %v1009, %v994
      %v1026 = vmul.f32 %v1009, %v995
      %v1027 = vmul.f32 %v1009, %v996
      %v1028 = vmul.f32 %v1009, %v997
      %v1029 = vmul.f32 %v1009, %v998
      %v1030 = vmul.f32 %v1009, %v999
      %v1031 = vmul.f32 %v1009, %v1000
      %v1032 = vmul.f32 %v1009, %v1001
      %v1033 = vmul.f32 %v1009, %v1002
      %v1034 = vmul.f32 %v1009, %v1003
      %v1035 = vmul.f32 %v1009, %v1004
      %v1036 = vmul.f32 %v1009, %v1005
      %v1037 = vmul.f32 %v1009, %v1006
      %v1038 = vadd.f32 %v950, %v1010
      %v1039 = vadd.f32 %v951, %v1011
      %v1040 = vadd.f32 %v952, %v1012
      %v1041 = vadd.f32 %v953, %v1013
      %v1042 = vadd.f32 %v954, %v1014
      %v1043 = vadd.f32 %v955, %v1015
      %v1044 = vadd.f32 %v956, %v1016
      %v1045 = vadd.f32 %v957, %v1017
      %v1046 = vadd.f32 %v958, %v1018
      %v1047 = vadd.f32 %v959, %v1019
      %v1048 = vadd.f32 %v960, %v1020
      %v1049 = vadd.f32 %v961, %v1021
      %v1050 = vadd.f32 %v962, %v1022
      %v1051 = vadd.f32 %v963, %v1023
      %v1052 = vadd.f32 %v964, %v1024
      %v1053 = vadd.f32 %v965, %v1025
      %v1054 = vadd.f32 %v966, %v1026
      %v1055 = vadd.f32 %v967, %v1027
      %v1056 = vadd.f32 %v968, %v1028
      %v1057 = vadd.f32 %v969, %v1029
      %v1058 = vadd.f32 %v970, %v1030
      %v1059 = vadd.f32 %v971, %v1031
      %v1060 = vadd.f32 %v972, %v1032
      %v1061 = vadd.f32 %v973, %v1033
      %v1062 = vadd.f32 %v974, %v1034
      %v1063 = vadd.f32 %v975, %v1035
      %v1064 = vadd.f32 %v976, %v1036
      %v1065 = vadd.f32 %v977, %v1037
      %v1066 = vld [vmem:[%s890 + $0x1] sm:$0xff]
      %v1067 = vld [vmem:[%s890 + $0x9] sm:$0x3f]
      %v1068 = vld [vmem:[%s890 + $0x11] sm:$0xff]
      %v1069 = vld [vmem:[%s890 + $0x19] sm:$0x3f]
      %v1070 = vld [vmem:[%s890 + $0x21] sm:$0xff]
      %v1071 = vld [vmem:[%s890 + $0x29] sm:$0x3f]
      %v1072 = vld [vmem:[%s890 + $0x31] sm:$0xff]
      %v1073 = vld [vmem:[%s890 + $0x39] sm:$0x3f]
      %v1074 = vld [vmem:[%s890 + $0x41] sm:$0xff]
      %v1075 = vld [vmem:[%s890 + $0x49] sm:$0x3f]
      %v1076 = vld [vmem:[%s890 + $0x51] sm:$0xff]
      %v1077 = vld [vmem:[%s890 + $0x59] sm:$0x3f]
      %v1078 = vld [vmem:[%s890 + $0x61] sm:$0xff]
      %v1079 = vld [vmem:[%s890 + $0x69] sm:$0x3f]
      %v1080 = vld [vmem:[%s890 + $0x71] sm:$0xff]
      %v1081 = vld [vmem:[%s890 + $0x79] sm:$0x3f]
      %v1082 = vld [vmem:[%s890 + $0x81] sm:$0xff]
      %v1083 = vld [vmem:[%s890 + $0x89] sm:$0x3f]
      %v1084 = vld [vmem:[%s890 + $0x91] sm:$0xff]
      %v1085 = vld [vmem:[%s890 + $0x99] sm:$0x3f]
      %v1086 = vld [vmem:[%s890 + $0xa1] sm:$0xff]
      %v1087 = vld [vmem:[%s890 + $0xa9] sm:$0x3f]
      %v1088 = vld [vmem:[%s890 + $0xb1] sm:$0xff]
      %v1089 = vld [vmem:[%s890 + $0xb9] sm:$0x3f]
      %v1090 = vld [vmem:[%s890 + $0xc1] sm:$0xff]
      %v1091 = vld [vmem:[%s890 + $0xc9] sm:$0x3f]
      %v1092 = vld [vmem:[%s890 + $0xd1] sm:$0xff]
      %v1093 = vld [vmem:[%s890 + $0xd9] sm:$0x3f]
      %s1094 = sadd.s32 %s45, 12
      %s1095 = sld [smem:[#allocation2 + %s1094]]
      %v1096 = vstv %s1095
      %v1097 = vmul.f32 %v1096, %v1066
      %v1098 = vmul.f32 %v1096, %v1067
      %v1099 = vmul.f32 %v1096, %v1068
      %v1100 = vmul.f32 %v1096, %v1069
      %v1101 = vmul.f32 %v1096, %v1070
      %v1102 = vmul.f32 %v1096, %v1071
      %v1103 = vmul.f32 %v1096, %v1072
      %v1104 = vmul.f32 %v1096, %v1073
      %v1105 = vmul.f32 %v1096, %v1074
      %v1106 = vmul.f32 %v1096, %v1075
      %v1107 = vmul.f32 %v1096, %v1076
      %v1108 = vmul.f32 %v1096, %v1077
      %v1109 = vmul.f32 %v1096, %v1078
      %v1110 = vmul.f32 %v1096, %v1079
      %v1111 = vmul.f32 %v1096, %v1080
      %v1112 = vmul.f32 %v1096, %v1081
      %v1113 = vmul.f32 %v1096, %v1082
      %v1114 = vmul.f32 %v1096, %v1083
      %v1115 = vmul.f32 %v1096, %v1084
      %v1116 = vmul.f32 %v1096, %v1085
      %v1117 = vmul.f32 %v1096, %v1086
      %v1118 = vmul.f32 %v1096, %v1087
      %v1119 = vmul.f32 %v1096, %v1088
      %v1120 = vmul.f32 %v1096, %v1089
      %v1121 = vmul.f32 %v1096, %v1090
      %v1122 = vmul.f32 %v1096, %v1091
      %v1123 = vmul.f32 %v1096, %v1092
      %v1124 = vmul.f32 %v1096, %v1093
      %v1125 = vadd.f32 %v1038, %v1097
      %v1126 = vadd.f32 %v1039, %v1098
      %v1127 = vadd.f32 %v1040, %v1099
      %v1128 = vadd.f32 %v1041, %v1100
      %v1129 = vadd.f32 %v1042, %v1101
      %v1130 = vadd.f32 %v1043, %v1102
      %v1131 = vadd.f32 %v1044, %v1103
      %v1132 = vadd.f32 %v1045, %v1104
      %v1133 = vadd.f32 %v1046, %v1105
      %v1134 = vadd.f32 %v1047, %v1106
      %v1135 = vadd.f32 %v1048, %v1107
      %v1136 = vadd.f32 %v1049, %v1108
      %v1137 = vadd.f32 %v1050, %v1109
      %v1138 = vadd.f32 %v1051, %v1110
      %v1139 = vadd.f32 %v1052, %v1111
      %v1140 = vadd.f32 %v1053, %v1112
      %v1141 = vadd.f32 %v1054, %v1113
      %v1142 = vadd.f32 %v1055, %v1114
      %v1143 = vadd.f32 %v1056, %v1115
      %v1144 = vadd.f32 %v1057, %v1116
      %v1145 = vadd.f32 %v1058, %v1117
      %v1146 = vadd.f32 %v1059, %v1118
      %v1147 = vadd.f32 %v1060, %v1119
      %v1148 = vadd.f32 %v1061, %v1120
      %v1149 = vadd.f32 %v1062, %v1121
      %v1150 = vadd.f32 %v1063, %v1122
      %v1151 = vadd.f32 %v1064, %v1123
      %v1152 = vadd.f32 %v1065, %v1124
      %v1153 = vld [vmem:[%s978 + $0x1] sm:$0xff]
      %v1154 = vld [vmem:[%s978 + $0x9] sm:$0x3f]
      %v1155 = vld [vmem:[%s978 + $0x11] sm:$0xff]
      %v1156 = vld [vmem:[%s978 + $0x19] sm:$0x3f]
      %v1157 = vld [vmem:[%s978 + $0x21] sm:$0xff]
      %v1158 = vld [vmem:[%s978 + $0x29] sm:$0x3f]
      %v1159 = vld [vmem:[%s978 + $0x31] sm:$0xff]
      %v1160 = vld [vmem:[%s978 + $0x39] sm:$0x3f]
      %v1161 = vld [vmem:[%s978 + $0x41] sm:$0xff]
      %v1162 = vld [vmem:[%s978 + $0x49] sm:$0x3f]
      %v1163 = vld [vmem:[%s978 + $0x51] sm:$0xff]
      %v1164 = vld [vmem:[%s978 + $0x59] sm:$0x3f]
      %v1165 = vld [vmem:[%s978 + $0x61] sm:$0xff]
      %v1166 = vld [vmem:[%s978 + $0x69] sm:$0x3f]
      %v1167 = vld [vmem:[%s978 + $0x71] sm:$0xff]
      %v1168 = vld [vmem:[%s978 + $0x79] sm:$0x3f]
      %v1169 = vld [vmem:[%s978 + $0x81] sm:$0xff]
      %v1170 = vld [vmem:[%s978 + $0x89] sm:$0x3f]
      %v1171 = vld [vmem:[%s978 + $0x91] sm:$0xff]
      %v1172 = vld [vmem:[%s978 + $0x99] sm:$0x3f]
      %v1173 = vld [vmem:[%s978 + $0xa1] sm:$0xff]
      %v1174 = vld [vmem:[%s978 + $0xa9] sm:$0x3f]
      %v1175 = vld [vmem:[%s978 + $0xb1] sm:$0xff]
      %v1176 = vld [vmem:[%s978 + $0xb9] sm:$0x3f]
      %v1177 = vld [vmem:[%s978 + $0xc1] sm:$0xff]
      %v1178 = vld [vmem:[%s978 + $0xc9] sm:$0x3f]
      %v1179 = vld [vmem:[%s978 + $0xd1] sm:$0xff]
      %v1180 = vld [vmem:[%s978 + $0xd9] sm:$0x3f]
      %s1181 = sadd.s32 %s45, 13
      %s1182 = sld [smem:[#allocation2 + %s1181]]
      %v1183 = vstv %s1182
      %v1184 = vmul.f32 %v1183, %v1153
      %v1185 = vmul.f32 %v1183, %v1154
      %v1186 = vmul.f32 %v1183, %v1155
      %v1187 = vmul.f32 %v1183, %v1156
      %v1188 = vmul.f32 %v1183, %v1157
      %v1189 = vmul.f32 %v1183, %v1158
      %v1190 = vmul.f32 %v1183, %v1159
      %v1191 = vmul.f32 %v1183, %v1160
      %v1192 = vmul.f32 %v1183, %v1161
      %v1193 = vmul.f32 %v1183, %v1162
      %v1194 = vmul.f32 %v1183, %v1163
      %v1195 = vmul.f32 %v1183, %v1164
      %v1196 = vmul.f32 %v1183, %v1165
      %v1197 = vmul.f32 %v1183, %v1166
      %v1198 = vmul.f32 %v1183, %v1167
      %v1199 = vmul.f32 %v1183, %v1168
      %v1200 = vmul.f32 %v1183, %v1169
      %v1201 = vmul.f32 %v1183, %v1170
      %v1202 = vmul.f32 %v1183, %v1171
      %v1203 = vmul.f32 %v1183, %v1172
      %v1204 = vmul.f32 %v1183, %v1173
      %v1205 = vmul.f32 %v1183, %v1174
      %v1206 = vmul.f32 %v1183, %v1175
      %v1207 = vmul.f32 %v1183, %v1176
      %v1208 = vmul.f32 %v1183, %v1177
      %v1209 = vmul.f32 %v1183, %v1178
      %v1210 = vmul.f32 %v1183, %v1179
      %v1211 = vmul.f32 %v1183, %v1180
      %v1212 = vadd.f32 %v1125, %v1184
      %v1213 = vadd.f32 %v1126, %v1185
      %v1214 = vadd.f32 %v1127, %v1186
      %v1215 = vadd.f32 %v1128, %v1187
      %v1216 = vadd.f32 %v1129, %v1188
      %v1217 = vadd.f32 %v1130, %v1189
      %v1218 = vadd.f32 %v1131, %v1190
      %v1219 = vadd.f32 %v1132, %v1191
      %v1220 = vadd.f32 %v1133, %v1192
      %v1221 = vadd.f32 %v1134, %v1193
      %v1222 = vadd.f32 %v1135, %v1194
      %v1223 = vadd.f32 %v1136, %v1195
      %v1224 = vadd.f32 %v1137, %v1196
      %v1225 = vadd.f32 %v1138, %v1197
      %v1226 = vadd.f32 %v1139, %v1198
      %v1227 = vadd.f32 %v1140, %v1199
      %v1228 = vadd.f32 %v1141, %v1200
      %v1229 = vadd.f32 %v1142, %v1201
      %v1230 = vadd.f32 %v1143, %v1202
      %v1231 = vadd.f32 %v1144, %v1203
      %v1232 = vadd.f32 %v1145, %v1204
      %v1233 = vadd.f32 %v1146, %v1205
      %v1234 = vadd.f32 %v1147, %v1206
      %v1235 = vadd.f32 %v1148, %v1207
      %v1236 = vadd.f32 %v1149, %v1208
      %v1237 = vadd.f32 %v1150, %v1209
      %v1238 = vadd.f32 %v1151, %v1210
      %v1239 = vadd.f32 %v1152, %v1211
      %v1240 = vld [vmem:[%s890 + $0x2] sm:$0xff]
      %v1241 = vld [vmem:[%s890 + $0xa] sm:$0x3f]
      %v1242 = vld [vmem:[%s890 + $0x12] sm:$0xff]
      %v1243 = vld [vmem:[%s890 + $0x1a] sm:$0x3f]
      %v1244 = vld [vmem:[%s890 + $0x22] sm:$0xff]
      %v1245 = vld [vmem:[%s890 + $0x2a] sm:$0x3f]
      %v1246 = vld [vmem:[%s890 + $0x32] sm:$0xff]
      %v1247 = vld [vmem:[%s890 + $0x3a] sm:$0x3f]
      %v1248 = vld [vmem:[%s890 + $0x42] sm:$0xff]
      %v1249 = vld [vmem:[%s890 + $0x4a] sm:$0x3f]
      %v1250 = vld [vmem:[%s890 + $0x52] sm:$0xff]
      %v1251 = vld [vmem:[%s890 + $0x5a] sm:$0x3f]
      %v1252 = vld [vmem:[%s890 + $0x62] sm:$0xff]
      %v1253 = vld [vmem:[%s890 + $0x6a] sm:$0x3f]
      %v1254 = vld [vmem:[%s890 + $0x72] sm:$0xff]
      %v1255 = vld [vmem:[%s890 + $0x7a] sm:$0x3f]
      %v1256 = vld [vmem:[%s890 + $0x82] sm:$0xff]
      %v1257 = vld [vmem:[%s890 + $0x8a] sm:$0x3f]
      %v1258 = vld [vmem:[%s890 + $0x92] sm:$0xff]
      %v1259 = vld [vmem:[%s890 + $0x9a] sm:$0x3f]
      %v1260 = vld [vmem:[%s890 + $0xa2] sm:$0xff]
      %v1261 = vld [vmem:[%s890 + $0xaa] sm:$0x3f]
      %v1262 = vld [vmem:[%s890 + $0xb2] sm:$0xff]
      %v1263 = vld [vmem:[%s890 + $0xba] sm:$0x3f]
      %v1264 = vld [vmem:[%s890 + $0xc2] sm:$0xff]
      %v1265 = vld [vmem:[%s890 + $0xca] sm:$0x3f]
      %v1266 = vld [vmem:[%s890 + $0xd2] sm:$0xff]
      %v1267 = vld [vmem:[%s890 + $0xda] sm:$0x3f]
      %s1268 = sadd.s32 %s45, 14
      %s1269 = sld [smem:[#allocation2 + %s1268]]
      %v1270 = vstv %s1269
      %v1271 = vmul.f32 %v1270, %v1240
      %v1272 = vmul.f32 %v1270, %v1241
      %v1273 = vmul.f32 %v1270, %v1242
      %v1274 = vmul.f32 %v1270, %v1243
      %v1275 = vmul.f32 %v1270, %v1244
      %v1276 = vmul.f32 %v1270, %v1245
      %v1277 = vmul.f32 %v1270, %v1246
      %v1278 = vmul.f32 %v1270, %v1247
      %v1279 = vmul.f32 %v1270, %v1248
      %v1280 = vmul.f32 %v1270, %v1249
      %v1281 = vmul.f32 %v1270, %v1250
      %v1282 = vmul.f32 %v1270, %v1251
      %v1283 = vmul.f32 %v1270, %v1252
      %v1284 = vmul.f32 %v1270, %v1253
      %v1285 = vmul.f32 %v1270, %v1254
      %v1286 = vmul.f32 %v1270, %v1255
      %v1287 = vmul.f32 %v1270, %v1256
      %v1288 = vmul.f32 %v1270, %v1257
      %v1289 = vmul.f32 %v1270, %v1258
      %v1290 = vmul.f32 %v1270, %v1259
      %v1291 = vmul.f32 %v1270, %v1260
      %v1292 = vmul.f32 %v1270, %v1261
      %v1293 = vmul.f32 %v1270, %v1262
      %v1294 = vmul.f32 %v1270, %v1263
      %v1295 = vmul.f32 %v1270, %v1264
      %v1296 = vmul.f32 %v1270, %v1265
      %v1297 = vmul.f32 %v1270, %v1266
      %v1298 = vmul.f32 %v1270, %v1267
      %v1299 = vadd.f32 %v1212, %v1271
      %v1300 = vadd.f32 %v1213, %v1272
      %v1301 = vadd.f32 %v1214, %v1273
      %v1302 = vadd.f32 %v1215, %v1274
      %v1303 = vadd.f32 %v1216, %v1275
      %v1304 = vadd.f32 %v1217, %v1276
      %v1305 = vadd.f32 %v1218, %v1277
      %v1306 = vadd.f32 %v1219, %v1278
      %v1307 = vadd.f32 %v1220, %v1279
      %v1308 = vadd.f32 %v1221, %v1280
      %v1309 = vadd.f32 %v1222, %v1281
      %v1310 = vadd.f32 %v1223, %v1282
      %v1311 = vadd.f32 %v1224, %v1283
      %v1312 = vadd.f32 %v1225, %v1284
      %v1313 = vadd.f32 %v1226, %v1285
      %v1314 = vadd.f32 %v1227, %v1286
      %v1315 = vadd.f32 %v1228, %v1287
      %v1316 = vadd.f32 %v1229, %v1288
      %v1317 = vadd.f32 %v1230, %v1289
      %v1318 = vadd.f32 %v1231, %v1290
      %v1319 = vadd.f32 %v1232, %v1291
      %v1320 = vadd.f32 %v1233, %v1292
      %v1321 = vadd.f32 %v1234, %v1293
      %v1322 = vadd.f32 %v1235, %v1294
      %v1323 = vadd.f32 %v1236, %v1295
      %v1324 = vadd.f32 %v1237, %v1296
      %v1325 = vadd.f32 %v1238, %v1297
      %v1326 = vadd.f32 %v1239, %v1298
      %s1327 = scalar_lea.vmem %s2, 528
      %v1328 = vld [vmem:[%s1327] sm:$0xff]
      %v1329 = vld [vmem:[%s1327 + $0x8] sm:$0x3f]
      %v1330 = vld [vmem:[%s1327 + $0x10] sm:$0xff]
      %v1331 = vld [vmem:[%s1327 + $0x18] sm:$0x3f]
      %v1332 = vld [vmem:[%s1327 + $0x20] sm:$0xff]
      %v1333 = vld [vmem:[%s1327 + $0x28] sm:$0x3f]
      %v1334 = vld [vmem:[%s1327 + $0x30] sm:$0xff]
      %v1335 = vld [vmem:[%s1327 + $0x38] sm:$0x3f]
      %v1336 = vld [vmem:[%s1327 + $0x40] sm:$0xff]
      %v1337 = vld [vmem:[%s1327 + $0x48] sm:$0x3f]
      %v1338 = vld [vmem:[%s1327 + $0x50] sm:$0xff]
      %v1339 = vld [vmem:[%s1327 + $0x58] sm:$0x3f]
      %v1340 = vld [vmem:[%s1327 + $0x60] sm:$0xff]
      %v1341 = vld [vmem:[%s1327 + $0x68] sm:$0x3f]
      %v1342 = vld [vmem:[%s1327 + $0x70] sm:$0xff]
      %v1343 = vld [vmem:[%s1327 + $0x78] sm:$0x3f]
      %v1344 = vld [vmem:[%s1327 + $0x80] sm:$0xff]
      %v1345 = vld [vmem:[%s1327 + $0x88] sm:$0x3f]
      %v1346 = vld [vmem:[%s1327 + $0x90] sm:$0xff]
      %v1347 = vld [vmem:[%s1327 + $0x98] sm:$0x3f]
      %v1348 = vld [vmem:[%s1327 + $0xa0] sm:$0xff]
      %v1349 = vld [vmem:[%s1327 + $0xa8] sm:$0x3f]
      %v1350 = vld [vmem:[%s1327 + $0xb0] sm:$0xff]
      %v1351 = vld [vmem:[%s1327 + $0xb8] sm:$0x3f]
      %v1352 = vld [vmem:[%s1327 + $0xc0] sm:$0xff]
      %v1353 = vld [vmem:[%s1327 + $0xc8] sm:$0x3f]
      %v1354 = vld [vmem:[%s1327 + $0xd0] sm:$0xff]
      %v1355 = vld [vmem:[%s1327 + $0xd8] sm:$0x3f]
      %s1356 = sadd.s32 %s45, 15
      %s1357 = sld [smem:[#allocation2 + %s1356]]
      %v1358 = vstv %s1357
      %v1359 = vmul.f32 %v1358, %v1328
      %v1360 = vmul.f32 %v1358, %v1329
      %v1361 = vmul.f32 %v1358, %v1330
      %v1362 = vmul.f32 %v1358, %v1331
      %v1363 = vmul.f32 %v1358, %v1332
      %v1364 = vmul.f32 %v1358, %v1333
      %v1365 = vmul.f32 %v1358, %v1334
      %v1366 = vmul.f32 %v1358, %v1335
      %v1367 = vmul.f32 %v1358, %v1336
      %v1368 = vmul.f32 %v1358, %v1337
      %v1369 = vmul.f32 %v1358, %v1338
      %v1370 = vmul.f32 %v1358, %v1339
      %v1371 = vmul.f32 %v1358, %v1340
      %v1372 = vmul.f32 %v1358, %v1341
      %v1373 = vmul.f32 %v1358, %v1342
      %v1374 = vmul.f32 %v1358, %v1343
      %v1375 = vmul.f32 %v1358, %v1344
      %v1376 = vmul.f32 %v1358, %v1345
      %v1377 = vmul.f32 %v1358, %v1346
      %v1378 = vmul.f32 %v1358, %v1347
      %v1379 = vmul.f32 %v1358, %v1348
      %v1380 = vmul.f32 %v1358, %v1349
      %v1381 = vmul.f32 %v1358, %v1350
      %v1382 = vmul.f32 %v1358, %v1351
      %v1383 = vmul.f32 %v1358, %v1352
      %v1384 = vmul.f32 %v1358, %v1353
      %v1385 = vmul.f32 %v1358, %v1354
      %v1386 = vmul.f32 %v1358, %v1355
      %v1387 = vadd.f32 %v1299, %v1359
      %v1388 = vadd.f32 %v1300, %v1360
      %v1389 = vadd.f32 %v1301, %v1361
      %v1390 = vadd.f32 %v1302, %v1362
      %v1391 = vadd.f32 %v1303, %v1363
      %v1392 = vadd.f32 %v1304, %v1364
      %v1393 = vadd.f32 %v1305, %v1365
      %v1394 = vadd.f32 %v1306, %v1366
      %v1395 = vadd.f32 %v1307, %v1367
      %v1396 = vadd.f32 %v1308, %v1368
      %v1397 = vadd.f32 %v1309, %v1369
      %v1398 = vadd.f32 %v1310, %v1370
      %v1399 = vadd.f32 %v1311, %v1371
      %v1400 = vadd.f32 %v1312, %v1372
      %v1401 = vadd.f32 %v1313, %v1373
      %v1402 = vadd.f32 %v1314, %v1374
      %v1403 = vadd.f32 %v1315, %v1375
      %v1404 = vadd.f32 %v1316, %v1376
      %v1405 = vadd.f32 %v1317, %v1377
      %v1406 = vadd.f32 %v1318, %v1378
      %v1407 = vadd.f32 %v1319, %v1379
      %v1408 = vadd.f32 %v1320, %v1380
      %v1409 = vadd.f32 %v1321, %v1381
      %v1410 = vadd.f32 %v1322, %v1382
      %v1411 = vadd.f32 %v1323, %v1383
      %v1412 = vadd.f32 %v1324, %v1384
      %v1413 = vadd.f32 %v1325, %v1385
      %v1414 = vadd.f32 %v1326, %v1386
      %s1415 = scalar_lea.vmem %s2, 784
      %v1416 = vld [vmem:[%s1415] sm:$0xff]
      %v1417 = vld [vmem:[%s1415 + $0x8] sm:$0x3f]
      %v1418 = vld [vmem:[%s1415 + $0x10] sm:$0xff]
      %v1419 = vld [vmem:[%s1415 + $0x18] sm:$0x3f]
      %v1420 = vld [vmem:[%s1415 + $0x20] sm:$0xff]
      %v1421 = vld [vmem:[%s1415 + $0x28] sm:$0x3f]
      %v1422 = vld [vmem:[%s1415 + $0x30] sm:$0xff]
      %v1423 = vld [vmem:[%s1415 + $0x38] sm:$0x3f]
      %v1424 = vld [vmem:[%s1415 + $0x40] sm:$0xff]
      %v1425 = vld [vmem:[%s1415 + $0x48] sm:$0x3f]
      %v1426 = vld [vmem:[%s1415 + $0x50] sm:$0xff]
      %v1427 = vld [vmem:[%s1415 + $0x58] sm:$0x3f]
      %v1428 = vld [vmem:[%s1415 + $0x60] sm:$0xff]
      %v1429 = vld [vmem:[%s1415 + $0x68] sm:$0x3f]
      %v1430 = vld [vmem:[%s1415 + $0x70] sm:$0xff]
      %v1431 = vld [vmem:[%s1415 + $0x78] sm:$0x3f]
      %v1432 = vld [vmem:[%s1415 + $0x80] sm:$0xff]
      %v1433 = vld [vmem:[%s1415 + $0x88] sm:$0x3f]
      %v1434 = vld [vmem:[%s1415 + $0x90] sm:$0xff]
      %v1435 = vld [vmem:[%s1415 + $0x98] sm:$0x3f]
      %v1436 = vld [vmem:[%s1415 + $0xa0] sm:$0xff]
      %v1437 = vld [vmem:[%s1415 + $0xa8] sm:$0x3f]
      %v1438 = vld [vmem:[%s1415 + $0xb0] sm:$0xff]
      %v1439 = vld [vmem:[%s1415 + $0xb8] sm:$0x3f]
      %v1440 = vld [vmem:[%s1415 + $0xc0] sm:$0xff]
      %v1441 = vld [vmem:[%s1415 + $0xc8] sm:$0x3f]
      %v1442 = vld [vmem:[%s1415 + $0xd0] sm:$0xff]
      %v1443 = vld [vmem:[%s1415 + $0xd8] sm:$0x3f]
      %s1444 = sadd.s32 %s45, 16
      %s1445 = sld [smem:[#allocation2 + %s1444]]
      %v1446 = vstv %s1445
      %v1447 = vmul.f32 %v1446, %v1416
      %v1448 = vmul.f32 %v1446, %v1417
      %v1449 = vmul.f32 %v1446, %v1418
      %v1450 = vmul.f32 %v1446, %v1419
      %v1451 = vmul.f32 %v1446, %v1420
      %v1452 = vmul.f32 %v1446, %v1421
      %v1453 = vmul.f32 %v1446, %v1422
      %v1454 = vmul.f32 %v1446, %v1423
      %v1455 = vmul.f32 %v1446, %v1424
      %v1456 = vmul.f32 %v1446, %v1425
      %v1457 = vmul.f32 %v1446, %v1426
      %v1458 = vmul.f32 %v1446, %v1427
      %v1459 = vmul.f32 %v1446, %v1428
      %v1460 = vmul.f32 %v1446, %v1429
      %v1461 = vmul.f32 %v1446, %v1430
      %v1462 = vmul.f32 %v1446, %v1431
      %v1463 = vmul.f32 %v1446, %v1432
      %v1464 = vmul.f32 %v1446, %v1433
      %v1465 = vmul.f32 %v1446, %v1434
      %v1466 = vmul.f32 %v1446, %v1435
      %v1467 = vmul.f32 %v1446, %v1436
      %v1468 = vmul.f32 %v1446, %v1437
      %v1469 = vmul.f32 %v1446, %v1438
      %v1470 = vmul.f32 %v1446, %v1439
      %v1471 = vmul.f32 %v1446, %v1440
      %v1472 = vmul.f32 %v1446, %v1441
      %v1473 = vmul.f32 %v1446, %v1442
      %v1474 = vmul.f32 %v1446, %v1443
      %v1475 = vadd.f32 %v1387, %v1447
      %v1476 = vadd.f32 %v1388, %v1448
      %v1477 = vadd.f32 %v1389, %v1449
      %v1478 = vadd.f32 %v1390, %v1450
      %v1479 = vadd.f32 %v1391, %v1451
      %v1480 = vadd.f32 %v1392, %v1452
      %v1481 = vadd.f32 %v1393, %v1453
      %v1482 = vadd.f32 %v1394, %v1454
      %v1483 = vadd.f32 %v1395, %v1455
      %v1484 = vadd.f32 %v1396, %v1456
      %v1485 = vadd.f32 %v1397, %v1457
      %v1486 = vadd.f32 %v1398, %v1458
      %v1487 = vadd.f32 %v1399, %v1459
      %v1488 = vadd.f32 %v1400, %v1460
      %v1489 = vadd.f32 %v1401, %v1461
      %v1490 = vadd.f32 %v1402, %v1462
      %v1491 = vadd.f32 %v1403, %v1463
      %v1492 = vadd.f32 %v1404, %v1464
      %v1493 = vadd.f32 %v1405, %v1465
      %v1494 = vadd.f32 %v1406, %v1466
      %v1495 = vadd.f32 %v1407, %v1467
      %v1496 = vadd.f32 %v1408, %v1468
      %v1497 = vadd.f32 %v1409, %v1469
      %v1498 = vadd.f32 %v1410, %v1470
      %v1499 = vadd.f32 %v1411, %v1471
      %v1500 = vadd.f32 %v1412, %v1472
      %v1501 = vadd.f32 %v1413, %v1473
      %v1502 = vadd.f32 %v1414, %v1474
      %v1503 = vld [vmem:[%s1327 + $0x1] sm:$0xff]
      %v1504 = vld [vmem:[%s1327 + $0x9] sm:$0x3f]
      %v1505 = vld [vmem:[%s1327 + $0x11] sm:$0xff]
      %v1506 = vld [vmem:[%s1327 + $0x19] sm:$0x3f]
      %v1507 = vld [vmem:[%s1327 + $0x21] sm:$0xff]
      %v1508 = vld [vmem:[%s1327 + $0x29] sm:$0x3f]
      %v1509 = vld [vmem:[%s1327 + $0x31] sm:$0xff]
      %v1510 = vld [vmem:[%s1327 + $0x39] sm:$0x3f]
      %v1511 = vld [vmem:[%s1327 + $0x41] sm:$0xff]
      %v1512 = vld [vmem:[%s1327 + $0x49] sm:$0x3f]
      %v1513 = vld [vmem:[%s1327 + $0x51] sm:$0xff]
      %v1514 = vld [vmem:[%s1327 + $0x59] sm:$0x3f]
      %v1515 = vld [vmem:[%s1327 + $0x61] sm:$0xff]
      %v1516 = vld [vmem:[%s1327 + $0x69] sm:$0x3f]
      %v1517 = vld [vmem:[%s1327 + $0x71] sm:$0xff]
      %v1518 = vld [vmem:[%s1327 + $0x79] sm:$0x3f]
      %v1519 = vld [vmem:[%s1327 + $0x81] sm:$0xff]
      %v1520 = vld [vmem:[%s1327 + $0x89] sm:$0x3f]
      %v1521 = vld [vmem:[%s1327 + $0x91] sm:$0xff]
      %v1522 = vld [vmem:[%s1327 + $0x99] sm:$0x3f]
      %v1523 = vld [vmem:[%s1327 + $0xa1] sm:$0xff]
      %v1524 = vld [vmem:[%s1327 + $0xa9] sm:$0x3f]
      %v1525 = vld [vmem:[%s1327 + $0xb1] sm:$0xff]
      %v1526 = vld [vmem:[%s1327 + $0xb9] sm:$0x3f]
      %v1527 = vld [vmem:[%s1327 + $0xc1] sm:$0xff]
      %v1528 = vld [vmem:[%s1327 + $0xc9] sm:$0x3f]
      %v1529 = vld [vmem:[%s1327 + $0xd1] sm:$0xff]
      %v1530 = vld [vmem:[%s1327 + $0xd9] sm:$0x3f]
      %s1531 = sadd.s32 %s45, 17
      %s1532 = sld [smem:[#allocation2 + %s1531]]
      %v1533 = vstv %s1532
      %v1534 = vmul.f32 %v1533, %v1503
      %v1535 = vmul.f32 %v1533, %v1504
      %v1536 = vmul.f32 %v1533, %v1505
      %v1537 = vmul.f32 %v1533, %v1506
      %v1538 = vmul.f32 %v1533, %v1507
      %v1539 = vmul.f32 %v1533, %v1508
      %v1540 = vmul.f32 %v1533, %v1509
      %v1541 = vmul.f32 %v1533, %v1510
      %v1542 = vmul.f32 %v1533, %v1511
      %v1543 = vmul.f32 %v1533, %v1512
      %v1544 = vmul.f32 %v1533, %v1513
      %v1545 = vmul.f32 %v1533, %v1514
      %v1546 = vmul.f32 %v1533, %v1515
      %v1547 = vmul.f32 %v1533, %v1516
      %v1548 = vmul.f32 %v1533, %v1517
      %v1549 = vmul.f32 %v1533, %v1518
      %v1550 = vmul.f32 %v1533, %v1519
      %v1551 = vmul.f32 %v1533, %v1520
      %v1552 = vmul.f32 %v1533, %v1521
      %v1553 = vmul.f32 %v1533, %v1522
      %v1554 = vmul.f32 %v1533, %v1523
      %v1555 = vmul.f32 %v1533, %v1524
      %v1556 = vmul.f32 %v1533, %v1525
      %v1557 = vmul.f32 %v1533, %v1526
      %v1558 = vmul.f32 %v1533, %v1527
      %v1559 = vmul.f32 %v1533, %v1528
      %v1560 = vmul.f32 %v1533, %v1529
      %v1561 = vmul.f32 %v1533, %v1530
      %v1562 = vadd.f32 %v1475, %v1534
      %v1563 = vadd.f32 %v1476, %v1535
      %v1564 = vadd.f32 %v1477, %v1536
      %v1565 = vadd.f32 %v1478, %v1537
      %v1566 = vadd.f32 %v1479, %v1538
      %v1567 = vadd.f32 %v1480, %v1539
      %v1568 = vadd.f32 %v1481, %v1540
      %v1569 = vadd.f32 %v1482, %v1541
      %v1570 = vadd.f32 %v1483, %v1542
      %v1571 = vadd.f32 %v1484, %v1543
      %v1572 = vadd.f32 %v1485, %v1544
      %v1573 = vadd.f32 %v1486, %v1545
      %v1574 = vadd.f32 %v1487, %v1546
      %v1575 = vadd.f32 %v1488, %v1547
      %v1576 = vadd.f32 %v1489, %v1548
      %v1577 = vadd.f32 %v1490, %v1549
      %v1578 = vadd.f32 %v1491, %v1550
      %v1579 = vadd.f32 %v1492, %v1551
      %v1580 = vadd.f32 %v1493, %v1552
      %v1581 = vadd.f32 %v1494, %v1553
      %v1582 = vadd.f32 %v1495, %v1554
      %v1583 = vadd.f32 %v1496, %v1555
      %v1584 = vadd.f32 %v1497, %v1556
      %v1585 = vadd.f32 %v1498, %v1557
      %v1586 = vadd.f32 %v1499, %v1558
      %v1587 = vadd.f32 %v1500, %v1559
      %v1588 = vadd.f32 %v1501, %v1560
      %v1589 = vadd.f32 %v1502, %v1561
      %v1590 = vld [vmem:[%s1415 + $0x1] sm:$0xff]
      %v1591 = vld [vmem:[%s1415 + $0x9] sm:$0x3f]
      %v1592 = vld [vmem:[%s1415 + $0x11] sm:$0xff]
      %v1593 = vld [vmem:[%s1415 + $0x19] sm:$0x3f]
      %v1594 = vld [vmem:[%s1415 + $0x21] sm:$0xff]
      %v1595 = vld [vmem:[%s1415 + $0x29] sm:$0x3f]
      %v1596 = vld [vmem:[%s1415 + $0x31] sm:$0xff]
      %v1597 = vld [vmem:[%s1415 + $0x39] sm:$0x3f]
      %v1598 = vld [vmem:[%s1415 + $0x41] sm:$0xff]
      %v1599 = vld [vmem:[%s1415 + $0x49] sm:$0x3f]
      %v1600 = vld [vmem:[%s1415 + $0x51] sm:$0xff]
      %v1601 = vld [vmem:[%s1415 + $0x59] sm:$0x3f]
      %v1602 = vld [vmem:[%s1415 + $0x61] sm:$0xff]
      %v1603 = vld [vmem:[%s1415 + $0x69] sm:$0x3f]
      %v1604 = vld [vmem:[%s1415 + $0x71] sm:$0xff]
      %v1605 = vld [vmem:[%s1415 + $0x79] sm:$0x3f]
      %v1606 = vld [vmem:[%s1415 + $0x81] sm:$0xff]
      %v1607 = vld [vmem:[%s1415 + $0x89] sm:$0x3f]
      %v1608 = vld [vmem:[%s1415 + $0x91] sm:$0xff]
      %v1609 = vld [vmem:[%s1415 + $0x99] sm:$0x3f]
      %v1610 = vld [vmem:[%s1415 + $0xa1] sm:$0xff]
      %v1611 = vld [vmem:[%s1415 + $0xa9] sm:$0x3f]
      %v1612 = vld [vmem:[%s1415 + $0xb1] sm:$0xff]
      %v1613 = vld [vmem:[%s1415 + $0xb9] sm:$0x3f]
      %v1614 = vld [vmem:[%s1415 + $0xc1] sm:$0xff]
      %v1615 = vld [vmem:[%s1415 + $0xc9] sm:$0x3f]
      %v1616 = vld [vmem:[%s1415 + $0xd1] sm:$0xff]
      %v1617 = vld [vmem:[%s1415 + $0xd9] sm:$0x3f]
      %s1618 = sadd.s32 %s45, 18
      %s1619 = sld [smem:[#allocation2 + %s1618]]
      %v1620 = vstv %s1619
      %v1621 = vmul.f32 %v1620, %v1590
      %v1622 = vmul.f32 %v1620, %v1591
      %v1623 = vmul.f32 %v1620, %v1592
      %v1624 = vmul.f32 %v1620, %v1593
      %v1625 = vmul.f32 %v1620, %v1594
      %v1626 = vmul.f32 %v1620, %v1595
      %v1627 = vmul.f32 %v1620, %v1596
      %v1628 = vmul.f32 %v1620, %v1597
      %v1629 = vmul.f32 %v1620, %v1598
      %v1630 = vmul.f32 %v1620, %v1599
      %v1631 = vmul.f32 %v1620, %v1600
      %v1632 = vmul.f32 %v1620, %v1601
      %v1633 = vmul.f32 %v1620, %v1602
      %v1634 = vmul.f32 %v1620, %v1603
      %v1635 = vmul.f32 %v1620, %v1604
      %v1636 = vmul.f32 %v1620, %v1605
      %v1637 = vmul.f32 %v1620, %v1606
      %v1638 = vmul.f32 %v1620, %v1607
      %v1639 = vmul.f32 %v1620, %v1608
      %v1640 = vmul.f32 %v1620, %v1609
      %v1641 = vmul.f32 %v1620, %v1610
      %v1642 = vmul.f32 %v1620, %v1611
      %v1643 = vmul.f32 %v1620, %v1612
      %v1644 = vmul.f32 %v1620, %v1613
      %v1645 = vmul.f32 %v1620, %v1614
      %v1646 = vmul.f32 %v1620, %v1615
      %v1647 = vmul.f32 %v1620, %v1616
      %v1648 = vmul.f32 %v1620, %v1617
      %v1649 = vadd.f32 %v1562, %v1621
      %v1650 = vadd.f32 %v1563, %v1622
      %v1651 = vadd.f32 %v1564, %v1623
      %v1652 = vadd.f32 %v1565, %v1624
      %v1653 = vadd.f32 %v1566, %v1625
      %v1654 = vadd.f32 %v1567, %v1626
      %v1655 = vadd.f32 %v1568, %v1627
      %v1656 = vadd.f32 %v1569, %v1628
      %v1657 = vadd.f32 %v1570, %v1629
      %v1658 = vadd.f32 %v1571, %v1630
      %v1659 = vadd.f32 %v1572, %v1631
      %v1660 = vadd.f32 %v1573, %v1632
      %v1661 = vadd.f32 %v1574, %v1633
      %v1662 = vadd.f32 %v1575, %v1634
      %v1663 = vadd.f32 %v1576, %v1635
      %v1664 = vadd.f32 %v1577, %v1636
      %v1665 = vadd.f32 %v1578, %v1637
      %v1666 = vadd.f32 %v1579, %v1638
      %v1667 = vadd.f32 %v1580, %v1639
      %v1668 = vadd.f32 %v1581, %v1640
      %v1669 = vadd.f32 %v1582, %v1641
      %v1670 = vadd.f32 %v1583, %v1642
      %v1671 = vadd.f32 %v1584, %v1643
      %v1672 = vadd.f32 %v1585, %v1644
      %v1673 = vadd.f32 %v1586, %v1645
      %v1674 = vadd.f32 %v1587, %v1646
      %v1675 = vadd.f32 %v1588, %v1647
      %v1676 = vadd.f32 %v1589, %v1648
      %v1677 = vld [vmem:[%s1327 + $0x2] sm:$0xff]
      %v1678 = vld [vmem:[%s1327 + $0xa] sm:$0x3f]
      %v1679 = vld [vmem:[%s1327 + $0x12] sm:$0xff]
      %v1680 = vld [vmem:[%s1327 + $0x1a] sm:$0x3f]
      %v1681 = vld [vmem:[%s1327 + $0x22] sm:$0xff]
      %v1682 = vld [vmem:[%s1327 + $0x2a] sm:$0x3f]
      %v1683 = vld [vmem:[%s1327 + $0x32] sm:$0xff]
      %v1684 = vld [vmem:[%s1327 + $0x3a] sm:$0x3f]
      %v1685 = vld [vmem:[%s1327 + $0x42] sm:$0xff]
      %v1686 = vld [vmem:[%s1327 + $0x4a] sm:$0x3f]
      %v1687 = vld [vmem:[%s1327 + $0x52] sm:$0xff]
      %v1688 = vld [vmem:[%s1327 + $0x5a] sm:$0x3f]
      %v1689 = vld [vmem:[%s1327 + $0x62] sm:$0xff]
      %v1690 = vld [vmem:[%s1327 + $0x6a] sm:$0x3f]
      %v1691 = vld [vmem:[%s1327 + $0x72] sm:$0xff]
      %v1692 = vld [vmem:[%s1327 + $0x7a] sm:$0x3f]
      %v1693 = vld [vmem:[%s1327 + $0x82] sm:$0xff]
      %v1694 = vld [vmem:[%s1327 + $0x8a] sm:$0x3f]
      %v1695 = vld [vmem:[%s1327 + $0x92] sm:$0xff]
      %v1696 = vld [vmem:[%s1327 + $0x9a] sm:$0x3f]
      %v1697 = vld [vmem:[%s1327 + $0xa2] sm:$0xff]
      %v1698 = vld [vmem:[%s1327 + $0xaa] sm:$0x3f]
      %v1699 = vld [vmem:[%s1327 + $0xb2] sm:$0xff]
      %v1700 = vld [vmem:[%s1327 + $0xba] sm:$0x3f]
      %v1701 = vld [vmem:[%s1327 + $0xc2] sm:$0xff]
      %v1702 = vld [vmem:[%s1327 + $0xca] sm:$0x3f]
      %v1703 = vld [vmem:[%s1327 + $0xd2] sm:$0xff]
      %v1704 = vld [vmem:[%s1327 + $0xda] sm:$0x3f]
      %s1705 = sadd.s32 %s45, 19
      %s1706 = sld [smem:[#allocation2 + %s1705]]
      %v1707 = vstv %s1706
      %v1708 = vmul.f32 %v1707, %v1677
      %v1709 = vmul.f32 %v1707, %v1678
      %v1710 = vmul.f32 %v1707, %v1679
      %v1711 = vmul.f32 %v1707, %v1680
      %v1712 = vmul.f32 %v1707, %v1681
      %v1713 = vmul.f32 %v1707, %v1682
      %v1714 = vmul.f32 %v1707, %v1683
      %v1715 = vmul.f32 %v1707, %v1684
      %v1716 = vmul.f32 %v1707, %v1685
      %v1717 = vmul.f32 %v1707, %v1686
      %v1718 = vmul.f32 %v1707, %v1687
      %v1719 = vmul.f32 %v1707, %v1688
      %v1720 = vmul.f32 %v1707, %v1689
      %v1721 = vmul.f32 %v1707, %v1690
      %v1722 = vmul.f32 %v1707, %v1691
      %v1723 = vmul.f32 %v1707, %v1692
      %v1724 = vmul.f32 %v1707, %v1693
      %v1725 = vmul.f32 %v1707, %v1694
      %v1726 = vmul.f32 %v1707, %v1695
      %v1727 = vmul.f32 %v1707, %v1696
      %v1728 = vmul.f32 %v1707, %v1697
      %v1729 = vmul.f32 %v1707, %v1698
      %v1730 = vmul.f32 %v1707, %v1699
      %v1731 = vmul.f32 %v1707, %v1700
      %v1732 = vmul.f32 %v1707, %v1701
      %v1733 = vmul.f32 %v1707, %v1702
      %v1734 = vmul.f32 %v1707, %v1703
      %v1735 = vmul.f32 %v1707, %v1704
      %v1736 = vadd.f32 %v1649, %v1708
      %v1737 = vadd.f32 %v1650, %v1709
      %v1738 = vadd.f32 %v1651, %v1710
      %v1739 = vadd.f32 %v1652, %v1711
      %v1740 = vadd.f32 %v1653, %v1712
      %v1741 = vadd.f32 %v1654, %v1713
      %v1742 = vadd.f32 %v1655, %v1714
      %v1743 = vadd.f32 %v1656, %v1715
      %v1744 = vadd.f32 %v1657, %v1716
      %v1745 = vadd.f32 %v1658, %v1717
      %v1746 = vadd.f32 %v1659, %v1718
      %v1747 = vadd.f32 %v1660, %v1719
      %v1748 = vadd.f32 %v1661, %v1720
      %v1749 = vadd.f32 %v1662, %v1721
      %v1750 = vadd.f32 %v1663, %v1722
      %v1751 = vadd.f32 %v1664, %v1723
      %v1752 = vadd.f32 %v1665, %v1724
      %v1753 = vadd.f32 %v1666, %v1725
      %v1754 = vadd.f32 %v1667, %v1726
      %v1755 = vadd.f32 %v1668, %v1727
      %v1756 = vadd.f32 %v1669, %v1728
      %v1757 = vadd.f32 %v1670, %v1729
      %v1758 = vadd.f32 %v1671, %v1730
      %v1759 = vadd.f32 %v1672, %v1731
      %v1760 = vadd.f32 %v1673, %v1732
      %v1761 = vadd.f32 %v1674, %v1733
      %v1762 = vadd.f32 %v1675, %v1734
      %v1763 = vadd.f32 %v1676, %v1735
      %s1764 = scalar_lea.vmem %s2, 32
      %v1765 = vld [vmem:[%s1764] sm:$0xff]
      %v1766 = vld [vmem:[%s1764 + $0x8] sm:$0x3f]
      %v1767 = vld [vmem:[%s1764 + $0x10] sm:$0xff]
      %v1768 = vld [vmem:[%s1764 + $0x18] sm:$0x3f]
      %v1769 = vld [vmem:[%s1764 + $0x20] sm:$0xff]
      %v1770 = vld [vmem:[%s1764 + $0x28] sm:$0x3f]
      %v1771 = vld [vmem:[%s1764 + $0x30] sm:$0xff]
      %v1772 = vld [vmem:[%s1764 + $0x38] sm:$0x3f]
      %v1773 = vld [vmem:[%s1764 + $0x40] sm:$0xff]
      %v1774 = vld [vmem:[%s1764 + $0x48] sm:$0x3f]
      %v1775 = vld [vmem:[%s1764 + $0x50] sm:$0xff]
      %v1776 = vld [vmem:[%s1764 + $0x58] sm:$0x3f]
      %v1777 = vld [vmem:[%s1764 + $0x60] sm:$0xff]
      %v1778 = vld [vmem:[%s1764 + $0x68] sm:$0x3f]
      %v1779 = vld [vmem:[%s1764 + $0x70] sm:$0xff]
      %v1780 = vld [vmem:[%s1764 + $0x78] sm:$0x3f]
      %v1781 = vld [vmem:[%s1764 + $0x80] sm:$0xff]
      %v1782 = vld [vmem:[%s1764 + $0x88] sm:$0x3f]
      %v1783 = vld [vmem:[%s1764 + $0x90] sm:$0xff]
      %v1784 = vld [vmem:[%s1764 + $0x98] sm:$0x3f]
      %v1785 = vld [vmem:[%s1764 + $0xa0] sm:$0xff]
      %v1786 = vld [vmem:[%s1764 + $0xa8] sm:$0x3f]
      %v1787 = vld [vmem:[%s1764 + $0xb0] sm:$0xff]
      %v1788 = vld [vmem:[%s1764 + $0xb8] sm:$0x3f]
      %v1789 = vld [vmem:[%s1764 + $0xc0] sm:$0xff]
      %v1790 = vld [vmem:[%s1764 + $0xc8] sm:$0x3f]
      %v1791 = vld [vmem:[%s1764 + $0xd0] sm:$0xff]
      %v1792 = vld [vmem:[%s1764 + $0xd8] sm:$0x3f]
      %s1793 = sadd.s32 %s45, 20
      %s1794 = sld [smem:[#allocation2 + %s1793]]
      %v1795 = vstv %s1794
      %v1796 = vmul.f32 %v1795, %v1765
      %v1797 = vmul.f32 %v1795, %v1766
      %v1798 = vmul.f32 %v1795, %v1767
      %v1799 = vmul.f32 %v1795, %v1768
      %v1800 = vmul.f32 %v1795, %v1769
      %v1801 = vmul.f32 %v1795, %v1770
      %v1802 = vmul.f32 %v1795, %v1771
      %v1803 = vmul.f32 %v1795, %v1772
      %v1804 = vmul.f32 %v1795, %v1773
      %v1805 = vmul.f32 %v1795, %v1774
      %v1806 = vmul.f32 %v1795, %v1775
      %v1807 = vmul.f32 %v1795, %v1776
      %v1808 = vmul.f32 %v1795, %v1777
      %v1809 = vmul.f32 %v1795, %v1778
      %v1810 = vmul.f32 %v1795, %v1779
      %v1811 = vmul.f32 %v1795, %v1780
      %v1812 = vmul.f32 %v1795, %v1781
      %v1813 = vmul.f32 %v1795, %v1782
      %v1814 = vmul.f32 %v1795, %v1783
      %v1815 = vmul.f32 %v1795, %v1784
      %v1816 = vmul.f32 %v1795, %v1785
      %v1817 = vmul.f32 %v1795, %v1786
      %v1818 = vmul.f32 %v1795, %v1787
      %v1819 = vmul.f32 %v1795, %v1788
      %v1820 = vmul.f32 %v1795, %v1789
      %v1821 = vmul.f32 %v1795, %v1790
      %v1822 = vmul.f32 %v1795, %v1791
      %v1823 = vmul.f32 %v1795, %v1792
      %v1824 = vadd.f32 %v1736, %v1796
      %v1825 = vadd.f32 %v1737, %v1797
      %v1826 = vadd.f32 %v1738, %v1798
      %v1827 = vadd.f32 %v1739, %v1799
      %v1828 = vadd.f32 %v1740, %v1800
      %v1829 = vadd.f32 %v1741, %v1801
      %v1830 = vadd.f32 %v1742, %v1802
      %v1831 = vadd.f32 %v1743, %v1803
      %v1832 = vadd.f32 %v1744, %v1804
      %v1833 = vadd.f32 %v1745, %v1805
      %v1834 = vadd.f32 %v1746, %v1806
      %v1835 = vadd.f32 %v1747, %v1807
      %v1836 = vadd.f32 %v1748, %v1808
      %v1837 = vadd.f32 %v1749, %v1809
      %v1838 = vadd.f32 %v1750, %v1810
      %v1839 = vadd.f32 %v1751, %v1811
      %v1840 = vadd.f32 %v1752, %v1812
      %v1841 = vadd.f32 %v1753, %v1813
      %v1842 = vadd.f32 %v1754, %v1814
      %v1843 = vadd.f32 %v1755, %v1815
      %v1844 = vadd.f32 %v1756, %v1816
      %v1845 = vadd.f32 %v1757, %v1817
      %v1846 = vadd.f32 %v1758, %v1818
      %v1847 = vadd.f32 %v1759, %v1819
      %v1848 = vadd.f32 %v1760, %v1820
      %v1849 = vadd.f32 %v1761, %v1821
      %v1850 = vadd.f32 %v1762, %v1822
      %v1851 = vadd.f32 %v1763, %v1823
      %s1852 = scalar_lea.vmem %s2, 288
      %v1853 = vld [vmem:[%s1852] sm:$0xff]
      %v1854 = vld [vmem:[%s1852 + $0x8] sm:$0x3f]
      %v1855 = vld [vmem:[%s1852 + $0x10] sm:$0xff]
      %v1856 = vld [vmem:[%s1852 + $0x18] sm:$0x3f]
      %v1857 = vld [vmem:[%s1852 + $0x20] sm:$0xff]
      %v1858 = vld [vmem:[%s1852 + $0x28] sm:$0x3f]
      %v1859 = vld [vmem:[%s1852 + $0x30] sm:$0xff]
      %v1860 = vld [vmem:[%s1852 + $0x38] sm:$0x3f]
      %v1861 = vld [vmem:[%s1852 + $0x40] sm:$0xff]
      %v1862 = vld [vmem:[%s1852 + $0x48] sm:$0x3f]
      %v1863 = vld [vmem:[%s1852 + $0x50] sm:$0xff]
      %v1864 = vld [vmem:[%s1852 + $0x58] sm:$0x3f]
      %v1865 = vld [vmem:[%s1852 + $0x60] sm:$0xff]
      %v1866 = vld [vmem:[%s1852 + $0x68] sm:$0x3f]
      %v1867 = vld [vmem:[%s1852 + $0x70] sm:$0xff]
      %v1868 = vld [vmem:[%s1852 + $0x78] sm:$0x3f]
      %v1869 = vld [vmem:[%s1852 + $0x80] sm:$0xff]
      %v1870 = vld [vmem:[%s1852 + $0x88] sm:$0x3f]
      %v1871 = vld [vmem:[%s1852 + $0x90] sm:$0xff]
      %v1872 = vld [vmem:[%s1852 + $0x98] sm:$0x3f]
      %v1873 = vld [vmem:[%s1852 + $0xa0] sm:$0xff]
      %v1874 = vld [vmem:[%s1852 + $0xa8] sm:$0x3f]
      %v1875 = vld [vmem:[%s1852 + $0xb0] sm:$0xff]
      %v1876 = vld [vmem:[%s1852 + $0xb8] sm:$0x3f]
      %v1877 = vld [vmem:[%s1852 + $0xc0] sm:$0xff]
      %v1878 = vld [vmem:[%s1852 + $0xc8] sm:$0x3f]
      %v1879 = vld [vmem:[%s1852 + $0xd0] sm:$0xff]
      %v1880 = vld [vmem:[%s1852 + $0xd8] sm:$0x3f]
      %s1881 = sadd.s32 %s45, 21
      %s1882 = sld [smem:[#allocation2 + %s1881]]
      %v1883 = vstv %s1882
      %v1884 = vmul.f32 %v1883, %v1853
      %v1885 = vmul.f32 %v1883, %v1854
      %v1886 = vmul.f32 %v1883, %v1855
      %v1887 = vmul.f32 %v1883, %v1856
      %v1888 = vmul.f32 %v1883, %v1857
      %v1889 = vmul.f32 %v1883, %v1858
      %v1890 = vmul.f32 %v1883, %v1859
      %v1891 = vmul.f32 %v1883, %v1860
      %v1892 = vmul.f32 %v1883, %v1861
      %v1893 = vmul.f32 %v1883, %v1862
      %v1894 = vmul.f32 %v1883, %v1863
      %v1895 = vmul.f32 %v1883, %v1864
      %v1896 = vmul.f32 %v1883, %v1865
      %v1897 = vmul.f32 %v1883, %v1866
      %v1898 = vmul.f32 %v1883, %v1867
      %v1899 = vmul.f32 %v1883, %v1868
      %v1900 = vmul.f32 %v1883, %v1869
      %v1901 = vmul.f32 %v1883, %v1870
      %v1902 = vmul.f32 %v1883, %v1871
      %v1903 = vmul.f32 %v1883, %v1872
      %v1904 = vmul.f32 %v1883, %v1873
      %v1905 = vmul.f32 %v1883, %v1874
      %v1906 = vmul.f32 %v1883, %v1875
      %v1907 = vmul.f32 %v1883, %v1876
      %v1908 = vmul.f32 %v1883, %v1877
      %v1909 = vmul.f32 %v1883, %v1878
      %v1910 = vmul.f32 %v1883, %v1879
      %v1911 = vmul.f32 %v1883, %v1880
      %v1912 = vadd.f32 %v1824, %v1884
      %v1913 = vadd.f32 %v1825, %v1885
      %v1914 = vadd.f32 %v1826, %v1886
      %v1915 = vadd.f32 %v1827, %v1887
      %v1916 = vadd.f32 %v1828, %v1888
      %v1917 = vadd.f32 %v1829, %v1889
      %v1918 = vadd.f32 %v1830, %v1890
      %v1919 = vadd.f32 %v1831, %v1891
      %v1920 = vadd.f32 %v1832, %v1892
      %v1921 = vadd.f32 %v1833, %v1893
      %v1922 = vadd.f32 %v1834, %v1894
      %v1923 = vadd.f32 %v1835, %v1895
      %v1924 = vadd.f32 %v1836, %v1896
      %v1925 = vadd.f32 %v1837, %v1897
      %v1926 = vadd.f32 %v1838, %v1898
      %v1927 = vadd.f32 %v1839, %v1899
      %v1928 = vadd.f32 %v1840, %v1900
      %v1929 = vadd.f32 %v1841, %v1901
      %v1930 = vadd.f32 %v1842, %v1902
      %v1931 = vadd.f32 %v1843, %v1903
      %v1932 = vadd.f32 %v1844, %v1904
      %v1933 = vadd.f32 %v1845, %v1905
      %v1934 = vadd.f32 %v1846, %v1906
      %v1935 = vadd.f32 %v1847, %v1907
      %v1936 = vadd.f32 %v1848, %v1908
      %v1937 = vadd.f32 %v1849, %v1909
      %v1938 = vadd.f32 %v1850, %v1910
      %v1939 = vadd.f32 %v1851, %v1911
      %v1940 = vld [vmem:[%s1764 + $0x1] sm:$0xff]
      %v1941 = vld [vmem:[%s1764 + $0x9] sm:$0x3f]
      %v1942 = vld [vmem:[%s1764 + $0x11] sm:$0xff]
      %v1943 = vld [vmem:[%s1764 + $0x19] sm:$0x3f]
      %v1944 = vld [vmem:[%s1764 + $0x21] sm:$0xff]
      %v1945 = vld [vmem:[%s1764 + $0x29] sm:$0x3f]
      %v1946 = vld [vmem:[%s1764 + $0x31] sm:$0xff]
      %v1947 = vld [vmem:[%s1764 + $0x39] sm:$0x3f]
      %v1948 = vld [vmem:[%s1764 + $0x41] sm:$0xff]
      %v1949 = vld [vmem:[%s1764 + $0x49] sm:$0x3f]
      %v1950 = vld [vmem:[%s1764 + $0x51] sm:$0xff]
      %v1951 = vld [vmem:[%s1764 + $0x59] sm:$0x3f]
      %v1952 = vld [vmem:[%s1764 + $0x61] sm:$0xff]
      %v1953 = vld [vmem:[%s1764 + $0x69] sm:$0x3f]
      %v1954 = vld [vmem:[%s1764 + $0x71] sm:$0xff]
      %v1955 = vld [vmem:[%s1764 + $0x79] sm:$0x3f]
      %v1956 = vld [vmem:[%s1764 + $0x81] sm:$0xff]
      %v1957 = vld [vmem:[%s1764 + $0x89] sm:$0x3f]
      %v1958 = vld [vmem:[%s1764 + $0x91] sm:$0xff]
      %v1959 = vld [vmem:[%s1764 + $0x99] sm:$0x3f]
      %v1960 = vld [vmem:[%s1764 + $0xa1] sm:$0xff]
      %v1961 = vld [vmem:[%s1764 + $0xa9] sm:$0x3f]
      %v1962 = vld [vmem:[%s1764 + $0xb1] sm:$0xff]
      %v1963 = vld [vmem:[%s1764 + $0xb9] sm:$0x3f]
      %v1964 = vld [vmem:[%s1764 + $0xc1] sm:$0xff]
      %v1965 = vld [vmem:[%s1764 + $0xc9] sm:$0x3f]
      %v1966 = vld [vmem:[%s1764 + $0xd1] sm:$0xff]
      %v1967 = vld [vmem:[%s1764 + $0xd9] sm:$0x3f]
      %s1968 = sadd.s32 %s45, 22
      %s1969 = sld [smem:[#allocation2 + %s1968]]
      %v1970 = vstv %s1969
      %v1971 = vmul.f32 %v1970, %v1940
      %v1972 = vmul.f32 %v1970, %v1941
      %v1973 = vmul.f32 %v1970, %v1942
      %v1974 = vmul.f32 %v1970, %v1943
      %v1975 = vmul.f32 %v1970, %v1944
      %v1976 = vmul.f32 %v1970, %v1945
      %v1977 = vmul.f32 %v1970, %v1946
      %v1978 = vmul.f32 %v1970, %v1947
      %v1979 = vmul.f32 %v1970, %v1948
      %v1980 = vmul.f32 %v1970, %v1949
      %v1981 = vmul.f32 %v1970, %v1950
      %v1982 = vmul.f32 %v1970, %v1951
      %v1983 = vmul.f32 %v1970, %v1952
      %v1984 = vmul.f32 %v1970, %v1953
      %v1985 = vmul.f32 %v1970, %v1954
      %v1986 = vmul.f32 %v1970, %v1955
      %v1987 = vmul.f32 %v1970, %v1956
      %v1988 = vmul.f32 %v1970, %v1957
      %v1989 = vmul.f32 %v1970, %v1958
      %v1990 = vmul.f32 %v1970, %v1959
      %v1991 = vmul.f32 %v1970, %v1960
      %v1992 = vmul.f32 %v1970, %v1961
      %v1993 = vmul.f32 %v1970, %v1962
      %v1994 = vmul.f32 %v1970, %v1963
      %v1995 = vmul.f32 %v1970, %v1964
      %v1996 = vmul.f32 %v1970, %v1965
      %v1997 = vmul.f32 %v1970, %v1966
      %v1998 = vmul.f32 %v1970, %v1967
      %v1999 = vadd.f32 %v1912, %v1971
      %v2000 = vadd.f32 %v1913, %v1972
      %v2001 = vadd.f32 %v1914, %v1973
      %v2002 = vadd.f32 %v1915, %v1974
      %v2003 = vadd.f32 %v1916, %v1975
      %v2004 = vadd.f32 %v1917, %v1976
      %v2005 = vadd.f32 %v1918, %v1977
      %v2006 = vadd.f32 %v1919, %v1978
      %v2007 = vadd.f32 %v1920, %v1979
      %v2008 = vadd.f32 %v1921, %v1980
      %v2009 = vadd.f32 %v1922, %v1981
      %v2010 = vadd.f32 %v1923, %v1982
      %v2011 = vadd.f32 %v1924, %v1983
      %v2012 = vadd.f32 %v1925, %v1984
      %v2013 = vadd.f32 %v1926, %v1985
      %v2014 = vadd.f32 %v1927, %v1986
      %v2015 = vadd.f32 %v1928, %v1987
      %v2016 = vadd.f32 %v1929, %v1988
      %v2017 = vadd.f32 %v1930, %v1989
      %v2018 = vadd.f32 %v1931, %v1990
      %v2019 = vadd.f32 %v1932, %v1991
      %v2020 = vadd.f32 %v1933, %v1992
      %v2021 = vadd.f32 %v1934, %v1993
      %v2022 = vadd.f32 %v1935, %v1994
      %v2023 = vadd.f32 %v1936, %v1995
      %v2024 = vadd.f32 %v1937, %v1996
      %v2025 = vadd.f32 %v1938, %v1997
      %v2026 = vadd.f32 %v1939, %v1998
      %v2027 = vld [vmem:[%s1852 + $0x1] sm:$0xff]
      %v2028 = vld [vmem:[%s1852 + $0x9] sm:$0x3f]
      %v2029 = vld [vmem:[%s1852 + $0x11] sm:$0xff]
      %v2030 = vld [vmem:[%s1852 + $0x19] sm:$0x3f]
      %v2031 = vld [vmem:[%s1852 + $0x21] sm:$0xff]
      %v2032 = vld [vmem:[%s1852 + $0x29] sm:$0x3f]
      %v2033 = vld [vmem:[%s1852 + $0x31] sm:$0xff]
      %v2034 = vld [vmem:[%s1852 + $0x39] sm:$0x3f]
      %v2035 = vld [vmem:[%s1852 + $0x41] sm:$0xff]
      %v2036 = vld [vmem:[%s1852 + $0x49] sm:$0x3f]
      %v2037 = vld [vmem:[%s1852 + $0x51] sm:$0xff]
      %v2038 = vld [vmem:[%s1852 + $0x59] sm:$0x3f]
      %v2039 = vld [vmem:[%s1852 + $0x61] sm:$0xff]
      %v2040 = vld [vmem:[%s1852 + $0x69] sm:$0x3f]
      %v2041 = vld [vmem:[%s1852 + $0x71] sm:$0xff]
      %v2042 = vld [vmem:[%s1852 + $0x79] sm:$0x3f]
      %v2043 = vld [vmem:[%s1852 + $0x81] sm:$0xff]
      %v2044 = vld [vmem:[%s1852 + $0x89] sm:$0x3f]
      %v2045 = vld [vmem:[%s1852 + $0x91] sm:$0xff]
      %v2046 = vld [vmem:[%s1852 + $0x99] sm:$0x3f]
      %v2047 = vld [vmem:[%s1852 + $0xa1] sm:$0xff]
      %v2048 = vld [vmem:[%s1852 + $0xa9] sm:$0x3f]
      %v2049 = vld [vmem:[%s1852 + $0xb1] sm:$0xff]
      %v2050 = vld [vmem:[%s1852 + $0xb9] sm:$0x3f]
      %v2051 = vld [vmem:[%s1852 + $0xc1] sm:$0xff]
      %v2052 = vld [vmem:[%s1852 + $0xc9] sm:$0x3f]
      %v2053 = vld [vmem:[%s1852 + $0xd1] sm:$0xff]
      %v2054 = vld [vmem:[%s1852 + $0xd9] sm:$0x3f]
      %s2055 = sadd.s32 %s45, 23
      %s2056 = sld [smem:[#allocation2 + %s2055]]
      %v2057 = vstv %s2056
      %v2058 = vmul.f32 %v2057, %v2027
      %v2059 = vmul.f32 %v2057, %v2028
      %v2060 = vmul.f32 %v2057, %v2029
      %v2061 = vmul.f32 %v2057, %v2030
      %v2062 = vmul.f32 %v2057, %v2031
      %v2063 = vmul.f32 %v2057, %v2032
      %v2064 = vmul.f32 %v2057, %v2033
      %v2065 = vmul.f32 %v2057, %v2034
      %v2066 = vmul.f32 %v2057, %v2035
      %v2067 = vmul.f32 %v2057, %v2036
      %v2068 = vmul.f32 %v2057, %v2037
      %v2069 = vmul.f32 %v2057, %v2038
      %v2070 = vmul.f32 %v2057, %v2039
      %v2071 = vmul.f32 %v2057, %v2040
      %v2072 = vmul.f32 %v2057, %v2041
      %v2073 = vmul.f32 %v2057, %v2042
      %v2074 = vmul.f32 %v2057, %v2043
      %v2075 = vmul.f32 %v2057, %v2044
      %v2076 = vmul.f32 %v2057, %v2045
      %v2077 = vmul.f32 %v2057, %v2046
      %v2078 = vmul.f32 %v2057, %v2047
      %v2079 = vmul.f32 %v2057, %v2048
      %v2080 = vmul.f32 %v2057, %v2049
      %v2081 = vmul.f32 %v2057, %v2050
      %v2082 = vmul.f32 %v2057, %v2051
      %v2083 = vmul.f32 %v2057, %v2052
      %v2084 = vmul.f32 %v2057, %v2053
      %v2085 = vmul.f32 %v2057, %v2054
      %v2086 = vadd.f32 %v1999, %v2058
      %v2087 = vadd.f32 %v2000, %v2059
      %v2088 = vadd.f32 %v2001, %v2060
      %v2089 = vadd.f32 %v2002, %v2061
      %v2090 = vadd.f32 %v2003, %v2062
      %v2091 = vadd.f32 %v2004, %v2063
      %v2092 = vadd.f32 %v2005, %v2064
      %v2093 = vadd.f32 %v2006, %v2065
      %v2094 = vadd.f32 %v2007, %v2066
      %v2095 = vadd.f32 %v2008, %v2067
      %v2096 = vadd.f32 %v2009, %v2068
      %v2097 = vadd.f32 %v2010, %v2069
      %v2098 = vadd.f32 %v2011, %v2070
      %v2099 = vadd.f32 %v2012, %v2071
      %v2100 = vadd.f32 %v2013, %v2072
      %v2101 = vadd.f32 %v2014, %v2073
      %v2102 = vadd.f32 %v2015, %v2074
      %v2103 = vadd.f32 %v2016, %v2075
      %v2104 = vadd.f32 %v2017, %v2076
      %v2105 = vadd.f32 %v2018, %v2077
      %v2106 = vadd.f32 %v2019, %v2078
      %v2107 = vadd.f32 %v2020, %v2079
      %v2108 = vadd.f32 %v2021, %v2080
      %v2109 = vadd.f32 %v2022, %v2081
      %v2110 = vadd.f32 %v2023, %v2082
      %v2111 = vadd.f32 %v2024, %v2083
      %v2112 = vadd.f32 %v2025, %v2084
      %v2113 = vadd.f32 %v2026, %v2085
      %v2114 = vld [vmem:[%s1764 + $0x2] sm:$0xff]
      %v2115 = vld [vmem:[%s1764 + $0xa] sm:$0x3f]
      %v2116 = vld [vmem:[%s1764 + $0x12] sm:$0xff]
      %v2117 = vld [vmem:[%s1764 + $0x1a] sm:$0x3f]
      %v2118 = vld [vmem:[%s1764 + $0x22] sm:$0xff]
      %v2119 = vld [vmem:[%s1764 + $0x2a] sm:$0x3f]
      %v2120 = vld [vmem:[%s1764 + $0x32] sm:$0xff]
      %v2121 = vld [vmem:[%s1764 + $0x3a] sm:$0x3f]
      %v2122 = vld [vmem:[%s1764 + $0x42] sm:$0xff]
      %v2123 = vld [vmem:[%s1764 + $0x4a] sm:$0x3f]
      %v2124 = vld [vmem:[%s1764 + $0x52] sm:$0xff]
      %v2125 = vld [vmem:[%s1764 + $0x5a] sm:$0x3f]
      %v2126 = vld [vmem:[%s1764 + $0x62] sm:$0xff]
      %v2127 = vld [vmem:[%s1764 + $0x6a] sm:$0x3f]
      %v2128 = vld [vmem:[%s1764 + $0x72] sm:$0xff]
      %v2129 = vld [vmem:[%s1764 + $0x7a] sm:$0x3f]
      %v2130 = vld [vmem:[%s1764 + $0x82] sm:$0xff]
      %v2131 = vld [vmem:[%s1764 + $0x8a] sm:$0x3f]
      %v2132 = vld [vmem:[%s1764 + $0x92] sm:$0xff]
      %v2133 = vld [vmem:[%s1764 + $0x9a] sm:$0x3f]
      %v2134 = vld [vmem:[%s1764 + $0xa2] sm:$0xff]
      %v2135 = vld [vmem:[%s1764 + $0xaa] sm:$0x3f]
      %v2136 = vld [vmem:[%s1764 + $0xb2] sm:$0xff]
      %v2137 = vld [vmem:[%s1764 + $0xba] sm:$0x3f]
      %v2138 = vld [vmem:[%s1764 + $0xc2] sm:$0xff]
      %v2139 = vld [vmem:[%s1764 + $0xca] sm:$0x3f]
      %v2140 = vld [vmem:[%s1764 + $0xd2] sm:$0xff]
      %v2141 = vld [vmem:[%s1764 + $0xda] sm:$0x3f]
      %s2142 = sadd.s32 %s45, 24
      %s2143 = sld [smem:[#allocation2 + %s2142]]
      %v2144 = vstv %s2143
      %v2145 = vmul.f32 %v2144, %v2114
      %v2146 = vmul.f32 %v2144, %v2115
      %v2147 = vmul.f32 %v2144, %v2116
      %v2148 = vmul.f32 %v2144, %v2117
      %v2149 = vmul.f32 %v2144, %v2118
      %v2150 = vmul.f32 %v2144, %v2119
      %v2151 = vmul.f32 %v2144, %v2120
      %v2152 = vmul.f32 %v2144, %v2121
      %v2153 = vmul.f32 %v2144, %v2122
      %v2154 = vmul.f32 %v2144, %v2123
      %v2155 = vmul.f32 %v2144, %v2124
      %v2156 = vmul.f32 %v2144, %v2125
      %v2157 = vmul.f32 %v2144, %v2126
      %v2158 = vmul.f32 %v2144, %v2127
      %v2159 = vmul.f32 %v2144, %v2128
      %v2160 = vmul.f32 %v2144, %v2129
      %v2161 = vmul.f32 %v2144, %v2130
      %v2162 = vmul.f32 %v2144, %v2131
      %v2163 = vmul.f32 %v2144, %v2132
      %v2164 = vmul.f32 %v2144, %v2133
      %v2165 = vmul.f32 %v2144, %v2134
      %v2166 = vmul.f32 %v2144, %v2135
      %v2167 = vmul.f32 %v2144, %v2136
      %v2168 = vmul.f32 %v2144, %v2137
      %v2169 = vmul.f32 %v2144, %v2138
      %v2170 = vmul.f32 %v2144, %v2139
      %v2171 = vmul.f32 %v2144, %v2140
      %v2172 = vmul.f32 %v2144, %v2141
      %v2173 = vadd.f32 %v2086, %v2145
      %v2174 = vadd.f32 %v2087, %v2146
      %v2175 = vadd.f32 %v2088, %v2147
      %v2176 = vadd.f32 %v2089, %v2148
      %v2177 = vadd.f32 %v2090, %v2149
      %v2178 = vadd.f32 %v2091, %v2150
      %v2179 = vadd.f32 %v2092, %v2151
      %v2180 = vadd.f32 %v2093, %v2152
      %v2181 = vadd.f32 %v2094, %v2153
      %v2182 = vadd.f32 %v2095, %v2154
      %v2183 = vadd.f32 %v2096, %v2155
      %v2184 = vadd.f32 %v2097, %v2156
      %v2185 = vadd.f32 %v2098, %v2157
      %v2186 = vadd.f32 %v2099, %v2158
      %v2187 = vadd.f32 %v2100, %v2159
      %v2188 = vadd.f32 %v2101, %v2160
      %v2189 = vadd.f32 %v2102, %v2161
      %v2190 = vadd.f32 %v2103, %v2162
      %v2191 = vadd.f32 %v2104, %v2163
      %v2192 = vadd.f32 %v2105, %v2164
      %v2193 = vadd.f32 %v2106, %v2165
      %v2194 = vadd.f32 %v2107, %v2166
      %v2195 = vadd.f32 %v2108, %v2167
      %v2196 = vadd.f32 %v2109, %v2168
      %v2197 = vadd.f32 %v2110, %v2169
      %v2198 = vadd.f32 %v2111, %v2170
      %v2199 = vadd.f32 %v2112, %v2171
      %v2200 = vadd.f32 %v2113, %v2172
      %v2201 = vmul.f32 %v75, %v105
      %v2202 = vmul.f32 %v75, %v106
      %v2203 = vmul.f32 %v75, %v107
      %v2204 = vmul.f32 %v75, %v108
      %v2205 = vmul.f32 %v75, %v109
      %v2206 = vmul.f32 %v75, %v110
      %v2207 = vmul.f32 %v75, %v111
      %v2208 = vmul.f32 %v75, %v112
      %v2209 = vmul.f32 %v75, %v113
      %v2210 = vmul.f32 %v75, %v114
      %v2211 = vmul.f32 %v75, %v115
      %v2212 = vmul.f32 %v75, %v116
      %v2213 = vmul.f32 %v75, %v117
      %v2214 = vmul.f32 %v75, %v118
      %v2215 = vmul.f32 %v75, %v119
      %v2216 = vmul.f32 %v75, %v120
      %v2217 = vmul.f32 %v75, %v121
      %v2218 = vmul.f32 %v75, %v122
      %v2219 = vmul.f32 %v75, %v123
      %v2220 = vmul.f32 %v75, %v124
      %v2221 = vmul.f32 %v75, %v125
      %v2222 = vmul.f32 %v75, %v126
      %v2223 = vmul.f32 %v75, %v127
      %v2224 = vmul.f32 %v75, %v128
      %v2225 = vmul.f32 %v75, %v129
      %v2226 = vmul.f32 %v75, %v130
      %v2227 = vmul.f32 %v75, %v131
      %v2228 = vmul.f32 %v75, %v132
      %v2229 = vmul.f32 %v135, %v192
      %v2230 = vmul.f32 %v135, %v193
      %v2231 = vmul.f32 %v135, %v194
      %v2232 = vmul.f32 %v135, %v195
      %v2233 = vmul.f32 %v135, %v196
      %v2234 = vmul.f32 %v135, %v197
      %v2235 = vmul.f32 %v135, %v198
      %v2236 = vmul.f32 %v135, %v199
      %v2237 = vmul.f32 %v135, %v200
      %v2238 = vmul.f32 %v135, %v201
      %v2239 = vmul.f32 %v135, %v202
      %v2240 = vmul.f32 %v135, %v203
      %v2241 = vmul.f32 %v135, %v204
      %v2242 = vmul.f32 %v135, %v205
      %v2243 = vmul.f32 %v135, %v206
      %v2244 = vmul.f32 %v135, %v207
      %v2245 = vmul.f32 %v135, %v208
      %v2246 = vmul.f32 %v135, %v209
      %v2247 = vmul.f32 %v135, %v210
      %v2248 = vmul.f32 %v135, %v211
      %v2249 = vmul.f32 %v135, %v212
      %v2250 = vmul.f32 %v135, %v213
      %v2251 = vmul.f32 %v135, %v214
      %v2252 = vmul.f32 %v135, %v215
      %v2253 = vmul.f32 %v135, %v216
      %v2254 = vmul.f32 %v135, %v217
      %v2255 = vmul.f32 %v135, %v218
      %v2256 = vmul.f32 %v135, %v219
      %v2257 = vadd.f32 %v2201, %v2229
      %v2258 = vadd.f32 %v2202, %v2230
      %v2259 = vadd.f32 %v2203, %v2231
      %v2260 = vadd.f32 %v2204, %v2232
      %v2261 = vadd.f32 %v2205, %v2233
      %v2262 = vadd.f32 %v2206, %v2234
      %v2263 = vadd.f32 %v2207, %v2235
      %v2264 = vadd.f32 %v2208, %v2236
      %v2265 = vadd.f32 %v2209, %v2237
      %v2266 = vadd.f32 %v2210, %v2238
      %v2267 = vadd.f32 %v2211, %v2239
      %v2268 = vadd.f32 %v2212, %v2240
      %v2269 = vadd.f32 %v2213, %v2241
      %v2270 = vadd.f32 %v2214, %v2242
      %v2271 = vadd.f32 %v2215, %v2243
      %v2272 = vadd.f32 %v2216, %v2244
      %v2273 = vadd.f32 %v2217, %v2245
      %v2274 = vadd.f32 %v2218, %v2246
      %v2275 = vadd.f32 %v2219, %v2247
      %v2276 = vadd.f32 %v2220, %v2248
      %v2277 = vadd.f32 %v2221, %v2249
      %v2278 = vadd.f32 %v2222, %v2250
      %v2279 = vadd.f32 %v2223, %v2251
      %v2280 = vadd.f32 %v2224, %v2252
      %v2281 = vadd.f32 %v2225, %v2253
      %v2282 = vadd.f32 %v2226, %v2254
      %v2283 = vadd.f32 %v2227, %v2255
      %v2284 = vadd.f32 %v2228, %v2256
      %v2285 = vmul.f32 %v222, %v279
      %v2286 = vmul.f32 %v222, %v280
      %v2287 = vmul.f32 %v222, %v281
      %v2288 = vmul.f32 %v222, %v282
      %v2289 = vmul.f32 %v222, %v283
      %v2290 = vmul.f32 %v222, %v284
      %v2291 = vmul.f32 %v222, %v285
      %v2292 = vmul.f32 %v222, %v286
      %v2293 = vmul.f32 %v222, %v287
      %v2294 = vmul.f32 %v222, %v288
      %v2295 = vmul.f32 %v222, %v289
      %v2296 = vmul.f32 %v222, %v290
      %v2297 = vmul.f32 %v222, %v291
      %v2298 = vmul.f32 %v222, %v292
      %v2299 = vmul.f32 %v222, %v293
      %v2300 = vmul.f32 %v222, %v294
      %v2301 = vmul.f32 %v222, %v295
      %v2302 = vmul.f32 %v222, %v296
      %v2303 = vmul.f32 %v222, %v297
      %v2304 = vmul.f32 %v222, %v298
      %v2305 = vmul.f32 %v222, %v299
      %v2306 = vmul.f32 %v222, %v300
      %v2307 = vmul.f32 %v222, %v301
      %v2308 = vmul.f32 %v222, %v302
      %v2309 = vmul.f32 %v222, %v303
      %v2310 = vmul.f32 %v222, %v304
      %v2311 = vmul.f32 %v222, %v305
      %v2312 = vmul.f32 %v222, %v306
      %v2313 = vadd.f32 %v2257, %v2285
      %v2314 = vadd.f32 %v2258, %v2286
      %v2315 = vadd.f32 %v2259, %v2287
      %v2316 = vadd.f32 %v2260, %v2288
      %v2317 = vadd.f32 %v2261, %v2289
      %v2318 = vadd.f32 %v2262, %v2290
      %v2319 = vadd.f32 %v2263, %v2291
      %v2320 = vadd.f32 %v2264, %v2292
      %v2321 = vadd.f32 %v2265, %v2293
      %v2322 = vadd.f32 %v2266, %v2294
      %v2323 = vadd.f32 %v2267, %v2295
      %v2324 = vadd.f32 %v2268, %v2296
      %v2325 = vadd.f32 %v2269, %v2297
      %v2326 = vadd.f32 %v2270, %v2298
      %v2327 = vadd.f32 %v2271, %v2299
      %v2328 = vadd.f32 %v2272, %v2300
      %v2329 = vadd.f32 %v2273, %v2301
      %v2330 = vadd.f32 %v2274, %v2302
      %v2331 = vadd.f32 %v2275, %v2303
      %v2332 = vadd.f32 %v2276, %v2304
      %v2333 = vadd.f32 %v2277, %v2305
      %v2334 = vadd.f32 %v2278, %v2306
      %v2335 = vadd.f32 %v2279, %v2307
      %v2336 = vadd.f32 %v2280, %v2308
      %v2337 = vadd.f32 %v2281, %v2309
      %v2338 = vadd.f32 %v2282, %v2310
      %v2339 = vadd.f32 %v2283, %v2311
      %v2340 = vadd.f32 %v2284, %v2312
      %v2341 = vmul.f32 %v309, %v366
      %v2342 = vmul.f32 %v309, %v367
      %v2343 = vmul.f32 %v309, %v368
      %v2344 = vmul.f32 %v309, %v369
      %v2345 = vmul.f32 %v309, %v370
      %v2346 = vmul.f32 %v309, %v371
      %v2347 = vmul.f32 %v309, %v372
      %v2348 = vmul.f32 %v309, %v373
      %v2349 = vmul.f32 %v309, %v374
      %v2350 = vmul.f32 %v309, %v375
      %v2351 = vmul.f32 %v309, %v376
      %v2352 = vmul.f32 %v309, %v377
      %v2353 = vmul.f32 %v309, %v378
      %v2354 = vmul.f32 %v309, %v379
      %v2355 = vmul.f32 %v309, %v380
      %v2356 = vmul.f32 %v309, %v381
      %v2357 = vmul.f32 %v309, %v382
      %v2358 = vmul.f32 %v309, %v383
      %v2359 = vmul.f32 %v309, %v384
      %v2360 = vmul.f32 %v309, %v385
      %v2361 = vmul.f32 %v309, %v386
      %v2362 = vmul.f32 %v309, %v387
      %v2363 = vmul.f32 %v309, %v388
      %v2364 = vmul.f32 %v309, %v389
      %v2365 = vmul.f32 %v309, %v390
      %v2366 = vmul.f32 %v309, %v391
      %v2367 = vmul.f32 %v309, %v392
      %v2368 = vmul.f32 %v309, %v393
      %v2369 = vadd.f32 %v2313, %v2341
      %v2370 = vadd.f32 %v2314, %v2342
      %v2371 = vadd.f32 %v2315, %v2343
      %v2372 = vadd.f32 %v2316, %v2344
      %v2373 = vadd.f32 %v2317, %v2345
      %v2374 = vadd.f32 %v2318, %v2346
      %v2375 = vadd.f32 %v2319, %v2347
      %v2376 = vadd.f32 %v2320, %v2348
      %v2377 = vadd.f32 %v2321, %v2349
      %v2378 = vadd.f32 %v2322, %v2350
      %v2379 = vadd.f32 %v2323, %v2351
      %v2380 = vadd.f32 %v2324, %v2352
      %v2381 = vadd.f32 %v2325, %v2353
      %v2382 = vadd.f32 %v2326, %v2354
      %v2383 = vadd.f32 %v2327, %v2355
      %v2384 = vadd.f32 %v2328, %v2356
      %v2385 = vadd.f32 %v2329, %v2357
      %v2386 = vadd.f32 %v2330, %v2358
      %v2387 = vadd.f32 %v2331, %v2359
      %v2388 = vadd.f32 %v2332, %v2360
      %v2389 = vadd.f32 %v2333, %v2361
      %v2390 = vadd.f32 %v2334, %v2362
      %v2391 = vadd.f32 %v2335, %v2363
      %v2392 = vadd.f32 %v2336, %v2364
      %v2393 = vadd.f32 %v2337, %v2365
      %v2394 = vadd.f32 %v2338, %v2366
      %v2395 = vadd.f32 %v2339, %v2367
      %v2396 = vadd.f32 %v2340, %v2368
      %v2397 = vld [vmem:[%s104 + $0x2] sm:$0xff]
      %v2398 = vld [vmem:[%s104 + $0xa] sm:$0x3f]
      %v2399 = vld [vmem:[%s104 + $0x12] sm:$0xff]
      %v2400 = vld [vmem:[%s104 + $0x1a] sm:$0x3f]
      %v2401 = vld [vmem:[%s104 + $0x22] sm:$0xff]
      %v2402 = vld [vmem:[%s104 + $0x2a] sm:$0x3f]
      %v2403 = vld [vmem:[%s104 + $0x32] sm:$0xff]
      %v2404 = vld [vmem:[%s104 + $0x3a] sm:$0x3f]
      %v2405 = vld [vmem:[%s104 + $0x42] sm:$0xff]
      %v2406 = vld [vmem:[%s104 + $0x4a] sm:$0x3f]
      %v2407 = vld [vmem:[%s104 + $0x52] sm:$0xff]
      %v2408 = vld [vmem:[%s104 + $0x5a] sm:$0x3f]
      %v2409 = vld [vmem:[%s104 + $0x62] sm:$0xff]
      %v2410 = vld [vmem:[%s104 + $0x6a] sm:$0x3f]
      %v2411 = vld [vmem:[%s104 + $0x72] sm:$0xff]
      %v2412 = vld [vmem:[%s104 + $0x7a] sm:$0x3f]
      %v2413 = vld [vmem:[%s104 + $0x82] sm:$0xff]
      %v2414 = vld [vmem:[%s104 + $0x8a] sm:$0x3f]
      %v2415 = vld [vmem:[%s104 + $0x92] sm:$0xff]
      %v2416 = vld [vmem:[%s104 + $0x9a] sm:$0x3f]
      %v2417 = vld [vmem:[%s104 + $0xa2] sm:$0xff]
      %v2418 = vld [vmem:[%s104 + $0xaa] sm:$0x3f]
      %v2419 = vld [vmem:[%s104 + $0xb2] sm:$0xff]
      %v2420 = vld [vmem:[%s104 + $0xba] sm:$0x3f]
      %v2421 = vld [vmem:[%s104 + $0xc2] sm:$0xff]
      %v2422 = vld [vmem:[%s104 + $0xca] sm:$0x3f]
      %v2423 = vld [vmem:[%s104 + $0xd2] sm:$0xff]
      %v2424 = vld [vmem:[%s104 + $0xda] sm:$0x3f]
      %v2425 = vmul.f32 %v396, %v2397
      %v2426 = vmul.f32 %v396, %v2398
      %v2427 = vmul.f32 %v396, %v2399
      %v2428 = vmul.f32 %v396, %v2400
      %v2429 = vmul.f32 %v396, %v2401
      %v2430 = vmul.f32 %v396, %v2402
      %v2431 = vmul.f32 %v396, %v2403
      %v2432 = vmul.f32 %v396, %v2404
      %v2433 = vmul.f32 %v396, %v2405
      %v2434 = vmul.f32 %v396, %v2406
      %v2435 = vmul.f32 %v396, %v2407
      %v2436 = vmul.f32 %v396, %v2408
      %v2437 = vmul.f32 %v396, %v2409
      %v2438 = vmul.f32 %v396, %v2410
      %v2439 = vmul.f32 %v396, %v2411
      %v2440 = vmul.f32 %v396, %v2412
      %v2441 = vmul.f32 %v396, %v2413
      %v2442 = vmul.f32 %v396, %v2414
      %v2443 = vmul.f32 %v396, %v2415
      %v2444 = vmul.f32 %v396, %v2416
      %v2445 = vmul.f32 %v396, %v2417
      %v2446 = vmul.f32 %v396, %v2418
      %v2447 = vmul.f32 %v396, %v2419
      %v2448 = vmul.f32 %v396, %v2420
      %v2449 = vmul.f32 %v396, %v2421
      %v2450 = vmul.f32 %v396, %v2422
      %v2451 = vmul.f32 %v396, %v2423
      %v2452 = vmul.f32 %v396, %v2424
      %v2453 = vadd.f32 %v2369, %v2425
      %v2454 = vadd.f32 %v2370, %v2426
      %v2455 = vadd.f32 %v2371, %v2427
      %v2456 = vadd.f32 %v2372, %v2428
      %v2457 = vadd.f32 %v2373, %v2429
      %v2458 = vadd.f32 %v2374, %v2430
      %v2459 = vadd.f32 %v2375, %v2431
      %v2460 = vadd.f32 %v2376, %v2432
      %v2461 = vadd.f32 %v2377, %v2433
      %v2462 = vadd.f32 %v2378, %v2434
      %v2463 = vadd.f32 %v2379, %v2435
      %v2464 = vadd.f32 %v2380, %v2436
      %v2465 = vadd.f32 %v2381, %v2437
      %v2466 = vadd.f32 %v2382, %v2438
      %v2467 = vadd.f32 %v2383, %v2439
      %v2468 = vadd.f32 %v2384, %v2440
      %v2469 = vadd.f32 %v2385, %v2441
      %v2470 = vadd.f32 %v2386, %v2442
      %v2471 = vadd.f32 %v2387, %v2443
      %v2472 = vadd.f32 %v2388, %v2444
      %v2473 = vadd.f32 %v2389, %v2445
      %v2474 = vadd.f32 %v2390, %v2446
      %v2475 = vadd.f32 %v2391, %v2447
      %v2476 = vadd.f32 %v2392, %v2448
      %v2477 = vadd.f32 %v2393, %v2449
      %v2478 = vadd.f32 %v2394, %v2450
      %v2479 = vadd.f32 %v2395, %v2451
      %v2480 = vadd.f32 %v2396, %v2452
      %v2481 = vmul.f32 %v484, %v542
      %v2482 = vmul.f32 %v484, %v543
      %v2483 = vmul.f32 %v484, %v544
      %v2484 = vmul.f32 %v484, %v545
      %v2485 = vmul.f32 %v484, %v546
      %v2486 = vmul.f32 %v484, %v547
      %v2487 = vmul.f32 %v484, %v548
      %v2488 = vmul.f32 %v484, %v549
      %v2489 = vmul.f32 %v484, %v550
      %v2490 = vmul.f32 %v484, %v551
      %v2491 = vmul.f32 %v484, %v552
      %v2492 = vmul.f32 %v484, %v553
      %v2493 = vmul.f32 %v484, %v554
      %v2494 = vmul.f32 %v484, %v555
      %v2495 = vmul.f32 %v484, %v556
      %v2496 = vmul.f32 %v484, %v557
      %v2497 = vmul.f32 %v484, %v558
      %v2498 = vmul.f32 %v484, %v559
      %v2499 = vmul.f32 %v484, %v560
      %v2500 = vmul.f32 %v484, %v561
      %v2501 = vmul.f32 %v484, %v562
      %v2502 = vmul.f32 %v484, %v563
      %v2503 = vmul.f32 %v484, %v564
      %v2504 = vmul.f32 %v484, %v565
      %v2505 = vmul.f32 %v484, %v566
      %v2506 = vmul.f32 %v484, %v567
      %v2507 = vmul.f32 %v484, %v568
      %v2508 = vmul.f32 %v484, %v569
      %v2509 = vadd.f32 %v2453, %v2481
      %v2510 = vadd.f32 %v2454, %v2482
      %v2511 = vadd.f32 %v2455, %v2483
      %v2512 = vadd.f32 %v2456, %v2484
      %v2513 = vadd.f32 %v2457, %v2485
      %v2514 = vadd.f32 %v2458, %v2486
      %v2515 = vadd.f32 %v2459, %v2487
      %v2516 = vadd.f32 %v2460, %v2488
      %v2517 = vadd.f32 %v2461, %v2489
      %v2518 = vadd.f32 %v2462, %v2490
      %v2519 = vadd.f32 %v2463, %v2491
      %v2520 = vadd.f32 %v2464, %v2492
      %v2521 = vadd.f32 %v2465, %v2493
      %v2522 = vadd.f32 %v2466, %v2494
      %v2523 = vadd.f32 %v2467, %v2495
      %v2524 = vadd.f32 %v2468, %v2496
      %v2525 = vadd.f32 %v2469, %v2497
      %v2526 = vadd.f32 %v2470, %v2498
      %v2527 = vadd.f32 %v2471, %v2499
      %v2528 = vadd.f32 %v2472, %v2500
      %v2529 = vadd.f32 %v2473, %v2501
      %v2530 = vadd.f32 %v2474, %v2502
      %v2531 = vadd.f32 %v2475, %v2503
      %v2532 = vadd.f32 %v2476, %v2504
      %v2533 = vadd.f32 %v2477, %v2505
      %v2534 = vadd.f32 %v2478, %v2506
      %v2535 = vadd.f32 %v2479, %v2507
      %v2536 = vadd.f32 %v2480, %v2508
      %v2537 = vmul.f32 %v572, %v629
      %v2538 = vmul.f32 %v572, %v630
      %v2539 = vmul.f32 %v572, %v631
      %v2540 = vmul.f32 %v572, %v632
      %v2541 = vmul.f32 %v572, %v633
      %v2542 = vmul.f32 %v572, %v634
      %v2543 = vmul.f32 %v572, %v635
      %v2544 = vmul.f32 %v572, %v636
      %v2545 = vmul.f32 %v572, %v637
      %v2546 = vmul.f32 %v572, %v638
      %v2547 = vmul.f32 %v572, %v639
      %v2548 = vmul.f32 %v572, %v640
      %v2549 = vmul.f32 %v572, %v641
      %v2550 = vmul.f32 %v572, %v642
      %v2551 = vmul.f32 %v572, %v643
      %v2552 = vmul.f32 %v572, %v644
      %v2553 = vmul.f32 %v572, %v645
      %v2554 = vmul.f32 %v572, %v646
      %v2555 = vmul.f32 %v572, %v647
      %v2556 = vmul.f32 %v572, %v648
      %v2557 = vmul.f32 %v572, %v649
      %v2558 = vmul.f32 %v572, %v650
      %v2559 = vmul.f32 %v572, %v651
      %v2560 = vmul.f32 %v572, %v652
      %v2561 = vmul.f32 %v572, %v653
      %v2562 = vmul.f32 %v572, %v654
      %v2563 = vmul.f32 %v572, %v655
      %v2564 = vmul.f32 %v572, %v656
      %v2565 = vadd.f32 %v2509, %v2537
      %v2566 = vadd.f32 %v2510, %v2538
      %v2567 = vadd.f32 %v2511, %v2539
      %v2568 = vadd.f32 %v2512, %v2540
      %v2569 = vadd.f32 %v2513, %v2541
      %v2570 = vadd.f32 %v2514, %v2542
      %v2571 = vadd.f32 %v2515, %v2543
      %v2572 = vadd.f32 %v2516, %v2544
      %v2573 = vadd.f32 %v2517, %v2545
      %v2574 = vadd.f32 %v2518, %v2546
      %v2575 = vadd.f32 %v2519, %v2547
      %v2576 = vadd.f32 %v2520, %v2548
      %v2577 = vadd.f32 %v2521, %v2549
      %v2578 = vadd.f32 %v2522, %v2550
      %v2579 = vadd.f32 %v2523, %v2551
      %v2580 = vadd.f32 %v2524, %v2552
      %v2581 = vadd.f32 %v2525, %v2553
      %v2582 = vadd.f32 %v2526, %v2554
      %v2583 = vadd.f32 %v2527, %v2555
      %v2584 = vadd.f32 %v2528, %v2556
      %v2585 = vadd.f32 %v2529, %v2557
      %v2586 = vadd.f32 %v2530, %v2558
      %v2587 = vadd.f32 %v2531, %v2559
      %v2588 = vadd.f32 %v2532, %v2560
      %v2589 = vadd.f32 %v2533, %v2561
      %v2590 = vadd.f32 %v2534, %v2562
      %v2591 = vadd.f32 %v2535, %v2563
      %v2592 = vadd.f32 %v2536, %v2564
      %v2593 = vmul.f32 %v659, %v716
      %v2594 = vmul.f32 %v659, %v717
      %v2595 = vmul.f32 %v659, %v718
      %v2596 = vmul.f32 %v659, %v719
      %v2597 = vmul.f32 %v659, %v720
      %v2598 = vmul.f32 %v659, %v721
      %v2599 = vmul.f32 %v659, %v722
      %v2600 = vmul.f32 %v659, %v723
      %v2601 = vmul.f32 %v659, %v724
      %v2602 = vmul.f32 %v659, %v725
      %v2603 = vmul.f32 %v659, %v726
      %v2604 = vmul.f32 %v659, %v727
      %v2605 = vmul.f32 %v659, %v728
      %v2606 = vmul.f32 %v659, %v729
      %v2607 = vmul.f32 %v659, %v730
      %v2608 = vmul.f32 %v659, %v731
      %v2609 = vmul.f32 %v659, %v732
      %v2610 = vmul.f32 %v659, %v733
      %v2611 = vmul.f32 %v659, %v734
      %v2612 = vmul.f32 %v659, %v735
      %v2613 = vmul.f32 %v659, %v736
      %v2614 = vmul.f32 %v659, %v737
      %v2615 = vmul.f32 %v659, %v738
      %v2616 = vmul.f32 %v659, %v739
      %v2617 = vmul.f32 %v659, %v740
      %v2618 = vmul.f32 %v659, %v741
      %v2619 = vmul.f32 %v659, %v742
      %v2620 = vmul.f32 %v659, %v743
      %v2621 = vadd.f32 %v2565, %v2593
      %v2622 = vadd.f32 %v2566, %v2594
      %v2623 = vadd.f32 %v2567, %v2595
      %v2624 = vadd.f32 %v2568, %v2596
      %v2625 = vadd.f32 %v2569, %v2597
      %v2626 = vadd.f32 %v2570, %v2598
      %v2627 = vadd.f32 %v2571, %v2599
      %v2628 = vadd.f32 %v2572, %v2600
      %v2629 = vadd.f32 %v2573, %v2601
      %v2630 = vadd.f32 %v2574, %v2602
      %v2631 = vadd.f32 %v2575, %v2603
      %v2632 = vadd.f32 %v2576, %v2604
      %v2633 = vadd.f32 %v2577, %v2605
      %v2634 = vadd.f32 %v2578, %v2606
      %v2635 = vadd.f32 %v2579, %v2607
      %v2636 = vadd.f32 %v2580, %v2608
      %v2637 = vadd.f32 %v2581, %v2609
      %v2638 = vadd.f32 %v2582, %v2610
      %v2639 = vadd.f32 %v2583, %v2611
      %v2640 = vadd.f32 %v2584, %v2612
      %v2641 = vadd.f32 %v2585, %v2613
      %v2642 = vadd.f32 %v2586, %v2614
      %v2643 = vadd.f32 %v2587, %v2615
      %v2644 = vadd.f32 %v2588, %v2616
      %v2645 = vadd.f32 %v2589, %v2617
      %v2646 = vadd.f32 %v2590, %v2618
      %v2647 = vadd.f32 %v2591, %v2619
      %v2648 = vadd.f32 %v2592, %v2620
      %v2649 = vmul.f32 %v746, %v803
      %v2650 = vmul.f32 %v746, %v804
      %v2651 = vmul.f32 %v746, %v805
      %v2652 = vmul.f32 %v746, %v806
      %v2653 = vmul.f32 %v746, %v807
      %v2654 = vmul.f32 %v746, %v808
      %v2655 = vmul.f32 %v746, %v809
      %v2656 = vmul.f32 %v746, %v810
      %v2657 = vmul.f32 %v746, %v811
      %v2658 = vmul.f32 %v746, %v812
      %v2659 = vmul.f32 %v746, %v813
      %v2660 = vmul.f32 %v746, %v814
      %v2661 = vmul.f32 %v746, %v815
      %v2662 = vmul.f32 %v746, %v816
      %v2663 = vmul.f32 %v746, %v817
      %v2664 = vmul.f32 %v746, %v818
      %v2665 = vmul.f32 %v746, %v819
      %v2666 = vmul.f32 %v746, %v820
      %v2667 = vmul.f32 %v746, %v821
      %v2668 = vmul.f32 %v746, %v822
      %v2669 = vmul.f32 %v746, %v823
      %v2670 = vmul.f32 %v746, %v824
      %v2671 = vmul.f32 %v746, %v825
      %v2672 = vmul.f32 %v746, %v826
      %v2673 = vmul.f32 %v746, %v827
      %v2674 = vmul.f32 %v746, %v828
      %v2675 = vmul.f32 %v746, %v829
      %v2676 = vmul.f32 %v746, %v830
      %v2677 = vadd.f32 %v2621, %v2649
      %v2678 = vadd.f32 %v2622, %v2650
      %v2679 = vadd.f32 %v2623, %v2651
      %v2680 = vadd.f32 %v2624, %v2652
      %v2681 = vadd.f32 %v2625, %v2653
      %v2682 = vadd.f32 %v2626, %v2654
      %v2683 = vadd.f32 %v2627, %v2655
      %v2684 = vadd.f32 %v2628, %v2656
      %v2685 = vadd.f32 %v2629, %v2657
      %v2686 = vadd.f32 %v2630, %v2658
      %v2687 = vadd.f32 %v2631, %v2659
      %v2688 = vadd.f32 %v2632, %v2660
      %v2689 = vadd.f32 %v2633, %v2661
      %v2690 = vadd.f32 %v2634, %v2662
      %v2691 = vadd.f32 %v2635, %v2663
      %v2692 = vadd.f32 %v2636, %v2664
      %v2693 = vadd.f32 %v2637, %v2665
      %v2694 = vadd.f32 %v2638, %v2666
      %v2695 = vadd.f32 %v2639, %v2667
      %v2696 = vadd.f32 %v2640, %v2668
      %v2697 = vadd.f32 %v2641, %v2669
      %v2698 = vadd.f32 %v2642, %v2670
      %v2699 = vadd.f32 %v2643, %v2671
      %v2700 = vadd.f32 %v2644, %v2672
      %v2701 = vadd.f32 %v2645, %v2673
      %v2702 = vadd.f32 %v2646, %v2674
      %v2703 = vadd.f32 %v2647, %v2675
      %v2704 = vadd.f32 %v2648, %v2676
      %v2705 = vld [vmem:[%s541 + $0x2] sm:$0xff]
      %v2706 = vld [vmem:[%s541 + $0xa] sm:$0x3f]
      %v2707 = vld [vmem:[%s541 + $0x12] sm:$0xff]
      %v2708 = vld [vmem:[%s541 + $0x1a] sm:$0x3f]
      %v2709 = vld [vmem:[%s541 + $0x22] sm:$0xff]
      %v2710 = vld [vmem:[%s541 + $0x2a] sm:$0x3f]
      %v2711 = vld [vmem:[%s541 + $0x32] sm:$0xff]
      %v2712 = vld [vmem:[%s541 + $0x3a] sm:$0x3f]
      %v2713 = vld [vmem:[%s541 + $0x42] sm:$0xff]
      %v2714 = vld [vmem:[%s541 + $0x4a] sm:$0x3f]
      %v2715 = vld [vmem:[%s541 + $0x52] sm:$0xff]
      %v2716 = vld [vmem:[%s541 + $0x5a] sm:$0x3f]
      %v2717 = vld [vmem:[%s541 + $0x62] sm:$0xff]
      %v2718 = vld [vmem:[%s541 + $0x6a] sm:$0x3f]
      %v2719 = vld [vmem:[%s541 + $0x72] sm:$0xff]
      %v2720 = vld [vmem:[%s541 + $0x7a] sm:$0x3f]
      %v2721 = vld [vmem:[%s541 + $0x82] sm:$0xff]
      %v2722 = vld [vmem:[%s541 + $0x8a] sm:$0x3f]
      %v2723 = vld [vmem:[%s541 + $0x92] sm:$0xff]
      %v2724 = vld [vmem:[%s541 + $0x9a] sm:$0x3f]
      %v2725 = vld [vmem:[%s541 + $0xa2] sm:$0xff]
      %v2726 = vld [vmem:[%s541 + $0xaa] sm:$0x3f]
      %v2727 = vld [vmem:[%s541 + $0xb2] sm:$0xff]
      %v2728 = vld [vmem:[%s541 + $0xba] sm:$0x3f]
      %v2729 = vld [vmem:[%s541 + $0xc2] sm:$0xff]
      %v2730 = vld [vmem:[%s541 + $0xca] sm:$0x3f]
      %v2731 = vld [vmem:[%s541 + $0xd2] sm:$0xff]
      %v2732 = vld [vmem:[%s541 + $0xda] sm:$0x3f]
      %v2733 = vmul.f32 %v833, %v2705
      %v2734 = vmul.f32 %v833, %v2706
      %v2735 = vmul.f32 %v833, %v2707
      %v2736 = vmul.f32 %v833, %v2708
      %v2737 = vmul.f32 %v833, %v2709
      %v2738 = vmul.f32 %v833, %v2710
      %v2739 = vmul.f32 %v833, %v2711
      %v2740 = vmul.f32 %v833, %v2712
      %v2741 = vmul.f32 %v833, %v2713
      %v2742 = vmul.f32 %v833, %v2714
      %v2743 = vmul.f32 %v833, %v2715
      %v2744 = vmul.f32 %v833, %v2716
      %v2745 = vmul.f32 %v833, %v2717
      %v2746 = vmul.f32 %v833, %v2718
      %v2747 = vmul.f32 %v833, %v2719
      %v2748 = vmul.f32 %v833, %v2720
      %v2749 = vmul.f32 %v833, %v2721
      %v2750 = vmul.f32 %v833, %v2722
      %v2751 = vmul.f32 %v833, %v2723
      %v2752 = vmul.f32 %v833, %v2724
      %v2753 = vmul.f32 %v833, %v2725
      %v2754 = vmul.f32 %v833, %v2726
      %v2755 = vmul.f32 %v833, %v2727
      %v2756 = vmul.f32 %v833, %v2728
      %v2757 = vmul.f32 %v833, %v2729
      %v2758 = vmul.f32 %v833, %v2730
      %v2759 = vmul.f32 %v833, %v2731
      %v2760 = vmul.f32 %v833, %v2732
      %v2761 = vadd.f32 %v2677, %v2733
      %v2762 = vadd.f32 %v2678, %v2734
      %v2763 = vadd.f32 %v2679, %v2735
      %v2764 = vadd.f32 %v2680, %v2736
      %v2765 = vadd.f32 %v2681, %v2737
      %v2766 = vadd.f32 %v2682, %v2738
      %v2767 = vadd.f32 %v2683, %v2739
      %v2768 = vadd.f32 %v2684, %v2740
      %v2769 = vadd.f32 %v2685, %v2741
      %v2770 = vadd.f32 %v2686, %v2742
      %v2771 = vadd.f32 %v2687, %v2743
      %v2772 = vadd.f32 %v2688, %v2744
      %v2773 = vadd.f32 %v2689, %v2745
      %v2774 = vadd.f32 %v2690, %v2746
      %v2775 = vadd.f32 %v2691, %v2747
      %v2776 = vadd.f32 %v2692, %v2748
      %v2777 = vadd.f32 %v2693, %v2749
      %v2778 = vadd.f32 %v2694, %v2750
      %v2779 = vadd.f32 %v2695, %v2751
      %v2780 = vadd.f32 %v2696, %v2752
      %v2781 = vadd.f32 %v2697, %v2753
      %v2782 = vadd.f32 %v2698, %v2754
      %v2783 = vadd.f32 %v2699, %v2755
      %v2784 = vadd.f32 %v2700, %v2756
      %v2785 = vadd.f32 %v2701, %v2757
      %v2786 = vadd.f32 %v2702, %v2758
      %v2787 = vadd.f32 %v2703, %v2759
      %v2788 = vadd.f32 %v2704, %v2760
      %v2789 = vmul.f32 %v921, %v979
      %v2790 = vmul.f32 %v921, %v980
      %v2791 = vmul.f32 %v921, %v981
      %v2792 = vmul.f32 %v921, %v982
      %v2793 = vmul.f32 %v921, %v983
      %v2794 = vmul.f32 %v921, %v984
      %v2795 = vmul.f32 %v921, %v985
      %v2796 = vmul.f32 %v921, %v986
      %v2797 = vmul.f32 %v921, %v987
      %v2798 = vmul.f32 %v921, %v988
      %v2799 = vmul.f32 %v921, %v989
      %v2800 = vmul.f32 %v921, %v990
      %v2801 = vmul.f32 %v921, %v991
      %v2802 = vmul.f32 %v921, %v992
      %v2803 = vmul.f32 %v921, %v993
      %v2804 = vmul.f32 %v921, %v994
      %v2805 = vmul.f32 %v921, %v995
      %v2806 = vmul.f32 %v921, %v996
      %v2807 = vmul.f32 %v921, %v997
      %v2808 = vmul.f32 %v921, %v998
      %v2809 = vmul.f32 %v921, %v999
      %v2810 = vmul.f32 %v921, %v1000
      %v2811 = vmul.f32 %v921, %v1001
      %v2812 = vmul.f32 %v921, %v1002
      %v2813 = vmul.f32 %v921, %v1003
      %v2814 = vmul.f32 %v921, %v1004
      %v2815 = vmul.f32 %v921, %v1005
      %v2816 = vmul.f32 %v921, %v1006
      %v2817 = vadd.f32 %v2761, %v2789
      %v2818 = vadd.f32 %v2762, %v2790
      %v2819 = vadd.f32 %v2763, %v2791
      %v2820 = vadd.f32 %v2764, %v2792
      %v2821 = vadd.f32 %v2765, %v2793
      %v2822 = vadd.f32 %v2766, %v2794
      %v2823 = vadd.f32 %v2767, %v2795
      %v2824 = vadd.f32 %v2768, %v2796
      %v2825 = vadd.f32 %v2769, %v2797
      %v2826 = vadd.f32 %v2770, %v2798
      %v2827 = vadd.f32 %v2771, %v2799
      %v2828 = vadd.f32 %v2772, %v2800
      %v2829 = vadd.f32 %v2773, %v2801
      %v2830 = vadd.f32 %v2774, %v2802
      %v2831 = vadd.f32 %v2775, %v2803
      %v2832 = vadd.f32 %v2776, %v2804
      %v2833 = vadd.f32 %v2777, %v2805
      %v2834 = vadd.f32 %v2778, %v2806
      %v2835 = vadd.f32 %v2779, %v2807
      %v2836 = vadd.f32 %v2780, %v2808
      %v2837 = vadd.f32 %v2781, %v2809
      %v2838 = vadd.f32 %v2782, %v2810
      %v2839 = vadd.f32 %v2783, %v2811
      %v2840 = vadd.f32 %v2784, %v2812
      %v2841 = vadd.f32 %v2785, %v2813
      %v2842 = vadd.f32 %v2786, %v2814
      %v2843 = vadd.f32 %v2787, %v2815
      %v2844 = vadd.f32 %v2788, %v2816
      %v2845 = vmul.f32 %v1009, %v1066
      %v2846 = vmul.f32 %v1009, %v1067
      %v2847 = vmul.f32 %v1009, %v1068
      %v2848 = vmul.f32 %v1009, %v1069
      %v2849 = vmul.f32 %v1009, %v1070
      %v2850 = vmul.f32 %v1009, %v1071
      %v2851 = vmul.f32 %v1009, %v1072
      %v2852 = vmul.f32 %v1009, %v1073
      %v2853 = vmul.f32 %v1009, %v1074
      %v2854 = vmul.f32 %v1009, %v1075
      %v2855 = vmul.f32 %v1009, %v1076
      %v2856 = vmul.f32 %v1009, %v1077
      %v2857 = vmul.f32 %v1009, %v1078
      %v2858 = vmul.f32 %v1009, %v1079
      %v2859 = vmul.f32 %v1009, %v1080
      %v2860 = vmul.f32 %v1009, %v1081
      %v2861 = vmul.f32 %v1009, %v1082
      %v2862 = vmul.f32 %v1009, %v1083
      %v2863 = vmul.f32 %v1009, %v1084
      %v2864 = vmul.f32 %v1009, %v1085
      %v2865 = vmul.f32 %v1009, %v1086
      %v2866 = vmul.f32 %v1009, %v1087
      %v2867 = vmul.f32 %v1009, %v1088
      %v2868 = vmul.f32 %v1009, %v1089
      %v2869 = vmul.f32 %v1009, %v1090
      %v2870 = vmul.f32 %v1009, %v1091
      %v2871 = vmul.f32 %v1009, %v1092
      %v2872 = vmul.f32 %v1009, %v1093
      %v2873 = vadd.f32 %v2817, %v2845
      %v2874 = vadd.f32 %v2818, %v2846
      %v2875 = vadd.f32 %v2819, %v2847
      %v2876 = vadd.f32 %v2820, %v2848
      %v2877 = vadd.f32 %v2821, %v2849
      %v2878 = vadd.f32 %v2822, %v2850
      %v2879 = vadd.f32 %v2823, %v2851
      %v2880 = vadd.f32 %v2824, %v2852
      %v2881 = vadd.f32 %v2825, %v2853
      %v2882 = vadd.f32 %v2826, %v2854
      %v2883 = vadd.f32 %v2827, %v2855
      %v2884 = vadd.f32 %v2828, %v2856
      %v2885 = vadd.f32 %v2829, %v2857
      %v2886 = vadd.f32 %v2830, %v2858
      %v2887 = vadd.f32 %v2831, %v2859
      %v2888 = vadd.f32 %v2832, %v2860
      %v2889 = vadd.f32 %v2833, %v2861
      %v2890 = vadd.f32 %v2834, %v2862
      %v2891 = vadd.f32 %v2835, %v2863
      %v2892 = vadd.f32 %v2836, %v2864
      %v2893 = vadd.f32 %v2837, %v2865
      %v2894 = vadd.f32 %v2838, %v2866
      %v2895 = vadd.f32 %v2839, %v2867
      %v2896 = vadd.f32 %v2840, %v2868
      %v2897 = vadd.f32 %v2841, %v2869
      %v2898 = vadd.f32 %v2842, %v2870
      %v2899 = vadd.f32 %v2843, %v2871
      %v2900 = vadd.f32 %v2844, %v2872
      %v2901 = vmul.f32 %v1096, %v1153
      %v2902 = vmul.f32 %v1096, %v1154
      %v2903 = vmul.f32 %v1096, %v1155
      %v2904 = vmul.f32 %v1096, %v1156
      %v2905 = vmul.f32 %v1096, %v1157
      %v2906 = vmul.f32 %v1096, %v1158
      %v2907 = vmul.f32 %v1096, %v1159
      %v2908 = vmul.f32 %v1096, %v1160
      %v2909 = vmul.f32 %v1096, %v1161
      %v2910 = vmul.f32 %v1096, %v1162
      %v2911 = vmul.f32 %v1096, %v1163
      %v2912 = vmul.f32 %v1096, %v1164
      %v2913 = vmul.f32 %v1096, %v1165
      %v2914 = vmul.f32 %v1096, %v1166
      %v2915 = vmul.f32 %v1096, %v1167
      %v2916 = vmul.f32 %v1096, %v1168
      %v2917 = vmul.f32 %v1096, %v1169
      %v2918 = vmul.f32 %v1096, %v1170
      %v2919 = vmul.f32 %v1096, %v1171
      %v2920 = vmul.f32 %v1096, %v1172
      %v2921 = vmul.f32 %v1096, %v1173
      %v2922 = vmul.f32 %v1096, %v1174
      %v2923 = vmul.f32 %v1096, %v1175
      %v2924 = vmul.f32 %v1096, %v1176
      %v2925 = vmul.f32 %v1096, %v1177
      %v2926 = vmul.f32 %v1096, %v1178
      %v2927 = vmul.f32 %v1096, %v1179
      %v2928 = vmul.f32 %v1096, %v1180
      %v2929 = vadd.f32 %v2873, %v2901
      %v2930 = vadd.f32 %v2874, %v2902
      %v2931 = vadd.f32 %v2875, %v2903
      %v2932 = vadd.f32 %v2876, %v2904
      %v2933 = vadd.f32 %v2877, %v2905
      %v2934 = vadd.f32 %v2878, %v2906
      %v2935 = vadd.f32 %v2879, %v2907
      %v2936 = vadd.f32 %v2880, %v2908
      %v2937 = vadd.f32 %v2881, %v2909
      %v2938 = vadd.f32 %v2882, %v2910
      %v2939 = vadd.f32 %v2883, %v2911
      %v2940 = vadd.f32 %v2884, %v2912
      %v2941 = vadd.f32 %v2885, %v2913
      %v2942 = vadd.f32 %v2886, %v2914
      %v2943 = vadd.f32 %v2887, %v2915
      %v2944 = vadd.f32 %v2888, %v2916
      %v2945 = vadd.f32 %v2889, %v2917
      %v2946 = vadd.f32 %v2890, %v2918
      %v2947 = vadd.f32 %v2891, %v2919
      %v2948 = vadd.f32 %v2892, %v2920
      %v2949 = vadd.f32 %v2893, %v2921
      %v2950 = vadd.f32 %v2894, %v2922
      %v2951 = vadd.f32 %v2895, %v2923
      %v2952 = vadd.f32 %v2896, %v2924
      %v2953 = vadd.f32 %v2897, %v2925
      %v2954 = vadd.f32 %v2898, %v2926
      %v2955 = vadd.f32 %v2899, %v2927
      %v2956 = vadd.f32 %v2900, %v2928
      %v2957 = vmul.f32 %v1183, %v1240
      %v2958 = vmul.f32 %v1183, %v1241
      %v2959 = vmul.f32 %v1183, %v1242
      %v2960 = vmul.f32 %v1183, %v1243
      %v2961 = vmul.f32 %v1183, %v1244
      %v2962 = vmul.f32 %v1183, %v1245
      %v2963 = vmul.f32 %v1183, %v1246
      %v2964 = vmul.f32 %v1183, %v1247
      %v2965 = vmul.f32 %v1183, %v1248
      %v2966 = vmul.f32 %v1183, %v1249
      %v2967 = vmul.f32 %v1183, %v1250
      %v2968 = vmul.f32 %v1183, %v1251
      %v2969 = vmul.f32 %v1183, %v1252
      %v2970 = vmul.f32 %v1183, %v1253
      %v2971 = vmul.f32 %v1183, %v1254
      %v2972 = vmul.f32 %v1183, %v1255
      %v2973 = vmul.f32 %v1183, %v1256
      %v2974 = vmul.f32 %v1183, %v1257
      %v2975 = vmul.f32 %v1183, %v1258
      %v2976 = vmul.f32 %v1183, %v1259
      %v2977 = vmul.f32 %v1183, %v1260
      %v2978 = vmul.f32 %v1183, %v1261
      %v2979 = vmul.f32 %v1183, %v1262
      %v2980 = vmul.f32 %v1183, %v1263
      %v2981 = vmul.f32 %v1183, %v1264
      %v2982 = vmul.f32 %v1183, %v1265
      %v2983 = vmul.f32 %v1183, %v1266
      %v2984 = vmul.f32 %v1183, %v1267
      %v2985 = vadd.f32 %v2929, %v2957
      %v2986 = vadd.f32 %v2930, %v2958
      %v2987 = vadd.f32 %v2931, %v2959
      %v2988 = vadd.f32 %v2932, %v2960
      %v2989 = vadd.f32 %v2933, %v2961
      %v2990 = vadd.f32 %v2934, %v2962
      %v2991 = vadd.f32 %v2935, %v2963
      %v2992 = vadd.f32 %v2936, %v2964
      %v2993 = vadd.f32 %v2937, %v2965
      %v2994 = vadd.f32 %v2938, %v2966
      %v2995 = vadd.f32 %v2939, %v2967
      %v2996 = vadd.f32 %v2940, %v2968
      %v2997 = vadd.f32 %v2941, %v2969
      %v2998 = vadd.f32 %v2942, %v2970
      %v2999 = vadd.f32 %v2943, %v2971
      %v3000 = vadd.f32 %v2944, %v2972
      %v3001 = vadd.f32 %v2945, %v2973
      %v3002 = vadd.f32 %v2946, %v2974
      %v3003 = vadd.f32 %v2947, %v2975
      %v3004 = vadd.f32 %v2948, %v2976
      %v3005 = vadd.f32 %v2949, %v2977
      %v3006 = vadd.f32 %v2950, %v2978
      %v3007 = vadd.f32 %v2951, %v2979
      %v3008 = vadd.f32 %v2952, %v2980
      %v3009 = vadd.f32 %v2953, %v2981
      %v3010 = vadd.f32 %v2954, %v2982
      %v3011 = vadd.f32 %v2955, %v2983
      %v3012 = vadd.f32 %v2956, %v2984
      %v3013 = vld [vmem:[%s978 + $0x2] sm:$0xff]
      %v3014 = vld [vmem:[%s978 + $0xa] sm:$0x3f]
      %v3015 = vld [vmem:[%s978 + $0x12] sm:$0xff]
      %v3016 = vld [vmem:[%s978 + $0x1a] sm:$0x3f]
      %v3017 = vld [vmem:[%s978 + $0x22] sm:$0xff]
      %v3018 = vld [vmem:[%s978 + $0x2a] sm:$0x3f]
      %v3019 = vld [vmem:[%s978 + $0x32] sm:$0xff]
      %v3020 = vld [vmem:[%s978 + $0x3a] sm:$0x3f]
      %v3021 = vld [vmem:[%s978 + $0x42] sm:$0xff]
      %v3022 = vld [vmem:[%s978 + $0x4a] sm:$0x3f]
      %v3023 = vld [vmem:[%s978 + $0x52] sm:$0xff]
      %v3024 = vld [vmem:[%s978 + $0x5a] sm:$0x3f]
      %v3025 = vld [vmem:[%s978 + $0x62] sm:$0xff]
      %v3026 = vld [vmem:[%s978 + $0x6a] sm:$0x3f]
      %v3027 = vld [vmem:[%s978 + $0x72] sm:$0xff]
      %v3028 = vld [vmem:[%s978 + $0x7a] sm:$0x3f]
      %v3029 = vld [vmem:[%s978 + $0x82] sm:$0xff]
      %v3030 = vld [vmem:[%s978 + $0x8a] sm:$0x3f]
      %v3031 = vld [vmem:[%s978 + $0x92] sm:$0xff]
      %v3032 = vld [vmem:[%s978 + $0x9a] sm:$0x3f]
      %v3033 = vld [vmem:[%s978 + $0xa2] sm:$0xff]
      %v3034 = vld [vmem:[%s978 + $0xaa] sm:$0x3f]
      %v3035 = vld [vmem:[%s978 + $0xb2] sm:$0xff]
      %v3036 = vld [vmem:[%s978 + $0xba] sm:$0x3f]
      %v3037 = vld [vmem:[%s978 + $0xc2] sm:$0xff]
      %v3038 = vld [vmem:[%s978 + $0xca] sm:$0x3f]
      %v3039 = vld [vmem:[%s978 + $0xd2] sm:$0xff]
      %v3040 = vld [vmem:[%s978 + $0xda] sm:$0x3f]
      %v3041 = vmul.f32 %v1270, %v3013
      %v3042 = vmul.f32 %v1270, %v3014
      %v3043 = vmul.f32 %v1270, %v3015
      %v3044 = vmul.f32 %v1270, %v3016
      %v3045 = vmul.f32 %v1270, %v3017
      %v3046 = vmul.f32 %v1270, %v3018
      %v3047 = vmul.f32 %v1270, %v3019
      %v3048 = vmul.f32 %v1270, %v3020
      %v3049 = vmul.f32 %v1270, %v3021
      %v3050 = vmul.f32 %v1270, %v3022
      %v3051 = vmul.f32 %v1270, %v3023
      %v3052 = vmul.f32 %v1270, %v3024
      %v3053 = vmul.f32 %v1270, %v3025
      %v3054 = vmul.f32 %v1270, %v3026
      %v3055 = vmul.f32 %v1270, %v3027
      %v3056 = vmul.f32 %v1270, %v3028
      %v3057 = vmul.f32 %v1270, %v3029
      %v3058 = vmul.f32 %v1270, %v3030
      %v3059 = vmul.f32 %v1270, %v3031
      %v3060 = vmul.f32 %v1270, %v3032
      %v3061 = vmul.f32 %v1270, %v3033
      %v3062 = vmul.f32 %v1270, %v3034
      %v3063 = vmul.f32 %v1270, %v3035
      %v3064 = vmul.f32 %v1270, %v3036
      %v3065 = vmul.f32 %v1270, %v3037
      %v3066 = vmul.f32 %v1270, %v3038
      %v3067 = vmul.f32 %v1270, %v3039
      %v3068 = vmul.f32 %v1270, %v3040
      %v3069 = vadd.f32 %v2985, %v3041
      %v3070 = vadd.f32 %v2986, %v3042
      %v3071 = vadd.f32 %v2987, %v3043
      %v3072 = vadd.f32 %v2988, %v3044
      %v3073 = vadd.f32 %v2989, %v3045
      %v3074 = vadd.f32 %v2990, %v3046
      %v3075 = vadd.f32 %v2991, %v3047
      %v3076 = vadd.f32 %v2992, %v3048
      %v3077 = vadd.f32 %v2993, %v3049
      %v3078 = vadd.f32 %v2994, %v3050
      %v3079 = vadd.f32 %v2995, %v3051
      %v3080 = vadd.f32 %v2996, %v3052
      %v3081 = vadd.f32 %v2997, %v3053
      %v3082 = vadd.f32 %v2998, %v3054
      %v3083 = vadd.f32 %v2999, %v3055
      %v3084 = vadd.f32 %v3000, %v3056
      %v3085 = vadd.f32 %v3001, %v3057
      %v3086 = vadd.f32 %v3002, %v3058
      %v3087 = vadd.f32 %v3003, %v3059
      %v3088 = vadd.f32 %v3004, %v3060
      %v3089 = vadd.f32 %v3005, %v3061
      %v3090 = vadd.f32 %v3006, %v3062
      %v3091 = vadd.f32 %v3007, %v3063
      %v3092 = vadd.f32 %v3008, %v3064
      %v3093 = vadd.f32 %v3009, %v3065
      %v3094 = vadd.f32 %v3010, %v3066
      %v3095 = vadd.f32 %v3011, %v3067
      %v3096 = vadd.f32 %v3012, %v3068
      %v3097 = vmul.f32 %v1358, %v1416
      %v3098 = vmul.f32 %v1358, %v1417
      %v3099 = vmul.f32 %v1358, %v1418
      %v3100 = vmul.f32 %v1358, %v1419
      %v3101 = vmul.f32 %v1358, %v1420
      %v3102 = vmul.f32 %v1358, %v1421
      %v3103 = vmul.f32 %v1358, %v1422
      %v3104 = vmul.f32 %v1358, %v1423
      %v3105 = vmul.f32 %v1358, %v1424
      %v3106 = vmul.f32 %v1358, %v1425
      %v3107 = vmul.f32 %v1358, %v1426
      %v3108 = vmul.f32 %v1358, %v1427
      %v3109 = vmul.f32 %v1358, %v1428
      %v3110 = vmul.f32 %v1358, %v1429
      %v3111 = vmul.f32 %v1358, %v1430
      %v3112 = vmul.f32 %v1358, %v1431
      %v3113 = vmul.f32 %v1358, %v1432
      %v3114 = vmul.f32 %v1358, %v1433
      %v3115 = vmul.f32 %v1358, %v1434
      %v3116 = vmul.f32 %v1358, %v1435
      %v3117 = vmul.f32 %v1358, %v1436
      %v3118 = vmul.f32 %v1358, %v1437
      %v3119 = vmul.f32 %v1358, %v1438
      %v3120 = vmul.f32 %v1358, %v1439
      %v3121 = vmul.f32 %v1358, %v1440
      %v3122 = vmul.f32 %v1358, %v1441
      %v3123 = vmul.f32 %v1358, %v1442
      %v3124 = vmul.f32 %v1358, %v1443
      %v3125 = vadd.f32 %v3069, %v3097
      %v3126 = vadd.f32 %v3070, %v3098
      %v3127 = vadd.f32 %v3071, %v3099
      %v3128 = vadd.f32 %v3072, %v3100
      %v3129 = vadd.f32 %v3073, %v3101
      %v3130 = vadd.f32 %v3074, %v3102
      %v3131 = vadd.f32 %v3075, %v3103
      %v3132 = vadd.f32 %v3076, %v3104
      %v3133 = vadd.f32 %v3077, %v3105
      %v3134 = vadd.f32 %v3078, %v3106
      %v3135 = vadd.f32 %v3079, %v3107
      %v3136 = vadd.f32 %v3080, %v3108
      %v3137 = vadd.f32 %v3081, %v3109
      %v3138 = vadd.f32 %v3082, %v3110
      %v3139 = vadd.f32 %v3083, %v3111
      %v3140 = vadd.f32 %v3084, %v3112
      %v3141 = vadd.f32 %v3085, %v3113
      %v3142 = vadd.f32 %v3086, %v3114
      %v3143 = vadd.f32 %v3087, %v3115
      %v3144 = vadd.f32 %v3088, %v3116
      %v3145 = vadd.f32 %v3089, %v3117
      %v3146 = vadd.f32 %v3090, %v3118
      %v3147 = vadd.f32 %v3091, %v3119
      %v3148 = vadd.f32 %v3092, %v3120
      %v3149 = vadd.f32 %v3093, %v3121
      %v3150 = vadd.f32 %v3094, %v3122
      %v3151 = vadd.f32 %v3095, %v3123
      %v3152 = vadd.f32 %v3096, %v3124
      %v3153 = vmul.f32 %v1446, %v1503
      %v3154 = vmul.f32 %v1446, %v1504
      %v3155 = vmul.f32 %v1446, %v1505
      %v3156 = vmul.f32 %v1446, %v1506
      %v3157 = vmul.f32 %v1446, %v1507
      %v3158 = vmul.f32 %v1446, %v1508
      %v3159 = vmul.f32 %v1446, %v1509
      %v3160 = vmul.f32 %v1446, %v1510
      %v3161 = vmul.f32 %v1446, %v1511
      %v3162 = vmul.f32 %v1446, %v1512
      %v3163 = vmul.f32 %v1446, %v1513
      %v3164 = vmul.f32 %v1446, %v1514
      %v3165 = vmul.f32 %v1446, %v1515
      %v3166 = vmul.f32 %v1446, %v1516
      %v3167 = vmul.f32 %v1446, %v1517
      %v3168 = vmul.f32 %v1446, %v1518
      %v3169 = vmul.f32 %v1446, %v1519
      %v3170 = vmul.f32 %v1446, %v1520
      %v3171 = vmul.f32 %v1446, %v1521
      %v3172 = vmul.f32 %v1446, %v1522
      %v3173 = vmul.f32 %v1446, %v1523
      %v3174 = vmul.f32 %v1446, %v1524
      %v3175 = vmul.f32 %v1446, %v1525
      %v3176 = vmul.f32 %v1446, %v1526
      %v3177 = vmul.f32 %v1446, %v1527
      %v3178 = vmul.f32 %v1446, %v1528
      %v3179 = vmul.f32 %v1446, %v1529
      %v3180 = vmul.f32 %v1446, %v1530
      %v3181 = vadd.f32 %v3125, %v3153
      %v3182 = vadd.f32 %v3126, %v3154
      %v3183 = vadd.f32 %v3127, %v3155
      %v3184 = vadd.f32 %v3128, %v3156
      %v3185 = vadd.f32 %v3129, %v3157
      %v3186 = vadd.f32 %v3130, %v3158
      %v3187 = vadd.f32 %v3131, %v3159
      %v3188 = vadd.f32 %v3132, %v3160
      %v3189 = vadd.f32 %v3133, %v3161
      %v3190 = vadd.f32 %v3134, %v3162
      %v3191 = vadd.f32 %v3135, %v3163
      %v3192 = vadd.f32 %v3136, %v3164
      %v3193 = vadd.f32 %v3137, %v3165
      %v3194 = vadd.f32 %v3138, %v3166
      %v3195 = vadd.f32 %v3139, %v3167
      %v3196 = vadd.f32 %v3140, %v3168
      %v3197 = vadd.f32 %v3141, %v3169
      %v3198 = vadd.f32 %v3142, %v3170
      %v3199 = vadd.f32 %v3143, %v3171
      %v3200 = vadd.f32 %v3144, %v3172
      %v3201 = vadd.f32 %v3145, %v3173
      %v3202 = vadd.f32 %v3146, %v3174
      %v3203 = vadd.f32 %v3147, %v3175
      %v3204 = vadd.f32 %v3148, %v3176
      %v3205 = vadd.f32 %v3149, %v3177
      %v3206 = vadd.f32 %v3150, %v3178
      %v3207 = vadd.f32 %v3151, %v3179
      %v3208 = vadd.f32 %v3152, %v3180
      %v3209 = vmul.f32 %v1533, %v1590
      %v3210 = vmul.f32 %v1533, %v1591
      %v3211 = vmul.f32 %v1533, %v1592
      %v3212 = vmul.f32 %v1533, %v1593
      %v3213 = vmul.f32 %v1533, %v1594
      %v3214 = vmul.f32 %v1533, %v1595
      %v3215 = vmul.f32 %v1533, %v1596
      %v3216 = vmul.f32 %v1533, %v1597
      %v3217 = vmul.f32 %v1533, %v1598
      %v3218 = vmul.f32 %v1533, %v1599
      %v3219 = vmul.f32 %v1533, %v1600
      %v3220 = vmul.f32 %v1533, %v1601
      %v3221 = vmul.f32 %v1533, %v1602
      %v3222 = vmul.f32 %v1533, %v1603
      %v3223 = vmul.f32 %v1533, %v1604
      %v3224 = vmul.f32 %v1533, %v1605
      %v3225 = vmul.f32 %v1533, %v1606
      %v3226 = vmul.f32 %v1533, %v1607
      %v3227 = vmul.f32 %v1533, %v1608
      %v3228 = vmul.f32 %v1533, %v1609
      %v3229 = vmul.f32 %v1533, %v1610
      %v3230 = vmul.f32 %v1533, %v1611
      %v3231 = vmul.f32 %v1533, %v1612
      %v3232 = vmul.f32 %v1533, %v1613
      %v3233 = vmul.f32 %v1533, %v1614
      %v3234 = vmul.f32 %v1533, %v1615
      %v3235 = vmul.f32 %v1533, %v1616
      %v3236 = vmul.f32 %v1533, %v1617
      %v3237 = vadd.f32 %v3181, %v3209
      %v3238 = vadd.f32 %v3182, %v3210
      %v3239 = vadd.f32 %v3183, %v3211
      %v3240 = vadd.f32 %v3184, %v3212
      %v3241 = vadd.f32 %v3185, %v3213
      %v3242 = vadd.f32 %v3186, %v3214
      %v3243 = vadd.f32 %v3187, %v3215
      %v3244 = vadd.f32 %v3188, %v3216
      %v3245 = vadd.f32 %v3189, %v3217
      %v3246 = vadd.f32 %v3190, %v3218
      %v3247 = vadd.f32 %v3191, %v3219
      %v3248 = vadd.f32 %v3192, %v3220
      %v3249 = vadd.f32 %v3193, %v3221
      %v3250 = vadd.f32 %v3194, %v3222
      %v3251 = vadd.f32 %v3195, %v3223
      %v3252 = vadd.f32 %v3196, %v3224
      %v3253 = vadd.f32 %v3197, %v3225
      %v3254 = vadd.f32 %v3198, %v3226
      %v3255 = vadd.f32 %v3199, %v3227
      %v3256 = vadd.f32 %v3200, %v3228
      %v3257 = vadd.f32 %v3201, %v3229
      %v3258 = vadd.f32 %v3202, %v3230
      %v3259 = vadd.f32 %v3203, %v3231
      %v3260 = vadd.f32 %v3204, %v3232
      %v3261 = vadd.f32 %v3205, %v3233
      %v3262 = vadd.f32 %v3206, %v3234
      %v3263 = vadd.f32 %v3207, %v3235
      %v3264 = vadd.f32 %v3208, %v3236
      %v3265 = vmul.f32 %v1620, %v1677
      %v3266 = vmul.f32 %v1620, %v1678
      %v3267 = vmul.f32 %v1620, %v1679
      %v3268 = vmul.f32 %v1620, %v1680
      %v3269 = vmul.f32 %v1620, %v1681
      %v3270 = vmul.f32 %v1620, %v1682
      %v3271 = vmul.f32 %v1620, %v1683
      %v3272 = vmul.f32 %v1620, %v1684
      %v3273 = vmul.f32 %v1620, %v1685
      %v3274 = vmul.f32 %v1620, %v1686
      %v3275 = vmul.f32 %v1620, %v1687
      %v3276 = vmul.f32 %v1620, %v1688
      %v3277 = vmul.f32 %v1620, %v1689
      %v3278 = vmul.f32 %v1620, %v1690
      %v3279 = vmul.f32 %v1620, %v1691
      %v3280 = vmul.f32 %v1620, %v1692
      %v3281 = vmul.f32 %v1620, %v1693
      %v3282 = vmul.f32 %v1620, %v1694
      %v3283 = vmul.f32 %v1620, %v1695
      %v3284 = vmul.f32 %v1620, %v1696
      %v3285 = vmul.f32 %v1620, %v1697
      %v3286 = vmul.f32 %v1620, %v1698
      %v3287 = vmul.f32 %v1620, %v1699
      %v3288 = vmul.f32 %v1620, %v1700
      %v3289 = vmul.f32 %v1620, %v1701
      %v3290 = vmul.f32 %v1620, %v1702
      %v3291 = vmul.f32 %v1620, %v1703
      %v3292 = vmul.f32 %v1620, %v1704
      %v3293 = vadd.f32 %v3237, %v3265
      %v3294 = vadd.f32 %v3238, %v3266
      %v3295 = vadd.f32 %v3239, %v3267
      %v3296 = vadd.f32 %v3240, %v3268
      %v3297 = vadd.f32 %v3241, %v3269
      %v3298 = vadd.f32 %v3242, %v3270
      %v3299 = vadd.f32 %v3243, %v3271
      %v3300 = vadd.f32 %v3244, %v3272
      %v3301 = vadd.f32 %v3245, %v3273
      %v3302 = vadd.f32 %v3246, %v3274
      %v3303 = vadd.f32 %v3247, %v3275
      %v3304 = vadd.f32 %v3248, %v3276
      %v3305 = vadd.f32 %v3249, %v3277
      %v3306 = vadd.f32 %v3250, %v3278
      %v3307 = vadd.f32 %v3251, %v3279
      %v3308 = vadd.f32 %v3252, %v3280
      %v3309 = vadd.f32 %v3253, %v3281
      %v3310 = vadd.f32 %v3254, %v3282
      %v3311 = vadd.f32 %v3255, %v3283
      %v3312 = vadd.f32 %v3256, %v3284
      %v3313 = vadd.f32 %v3257, %v3285
      %v3314 = vadd.f32 %v3258, %v3286
      %v3315 = vadd.f32 %v3259, %v3287
      %v3316 = vadd.f32 %v3260, %v3288
      %v3317 = vadd.f32 %v3261, %v3289
      %v3318 = vadd.f32 %v3262, %v3290
      %v3319 = vadd.f32 %v3263, %v3291
      %v3320 = vadd.f32 %v3264, %v3292
      %v3321 = vld [vmem:[%s1415 + $0x2] sm:$0xff]
      %v3322 = vld [vmem:[%s1415 + $0xa] sm:$0x3f]
      %v3323 = vld [vmem:[%s1415 + $0x12] sm:$0xff]
      %v3324 = vld [vmem:[%s1415 + $0x1a] sm:$0x3f]
      %v3325 = vld [vmem:[%s1415 + $0x22] sm:$0xff]
      %v3326 = vld [vmem:[%s1415 + $0x2a] sm:$0x3f]
      %v3327 = vld [vmem:[%s1415 + $0x32] sm:$0xff]
      %v3328 = vld [vmem:[%s1415 + $0x3a] sm:$0x3f]
      %v3329 = vld [vmem:[%s1415 + $0x42] sm:$0xff]
      %v3330 = vld [vmem:[%s1415 + $0x4a] sm:$0x3f]
      %v3331 = vld [vmem:[%s1415 + $0x52] sm:$0xff]
      %v3332 = vld [vmem:[%s1415 + $0x5a] sm:$0x3f]
      %v3333 = vld [vmem:[%s1415 + $0x62] sm:$0xff]
      %v3334 = vld [vmem:[%s1415 + $0x6a] sm:$0x3f]
      %v3335 = vld [vmem:[%s1415 + $0x72] sm:$0xff]
      %v3336 = vld [vmem:[%s1415 + $0x7a] sm:$0x3f]
      %v3337 = vld [vmem:[%s1415 + $0x82] sm:$0xff]
      %v3338 = vld [vmem:[%s1415 + $0x8a] sm:$0x3f]
      %v3339 = vld [vmem:[%s1415 + $0x92] sm:$0xff]
      %v3340 = vld [vmem:[%s1415 + $0x9a] sm:$0x3f]
      %v3341 = vld [vmem:[%s1415 + $0xa2] sm:$0xff]
      %v3342 = vld [vmem:[%s1415 + $0xaa] sm:$0x3f]
      %v3343 = vld [vmem:[%s1415 + $0xb2] sm:$0xff]
      %v3344 = vld [vmem:[%s1415 + $0xba] sm:$0x3f]
      %v3345 = vld [vmem:[%s1415 + $0xc2] sm:$0xff]
      %v3346 = vld [vmem:[%s1415 + $0xca] sm:$0x3f]
      %v3347 = vld [vmem:[%s1415 + $0xd2] sm:$0xff]
      %v3348 = vld [vmem:[%s1415 + $0xda] sm:$0x3f]
      %v3349 = vmul.f32 %v1707, %v3321
      %v3350 = vmul.f32 %v1707, %v3322
      %v3351 = vmul.f32 %v1707, %v3323
      %v3352 = vmul.f32 %v1707, %v3324
      %v3353 = vmul.f32 %v1707, %v3325
      %v3354 = vmul.f32 %v1707, %v3326
      %v3355 = vmul.f32 %v1707, %v3327
      %v3356 = vmul.f32 %v1707, %v3328
      %v3357 = vmul.f32 %v1707, %v3329
      %v3358 = vmul.f32 %v1707, %v3330
      %v3359 = vmul.f32 %v1707, %v3331
      %v3360 = vmul.f32 %v1707, %v3332
      %v3361 = vmul.f32 %v1707, %v3333
      %v3362 = vmul.f32 %v1707, %v3334
      %v3363 = vmul.f32 %v1707, %v3335
      %v3364 = vmul.f32 %v1707, %v3336
      %v3365 = vmul.f32 %v1707, %v3337
      %v3366 = vmul.f32 %v1707, %v3338
      %v3367 = vmul.f32 %v1707, %v3339
      %v3368 = vmul.f32 %v1707, %v3340
      %v3369 = vmul.f32 %v1707, %v3341
      %v3370 = vmul.f32 %v1707, %v3342
      %v3371 = vmul.f32 %v1707, %v3343
      %v3372 = vmul.f32 %v1707, %v3344
      %v3373 = vmul.f32 %v1707, %v3345
      %v3374 = vmul.f32 %v1707, %v3346
      %v3375 = vmul.f32 %v1707, %v3347
      %v3376 = vmul.f32 %v1707, %v3348
      %v3377 = vadd.f32 %v3293, %v3349
      %v3378 = vadd.f32 %v3294, %v3350
      %v3379 = vadd.f32 %v3295, %v3351
      %v3380 = vadd.f32 %v3296, %v3352
      %v3381 = vadd.f32 %v3297, %v3353
      %v3382 = vadd.f32 %v3298, %v3354
      %v3383 = vadd.f32 %v3299, %v3355
      %v3384 = vadd.f32 %v3300, %v3356
      %v3385 = vadd.f32 %v3301, %v3357
      %v3386 = vadd.f32 %v3302, %v3358
      %v3387 = vadd.f32 %v3303, %v3359
      %v3388 = vadd.f32 %v3304, %v3360
      %v3389 = vadd.f32 %v3305, %v3361
      %v3390 = vadd.f32 %v3306, %v3362
      %v3391 = vadd.f32 %v3307, %v3363
      %v3392 = vadd.f32 %v3308, %v3364
      %v3393 = vadd.f32 %v3309, %v3365
      %v3394 = vadd.f32 %v3310, %v3366
      %v3395 = vadd.f32 %v3311, %v3367
      %v3396 = vadd.f32 %v3312, %v3368
      %v3397 = vadd.f32 %v3313, %v3369
      %v3398 = vadd.f32 %v3314, %v3370
      %v3399 = vadd.f32 %v3315, %v3371
      %v3400 = vadd.f32 %v3316, %v3372
      %v3401 = vadd.f32 %v3317, %v3373
      %v3402 = vadd.f32 %v3318, %v3374
      %v3403 = vadd.f32 %v3319, %v3375
      %v3404 = vadd.f32 %v3320, %v3376
      %v3405 = vmul.f32 %v1795, %v1853
      %v3406 = vmul.f32 %v1795, %v1854
      %v3407 = vmul.f32 %v1795, %v1855
      %v3408 = vmul.f32 %v1795, %v1856
      %v3409 = vmul.f32 %v1795, %v1857
      %v3410 = vmul.f32 %v1795, %v1858
      %v3411 = vmul.f32 %v1795, %v1859
      %v3412 = vmul.f32 %v1795, %v1860
      %v3413 = vmul.f32 %v1795, %v1861
      %v3414 = vmul.f32 %v1795, %v1862
      %v3415 = vmul.f32 %v1795, %v1863
      %v3416 = vmul.f32 %v1795, %v1864
      %v3417 = vmul.f32 %v1795, %v1865
      %v3418 = vmul.f32 %v1795, %v1866
      %v3419 = vmul.f32 %v1795, %v1867
      %v3420 = vmul.f32 %v1795, %v1868
      %v3421 = vmul.f32 %v1795, %v1869
      %v3422 = vmul.f32 %v1795, %v1870
      %v3423 = vmul.f32 %v1795, %v1871
      %v3424 = vmul.f32 %v1795, %v1872
      %v3425 = vmul.f32 %v1795, %v1873
      %v3426 = vmul.f32 %v1795, %v1874
      %v3427 = vmul.f32 %v1795, %v1875
      %v3428 = vmul.f32 %v1795, %v1876
      %v3429 = vmul.f32 %v1795, %v1877
      %v3430 = vmul.f32 %v1795, %v1878
      %v3431 = vmul.f32 %v1795, %v1879
      %v3432 = vmul.f32 %v1795, %v1880
      %v3433 = vadd.f32 %v3377, %v3405
      %v3434 = vadd.f32 %v3378, %v3406
      %v3435 = vadd.f32 %v3379, %v3407
      %v3436 = vadd.f32 %v3380, %v3408
      %v3437 = vadd.f32 %v3381, %v3409
      %v3438 = vadd.f32 %v3382, %v3410
      %v3439 = vadd.f32 %v3383, %v3411
      %v3440 = vadd.f32 %v3384, %v3412
      %v3441 = vadd.f32 %v3385, %v3413
      %v3442 = vadd.f32 %v3386, %v3414
      %v3443 = vadd.f32 %v3387, %v3415
      %v3444 = vadd.f32 %v3388, %v3416
      %v3445 = vadd.f32 %v3389, %v3417
      %v3446 = vadd.f32 %v3390, %v3418
      %v3447 = vadd.f32 %v3391, %v3419
      %v3448 = vadd.f32 %v3392, %v3420
      %v3449 = vadd.f32 %v3393, %v3421
      %v3450 = vadd.f32 %v3394, %v3422
      %v3451 = vadd.f32 %v3395, %v3423
      %v3452 = vadd.f32 %v3396, %v3424
      %v3453 = vadd.f32 %v3397, %v3425
      %v3454 = vadd.f32 %v3398, %v3426
      %v3455 = vadd.f32 %v3399, %v3427
      %v3456 = vadd.f32 %v3400, %v3428
      %v3457 = vadd.f32 %v3401, %v3429
      %v3458 = vadd.f32 %v3402, %v3430
      %v3459 = vadd.f32 %v3403, %v3431
      %v3460 = vadd.f32 %v3404, %v3432
      %v3461 = vmul.f32 %v1883, %v1940
      %v3462 = vmul.f32 %v1883, %v1941
      %v3463 = vmul.f32 %v1883, %v1942
      %v3464 = vmul.f32 %v1883, %v1943
      %v3465 = vmul.f32 %v1883, %v1944
      %v3466 = vmul.f32 %v1883, %v1945
      %v3467 = vmul.f32 %v1883, %v1946
      %v3468 = vmul.f32 %v1883, %v1947
      %v3469 = vmul.f32 %v1883, %v1948
      %v3470 = vmul.f32 %v1883, %v1949
      %v3471 = vmul.f32 %v1883, %v1950
      %v3472 = vmul.f32 %v1883, %v1951
      %v3473 = vmul.f32 %v1883, %v1952
      %v3474 = vmul.f32 %v1883, %v1953
      %v3475 = vmul.f32 %v1883, %v1954
      %v3476 = vmul.f32 %v1883, %v1955
      %v3477 = vmul.f32 %v1883, %v1956
      %v3478 = vmul.f32 %v1883, %v1957
      %v3479 = vmul.f32 %v1883, %v1958
      %v3480 = vmul.f32 %v1883, %v1959
      %v3481 = vmul.f32 %v1883, %v1960
      %v3482 = vmul.f32 %v1883, %v1961
      %v3483 = vmul.f32 %v1883, %v1962
      %v3484 = vmul.f32 %v1883, %v1963
      %v3485 = vmul.f32 %v1883, %v1964
      %v3486 = vmul.f32 %v1883, %v1965
      %v3487 = vmul.f32 %v1883, %v1966
      %v3488 = vmul.f32 %v1883, %v1967
      %v3489 = vadd.f32 %v3433, %v3461
      %v3490 = vadd.f32 %v3434, %v3462
      %v3491 = vadd.f32 %v3435, %v3463
      %v3492 = vadd.f32 %v3436, %v3464
      %v3493 = vadd.f32 %v3437, %v3465
      %v3494 = vadd.f32 %v3438, %v3466
      %v3495 = vadd.f32 %v3439, %v3467
      %v3496 = vadd.f32 %v3440, %v3468
      %v3497 = vadd.f32 %v3441, %v3469
      %v3498 = vadd.f32 %v3442, %v3470
      %v3499 = vadd.f32 %v3443, %v3471
      %v3500 = vadd.f32 %v3444, %v3472
      %v3501 = vadd.f32 %v3445, %v3473
      %v3502 = vadd.f32 %v3446, %v3474
      %v3503 = vadd.f32 %v3447, %v3475
      %v3504 = vadd.f32 %v3448, %v3476
      %v3505 = vadd.f32 %v3449, %v3477
      %v3506 = vadd.f32 %v3450, %v3478
      %v3507 = vadd.f32 %v3451, %v3479
      %v3508 = vadd.f32 %v3452, %v3480
      %v3509 = vadd.f32 %v3453, %v3481
      %v3510 = vadd.f32 %v3454, %v3482
      %v3511 = vadd.f32 %v3455, %v3483
      %v3512 = vadd.f32 %v3456, %v3484
      %v3513 = vadd.f32 %v3457, %v3485
      %v3514 = vadd.f32 %v3458, %v3486
      %v3515 = vadd.f32 %v3459, %v3487
      %v3516 = vadd.f32 %v3460, %v3488
      %v3517 = vmul.f32 %v1970, %v2027
      %v3518 = vmul.f32 %v1970, %v2028
      %v3519 = vmul.f32 %v1970, %v2029
      %v3520 = vmul.f32 %v1970, %v2030
      %v3521 = vmul.f32 %v1970, %v2031
      %v3522 = vmul.f32 %v1970, %v2032
      %v3523 = vmul.f32 %v1970, %v2033
      %v3524 = vmul.f32 %v1970, %v2034
      %v3525 = vmul.f32 %v1970, %v2035
      %v3526 = vmul.f32 %v1970, %v2036
      %v3527 = vmul.f32 %v1970, %v2037
      %v3528 = vmul.f32 %v1970, %v2038
      %v3529 = vmul.f32 %v1970, %v2039
      %v3530 = vmul.f32 %v1970, %v2040
      %v3531 = vmul.f32 %v1970, %v2041
      %v3532 = vmul.f32 %v1970, %v2042
      %v3533 = vmul.f32 %v1970, %v2043
      %v3534 = vmul.f32 %v1970, %v2044
      %v3535 = vmul.f32 %v1970, %v2045
      %v3536 = vmul.f32 %v1970, %v2046
      %v3537 = vmul.f32 %v1970, %v2047
      %v3538 = vmul.f32 %v1970, %v2048
      %v3539 = vmul.f32 %v1970, %v2049
      %v3540 = vmul.f32 %v1970, %v2050
      %v3541 = vmul.f32 %v1970, %v2051
      %v3542 = vmul.f32 %v1970, %v2052
      %v3543 = vmul.f32 %v1970, %v2053
      %v3544 = vmul.f32 %v1970, %v2054
      %v3545 = vadd.f32 %v3489, %v3517
      %v3546 = vadd.f32 %v3490, %v3518
      %v3547 = vadd.f32 %v3491, %v3519
      %v3548 = vadd.f32 %v3492, %v3520
      %v3549 = vadd.f32 %v3493, %v3521
      %v3550 = vadd.f32 %v3494, %v3522
      %v3551 = vadd.f32 %v3495, %v3523
      %v3552 = vadd.f32 %v3496, %v3524
      %v3553 = vadd.f32 %v3497, %v3525
      %v3554 = vadd.f32 %v3498, %v3526
      %v3555 = vadd.f32 %v3499, %v3527
      %v3556 = vadd.f32 %v3500, %v3528
      %v3557 = vadd.f32 %v3501, %v3529
      %v3558 = vadd.f32 %v3502, %v3530
      %v3559 = vadd.f32 %v3503, %v3531
      %v3560 = vadd.f32 %v3504, %v3532
      %v3561 = vadd.f32 %v3505, %v3533
      %v3562 = vadd.f32 %v3506, %v3534
      %v3563 = vadd.f32 %v3507, %v3535
      %v3564 = vadd.f32 %v3508, %v3536
      %v3565 = vadd.f32 %v3509, %v3537
      %v3566 = vadd.f32 %v3510, %v3538
      %v3567 = vadd.f32 %v3511, %v3539
      %v3568 = vadd.f32 %v3512, %v3540
      %v3569 = vadd.f32 %v3513, %v3541
      %v3570 = vadd.f32 %v3514, %v3542
      %v3571 = vadd.f32 %v3515, %v3543
      %v3572 = vadd.f32 %v3516, %v3544
      %v3573 = vmul.f32 %v2057, %v2114
      %v3574 = vmul.f32 %v2057, %v2115
      %v3575 = vmul.f32 %v2057, %v2116
      %v3576 = vmul.f32 %v2057, %v2117
      %v3577 = vmul.f32 %v2057, %v2118
      %v3578 = vmul.f32 %v2057, %v2119
      %v3579 = vmul.f32 %v2057, %v2120
      %v3580 = vmul.f32 %v2057, %v2121
      %v3581 = vmul.f32 %v2057, %v2122
      %v3582 = vmul.f32 %v2057, %v2123
      %v3583 = vmul.f32 %v2057, %v2124
      %v3584 = vmul.f32 %v2057, %v2125
      %v3585 = vmul.f32 %v2057, %v2126
      %v3586 = vmul.f32 %v2057, %v2127
      %v3587 = vmul.f32 %v2057, %v2128
      %v3588 = vmul.f32 %v2057, %v2129
      %v3589 = vmul.f32 %v2057, %v2130
      %v3590 = vmul.f32 %v2057, %v2131
      %v3591 = vmul.f32 %v2057, %v2132
      %v3592 = vmul.f32 %v2057, %v2133
      %v3593 = vmul.f32 %v2057, %v2134
      %v3594 = vmul.f32 %v2057, %v2135
      %v3595 = vmul.f32 %v2057, %v2136
      %v3596 = vmul.f32 %v2057, %v2137
      %v3597 = vmul.f32 %v2057, %v2138
      %v3598 = vmul.f32 %v2057, %v2139
      %v3599 = vmul.f32 %v2057, %v2140
      %v3600 = vmul.f32 %v2057, %v2141
      %v3601 = vadd.f32 %v3545, %v3573
      %v3602 = vadd.f32 %v3546, %v3574
      %v3603 = vadd.f32 %v3547, %v3575
      %v3604 = vadd.f32 %v3548, %v3576
      %v3605 = vadd.f32 %v3549, %v3577
      %v3606 = vadd.f32 %v3550, %v3578
      %v3607 = vadd.f32 %v3551, %v3579
      %v3608 = vadd.f32 %v3552, %v3580
      %v3609 = vadd.f32 %v3553, %v3581
      %v3610 = vadd.f32 %v3554, %v3582
      %v3611 = vadd.f32 %v3555, %v3583
      %v3612 = vadd.f32 %v3556, %v3584
      %v3613 = vadd.f32 %v3557, %v3585
      %v3614 = vadd.f32 %v3558, %v3586
      %v3615 = vadd.f32 %v3559, %v3587
      %v3616 = vadd.f32 %v3560, %v3588
      %v3617 = vadd.f32 %v3561, %v3589
      %v3618 = vadd.f32 %v3562, %v3590
      %v3619 = vadd.f32 %v3563, %v3591
      %v3620 = vadd.f32 %v3564, %v3592
      %v3621 = vadd.f32 %v3565, %v3593
      %v3622 = vadd.f32 %v3566, %v3594
      %v3623 = vadd.f32 %v3567, %v3595
      %v3624 = vadd.f32 %v3568, %v3596
      %v3625 = vadd.f32 %v3569, %v3597
      %v3626 = vadd.f32 %v3570, %v3598
      %v3627 = vadd.f32 %v3571, %v3599
      %v3628 = vadd.f32 %v3572, %v3600
      %v3629 = vld [vmem:[%s1852 + $0x2] sm:$0xff]
      %v3630 = vld [vmem:[%s1852 + $0xa] sm:$0x3f]
      %v3631 = vld [vmem:[%s1852 + $0x12] sm:$0xff]
      %v3632 = vld [vmem:[%s1852 + $0x1a] sm:$0x3f]
      %v3633 = vld [vmem:[%s1852 + $0x22] sm:$0xff]
      %v3634 = vld [vmem:[%s1852 + $0x2a] sm:$0x3f]
      %v3635 = vld [vmem:[%s1852 + $0x32] sm:$0xff]
      %v3636 = vld [vmem:[%s1852 + $0x3a] sm:$0x3f]
      %v3637 = vld [vmem:[%s1852 + $0x42] sm:$0xff]
      %v3638 = vld [vmem:[%s1852 + $0x4a] sm:$0x3f]
      %v3639 = vld [vmem:[%s1852 + $0x52] sm:$0xff]
      %v3640 = vld [vmem:[%s1852 + $0x5a] sm:$0x3f]
      %v3641 = vld [vmem:[%s1852 + $0x62] sm:$0xff]
      %v3642 = vld [vmem:[%s1852 + $0x6a] sm:$0x3f]
      %v3643 = vld [vmem:[%s1852 + $0x72] sm:$0xff]
      %v3644 = vld [vmem:[%s1852 + $0x7a] sm:$0x3f]
      %v3645 = vld [vmem:[%s1852 + $0x82] sm:$0xff]
      %v3646 = vld [vmem:[%s1852 + $0x8a] sm:$0x3f]
      %v3647 = vld [vmem:[%s1852 + $0x92] sm:$0xff]
      %v3648 = vld [vmem:[%s1852 + $0x9a] sm:$0x3f]
      %v3649 = vld [vmem:[%s1852 + $0xa2] sm:$0xff]
      %v3650 = vld [vmem:[%s1852 + $0xaa] sm:$0x3f]
      %v3651 = vld [vmem:[%s1852 + $0xb2] sm:$0xff]
      %v3652 = vld [vmem:[%s1852 + $0xba] sm:$0x3f]
      %v3653 = vld [vmem:[%s1852 + $0xc2] sm:$0xff]
      %v3654 = vld [vmem:[%s1852 + $0xca] sm:$0x3f]
      %v3655 = vld [vmem:[%s1852 + $0xd2] sm:$0xff]
      %v3656 = vld [vmem:[%s1852 + $0xda] sm:$0x3f]
      %v3657 = vmul.f32 %v2144, %v3629
      %v3658 = vmul.f32 %v2144, %v3630
      %v3659 = vmul.f32 %v2144, %v3631
      %v3660 = vmul.f32 %v2144, %v3632
      %v3661 = vmul.f32 %v2144, %v3633
      %v3662 = vmul.f32 %v2144, %v3634
      %v3663 = vmul.f32 %v2144, %v3635
      %v3664 = vmul.f32 %v2144, %v3636
      %v3665 = vmul.f32 %v2144, %v3637
      %v3666 = vmul.f32 %v2144, %v3638
      %v3667 = vmul.f32 %v2144, %v3639
      %v3668 = vmul.f32 %v2144, %v3640
      %v3669 = vmul.f32 %v2144, %v3641
      %v3670 = vmul.f32 %v2144, %v3642
      %v3671 = vmul.f32 %v2144, %v3643
      %v3672 = vmul.f32 %v2144, %v3644
      %v3673 = vmul.f32 %v2144, %v3645
      %v3674 = vmul.f32 %v2144, %v3646
      %v3675 = vmul.f32 %v2144, %v3647
      %v3676 = vmul.f32 %v2144, %v3648
      %v3677 = vmul.f32 %v2144, %v3649
      %v3678 = vmul.f32 %v2144, %v3650
      %v3679 = vmul.f32 %v2144, %v3651
      %v3680 = vmul.f32 %v2144, %v3652
      %v3681 = vmul.f32 %v2144, %v3653
      %v3682 = vmul.f32 %v2144, %v3654
      %v3683 = vmul.f32 %v2144, %v3655
      %v3684 = vmul.f32 %v2144, %v3656
      %v3685 = vadd.f32 %v3601, %v3657
      %v3686 = vadd.f32 %v3602, %v3658
      %v3687 = vadd.f32 %v3603, %v3659
      %v3688 = vadd.f32 %v3604, %v3660
      %v3689 = vadd.f32 %v3605, %v3661
      %v3690 = vadd.f32 %v3606, %v3662
      %v3691 = vadd.f32 %v3607, %v3663
      %v3692 = vadd.f32 %v3608, %v3664
      %v3693 = vadd.f32 %v3609, %v3665
      %v3694 = vadd.f32 %v3610, %v3666
      %v3695 = vadd.f32 %v3611, %v3667
      %v3696 = vadd.f32 %v3612, %v3668
      %v3697 = vadd.f32 %v3613, %v3669
      %v3698 = vadd.f32 %v3614, %v3670
      %v3699 = vadd.f32 %v3615, %v3671
      %v3700 = vadd.f32 %v3616, %v3672
      %v3701 = vadd.f32 %v3617, %v3673
      %v3702 = vadd.f32 %v3618, %v3674
      %v3703 = vadd.f32 %v3619, %v3675
      %v3704 = vadd.f32 %v3620, %v3676
      %v3705 = vadd.f32 %v3621, %v3677
      %v3706 = vadd.f32 %v3622, %v3678
      %v3707 = vadd.f32 %v3623, %v3679
      %v3708 = vadd.f32 %v3624, %v3680
      %v3709 = vadd.f32 %v3625, %v3681
      %v3710 = vadd.f32 %v3626, %v3682
      %v3711 = vadd.f32 %v3627, %v3683
      %v3712 = vadd.f32 %v3628, %v3684
      %v3713 = vmax.f32 %v2173, %v3685
      %v3714 = vmax.f32 %v2174, %v3686
      %v3715 = vmax.f32 %v2175, %v3687
      %v3716 = vmax.f32 %v2176, %v3688
      %v3717 = vmax.f32 %v2177, %v3689
      %v3718 = vmax.f32 %v2178, %v3690
      %v3719 = vmax.f32 %v2179, %v3691
      %v3720 = vmax.f32 %v2180, %v3692
      %v3721 = vmax.f32 %v2181, %v3693
      %v3722 = vmax.f32 %v2182, %v3694
      %v3723 = vmax.f32 %v2183, %v3695
      %v3724 = vmax.f32 %v2184, %v3696
      %v3725 = vmax.f32 %v2185, %v3697
      %v3726 = vmax.f32 %v2186, %v3698
      %v3727 = vmax.f32 %v2187, %v3699
      %v3728 = vmax.f32 %v2188, %v3700
      %v3729 = vmax.f32 %v2189, %v3701
      %v3730 = vmax.f32 %v2190, %v3702
      %v3731 = vmax.f32 %v2191, %v3703
      %v3732 = vmax.f32 %v2192, %v3704
      %v3733 = vmax.f32 %v2193, %v3705
      %v3734 = vmax.f32 %v2194, %v3706
      %v3735 = vmax.f32 %v2195, %v3707
      %v3736 = vmax.f32 %v2196, %v3708
      %v3737 = vmax.f32 %v2197, %v3709
      %v3738 = vmax.f32 %v2198, %v3710
      %v3739 = vmax.f32 %v2199, %v3711
      %v3740 = vmax.f32 %v2200, %v3712
      %v3741 = vmul.f32 %v75, %v454
      %v3742 = vmul.f32 %v75, %v455
      %v3743 = vmul.f32 %v75, %v456
      %v3744 = vmul.f32 %v75, %v457
      %v3745 = vmul.f32 %v75, %v458
      %v3746 = vmul.f32 %v75, %v459
      %v3747 = vmul.f32 %v75, %v460
      %v3748 = vmul.f32 %v75, %v461
      %v3749 = vmul.f32 %v75, %v462
      %v3750 = vmul.f32 %v75, %v463
      %v3751 = vmul.f32 %v75, %v464
      %v3752 = vmul.f32 %v75, %v465
      %v3753 = vmul.f32 %v75, %v466
      %v3754 = vmul.f32 %v75, %v467
      %v3755 = vmul.f32 %v75, %v468
      %v3756 = vmul.f32 %v75, %v469
      %v3757 = vmul.f32 %v75, %v470
      %v3758 = vmul.f32 %v75, %v471
      %v3759 = vmul.f32 %v75, %v472
      %v3760 = vmul.f32 %v75, %v473
      %v3761 = vmul.f32 %v75, %v474
      %v3762 = vmul.f32 %v75, %v475
      %v3763 = vmul.f32 %v75, %v476
      %v3764 = vmul.f32 %v75, %v477
      %v3765 = vmul.f32 %v75, %v478
      %v3766 = vmul.f32 %v75, %v479
      %v3767 = vmul.f32 %v75, %v480
      %v3768 = vmul.f32 %v75, %v481
      %v3769 = vmul.f32 %v135, %v542
      %v3770 = vmul.f32 %v135, %v543
      %v3771 = vmul.f32 %v135, %v544
      %v3772 = vmul.f32 %v135, %v545
      %v3773 = vmul.f32 %v135, %v546
      %v3774 = vmul.f32 %v135, %v547
      %v3775 = vmul.f32 %v135, %v548
      %v3776 = vmul.f32 %v135, %v549
      %v3777 = vmul.f32 %v135, %v550
      %v3778 = vmul.f32 %v135, %v551
      %v3779 = vmul.f32 %v135, %v552
      %v3780 = vmul.f32 %v135, %v553
      %v3781 = vmul.f32 %v135, %v554
      %v3782 = vmul.f32 %v135, %v555
      %v3783 = vmul.f32 %v135, %v556
      %v3784 = vmul.f32 %v135, %v557
      %v3785 = vmul.f32 %v135, %v558
      %v3786 = vmul.f32 %v135, %v559
      %v3787 = vmul.f32 %v135, %v560
      %v3788 = vmul.f32 %v135, %v561
      %v3789 = vmul.f32 %v135, %v562
      %v3790 = vmul.f32 %v135, %v563
      %v3791 = vmul.f32 %v135, %v564
      %v3792 = vmul.f32 %v135, %v565
      %v3793 = vmul.f32 %v135, %v566
      %v3794 = vmul.f32 %v135, %v567
      %v3795 = vmul.f32 %v135, %v568
      %v3796 = vmul.f32 %v135, %v569
      %v3797 = vadd.f32 %v3741, %v3769
      %v3798 = vadd.f32 %v3742, %v3770
      %v3799 = vadd.f32 %v3743, %v3771
      %v3800 = vadd.f32 %v3744, %v3772
      %v3801 = vadd.f32 %v3745, %v3773
      %v3802 = vadd.f32 %v3746, %v3774
      %v3803 = vadd.f32 %v3747, %v3775
      %v3804 = vadd.f32 %v3748, %v3776
      %v3805 = vadd.f32 %v3749, %v3777
      %v3806 = vadd.f32 %v3750, %v3778
      %v3807 = vadd.f32 %v3751, %v3779
      %v3808 = vadd.f32 %v3752, %v3780
      %v3809 = vadd.f32 %v3753, %v3781
      %v3810 = vadd.f32 %v3754, %v3782
      %v3811 = vadd.f32 %v3755, %v3783
      %v3812 = vadd.f32 %v3756, %v3784
      %v3813 = vadd.f32 %v3757, %v3785
      %v3814 = vadd.f32 %v3758, %v3786
      %v3815 = vadd.f32 %v3759, %v3787
      %v3816 = vadd.f32 %v3760, %v3788
      %v3817 = vadd.f32 %v3761, %v3789
      %v3818 = vadd.f32 %v3762, %v3790
      %v3819 = vadd.f32 %v3763, %v3791
      %v3820 = vadd.f32 %v3764, %v3792
      %v3821 = vadd.f32 %v3765, %v3793
      %v3822 = vadd.f32 %v3766, %v3794
      %v3823 = vadd.f32 %v3767, %v3795
      %v3824 = vadd.f32 %v3768, %v3796
      %v3825 = vmul.f32 %v222, %v629
      %v3826 = vmul.f32 %v222, %v630
      %v3827 = vmul.f32 %v222, %v631
      %v3828 = vmul.f32 %v222, %v632
      %v3829 = vmul.f32 %v222, %v633
      %v3830 = vmul.f32 %v222, %v634
      %v3831 = vmul.f32 %v222, %v635
      %v3832 = vmul.f32 %v222, %v636
      %v3833 = vmul.f32 %v222, %v637
      %v3834 = vmul.f32 %v222, %v638
      %v3835 = vmul.f32 %v222, %v639
      %v3836 = vmul.f32 %v222, %v640
      %v3837 = vmul.f32 %v222, %v641
      %v3838 = vmul.f32 %v222, %v642
      %v3839 = vmul.f32 %v222, %v643
      %v3840 = vmul.f32 %v222, %v644
      %v3841 = vmul.f32 %v222, %v645
      %v3842 = vmul.f32 %v222, %v646
      %v3843 = vmul.f32 %v222, %v647
      %v3844 = vmul.f32 %v222, %v648
      %v3845 = vmul.f32 %v222, %v649
      %v3846 = vmul.f32 %v222, %v650
      %v3847 = vmul.f32 %v222, %v651
      %v3848 = vmul.f32 %v222, %v652
      %v3849 = vmul.f32 %v222, %v653
      %v3850 = vmul.f32 %v222, %v654
      %v3851 = vmul.f32 %v222, %v655
      %v3852 = vmul.f32 %v222, %v656
      %v3853 = vadd.f32 %v3797, %v3825
      %v3854 = vadd.f32 %v3798, %v3826
      %v3855 = vadd.f32 %v3799, %v3827
      %v3856 = vadd.f32 %v3800, %v3828
      %v3857 = vadd.f32 %v3801, %v3829
      %v3858 = vadd.f32 %v3802, %v3830
      %v3859 = vadd.f32 %v3803, %v3831
      %v3860 = vadd.f32 %v3804, %v3832
      %v3861 = vadd.f32 %v3805, %v3833
      %v3862 = vadd.f32 %v3806, %v3834
      %v3863 = vadd.f32 %v3807, %v3835
      %v3864 = vadd.f32 %v3808, %v3836
      %v3865 = vadd.f32 %v3809, %v3837
      %v3866 = vadd.f32 %v3810, %v3838
      %v3867 = vadd.f32 %v3811, %v3839
      %v3868 = vadd.f32 %v3812, %v3840
      %v3869 = vadd.f32 %v3813, %v3841
      %v3870 = vadd.f32 %v3814, %v3842
      %v3871 = vadd.f32 %v3815, %v3843
      %v3872 = vadd.f32 %v3816, %v3844
      %v3873 = vadd.f32 %v3817, %v3845
      %v3874 = vadd.f32 %v3818, %v3846
      %v3875 = vadd.f32 %v3819, %v3847
      %v3876 = vadd.f32 %v3820, %v3848
      %v3877 = vadd.f32 %v3821, %v3849
      %v3878 = vadd.f32 %v3822, %v3850
      %v3879 = vadd.f32 %v3823, %v3851
      %v3880 = vadd.f32 %v3824, %v3852
      %v3881 = vmul.f32 %v309, %v716
      %v3882 = vmul.f32 %v309, %v717
      %v3883 = vmul.f32 %v309, %v718
      %v3884 = vmul.f32 %v309, %v719
      %v3885 = vmul.f32 %v309, %v720
      %v3886 = vmul.f32 %v309, %v721
      %v3887 = vmul.f32 %v309, %v722
      %v3888 = vmul.f32 %v309, %v723
      %v3889 = vmul.f32 %v309, %v724
      %v3890 = vmul.f32 %v309, %v725
      %v3891 = vmul.f32 %v309, %v726
      %v3892 = vmul.f32 %v309, %v727
      %v3893 = vmul.f32 %v309, %v728
      %v3894 = vmul.f32 %v309, %v729
      %v3895 = vmul.f32 %v309, %v730
      %v3896 = vmul.f32 %v309, %v731
      %v3897 = vmul.f32 %v309, %v732
      %v3898 = vmul.f32 %v309, %v733
      %v3899 = vmul.f32 %v309, %v734
      %v3900 = vmul.f32 %v309, %v735
      %v3901 = vmul.f32 %v309, %v736
      %v3902 = vmul.f32 %v309, %v737
      %v3903 = vmul.f32 %v309, %v738
      %v3904 = vmul.f32 %v309, %v739
      %v3905 = vmul.f32 %v309, %v740
      %v3906 = vmul.f32 %v309, %v741
      %v3907 = vmul.f32 %v309, %v742
      %v3908 = vmul.f32 %v309, %v743
      %v3909 = vadd.f32 %v3853, %v3881
      %v3910 = vadd.f32 %v3854, %v3882
      %v3911 = vadd.f32 %v3855, %v3883
      %v3912 = vadd.f32 %v3856, %v3884
      %v3913 = vadd.f32 %v3857, %v3885
      %v3914 = vadd.f32 %v3858, %v3886
      %v3915 = vadd.f32 %v3859, %v3887
      %v3916 = vadd.f32 %v3860, %v3888
      %v3917 = vadd.f32 %v3861, %v3889
      %v3918 = vadd.f32 %v3862, %v3890
      %v3919 = vadd.f32 %v3863, %v3891
      %v3920 = vadd.f32 %v3864, %v3892
      %v3921 = vadd.f32 %v3865, %v3893
      %v3922 = vadd.f32 %v3866, %v3894
      %v3923 = vadd.f32 %v3867, %v3895
      %v3924 = vadd.f32 %v3868, %v3896
      %v3925 = vadd.f32 %v3869, %v3897
      %v3926 = vadd.f32 %v3870, %v3898
      %v3927 = vadd.f32 %v3871, %v3899
      %v3928 = vadd.f32 %v3872, %v3900
      %v3929 = vadd.f32 %v3873, %v3901
      %v3930 = vadd.f32 %v3874, %v3902
      %v3931 = vadd.f32 %v3875, %v3903
      %v3932 = vadd.f32 %v3876, %v3904
      %v3933 = vadd.f32 %v3877, %v3905
      %v3934 = vadd.f32 %v3878, %v3906
      %v3935 = vadd.f32 %v3879, %v3907
      %v3936 = vadd.f32 %v3880, %v3908
      %v3937 = vmul.f32 %v396, %v803
      %v3938 = vmul.f32 %v396, %v804
      %v3939 = vmul.f32 %v396, %v805
      %v3940 = vmul.f32 %v396, %v806
      %v3941 = vmul.f32 %v396, %v807
      %v3942 = vmul.f32 %v396, %v808
      %v3943 = vmul.f32 %v396, %v809
      %v3944 = vmul.f32 %v396, %v810
      %v3945 = vmul.f32 %v396, %v811
      %v3946 = vmul.f32 %v396, %v812
      %v3947 = vmul.f32 %v396, %v813
      %v3948 = vmul.f32 %v396, %v814
      %v3949 = vmul.f32 %v396, %v815
      %v3950 = vmul.f32 %v396, %v816
      %v3951 = vmul.f32 %v396, %v817
      %v3952 = vmul.f32 %v396, %v818
      %v3953 = vmul.f32 %v396, %v819
      %v3954 = vmul.f32 %v396, %v820
      %v3955 = vmul.f32 %v396, %v821
      %v3956 = vmul.f32 %v396, %v822
      %v3957 = vmul.f32 %v396, %v823
      %v3958 = vmul.f32 %v396, %v824
      %v3959 = vmul.f32 %v396, %v825
      %v3960 = vmul.f32 %v396, %v826
      %v3961 = vmul.f32 %v396, %v827
      %v3962 = vmul.f32 %v396, %v828
      %v3963 = vmul.f32 %v396, %v829
      %v3964 = vmul.f32 %v396, %v830
      %v3965 = vadd.f32 %v3909, %v3937
      %v3966 = vadd.f32 %v3910, %v3938
      %v3967 = vadd.f32 %v3911, %v3939
      %v3968 = vadd.f32 %v3912, %v3940
      %v3969 = vadd.f32 %v3913, %v3941
      %v3970 = vadd.f32 %v3914, %v3942
      %v3971 = vadd.f32 %v3915, %v3943
      %v3972 = vadd.f32 %v3916, %v3944
      %v3973 = vadd.f32 %v3917, %v3945
      %v3974 = vadd.f32 %v3918, %v3946
      %v3975 = vadd.f32 %v3919, %v3947
      %v3976 = vadd.f32 %v3920, %v3948
      %v3977 = vadd.f32 %v3921, %v3949
      %v3978 = vadd.f32 %v3922, %v3950
      %v3979 = vadd.f32 %v3923, %v3951
      %v3980 = vadd.f32 %v3924, %v3952
      %v3981 = vadd.f32 %v3925, %v3953
      %v3982 = vadd.f32 %v3926, %v3954
      %v3983 = vadd.f32 %v3927, %v3955
      %v3984 = vadd.f32 %v3928, %v3956
      %v3985 = vadd.f32 %v3929, %v3957
      %v3986 = vadd.f32 %v3930, %v3958
      %v3987 = vadd.f32 %v3931, %v3959
      %v3988 = vadd.f32 %v3932, %v3960
      %v3989 = vadd.f32 %v3933, %v3961
      %v3990 = vadd.f32 %v3934, %v3962
      %v3991 = vadd.f32 %v3935, %v3963
      %v3992 = vadd.f32 %v3936, %v3964
      %v3993 = vmul.f32 %v484, %v891
      %v3994 = vmul.f32 %v484, %v892
      %v3995 = vmul.f32 %v484, %v893
      %v3996 = vmul.f32 %v484, %v894
      %v3997 = vmul.f32 %v484, %v895
      %v3998 = vmul.f32 %v484, %v896
      %v3999 = vmul.f32 %v484, %v897
      %v4000 = vmul.f32 %v484, %v898
      %v4001 = vmul.f32 %v484, %v899
      %v4002 = vmul.f32 %v484, %v900
      %v4003 = vmul.f32 %v484, %v901
      %v4004 = vmul.f32 %v484, %v902
      %v4005 = vmul.f32 %v484, %v903
      %v4006 = vmul.f32 %v484, %v904
      %v4007 = vmul.f32 %v484, %v905
      %v4008 = vmul.f32 %v484, %v906
      %v4009 = vmul.f32 %v484, %v907
      %v4010 = vmul.f32 %v484, %v908
      %v4011 = vmul.f32 %v484, %v909
      %v4012 = vmul.f32 %v484, %v910
      %v4013 = vmul.f32 %v484, %v911
      %v4014 = vmul.f32 %v484, %v912
      %v4015 = vmul.f32 %v484, %v913
      %v4016 = vmul.f32 %v484, %v914
      %v4017 = vmul.f32 %v484, %v915
      %v4018 = vmul.f32 %v484, %v916
      %v4019 = vmul.f32 %v484, %v917
      %v4020 = vmul.f32 %v484, %v918
      %v4021 = vadd.f32 %v3965, %v3993
      %v4022 = vadd.f32 %v3966, %v3994
      %v4023 = vadd.f32 %v3967, %v3995
      %v4024 = vadd.f32 %v3968, %v3996
      %v4025 = vadd.f32 %v3969, %v3997
      %v4026 = vadd.f32 %v3970, %v3998
      %v4027 = vadd.f32 %v3971, %v3999
      %v4028 = vadd.f32 %v3972, %v4000
      %v4029 = vadd.f32 %v3973, %v4001
      %v4030 = vadd.f32 %v3974, %v4002
      %v4031 = vadd.f32 %v3975, %v4003
      %v4032 = vadd.f32 %v3976, %v4004
      %v4033 = vadd.f32 %v3977, %v4005
      %v4034 = vadd.f32 %v3978, %v4006
      %v4035 = vadd.f32 %v3979, %v4007
      %v4036 = vadd.f32 %v3980, %v4008
      %v4037 = vadd.f32 %v3981, %v4009
      %v4038 = vadd.f32 %v3982, %v4010
      %v4039 = vadd.f32 %v3983, %v4011
      %v4040 = vadd.f32 %v3984, %v4012
      %v4041 = vadd.f32 %v3985, %v4013
      %v4042 = vadd.f32 %v3986, %v4014
      %v4043 = vadd.f32 %v3987, %v4015
      %v4044 = vadd.f32 %v3988, %v4016
      %v4045 = vadd.f32 %v3989, %v4017
      %v4046 = vadd.f32 %v3990, %v4018
      %v4047 = vadd.f32 %v3991, %v4019
      %v4048 = vadd.f32 %v3992, %v4020
      %v4049 = vmul.f32 %v572, %v979
      %v4050 = vmul.f32 %v572, %v980
      %v4051 = vmul.f32 %v572, %v981
      %v4052 = vmul.f32 %v572, %v982
      %v4053 = vmul.f32 %v572, %v983
      %v4054 = vmul.f32 %v572, %v984
      %v4055 = vmul.f32 %v572, %v985
      %v4056 = vmul.f32 %v572, %v986
      %v4057 = vmul.f32 %v572, %v987
      %v4058 = vmul.f32 %v572, %v988
      %v4059 = vmul.f32 %v572, %v989
      %v4060 = vmul.f32 %v572, %v990
      %v4061 = vmul.f32 %v572, %v991
      %v4062 = vmul.f32 %v572, %v992
      %v4063 = vmul.f32 %v572, %v993
      %v4064 = vmul.f32 %v572, %v994
      %v4065 = vmul.f32 %v572, %v995
      %v4066 = vmul.f32 %v572, %v996
      %v4067 = vmul.f32 %v572, %v997
      %v4068 = vmul.f32 %v572, %v998
      %v4069 = vmul.f32 %v572, %v999
      %v4070 = vmul.f32 %v572, %v1000
      %v4071 = vmul.f32 %v572, %v1001
      %v4072 = vmul.f32 %v572, %v1002
      %v4073 = vmul.f32 %v572, %v1003
      %v4074 = vmul.f32 %v572, %v1004
      %v4075 = vmul.f32 %v572, %v1005
      %v4076 = vmul.f32 %v572, %v1006
      %v4077 = vadd.f32 %v4021, %v4049
      %v4078 = vadd.f32 %v4022, %v4050
      %v4079 = vadd.f32 %v4023, %v4051
      %v4080 = vadd.f32 %v4024, %v4052
      %v4081 = vadd.f32 %v4025, %v4053
      %v4082 = vadd.f32 %v4026, %v4054
      %v4083 = vadd.f32 %v4027, %v4055
      %v4084 = vadd.f32 %v4028, %v4056
      %v4085 = vadd.f32 %v4029, %v4057
      %v4086 = vadd.f32 %v4030, %v4058
      %v4087 = vadd.f32 %v4031, %v4059
      %v4088 = vadd.f32 %v4032, %v4060
      %v4089 = vadd.f32 %v4033, %v4061
      %v4090 = vadd.f32 %v4034, %v4062
      %v4091 = vadd.f32 %v4035, %v4063
      %v4092 = vadd.f32 %v4036, %v4064
      %v4093 = vadd.f32 %v4037, %v4065
      %v4094 = vadd.f32 %v4038, %v4066
      %v4095 = vadd.f32 %v4039, %v4067
      %v4096 = vadd.f32 %v4040, %v4068
      %v4097 = vadd.f32 %v4041, %v4069
      %v4098 = vadd.f32 %v4042, %v4070
      %v4099 = vadd.f32 %v4043, %v4071
      %v4100 = vadd.f32 %v4044, %v4072
      %v4101 = vadd.f32 %v4045, %v4073
      %v4102 = vadd.f32 %v4046, %v4074
      %v4103 = vadd.f32 %v4047, %v4075
      %v4104 = vadd.f32 %v4048, %v4076
      %v4105 = vmul.f32 %v659, %v1066
      %v4106 = vmul.f32 %v659, %v1067
      %v4107 = vmul.f32 %v659, %v1068
      %v4108 = vmul.f32 %v659, %v1069
      %v4109 = vmul.f32 %v659, %v1070
      %v4110 = vmul.f32 %v659, %v1071
      %v4111 = vmul.f32 %v659, %v1072
      %v4112 = vmul.f32 %v659, %v1073
      %v4113 = vmul.f32 %v659, %v1074
      %v4114 = vmul.f32 %v659, %v1075
      %v4115 = vmul.f32 %v659, %v1076
      %v4116 = vmul.f32 %v659, %v1077
      %v4117 = vmul.f32 %v659, %v1078
      %v4118 = vmul.f32 %v659, %v1079
      %v4119 = vmul.f32 %v659, %v1080
      %v4120 = vmul.f32 %v659, %v1081
      %v4121 = vmul.f32 %v659, %v1082
      %v4122 = vmul.f32 %v659, %v1083
      %v4123 = vmul.f32 %v659, %v1084
      %v4124 = vmul.f32 %v659, %v1085
      %v4125 = vmul.f32 %v659, %v1086
      %v4126 = vmul.f32 %v659, %v1087
      %v4127 = vmul.f32 %v659, %v1088
      %v4128 = vmul.f32 %v659, %v1089
      %v4129 = vmul.f32 %v659, %v1090
      %v4130 = vmul.f32 %v659, %v1091
      %v4131 = vmul.f32 %v659, %v1092
      %v4132 = vmul.f32 %v659, %v1093
      %v4133 = vadd.f32 %v4077, %v4105
      %v4134 = vadd.f32 %v4078, %v4106
      %v4135 = vadd.f32 %v4079, %v4107
      %v4136 = vadd.f32 %v4080, %v4108
      %v4137 = vadd.f32 %v4081, %v4109
      %v4138 = vadd.f32 %v4082, %v4110
      %v4139 = vadd.f32 %v4083, %v4111
      %v4140 = vadd.f32 %v4084, %v4112
      %v4141 = vadd.f32 %v4085, %v4113
      %v4142 = vadd.f32 %v4086, %v4114
      %v4143 = vadd.f32 %v4087, %v4115
      %v4144 = vadd.f32 %v4088, %v4116
      %v4145 = vadd.f32 %v4089, %v4117
      %v4146 = vadd.f32 %v4090, %v4118
      %v4147 = vadd.f32 %v4091, %v4119
      %v4148 = vadd.f32 %v4092, %v4120
      %v4149 = vadd.f32 %v4093, %v4121
      %v4150 = vadd.f32 %v4094, %v4122
      %v4151 = vadd.f32 %v4095, %v4123
      %v4152 = vadd.f32 %v4096, %v4124
      %v4153 = vadd.f32 %v4097, %v4125
      %v4154 = vadd.f32 %v4098, %v4126
      %v4155 = vadd.f32 %v4099, %v4127
      %v4156 = vadd.f32 %v4100, %v4128
      %v4157 = vadd.f32 %v4101, %v4129
      %v4158 = vadd.f32 %v4102, %v4130
      %v4159 = vadd.f32 %v4103, %v4131
      %v4160 = vadd.f32 %v4104, %v4132
      %v4161 = vmul.f32 %v746, %v1153
      %v4162 = vmul.f32 %v746, %v1154
      %v4163 = vmul.f32 %v746, %v1155
      %v4164 = vmul.f32 %v746, %v1156
      %v4165 = vmul.f32 %v746, %v1157
      %v4166 = vmul.f32 %v746, %v1158
      %v4167 = vmul.f32 %v746, %v1159
      %v4168 = vmul.f32 %v746, %v1160
      %v4169 = vmul.f32 %v746, %v1161
      %v4170 = vmul.f32 %v746, %v1162
      %v4171 = vmul.f32 %v746, %v1163
      %v4172 = vmul.f32 %v746, %v1164
      %v4173 = vmul.f32 %v746, %v1165
      %v4174 = vmul.f32 %v746, %v1166
      %v4175 = vmul.f32 %v746, %v1167
      %v4176 = vmul.f32 %v746, %v1168
      %v4177 = vmul.f32 %v746, %v1169
      %v4178 = vmul.f32 %v746, %v1170
      %v4179 = vmul.f32 %v746, %v1171
      %v4180 = vmul.f32 %v746, %v1172
      %v4181 = vmul.f32 %v746, %v1173
      %v4182 = vmul.f32 %v746, %v1174
      %v4183 = vmul.f32 %v746, %v1175
      %v4184 = vmul.f32 %v746, %v1176
      %v4185 = vmul.f32 %v746, %v1177
      %v4186 = vmul.f32 %v746, %v1178
      %v4187 = vmul.f32 %v746, %v1179
      %v4188 = vmul.f32 %v746, %v1180
      %v4189 = vadd.f32 %v4133, %v4161
      %v4190 = vadd.f32 %v4134, %v4162
      %v4191 = vadd.f32 %v4135, %v4163
      %v4192 = vadd.f32 %v4136, %v4164
      %v4193 = vadd.f32 %v4137, %v4165
      %v4194 = vadd.f32 %v4138, %v4166
      %v4195 = vadd.f32 %v4139, %v4167
      %v4196 = vadd.f32 %v4140, %v4168
      %v4197 = vadd.f32 %v4141, %v4169
      %v4198 = vadd.f32 %v4142, %v4170
      %v4199 = vadd.f32 %v4143, %v4171
      %v4200 = vadd.f32 %v4144, %v4172
      %v4201 = vadd.f32 %v4145, %v4173
      %v4202 = vadd.f32 %v4146, %v4174
      %v4203 = vadd.f32 %v4147, %v4175
      %v4204 = vadd.f32 %v4148, %v4176
      %v4205 = vadd.f32 %v4149, %v4177
      %v4206 = vadd.f32 %v4150, %v4178
      %v4207 = vadd.f32 %v4151, %v4179
      %v4208 = vadd.f32 %v4152, %v4180
      %v4209 = vadd.f32 %v4153, %v4181
      %v4210 = vadd.f32 %v4154, %v4182
      %v4211 = vadd.f32 %v4155, %v4183
      %v4212 = vadd.f32 %v4156, %v4184
      %v4213 = vadd.f32 %v4157, %v4185
      %v4214 = vadd.f32 %v4158, %v4186
      %v4215 = vadd.f32 %v4159, %v4187
      %v4216 = vadd.f32 %v4160, %v4188
      %v4217 = vmul.f32 %v833, %v1240
      %v4218 = vmul.f32 %v833, %v1241
      %v4219 = vmul.f32 %v833, %v1242
      %v4220 = vmul.f32 %v833, %v1243
      %v4221 = vmul.f32 %v833, %v1244
      %v4222 = vmul.f32 %v833, %v1245
      %v4223 = vmul.f32 %v833, %v1246
      %v4224 = vmul.f32 %v833, %v1247
      %v4225 = vmul.f32 %v833, %v1248
      %v4226 = vmul.f32 %v833, %v1249
      %v4227 = vmul.f32 %v833, %v1250
      %v4228 = vmul.f32 %v833, %v1251
      %v4229 = vmul.f32 %v833, %v1252
      %v4230 = vmul.f32 %v833, %v1253
      %v4231 = vmul.f32 %v833, %v1254
      %v4232 = vmul.f32 %v833, %v1255
      %v4233 = vmul.f32 %v833, %v1256
      %v4234 = vmul.f32 %v833, %v1257
      %v4235 = vmul.f32 %v833, %v1258
      %v4236 = vmul.f32 %v833, %v1259
      %v4237 = vmul.f32 %v833, %v1260
      %v4238 = vmul.f32 %v833, %v1261
      %v4239 = vmul.f32 %v833, %v1262
      %v4240 = vmul.f32 %v833, %v1263
      %v4241 = vmul.f32 %v833, %v1264
      %v4242 = vmul.f32 %v833, %v1265
      %v4243 = vmul.f32 %v833, %v1266
      %v4244 = vmul.f32 %v833, %v1267
      %v4245 = vadd.f32 %v4189, %v4217
      %v4246 = vadd.f32 %v4190, %v4218
      %v4247 = vadd.f32 %v4191, %v4219
      %v4248 = vadd.f32 %v4192, %v4220
      %v4249 = vadd.f32 %v4193, %v4221
      %v4250 = vadd.f32 %v4194, %v4222
      %v4251 = vadd.f32 %v4195, %v4223
      %v4252 = vadd.f32 %v4196, %v4224
      %v4253 = vadd.f32 %v4197, %v4225
      %v4254 = vadd.f32 %v4198, %v4226
      %v4255 = vadd.f32 %v4199, %v4227
      %v4256 = vadd.f32 %v4200, %v4228
      %v4257 = vadd.f32 %v4201, %v4229
      %v4258 = vadd.f32 %v4202, %v4230
      %v4259 = vadd.f32 %v4203, %v4231
      %v4260 = vadd.f32 %v4204, %v4232
      %v4261 = vadd.f32 %v4205, %v4233
      %v4262 = vadd.f32 %v4206, %v4234
      %v4263 = vadd.f32 %v4207, %v4235
      %v4264 = vadd.f32 %v4208, %v4236
      %v4265 = vadd.f32 %v4209, %v4237
      %v4266 = vadd.f32 %v4210, %v4238
      %v4267 = vadd.f32 %v4211, %v4239
      %v4268 = vadd.f32 %v4212, %v4240
      %v4269 = vadd.f32 %v4213, %v4241
      %v4270 = vadd.f32 %v4214, %v4242
      %v4271 = vadd.f32 %v4215, %v4243
      %v4272 = vadd.f32 %v4216, %v4244
      %v4273 = vmul.f32 %v921, %v1328
      %v4274 = vmul.f32 %v921, %v1329
      %v4275 = vmul.f32 %v921, %v1330
      %v4276 = vmul.f32 %v921, %v1331
      %v4277 = vmul.f32 %v921, %v1332
      %v4278 = vmul.f32 %v921, %v1333
      %v4279 = vmul.f32 %v921, %v1334
      %v4280 = vmul.f32 %v921, %v1335
      %v4281 = vmul.f32 %v921, %v1336
      %v4282 = vmul.f32 %v921, %v1337
      %v4283 = vmul.f32 %v921, %v1338
      %v4284 = vmul.f32 %v921, %v1339
      %v4285 = vmul.f32 %v921, %v1340
      %v4286 = vmul.f32 %v921, %v1341
      %v4287 = vmul.f32 %v921, %v1342
      %v4288 = vmul.f32 %v921, %v1343
      %v4289 = vmul.f32 %v921, %v1344
      %v4290 = vmul.f32 %v921, %v1345
      %v4291 = vmul.f32 %v921, %v1346
      %v4292 = vmul.f32 %v921, %v1347
      %v4293 = vmul.f32 %v921, %v1348
      %v4294 = vmul.f32 %v921, %v1349
      %v4295 = vmul.f32 %v921, %v1350
      %v4296 = vmul.f32 %v921, %v1351
      %v4297 = vmul.f32 %v921, %v1352
      %v4298 = vmul.f32 %v921, %v1353
      %v4299 = vmul.f32 %v921, %v1354
      %v4300 = vmul.f32 %v921, %v1355
      %v4301 = vadd.f32 %v4245, %v4273
      %v4302 = vadd.f32 %v4246, %v4274
      %v4303 = vadd.f32 %v4247, %v4275
      %v4304 = vadd.f32 %v4248, %v4276
      %v4305 = vadd.f32 %v4249, %v4277
      %v4306 = vadd.f32 %v4250, %v4278
      %v4307 = vadd.f32 %v4251, %v4279
      %v4308 = vadd.f32 %v4252, %v4280
      %v4309 = vadd.f32 %v4253, %v4281
      %v4310 = vadd.f32 %v4254, %v4282
      %v4311 = vadd.f32 %v4255, %v4283
      %v4312 = vadd.f32 %v4256, %v4284
      %v4313 = vadd.f32 %v4257, %v4285
      %v4314 = vadd.f32 %v4258, %v4286
      %v4315 = vadd.f32 %v4259, %v4287
      %v4316 = vadd.f32 %v4260, %v4288
      %v4317 = vadd.f32 %v4261, %v4289
      %v4318 = vadd.f32 %v4262, %v4290
      %v4319 = vadd.f32 %v4263, %v4291
      %v4320 = vadd.f32 %v4264, %v4292
      %v4321 = vadd.f32 %v4265, %v4293
      %v4322 = vadd.f32 %v4266, %v4294
      %v4323 = vadd.f32 %v4267, %v4295
      %v4324 = vadd.f32 %v4268, %v4296
      %v4325 = vadd.f32 %v4269, %v4297
      %v4326 = vadd.f32 %v4270, %v4298
      %v4327 = vadd.f32 %v4271, %v4299
      %v4328 = vadd.f32 %v4272, %v4300
      %v4329 = vmul.f32 %v1009, %v1416
      %v4330 = vmul.f32 %v1009, %v1417
      %v4331 = vmul.f32 %v1009, %v1418
      %v4332 = vmul.f32 %v1009, %v1419
      %v4333 = vmul.f32 %v1009, %v1420
      %v4334 = vmul.f32 %v1009, %v1421
      %v4335 = vmul.f32 %v1009, %v1422
      %v4336 = vmul.f32 %v1009, %v1423
      %v4337 = vmul.f32 %v1009, %v1424
      %v4338 = vmul.f32 %v1009, %v1425
      %v4339 = vmul.f32 %v1009, %v1426
      %v4340 = vmul.f32 %v1009, %v1427
      %v4341 = vmul.f32 %v1009, %v1428
      %v4342 = vmul.f32 %v1009, %v1429
      %v4343 = vmul.f32 %v1009, %v1430
      %v4344 = vmul.f32 %v1009, %v1431
      %v4345 = vmul.f32 %v1009, %v1432
      %v4346 = vmul.f32 %v1009, %v1433
      %v4347 = vmul.f32 %v1009, %v1434
      %v4348 = vmul.f32 %v1009, %v1435
      %v4349 = vmul.f32 %v1009, %v1436
      %v4350 = vmul.f32 %v1009, %v1437
      %v4351 = vmul.f32 %v1009, %v1438
      %v4352 = vmul.f32 %v1009, %v1439
      %v4353 = vmul.f32 %v1009, %v1440
      %v4354 = vmul.f32 %v1009, %v1441
      %v4355 = vmul.f32 %v1009, %v1442
      %v4356 = vmul.f32 %v1009, %v1443
      %v4357 = vadd.f32 %v4301, %v4329
      %v4358 = vadd.f32 %v4302, %v4330
      %v4359 = vadd.f32 %v4303, %v4331
      %v4360 = vadd.f32 %v4304, %v4332
      %v4361 = vadd.f32 %v4305, %v4333
      %v4362 = vadd.f32 %v4306, %v4334
      %v4363 = vadd.f32 %v4307, %v4335
      %v4364 = vadd.f32 %v4308, %v4336
      %v4365 = vadd.f32 %v4309, %v4337
      %v4366 = vadd.f32 %v4310, %v4338
      %v4367 = vadd.f32 %v4311, %v4339
      %v4368 = vadd.f32 %v4312, %v4340
      %v4369 = vadd.f32 %v4313, %v4341
      %v4370 = vadd.f32 %v4314, %v4342
      %v4371 = vadd.f32 %v4315, %v4343
      %v4372 = vadd.f32 %v4316, %v4344
      %v4373 = vadd.f32 %v4317, %v4345
      %v4374 = vadd.f32 %v4318, %v4346
      %v4375 = vadd.f32 %v4319, %v4347
      %v4376 = vadd.f32 %v4320, %v4348
      %v4377 = vadd.f32 %v4321, %v4349
      %v4378 = vadd.f32 %v4322, %v4350
      %v4379 = vadd.f32 %v4323, %v4351
      %v4380 = vadd.f32 %v4324, %v4352
      %v4381 = vadd.f32 %v4325, %v4353
      %v4382 = vadd.f32 %v4326, %v4354
      %v4383 = vadd.f32 %v4327, %v4355
      %v4384 = vadd.f32 %v4328, %v4356
      %v4385 = vmul.f32 %v1096, %v1503
      %v4386 = vmul.f32 %v1096, %v1504
      %v4387 = vmul.f32 %v1096, %v1505
      %v4388 = vmul.f32 %v1096, %v1506
      %v4389 = vmul.f32 %v1096, %v1507
      %v4390 = vmul.f32 %v1096, %v1508
      %v4391 = vmul.f32 %v1096, %v1509
      %v4392 = vmul.f32 %v1096, %v1510
      %v4393 = vmul.f32 %v1096, %v1511
      %v4394 = vmul.f32 %v1096, %v1512
      %v4395 = vmul.f32 %v1096, %v1513
      %v4396 = vmul.f32 %v1096, %v1514
      %v4397 = vmul.f32 %v1096, %v1515
      %v4398 = vmul.f32 %v1096, %v1516
      %v4399 = vmul.f32 %v1096, %v1517
      %v4400 = vmul.f32 %v1096, %v1518
      %v4401 = vmul.f32 %v1096, %v1519
      %v4402 = vmul.f32 %v1096, %v1520
      %v4403 = vmul.f32 %v1096, %v1521
      %v4404 = vmul.f32 %v1096, %v1522
      %v4405 = vmul.f32 %v1096, %v1523
      %v4406 = vmul.f32 %v1096, %v1524
      %v4407 = vmul.f32 %v1096, %v1525
      %v4408 = vmul.f32 %v1096, %v1526
      %v4409 = vmul.f32 %v1096, %v1527
      %v4410 = vmul.f32 %v1096, %v1528
      %v4411 = vmul.f32 %v1096, %v1529
      %v4412 = vmul.f32 %v1096, %v1530
      %v4413 = vadd.f32 %v4357, %v4385
      %v4414 = vadd.f32 %v4358, %v4386
      %v4415 = vadd.f32 %v4359, %v4387
      %v4416 = vadd.f32 %v4360, %v4388
      %v4417 = vadd.f32 %v4361, %v4389
      %v4418 = vadd.f32 %v4362, %v4390
      %v4419 = vadd.f32 %v4363, %v4391
      %v4420 = vadd.f32 %v4364, %v4392
      %v4421 = vadd.f32 %v4365, %v4393
      %v4422 = vadd.f32 %v4366, %v4394
      %v4423 = vadd.f32 %v4367, %v4395
      %v4424 = vadd.f32 %v4368, %v4396
      %v4425 = vadd.f32 %v4369, %v4397
      %v4426 = vadd.f32 %v4370, %v4398
      %v4427 = vadd.f32 %v4371, %v4399
      %v4428 = vadd.f32 %v4372, %v4400
      %v4429 = vadd.f32 %v4373, %v4401
      %v4430 = vadd.f32 %v4374, %v4402
      %v4431 = vadd.f32 %v4375, %v4403
      %v4432 = vadd.f32 %v4376, %v4404
      %v4433 = vadd.f32 %v4377, %v4405
      %v4434 = vadd.f32 %v4378, %v4406
      %v4435 = vadd.f32 %v4379, %v4407
      %v4436 = vadd.f32 %v4380, %v4408
      %v4437 = vadd.f32 %v4381, %v4409
      %v4438 = vadd.f32 %v4382, %v4410
      %v4439 = vadd.f32 %v4383, %v4411
      %v4440 = vadd.f32 %v4384, %v4412
      %v4441 = vmul.f32 %v1183, %v1590
      %v4442 = vmul.f32 %v1183, %v1591
      %v4443 = vmul.f32 %v1183, %v1592
      %v4444 = vmul.f32 %v1183, %v1593
      %v4445 = vmul.f32 %v1183, %v1594
      %v4446 = vmul.f32 %v1183, %v1595
      %v4447 = vmul.f32 %v1183, %v1596
      %v4448 = vmul.f32 %v1183, %v1597
      %v4449 = vmul.f32 %v1183, %v1598
      %v4450 = vmul.f32 %v1183, %v1599
      %v4451 = vmul.f32 %v1183, %v1600
      %v4452 = vmul.f32 %v1183, %v1601
      %v4453 = vmul.f32 %v1183, %v1602
      %v4454 = vmul.f32 %v1183, %v1603
      %v4455 = vmul.f32 %v1183, %v1604
      %v4456 = vmul.f32 %v1183, %v1605
      %v4457 = vmul.f32 %v1183, %v1606
      %v4458 = vmul.f32 %v1183, %v1607
      %v4459 = vmul.f32 %v1183, %v1608
      %v4460 = vmul.f32 %v1183, %v1609
      %v4461 = vmul.f32 %v1183, %v1610
      %v4462 = vmul.f32 %v1183, %v1611
      %v4463 = vmul.f32 %v1183, %v1612
      %v4464 = vmul.f32 %v1183, %v1613
      %v4465 = vmul.f32 %v1183, %v1614
      %v4466 = vmul.f32 %v1183, %v1615
      %v4467 = vmul.f32 %v1183, %v1616
      %v4468 = vmul.f32 %v1183, %v1617
      %v4469 = vadd.f32 %v4413, %v4441
      %v4470 = vadd.f32 %v4414, %v4442
      %v4471 = vadd.f32 %v4415, %v4443
      %v4472 = vadd.f32 %v4416, %v4444
      %v4473 = vadd.f32 %v4417, %v4445
      %v4474 = vadd.f32 %v4418, %v4446
      %v4475 = vadd.f32 %v4419, %v4447
      %v4476 = vadd.f32 %v4420, %v4448
      %v4477 = vadd.f32 %v4421, %v4449
      %v4478 = vadd.f32 %v4422, %v4450
      %v4479 = vadd.f32 %v4423, %v4451
      %v4480 = vadd.f32 %v4424, %v4452
      %v4481 = vadd.f32 %v4425, %v4453
      %v4482 = vadd.f32 %v4426, %v4454
      %v4483 = vadd.f32 %v4427, %v4455
      %v4484 = vadd.f32 %v4428, %v4456
      %v4485 = vadd.f32 %v4429, %v4457
      %v4486 = vadd.f32 %v4430, %v4458
      %v4487 = vadd.f32 %v4431, %v4459
      %v4488 = vadd.f32 %v4432, %v4460
      %v4489 = vadd.f32 %v4433, %v4461
      %v4490 = vadd.f32 %v4434, %v4462
      %v4491 = vadd.f32 %v4435, %v4463
      %v4492 = vadd.f32 %v4436, %v4464
      %v4493 = vadd.f32 %v4437, %v4465
      %v4494 = vadd.f32 %v4438, %v4466
      %v4495 = vadd.f32 %v4439, %v4467
      %v4496 = vadd.f32 %v4440, %v4468
      %v4497 = vmul.f32 %v1270, %v1677
      %v4498 = vmul.f32 %v1270, %v1678
      %v4499 = vmul.f32 %v1270, %v1679
      %v4500 = vmul.f32 %v1270, %v1680
      %v4501 = vmul.f32 %v1270, %v1681
      %v4502 = vmul.f32 %v1270, %v1682
      %v4503 = vmul.f32 %v1270, %v1683
      %v4504 = vmul.f32 %v1270, %v1684
      %v4505 = vmul.f32 %v1270, %v1685
      %v4506 = vmul.f32 %v1270, %v1686
      %v4507 = vmul.f32 %v1270, %v1687
      %v4508 = vmul.f32 %v1270, %v1688
      %v4509 = vmul.f32 %v1270, %v1689
      %v4510 = vmul.f32 %v1270, %v1690
      %v4511 = vmul.f32 %v1270, %v1691
      %v4512 = vmul.f32 %v1270, %v1692
      %v4513 = vmul.f32 %v1270, %v1693
      %v4514 = vmul.f32 %v1270, %v1694
      %v4515 = vmul.f32 %v1270, %v1695
      %v4516 = vmul.f32 %v1270, %v1696
      %v4517 = vmul.f32 %v1270, %v1697
      %v4518 = vmul.f32 %v1270, %v1698
      %v4519 = vmul.f32 %v1270, %v1699
      %v4520 = vmul.f32 %v1270, %v1700
      %v4521 = vmul.f32 %v1270, %v1701
      %v4522 = vmul.f32 %v1270, %v1702
      %v4523 = vmul.f32 %v1270, %v1703
      %v4524 = vmul.f32 %v1270, %v1704
      %v4525 = vadd.f32 %v4469, %v4497
      %v4526 = vadd.f32 %v4470, %v4498
      %v4527 = vadd.f32 %v4471, %v4499
      %v4528 = vadd.f32 %v4472, %v4500
      %v4529 = vadd.f32 %v4473, %v4501
      %v4530 = vadd.f32 %v4474, %v4502
      %v4531 = vadd.f32 %v4475, %v4503
      %v4532 = vadd.f32 %v4476, %v4504
      %v4533 = vadd.f32 %v4477, %v4505
      %v4534 = vadd.f32 %v4478, %v4506
      %v4535 = vadd.f32 %v4479, %v4507
      %v4536 = vadd.f32 %v4480, %v4508
      %v4537 = vadd.f32 %v4481, %v4509
      %v4538 = vadd.f32 %v4482, %v4510
      %v4539 = vadd.f32 %v4483, %v4511
      %v4540 = vadd.f32 %v4484, %v4512
      %v4541 = vadd.f32 %v4485, %v4513
      %v4542 = vadd.f32 %v4486, %v4514
      %v4543 = vadd.f32 %v4487, %v4515
      %v4544 = vadd.f32 %v4488, %v4516
      %v4545 = vadd.f32 %v4489, %v4517
      %v4546 = vadd.f32 %v4490, %v4518
      %v4547 = vadd.f32 %v4491, %v4519
      %v4548 = vadd.f32 %v4492, %v4520
      %v4549 = vadd.f32 %v4493, %v4521
      %v4550 = vadd.f32 %v4494, %v4522
      %v4551 = vadd.f32 %v4495, %v4523
      %v4552 = vadd.f32 %v4496, %v4524
      %v4553 = vmul.f32 %v1358, %v1765
      %v4554 = vmul.f32 %v1358, %v1766
      %v4555 = vmul.f32 %v1358, %v1767
      %v4556 = vmul.f32 %v1358, %v1768
      %v4557 = vmul.f32 %v1358, %v1769
      %v4558 = vmul.f32 %v1358, %v1770
      %v4559 = vmul.f32 %v1358, %v1771
      %v4560 = vmul.f32 %v1358, %v1772
      %v4561 = vmul.f32 %v1358, %v1773
      %v4562 = vmul.f32 %v1358, %v1774
      %v4563 = vmul.f32 %v1358, %v1775
      %v4564 = vmul.f32 %v1358, %v1776
      %v4565 = vmul.f32 %v1358, %v1777
      %v4566 = vmul.f32 %v1358, %v1778
      %v4567 = vmul.f32 %v1358, %v1779
      %v4568 = vmul.f32 %v1358, %v1780
      %v4569 = vmul.f32 %v1358, %v1781
      %v4570 = vmul.f32 %v1358, %v1782
      %v4571 = vmul.f32 %v1358, %v1783
      %v4572 = vmul.f32 %v1358, %v1784
      %v4573 = vmul.f32 %v1358, %v1785
      %v4574 = vmul.f32 %v1358, %v1786
      %v4575 = vmul.f32 %v1358, %v1787
      %v4576 = vmul.f32 %v1358, %v1788
      %v4577 = vmul.f32 %v1358, %v1789
      %v4578 = vmul.f32 %v1358, %v1790
      %v4579 = vmul.f32 %v1358, %v1791
      %v4580 = vmul.f32 %v1358, %v1792
      %v4581 = vadd.f32 %v4525, %v4553
      %v4582 = vadd.f32 %v4526, %v4554
      %v4583 = vadd.f32 %v4527, %v4555
      %v4584 = vadd.f32 %v4528, %v4556
      %v4585 = vadd.f32 %v4529, %v4557
      %v4586 = vadd.f32 %v4530, %v4558
      %v4587 = vadd.f32 %v4531, %v4559
      %v4588 = vadd.f32 %v4532, %v4560
      %v4589 = vadd.f32 %v4533, %v4561
      %v4590 = vadd.f32 %v4534, %v4562
      %v4591 = vadd.f32 %v4535, %v4563
      %v4592 = vadd.f32 %v4536, %v4564
      %v4593 = vadd.f32 %v4537, %v4565
      %v4594 = vadd.f32 %v4538, %v4566
      %v4595 = vadd.f32 %v4539, %v4567
      %v4596 = vadd.f32 %v4540, %v4568
      %v4597 = vadd.f32 %v4541, %v4569
      %v4598 = vadd.f32 %v4542, %v4570
      %v4599 = vadd.f32 %v4543, %v4571
      %v4600 = vadd.f32 %v4544, %v4572
      %v4601 = vadd.f32 %v4545, %v4573
      %v4602 = vadd.f32 %v4546, %v4574
      %v4603 = vadd.f32 %v4547, %v4575
      %v4604 = vadd.f32 %v4548, %v4576
      %v4605 = vadd.f32 %v4549, %v4577
      %v4606 = vadd.f32 %v4550, %v4578
      %v4607 = vadd.f32 %v4551, %v4579
      %v4608 = vadd.f32 %v4552, %v4580
      %v4609 = vmul.f32 %v1446, %v1853
      %v4610 = vmul.f32 %v1446, %v1854
      %v4611 = vmul.f32 %v1446, %v1855
      %v4612 = vmul.f32 %v1446, %v1856
      %v4613 = vmul.f32 %v1446, %v1857
      %v4614 = vmul.f32 %v1446, %v1858
      %v4615 = vmul.f32 %v1446, %v1859
      %v4616 = vmul.f32 %v1446, %v1860
      %v4617 = vmul.f32 %v1446, %v1861
      %v4618 = vmul.f32 %v1446, %v1862
      %v4619 = vmul.f32 %v1446, %v1863
      %v4620 = vmul.f32 %v1446, %v1864
      %v4621 = vmul.f32 %v1446, %v1865
      %v4622 = vmul.f32 %v1446, %v1866
      %v4623 = vmul.f32 %v1446, %v1867
      %v4624 = vmul.f32 %v1446, %v1868
      %v4625 = vmul.f32 %v1446, %v1869
      %v4626 = vmul.f32 %v1446, %v1870
      %v4627 = vmul.f32 %v1446, %v1871
      %v4628 = vmul.f32 %v1446, %v1872
      %v4629 = vmul.f32 %v1446, %v1873
      %v4630 = vmul.f32 %v1446, %v1874
      %v4631 = vmul.f32 %v1446, %v1875
      %v4632 = vmul.f32 %v1446, %v1876
      %v4633 = vmul.f32 %v1446, %v1877
      %v4634 = vmul.f32 %v1446, %v1878
      %v4635 = vmul.f32 %v1446, %v1879
      %v4636 = vmul.f32 %v1446, %v1880
      %v4637 = vadd.f32 %v4581, %v4609
      %v4638 = vadd.f32 %v4582, %v4610
      %v4639 = vadd.f32 %v4583, %v4611
      %v4640 = vadd.f32 %v4584, %v4612
      %v4641 = vadd.f32 %v4585, %v4613
      %v4642 = vadd.f32 %v4586, %v4614
      %v4643 = vadd.f32 %v4587, %v4615
      %v4644 = vadd.f32 %v4588, %v4616
      %v4645 = vadd.f32 %v4589, %v4617
      %v4646 = vadd.f32 %v4590, %v4618
      %v4647 = vadd.f32 %v4591, %v4619
      %v4648 = vadd.f32 %v4592, %v4620
      %v4649 = vadd.f32 %v4593, %v4621
      %v4650 = vadd.f32 %v4594, %v4622
      %v4651 = vadd.f32 %v4595, %v4623
      %v4652 = vadd.f32 %v4596, %v4624
      %v4653 = vadd.f32 %v4597, %v4625
      %v4654 = vadd.f32 %v4598, %v4626
      %v4655 = vadd.f32 %v4599, %v4627
      %v4656 = vadd.f32 %v4600, %v4628
      %v4657 = vadd.f32 %v4601, %v4629
      %v4658 = vadd.f32 %v4602, %v4630
      %v4659 = vadd.f32 %v4603, %v4631
      %v4660 = vadd.f32 %v4604, %v4632
      %v4661 = vadd.f32 %v4605, %v4633
      %v4662 = vadd.f32 %v4606, %v4634
      %v4663 = vadd.f32 %v4607, %v4635
      %v4664 = vadd.f32 %v4608, %v4636
      %v4665 = vmul.f32 %v1533, %v1940
      %v4666 = vmul.f32 %v1533, %v1941
      %v4667 = vmul.f32 %v1533, %v1942
      %v4668 = vmul.f32 %v1533, %v1943
      %v4669 = vmul.f32 %v1533, %v1944
      %v4670 = vmul.f32 %v1533, %v1945
      %v4671 = vmul.f32 %v1533, %v1946
      %v4672 = vmul.f32 %v1533, %v1947
      %v4673 = vmul.f32 %v1533, %v1948
      %v4674 = vmul.f32 %v1533, %v1949
      %v4675 = vmul.f32 %v1533, %v1950
      %v4676 = vmul.f32 %v1533, %v1951
      %v4677 = vmul.f32 %v1533, %v1952
      %v4678 = vmul.f32 %v1533, %v1953
      %v4679 = vmul.f32 %v1533, %v1954
      %v4680 = vmul.f32 %v1533, %v1955
      %v4681 = vmul.f32 %v1533, %v1956
      %v4682 = vmul.f32 %v1533, %v1957
      %v4683 = vmul.f32 %v1533, %v1958
      %v4684 = vmul.f32 %v1533, %v1959
      %v4685 = vmul.f32 %v1533, %v1960
      %v4686 = vmul.f32 %v1533, %v1961
      %v4687 = vmul.f32 %v1533, %v1962
      %v4688 = vmul.f32 %v1533, %v1963
      %v4689 = vmul.f32 %v1533, %v1964
      %v4690 = vmul.f32 %v1533, %v1965
      %v4691 = vmul.f32 %v1533, %v1966
      %v4692 = vmul.f32 %v1533, %v1967
      %v4693 = vadd.f32 %v4637, %v4665
      %v4694 = vadd.f32 %v4638, %v4666
      %v4695 = vadd.f32 %v4639, %v4667
      %v4696 = vadd.f32 %v4640, %v4668
      %v4697 = vadd.f32 %v4641, %v4669
      %v4698 = vadd.f32 %v4642, %v4670
      %v4699 = vadd.f32 %v4643, %v4671
      %v4700 = vadd.f32 %v4644, %v4672
      %v4701 = vadd.f32 %v4645, %v4673
      %v4702 = vadd.f32 %v4646, %v4674
      %v4703 = vadd.f32 %v4647, %v4675
      %v4704 = vadd.f32 %v4648, %v4676
      %v4705 = vadd.f32 %v4649, %v4677
      %v4706 = vadd.f32 %v4650, %v4678
      %v4707 = vadd.f32 %v4651, %v4679
      %v4708 = vadd.f32 %v4652, %v4680
      %v4709 = vadd.f32 %v4653, %v4681
      %v4710 = vadd.f32 %v4654, %v4682
      %v4711 = vadd.f32 %v4655, %v4683
      %v4712 = vadd.f32 %v4656, %v4684
      %v4713 = vadd.f32 %v4657, %v4685
      %v4714 = vadd.f32 %v4658, %v4686
      %v4715 = vadd.f32 %v4659, %v4687
      %v4716 = vadd.f32 %v4660, %v4688
      %v4717 = vadd.f32 %v4661, %v4689
      %v4718 = vadd.f32 %v4662, %v4690
      %v4719 = vadd.f32 %v4663, %v4691
      %v4720 = vadd.f32 %v4664, %v4692
      %v4721 = vmul.f32 %v1620, %v2027
      %v4722 = vmul.f32 %v1620, %v2028
      %v4723 = vmul.f32 %v1620, %v2029
      %v4724 = vmul.f32 %v1620, %v2030
      %v4725 = vmul.f32 %v1620, %v2031
      %v4726 = vmul.f32 %v1620, %v2032
      %v4727 = vmul.f32 %v1620, %v2033
      %v4728 = vmul.f32 %v1620, %v2034
      %v4729 = vmul.f32 %v1620, %v2035
      %v4730 = vmul.f32 %v1620, %v2036
      %v4731 = vmul.f32 %v1620, %v2037
      %v4732 = vmul.f32 %v1620, %v2038
      %v4733 = vmul.f32 %v1620, %v2039
      %v4734 = vmul.f32 %v1620, %v2040
      %v4735 = vmul.f32 %v1620, %v2041
      %v4736 = vmul.f32 %v1620, %v2042
      %v4737 = vmul.f32 %v1620, %v2043
      %v4738 = vmul.f32 %v1620, %v2044
      %v4739 = vmul.f32 %v1620, %v2045
      %v4740 = vmul.f32 %v1620, %v2046
      %v4741 = vmul.f32 %v1620, %v2047
      %v4742 = vmul.f32 %v1620, %v2048
      %v4743 = vmul.f32 %v1620, %v2049
      %v4744 = vmul.f32 %v1620, %v2050
      %v4745 = vmul.f32 %v1620, %v2051
      %v4746 = vmul.f32 %v1620, %v2052
      %v4747 = vmul.f32 %v1620, %v2053
      %v4748 = vmul.f32 %v1620, %v2054
      %v4749 = vadd.f32 %v4693, %v4721
      %v4750 = vadd.f32 %v4694, %v4722
      %v4751 = vadd.f32 %v4695, %v4723
      %v4752 = vadd.f32 %v4696, %v4724
      %v4753 = vadd.f32 %v4697, %v4725
      %v4754 = vadd.f32 %v4698, %v4726
      %v4755 = vadd.f32 %v4699, %v4727
      %v4756 = vadd.f32 %v4700, %v4728
      %v4757 = vadd.f32 %v4701, %v4729
      %v4758 = vadd.f32 %v4702, %v4730
      %v4759 = vadd.f32 %v4703, %v4731
      %v4760 = vadd.f32 %v4704, %v4732
      %v4761 = vadd.f32 %v4705, %v4733
      %v4762 = vadd.f32 %v4706, %v4734
      %v4763 = vadd.f32 %v4707, %v4735
      %v4764 = vadd.f32 %v4708, %v4736
      %v4765 = vadd.f32 %v4709, %v4737
      %v4766 = vadd.f32 %v4710, %v4738
      %v4767 = vadd.f32 %v4711, %v4739
      %v4768 = vadd.f32 %v4712, %v4740
      %v4769 = vadd.f32 %v4713, %v4741
      %v4770 = vadd.f32 %v4714, %v4742
      %v4771 = vadd.f32 %v4715, %v4743
      %v4772 = vadd.f32 %v4716, %v4744
      %v4773 = vadd.f32 %v4717, %v4745
      %v4774 = vadd.f32 %v4718, %v4746
      %v4775 = vadd.f32 %v4719, %v4747
      %v4776 = vadd.f32 %v4720, %v4748
      %v4777 = vmul.f32 %v1707, %v2114
      %v4778 = vmul.f32 %v1707, %v2115
      %v4779 = vmul.f32 %v1707, %v2116
      %v4780 = vmul.f32 %v1707, %v2117
      %v4781 = vmul.f32 %v1707, %v2118
      %v4782 = vmul.f32 %v1707, %v2119
      %v4783 = vmul.f32 %v1707, %v2120
      %v4784 = vmul.f32 %v1707, %v2121
      %v4785 = vmul.f32 %v1707, %v2122
      %v4786 = vmul.f32 %v1707, %v2123
      %v4787 = vmul.f32 %v1707, %v2124
      %v4788 = vmul.f32 %v1707, %v2125
      %v4789 = vmul.f32 %v1707, %v2126
      %v4790 = vmul.f32 %v1707, %v2127
      %v4791 = vmul.f32 %v1707, %v2128
      %v4792 = vmul.f32 %v1707, %v2129
      %v4793 = vmul.f32 %v1707, %v2130
      %v4794 = vmul.f32 %v1707, %v2131
      %v4795 = vmul.f32 %v1707, %v2132
      %v4796 = vmul.f32 %v1707, %v2133
      %v4797 = vmul.f32 %v1707, %v2134
      %v4798 = vmul.f32 %v1707, %v2135
      %v4799 = vmul.f32 %v1707, %v2136
      %v4800 = vmul.f32 %v1707, %v2137
      %v4801 = vmul.f32 %v1707, %v2138
      %v4802 = vmul.f32 %v1707, %v2139
      %v4803 = vmul.f32 %v1707, %v2140
      %v4804 = vmul.f32 %v1707, %v2141
      %v4805 = vadd.f32 %v4749, %v4777
      %v4806 = vadd.f32 %v4750, %v4778
      %v4807 = vadd.f32 %v4751, %v4779
      %v4808 = vadd.f32 %v4752, %v4780
      %v4809 = vadd.f32 %v4753, %v4781
      %v4810 = vadd.f32 %v4754, %v4782
      %v4811 = vadd.f32 %v4755, %v4783
      %v4812 = vadd.f32 %v4756, %v4784
      %v4813 = vadd.f32 %v4757, %v4785
      %v4814 = vadd.f32 %v4758, %v4786
      %v4815 = vadd.f32 %v4759, %v4787
      %v4816 = vadd.f32 %v4760, %v4788
      %v4817 = vadd.f32 %v4761, %v4789
      %v4818 = vadd.f32 %v4762, %v4790
      %v4819 = vadd.f32 %v4763, %v4791
      %v4820 = vadd.f32 %v4764, %v4792
      %v4821 = vadd.f32 %v4765, %v4793
      %v4822 = vadd.f32 %v4766, %v4794
      %v4823 = vadd.f32 %v4767, %v4795
      %v4824 = vadd.f32 %v4768, %v4796
      %v4825 = vadd.f32 %v4769, %v4797
      %v4826 = vadd.f32 %v4770, %v4798
      %v4827 = vadd.f32 %v4771, %v4799
      %v4828 = vadd.f32 %v4772, %v4800
      %v4829 = vadd.f32 %v4773, %v4801
      %v4830 = vadd.f32 %v4774, %v4802
      %v4831 = vadd.f32 %v4775, %v4803
      %v4832 = vadd.f32 %v4776, %v4804
      %s4833 = scalar_lea.vmem %s2, 544
      %v4834 = vld [vmem:[%s4833] sm:$0xff]
      %v4835 = vld [vmem:[%s4833 + $0x8] sm:$0x3f]
      %v4836 = vld [vmem:[%s4833 + $0x10] sm:$0xff]
      %v4837 = vld [vmem:[%s4833 + $0x18] sm:$0x3f]
      %v4838 = vld [vmem:[%s4833 + $0x20] sm:$0xff]
      %v4839 = vld [vmem:[%s4833 + $0x28] sm:$0x3f]
      %v4840 = vld [vmem:[%s4833 + $0x30] sm:$0xff]
      %v4841 = vld [vmem:[%s4833 + $0x38] sm:$0x3f]
      %v4842 = vld [vmem:[%s4833 + $0x40] sm:$0xff]
      %v4843 = vld [vmem:[%s4833 + $0x48] sm:$0x3f]
      %v4844 = vld [vmem:[%s4833 + $0x50] sm:$0xff]
      %v4845 = vld [vmem:[%s4833 + $0x58] sm:$0x3f]
      %v4846 = vld [vmem:[%s4833 + $0x60] sm:$0xff]
      %v4847 = vld [vmem:[%s4833 + $0x68] sm:$0x3f]
      %v4848 = vld [vmem:[%s4833 + $0x70] sm:$0xff]
      %v4849 = vld [vmem:[%s4833 + $0x78] sm:$0x3f]
      %v4850 = vld [vmem:[%s4833 + $0x80] sm:$0xff]
      %v4851 = vld [vmem:[%s4833 + $0x88] sm:$0x3f]
      %v4852 = vld [vmem:[%s4833 + $0x90] sm:$0xff]
      %v4853 = vld [vmem:[%s4833 + $0x98] sm:$0x3f]
      %v4854 = vld [vmem:[%s4833 + $0xa0] sm:$0xff]
      %v4855 = vld [vmem:[%s4833 + $0xa8] sm:$0x3f]
      %v4856 = vld [vmem:[%s4833 + $0xb0] sm:$0xff]
      %v4857 = vld [vmem:[%s4833 + $0xb8] sm:$0x3f]
      %v4858 = vld [vmem:[%s4833 + $0xc0] sm:$0xff]
      %v4859 = vld [vmem:[%s4833 + $0xc8] sm:$0x3f]
      %v4860 = vld [vmem:[%s4833 + $0xd0] sm:$0xff]
      %v4861 = vld [vmem:[%s4833 + $0xd8] sm:$0x3f]
      %v4862 = vmul.f32 %v1795, %v4834
      %v4863 = vmul.f32 %v1795, %v4835
      %v4864 = vmul.f32 %v1795, %v4836
      %v4865 = vmul.f32 %v1795, %v4837
      %v4866 = vmul.f32 %v1795, %v4838
      %v4867 = vmul.f32 %v1795, %v4839
      %v4868 = vmul.f32 %v1795, %v4840
      %v4869 = vmul.f32 %v1795, %v4841
      %v4870 = vmul.f32 %v1795, %v4842
      %v4871 = vmul.f32 %v1795, %v4843
      %v4872 = vmul.f32 %v1795, %v4844
      %v4873 = vmul.f32 %v1795, %v4845
      %v4874 = vmul.f32 %v1795, %v4846
      %v4875 = vmul.f32 %v1795, %v4847
      %v4876 = vmul.f32 %v1795, %v4848
      %v4877 = vmul.f32 %v1795, %v4849
      %v4878 = vmul.f32 %v1795, %v4850
      %v4879 = vmul.f32 %v1795, %v4851
      %v4880 = vmul.f32 %v1795, %v4852
      %v4881 = vmul.f32 %v1795, %v4853
      %v4882 = vmul.f32 %v1795, %v4854
      %v4883 = vmul.f32 %v1795, %v4855
      %v4884 = vmul.f32 %v1795, %v4856
      %v4885 = vmul.f32 %v1795, %v4857
      %v4886 = vmul.f32 %v1795, %v4858
      %v4887 = vmul.f32 %v1795, %v4859
      %v4888 = vmul.f32 %v1795, %v4860
      %v4889 = vmul.f32 %v1795, %v4861
      %v4890 = vadd.f32 %v4805, %v4862
      %v4891 = vadd.f32 %v4806, %v4863
      %v4892 = vadd.f32 %v4807, %v4864
      %v4893 = vadd.f32 %v4808, %v4865
      %v4894 = vadd.f32 %v4809, %v4866
      %v4895 = vadd.f32 %v4810, %v4867
      %v4896 = vadd.f32 %v4811, %v4868
      %v4897 = vadd.f32 %v4812, %v4869
      %v4898 = vadd.f32 %v4813, %v4870
      %v4899 = vadd.f32 %v4814, %v4871
      %v4900 = vadd.f32 %v4815, %v4872
      %v4901 = vadd.f32 %v4816, %v4873
      %v4902 = vadd.f32 %v4817, %v4874
      %v4903 = vadd.f32 %v4818, %v4875
      %v4904 = vadd.f32 %v4819, %v4876
      %v4905 = vadd.f32 %v4820, %v4877
      %v4906 = vadd.f32 %v4821, %v4878
      %v4907 = vadd.f32 %v4822, %v4879
      %v4908 = vadd.f32 %v4823, %v4880
      %v4909 = vadd.f32 %v4824, %v4881
      %v4910 = vadd.f32 %v4825, %v4882
      %v4911 = vadd.f32 %v4826, %v4883
      %v4912 = vadd.f32 %v4827, %v4884
      %v4913 = vadd.f32 %v4828, %v4885
      %v4914 = vadd.f32 %v4829, %v4886
      %v4915 = vadd.f32 %v4830, %v4887
      %v4916 = vadd.f32 %v4831, %v4888
      %v4917 = vadd.f32 %v4832, %v4889
      %s4918 = scalar_lea.vmem %s2, 800
      %v4919 = vld [vmem:[%s4918] sm:$0xff]
      %v4920 = vld [vmem:[%s4918 + $0x8] sm:$0x3f]
      %v4921 = vld [vmem:[%s4918 + $0x10] sm:$0xff]
      %v4922 = vld [vmem:[%s4918 + $0x18] sm:$0x3f]
      %v4923 = vld [vmem:[%s4918 + $0x20] sm:$0xff]
      %v4924 = vld [vmem:[%s4918 + $0x28] sm:$0x3f]
      %v4925 = vld [vmem:[%s4918 + $0x30] sm:$0xff]
      %v4926 = vld [vmem:[%s4918 + $0x38] sm:$0x3f]
      %v4927 = vld [vmem:[%s4918 + $0x40] sm:$0xff]
      %v4928 = vld [vmem:[%s4918 + $0x48] sm:$0x3f]
      %v4929 = vld [vmem:[%s4918 + $0x50] sm:$0xff]
      %v4930 = vld [vmem:[%s4918 + $0x58] sm:$0x3f]
      %v4931 = vld [vmem:[%s4918 + $0x60] sm:$0xff]
      %v4932 = vld [vmem:[%s4918 + $0x68] sm:$0x3f]
      %v4933 = vld [vmem:[%s4918 + $0x70] sm:$0xff]
      %v4934 = vld [vmem:[%s4918 + $0x78] sm:$0x3f]
      %v4935 = vld [vmem:[%s4918 + $0x80] sm:$0xff]
      %v4936 = vld [vmem:[%s4918 + $0x88] sm:$0x3f]
      %v4937 = vld [vmem:[%s4918 + $0x90] sm:$0xff]
      %v4938 = vld [vmem:[%s4918 + $0x98] sm:$0x3f]
      %v4939 = vld [vmem:[%s4918 + $0xa0] sm:$0xff]
      %v4940 = vld [vmem:[%s4918 + $0xa8] sm:$0x3f]
      %v4941 = vld [vmem:[%s4918 + $0xb0] sm:$0xff]
      %v4942 = vld [vmem:[%s4918 + $0xb8] sm:$0x3f]
      %v4943 = vld [vmem:[%s4918 + $0xc0] sm:$0xff]
      %v4944 = vld [vmem:[%s4918 + $0xc8] sm:$0x3f]
      %v4945 = vld [vmem:[%s4918 + $0xd0] sm:$0xff]
      %v4946 = vld [vmem:[%s4918 + $0xd8] sm:$0x3f]
      %v4947 = vmul.f32 %v1883, %v4919
      %v4948 = vmul.f32 %v1883, %v4920
      %v4949 = vmul.f32 %v1883, %v4921
      %v4950 = vmul.f32 %v1883, %v4922
      %v4951 = vmul.f32 %v1883, %v4923
      %v4952 = vmul.f32 %v1883, %v4924
      %v4953 = vmul.f32 %v1883, %v4925
      %v4954 = vmul.f32 %v1883, %v4926
      %v4955 = vmul.f32 %v1883, %v4927
      %v4956 = vmul.f32 %v1883, %v4928
      %v4957 = vmul.f32 %v1883, %v4929
      %v4958 = vmul.f32 %v1883, %v4930
      %v4959 = vmul.f32 %v1883, %v4931
      %v4960 = vmul.f32 %v1883, %v4932
      %v4961 = vmul.f32 %v1883, %v4933
      %v4962 = vmul.f32 %v1883, %v4934
      %v4963 = vmul.f32 %v1883, %v4935
      %v4964 = vmul.f32 %v1883, %v4936
      %v4965 = vmul.f32 %v1883, %v4937
      %v4966 = vmul.f32 %v1883, %v4938
      %v4967 = vmul.f32 %v1883, %v4939
      %v4968 = vmul.f32 %v1883, %v4940
      %v4969 = vmul.f32 %v1883, %v4941
      %v4970 = vmul.f32 %v1883, %v4942
      %v4971 = vmul.f32 %v1883, %v4943
      %v4972 = vmul.f32 %v1883, %v4944
      %v4973 = vmul.f32 %v1883, %v4945
      %v4974 = vmul.f32 %v1883, %v4946
      %v4975 = vadd.f32 %v4890, %v4947
      %v4976 = vadd.f32 %v4891, %v4948
      %v4977 = vadd.f32 %v4892, %v4949
      %v4978 = vadd.f32 %v4893, %v4950
      %v4979 = vadd.f32 %v4894, %v4951
      %v4980 = vadd.f32 %v4895, %v4952
      %v4981 = vadd.f32 %v4896, %v4953
      %v4982 = vadd.f32 %v4897, %v4954
      %v4983 = vadd.f32 %v4898, %v4955
      %v4984 = vadd.f32 %v4899, %v4956
      %v4985 = vadd.f32 %v4900, %v4957
      %v4986 = vadd.f32 %v4901, %v4958
      %v4987 = vadd.f32 %v4902, %v4959
      %v4988 = vadd.f32 %v4903, %v4960
      %v4989 = vadd.f32 %v4904, %v4961
      %v4990 = vadd.f32 %v4905, %v4962
      %v4991 = vadd.f32 %v4906, %v4963
      %v4992 = vadd.f32 %v4907, %v4964
      %v4993 = vadd.f32 %v4908, %v4965
      %v4994 = vadd.f32 %v4909, %v4966
      %v4995 = vadd.f32 %v4910, %v4967
      %v4996 = vadd.f32 %v4911, %v4968
      %v4997 = vadd.f32 %v4912, %v4969
      %v4998 = vadd.f32 %v4913, %v4970
      %v4999 = vadd.f32 %v4914, %v4971
      %v5000 = vadd.f32 %v4915, %v4972
      %v5001 = vadd.f32 %v4916, %v4973
      %v5002 = vadd.f32 %v4917, %v4974
      %v5003 = vld [vmem:[%s4833 + $0x1] sm:$0xff]
      %v5004 = vld [vmem:[%s4833 + $0x9] sm:$0x3f]
      %v5005 = vld [vmem:[%s4833 + $0x11] sm:$0xff]
      %v5006 = vld [vmem:[%s4833 + $0x19] sm:$0x3f]
      %v5007 = vld [vmem:[%s4833 + $0x21] sm:$0xff]
      %v5008 = vld [vmem:[%s4833 + $0x29] sm:$0x3f]
      %v5009 = vld [vmem:[%s4833 + $0x31] sm:$0xff]
      %v5010 = vld [vmem:[%s4833 + $0x39] sm:$0x3f]
      %v5011 = vld [vmem:[%s4833 + $0x41] sm:$0xff]
      %v5012 = vld [vmem:[%s4833 + $0x49] sm:$0x3f]
      %v5013 = vld [vmem:[%s4833 + $0x51] sm:$0xff]
      %v5014 = vld [vmem:[%s4833 + $0x59] sm:$0x3f]
      %v5015 = vld [vmem:[%s4833 + $0x61] sm:$0xff]
      %v5016 = vld [vmem:[%s4833 + $0x69] sm:$0x3f]
      %v5017 = vld [vmem:[%s4833 + $0x71] sm:$0xff]
      %v5018 = vld [vmem:[%s4833 + $0x79] sm:$0x3f]
      %v5019 = vld [vmem:[%s4833 + $0x81] sm:$0xff]
      %v5020 = vld [vmem:[%s4833 + $0x89] sm:$0x3f]
      %v5021 = vld [vmem:[%s4833 + $0x91] sm:$0xff]
      %v5022 = vld [vmem:[%s4833 + $0x99] sm:$0x3f]
      %v5023 = vld [vmem:[%s4833 + $0xa1] sm:$0xff]
      %v5024 = vld [vmem:[%s4833 + $0xa9] sm:$0x3f]
      %v5025 = vld [vmem:[%s4833 + $0xb1] sm:$0xff]
      %v5026 = vld [vmem:[%s4833 + $0xb9] sm:$0x3f]
      %v5027 = vld [vmem:[%s4833 + $0xc1] sm:$0xff]
      %v5028 = vld [vmem:[%s4833 + $0xc9] sm:$0x3f]
      %v5029 = vld [vmem:[%s4833 + $0xd1] sm:$0xff]
      %v5030 = vld [vmem:[%s4833 + $0xd9] sm:$0x3f]
      %v5031 = vmul.f32 %v1970, %v5003
      %v5032 = vmul.f32 %v1970, %v5004
      %v5033 = vmul.f32 %v1970, %v5005
      %v5034 = vmul.f32 %v1970, %v5006
      %v5035 = vmul.f32 %v1970, %v5007
      %v5036 = vmul.f32 %v1970, %v5008
      %v5037 = vmul.f32 %v1970, %v5009
      %v5038 = vmul.f32 %v1970, %v5010
      %v5039 = vmul.f32 %v1970, %v5011
      %v5040 = vmul.f32 %v1970, %v5012
      %v5041 = vmul.f32 %v1970, %v5013
      %v5042 = vmul.f32 %v1970, %v5014
      %v5043 = vmul.f32 %v1970, %v5015
      %v5044 = vmul.f32 %v1970, %v5016
      %v5045 = vmul.f32 %v1970, %v5017
      %v5046 = vmul.f32 %v1970, %v5018
      %v5047 = vmul.f32 %v1970, %v5019
      %v5048 = vmul.f32 %v1970, %v5020
      %v5049 = vmul.f32 %v1970, %v5021
      %v5050 = vmul.f32 %v1970, %v5022
      %v5051 = vmul.f32 %v1970, %v5023
      %v5052 = vmul.f32 %v1970, %v5024
      %v5053 = vmul.f32 %v1970, %v5025
      %v5054 = vmul.f32 %v1970, %v5026
      %v5055 = vmul.f32 %v1970, %v5027
      %v5056 = vmul.f32 %v1970, %v5028
      %v5057 = vmul.f32 %v1970, %v5029
      %v5058 = vmul.f32 %v1970, %v5030
      %v5059 = vadd.f32 %v4975, %v5031
      %v5060 = vadd.f32 %v4976, %v5032
      %v5061 = vadd.f32 %v4977, %v5033
      %v5062 = vadd.f32 %v4978, %v5034
      %v5063 = vadd.f32 %v4979, %v5035
      %v5064 = vadd.f32 %v4980, %v5036
      %v5065 = vadd.f32 %v4981, %v5037
      %v5066 = vadd.f32 %v4982, %v5038
      %v5067 = vadd.f32 %v4983, %v5039
      %v5068 = vadd.f32 %v4984, %v5040
      %v5069 = vadd.f32 %v4985, %v5041
      %v5070 = vadd.f32 %v4986, %v5042
      %v5071 = vadd.f32 %v4987, %v5043
      %v5072 = vadd.f32 %v4988, %v5044
      %v5073 = vadd.f32 %v4989, %v5045
      %v5074 = vadd.f32 %v4990, %v5046
      %v5075 = vadd.f32 %v4991, %v5047
      %v5076 = vadd.f32 %v4992, %v5048
      %v5077 = vadd.f32 %v4993, %v5049
      %v5078 = vadd.f32 %v4994, %v5050
      %v5079 = vadd.f32 %v4995, %v5051
      %v5080 = vadd.f32 %v4996, %v5052
      %v5081 = vadd.f32 %v4997, %v5053
      %v5082 = vadd.f32 %v4998, %v5054
      %v5083 = vadd.f32 %v4999, %v5055
      %v5084 = vadd.f32 %v5000, %v5056
      %v5085 = vadd.f32 %v5001, %v5057
      %v5086 = vadd.f32 %v5002, %v5058
      %v5087 = vld [vmem:[%s4918 + $0x1] sm:$0xff]
      %v5088 = vld [vmem:[%s4918 + $0x9] sm:$0x3f]
      %v5089 = vld [vmem:[%s4918 + $0x11] sm:$0xff]
      %v5090 = vld [vmem:[%s4918 + $0x19] sm:$0x3f]
      %v5091 = vld [vmem:[%s4918 + $0x21] sm:$0xff]
      %v5092 = vld [vmem:[%s4918 + $0x29] sm:$0x3f]
      %v5093 = vld [vmem:[%s4918 + $0x31] sm:$0xff]
      %v5094 = vld [vmem:[%s4918 + $0x39] sm:$0x3f]
      %v5095 = vld [vmem:[%s4918 + $0x41] sm:$0xff]
      %v5096 = vld [vmem:[%s4918 + $0x49] sm:$0x3f]
      %v5097 = vld [vmem:[%s4918 + $0x51] sm:$0xff]
      %v5098 = vld [vmem:[%s4918 + $0x59] sm:$0x3f]
      %v5099 = vld [vmem:[%s4918 + $0x61] sm:$0xff]
      %v5100 = vld [vmem:[%s4918 + $0x69] sm:$0x3f]
      %v5101 = vld [vmem:[%s4918 + $0x71] sm:$0xff]
      %v5102 = vld [vmem:[%s4918 + $0x79] sm:$0x3f]
      %v5103 = vld [vmem:[%s4918 + $0x81] sm:$0xff]
      %v5104 = vld [vmem:[%s4918 + $0x89] sm:$0x3f]
      %v5105 = vld [vmem:[%s4918 + $0x91] sm:$0xff]
      %v5106 = vld [vmem:[%s4918 + $0x99] sm:$0x3f]
      %v5107 = vld [vmem:[%s4918 + $0xa1] sm:$0xff]
      %v5108 = vld [vmem:[%s4918 + $0xa9] sm:$0x3f]
      %v5109 = vld [vmem:[%s4918 + $0xb1] sm:$0xff]
      %v5110 = vld [vmem:[%s4918 + $0xb9] sm:$0x3f]
      %v5111 = vld [vmem:[%s4918 + $0xc1] sm:$0xff]
      %v5112 = vld [vmem:[%s4918 + $0xc9] sm:$0x3f]
      %v5113 = vld [vmem:[%s4918 + $0xd1] sm:$0xff]
      %v5114 = vld [vmem:[%s4918 + $0xd9] sm:$0x3f]
      %v5115 = vmul.f32 %v2057, %v5087
      %v5116 = vmul.f32 %v2057, %v5088
      %v5117 = vmul.f32 %v2057, %v5089
      %v5118 = vmul.f32 %v2057, %v5090
      %v5119 = vmul.f32 %v2057, %v5091
      %v5120 = vmul.f32 %v2057, %v5092
      %v5121 = vmul.f32 %v2057, %v5093
      %v5122 = vmul.f32 %v2057, %v5094
      %v5123 = vmul.f32 %v2057, %v5095
      %v5124 = vmul.f32 %v2057, %v5096
      %v5125 = vmul.f32 %v2057, %v5097
      %v5126 = vmul.f32 %v2057, %v5098
      %v5127 = vmul.f32 %v2057, %v5099
      %v5128 = vmul.f32 %v2057, %v5100
      %v5129 = vmul.f32 %v2057, %v5101
      %v5130 = vmul.f32 %v2057, %v5102
      %v5131 = vmul.f32 %v2057, %v5103
      %v5132 = vmul.f32 %v2057, %v5104
      %v5133 = vmul.f32 %v2057, %v5105
      %v5134 = vmul.f32 %v2057, %v5106
      %v5135 = vmul.f32 %v2057, %v5107
      %v5136 = vmul.f32 %v2057, %v5108
      %v5137 = vmul.f32 %v2057, %v5109
      %v5138 = vmul.f32 %v2057, %v5110
      %v5139 = vmul.f32 %v2057, %v5111
      %v5140 = vmul.f32 %v2057, %v5112
      %v5141 = vmul.f32 %v2057, %v5113
      %v5142 = vmul.f32 %v2057, %v5114
      %v5143 = vadd.f32 %v5059, %v5115
      %v5144 = vadd.f32 %v5060, %v5116
      %v5145 = vadd.f32 %v5061, %v5117
      %v5146 = vadd.f32 %v5062, %v5118
      %v5147 = vadd.f32 %v5063, %v5119
      %v5148 = vadd.f32 %v5064, %v5120
      %v5149 = vadd.f32 %v5065, %v5121
      %v5150 = vadd.f32 %v5066, %v5122
      %v5151 = vadd.f32 %v5067, %v5123
      %v5152 = vadd.f32 %v5068, %v5124
      %v5153 = vadd.f32 %v5069, %v5125
      %v5154 = vadd.f32 %v5070, %v5126
      %v5155 = vadd.f32 %v5071, %v5127
      %v5156 = vadd.f32 %v5072, %v5128
      %v5157 = vadd.f32 %v5073, %v5129
      %v5158 = vadd.f32 %v5074, %v5130
      %v5159 = vadd.f32 %v5075, %v5131
      %v5160 = vadd.f32 %v5076, %v5132
      %v5161 = vadd.f32 %v5077, %v5133
      %v5162 = vadd.f32 %v5078, %v5134
      %v5163 = vadd.f32 %v5079, %v5135
      %v5164 = vadd.f32 %v5080, %v5136
      %v5165 = vadd.f32 %v5081, %v5137
      %v5166 = vadd.f32 %v5082, %v5138
      %v5167 = vadd.f32 %v5083, %v5139
      %v5168 = vadd.f32 %v5084, %v5140
      %v5169 = vadd.f32 %v5085, %v5141
      %v5170 = vadd.f32 %v5086, %v5142
      %v5171 = vld [vmem:[%s4833 + $0x2] sm:$0xff]
      %v5172 = vld [vmem:[%s4833 + $0xa] sm:$0x3f]
      %v5173 = vld [vmem:[%s4833 + $0x12] sm:$0xff]
      %v5174 = vld [vmem:[%s4833 + $0x1a] sm:$0x3f]
      %v5175 = vld [vmem:[%s4833 + $0x22] sm:$0xff]
      %v5176 = vld [vmem:[%s4833 + $0x2a] sm:$0x3f]
      %v5177 = vld [vmem:[%s4833 + $0x32] sm:$0xff]
      %v5178 = vld [vmem:[%s4833 + $0x3a] sm:$0x3f]
      %v5179 = vld [vmem:[%s4833 + $0x42] sm:$0xff]
      %v5180 = vld [vmem:[%s4833 + $0x4a] sm:$0x3f]
      %v5181 = vld [vmem:[%s4833 + $0x52] sm:$0xff]
      %v5182 = vld [vmem:[%s4833 + $0x5a] sm:$0x3f]
      %v5183 = vld [vmem:[%s4833 + $0x62] sm:$0xff]
      %v5184 = vld [vmem:[%s4833 + $0x6a] sm:$0x3f]
      %v5185 = vld [vmem:[%s4833 + $0x72] sm:$0xff]
      %v5186 = vld [vmem:[%s4833 + $0x7a] sm:$0x3f]
      %v5187 = vld [vmem:[%s4833 + $0x82] sm:$0xff]
      %v5188 = vld [vmem:[%s4833 + $0x8a] sm:$0x3f]
      %v5189 = vld [vmem:[%s4833 + $0x92] sm:$0xff]
      %v5190 = vld [vmem:[%s4833 + $0x9a] sm:$0x3f]
      %v5191 = vld [vmem:[%s4833 + $0xa2] sm:$0xff]
      %v5192 = vld [vmem:[%s4833 + $0xaa] sm:$0x3f]
      %v5193 = vld [vmem:[%s4833 + $0xb2] sm:$0xff]
      %v5194 = vld [vmem:[%s4833 + $0xba] sm:$0x3f]
      %v5195 = vld [vmem:[%s4833 + $0xc2] sm:$0xff]
      %v5196 = vld [vmem:[%s4833 + $0xca] sm:$0x3f]
      %v5197 = vld [vmem:[%s4833 + $0xd2] sm:$0xff]
      %v5198 = vld [vmem:[%s4833 + $0xda] sm:$0x3f]
      %v5199 = vmul.f32 %v2144, %v5171
      %v5200 = vmul.f32 %v2144, %v5172
      %v5201 = vmul.f32 %v2144, %v5173
      %v5202 = vmul.f32 %v2144, %v5174
      %v5203 = vmul.f32 %v2144, %v5175
      %v5204 = vmul.f32 %v2144, %v5176
      %v5205 = vmul.f32 %v2144, %v5177
      %v5206 = vmul.f32 %v2144, %v5178
      %v5207 = vmul.f32 %v2144, %v5179
      %v5208 = vmul.f32 %v2144, %v5180
      %v5209 = vmul.f32 %v2144, %v5181
      %v5210 = vmul.f32 %v2144, %v5182
      %v5211 = vmul.f32 %v2144, %v5183
      %v5212 = vmul.f32 %v2144, %v5184
      %v5213 = vmul.f32 %v2144, %v5185
      %v5214 = vmul.f32 %v2144, %v5186
      %v5215 = vmul.f32 %v2144, %v5187
      %v5216 = vmul.f32 %v2144, %v5188
      %v5217 = vmul.f32 %v2144, %v5189
      %v5218 = vmul.f32 %v2144, %v5190
      %v5219 = vmul.f32 %v2144, %v5191
      %v5220 = vmul.f32 %v2144, %v5192
      %v5221 = vmul.f32 %v2144, %v5193
      %v5222 = vmul.f32 %v2144, %v5194
      %v5223 = vmul.f32 %v2144, %v5195
      %v5224 = vmul.f32 %v2144, %v5196
      %v5225 = vmul.f32 %v2144, %v5197
      %v5226 = vmul.f32 %v2144, %v5198
      %v5227 = vadd.f32 %v5143, %v5199
      %v5228 = vadd.f32 %v5144, %v5200
      %v5229 = vadd.f32 %v5145, %v5201
      %v5230 = vadd.f32 %v5146, %v5202
      %v5231 = vadd.f32 %v5147, %v5203
      %v5232 = vadd.f32 %v5148, %v5204
      %v5233 = vadd.f32 %v5149, %v5205
      %v5234 = vadd.f32 %v5150, %v5206
      %v5235 = vadd.f32 %v5151, %v5207
      %v5236 = vadd.f32 %v5152, %v5208
      %v5237 = vadd.f32 %v5153, %v5209
      %v5238 = vadd.f32 %v5154, %v5210
      %v5239 = vadd.f32 %v5155, %v5211
      %v5240 = vadd.f32 %v5156, %v5212
      %v5241 = vadd.f32 %v5157, %v5213
      %v5242 = vadd.f32 %v5158, %v5214
      %v5243 = vadd.f32 %v5159, %v5215
      %v5244 = vadd.f32 %v5160, %v5216
      %v5245 = vadd.f32 %v5161, %v5217
      %v5246 = vadd.f32 %v5162, %v5218
      %v5247 = vadd.f32 %v5163, %v5219
      %v5248 = vadd.f32 %v5164, %v5220
      %v5249 = vadd.f32 %v5165, %v5221
      %v5250 = vadd.f32 %v5166, %v5222
      %v5251 = vadd.f32 %v5167, %v5223
      %v5252 = vadd.f32 %v5168, %v5224
      %v5253 = vadd.f32 %v5169, %v5225
      %v5254 = vadd.f32 %v5170, %v5226
      %v5255 = vmax.f32 %v3713, %v5227
      %v5256 = vmax.f32 %v3714, %v5228
      %v5257 = vmax.f32 %v3715, %v5229
      %v5258 = vmax.f32 %v3716, %v5230
      %v5259 = vmax.f32 %v3717, %v5231
      %v5260 = vmax.f32 %v3718, %v5232
      %v5261 = vmax.f32 %v3719, %v5233
      %v5262 = vmax.f32 %v3720, %v5234
      %v5263 = vmax.f32 %v3721, %v5235
      %v5264 = vmax.f32 %v3722, %v5236
      %v5265 = vmax.f32 %v3723, %v5237
      %v5266 = vmax.f32 %v3724, %v5238
      %v5267 = vmax.f32 %v3725, %v5239
      %v5268 = vmax.f32 %v3726, %v5240
      %v5269 = vmax.f32 %v3727, %v5241
      %v5270 = vmax.f32 %v3728, %v5242
      %v5271 = vmax.f32 %v3729, %v5243
      %v5272 = vmax.f32 %v3730, %v5244
      %v5273 = vmax.f32 %v3731, %v5245
      %v5274 = vmax.f32 %v3732, %v5246
      %v5275 = vmax.f32 %v3733, %v5247
      %v5276 = vmax.f32 %v3734, %v5248
      %v5277 = vmax.f32 %v3735, %v5249
      %v5278 = vmax.f32 %v3736, %v5250
      %v5279 = vmax.f32 %v3737, %v5251
      %v5280 = vmax.f32 %v3738, %v5252
      %v5281 = vmax.f32 %v3739, %v5253
      %v5282 = vmax.f32 %v3740, %v5254
      %v5283 = vmul.f32 %v75, %v542
      %v5284 = vmul.f32 %v75, %v543
      %v5285 = vmul.f32 %v75, %v544
      %v5286 = vmul.f32 %v75, %v545
      %v5287 = vmul.f32 %v75, %v546
      %v5288 = vmul.f32 %v75, %v547
      %v5289 = vmul.f32 %v75, %v548
      %v5290 = vmul.f32 %v75, %v549
      %v5291 = vmul.f32 %v75, %v550
      %v5292 = vmul.f32 %v75, %v551
      %v5293 = vmul.f32 %v75, %v552
      %v5294 = vmul.f32 %v75, %v553
      %v5295 = vmul.f32 %v75, %v554
      %v5296 = vmul.f32 %v75, %v555
      %v5297 = vmul.f32 %v75, %v556
      %v5298 = vmul.f32 %v75, %v557
      %v5299 = vmul.f32 %v75, %v558
      %v5300 = vmul.f32 %v75, %v559
      %v5301 = vmul.f32 %v75, %v560
      %v5302 = vmul.f32 %v75, %v561
      %v5303 = vmul.f32 %v75, %v562
      %v5304 = vmul.f32 %v75, %v563
      %v5305 = vmul.f32 %v75, %v564
      %v5306 = vmul.f32 %v75, %v565
      %v5307 = vmul.f32 %v75, %v566
      %v5308 = vmul.f32 %v75, %v567
      %v5309 = vmul.f32 %v75, %v568
      %v5310 = vmul.f32 %v75, %v569
      %v5311 = vmul.f32 %v135, %v629
      %v5312 = vmul.f32 %v135, %v630
      %v5313 = vmul.f32 %v135, %v631
      %v5314 = vmul.f32 %v135, %v632
      %v5315 = vmul.f32 %v135, %v633
      %v5316 = vmul.f32 %v135, %v634
      %v5317 = vmul.f32 %v135, %v635
      %v5318 = vmul.f32 %v135, %v636
      %v5319 = vmul.f32 %v135, %v637
      %v5320 = vmul.f32 %v135, %v638
      %v5321 = vmul.f32 %v135, %v639
      %v5322 = vmul.f32 %v135, %v640
      %v5323 = vmul.f32 %v135, %v641
      %v5324 = vmul.f32 %v135, %v642
      %v5325 = vmul.f32 %v135, %v643
      %v5326 = vmul.f32 %v135, %v644
      %v5327 = vmul.f32 %v135, %v645
      %v5328 = vmul.f32 %v135, %v646
      %v5329 = vmul.f32 %v135, %v647
      %v5330 = vmul.f32 %v135, %v648
      %v5331 = vmul.f32 %v135, %v649
      %v5332 = vmul.f32 %v135, %v650
      %v5333 = vmul.f32 %v135, %v651
      %v5334 = vmul.f32 %v135, %v652
      %v5335 = vmul.f32 %v135, %v653
      %v5336 = vmul.f32 %v135, %v654
      %v5337 = vmul.f32 %v135, %v655
      %v5338 = vmul.f32 %v135, %v656
      %v5339 = vadd.f32 %v5283, %v5311
      %v5340 = vadd.f32 %v5284, %v5312
      %v5341 = vadd.f32 %v5285, %v5313
      %v5342 = vadd.f32 %v5286, %v5314
      %v5343 = vadd.f32 %v5287, %v5315
      %v5344 = vadd.f32 %v5288, %v5316
      %v5345 = vadd.f32 %v5289, %v5317
      %v5346 = vadd.f32 %v5290, %v5318
      %v5347 = vadd.f32 %v5291, %v5319
      %v5348 = vadd.f32 %v5292, %v5320
      %v5349 = vadd.f32 %v5293, %v5321
      %v5350 = vadd.f32 %v5294, %v5322
      %v5351 = vadd.f32 %v5295, %v5323
      %v5352 = vadd.f32 %v5296, %v5324
      %v5353 = vadd.f32 %v5297, %v5325
      %v5354 = vadd.f32 %v5298, %v5326
      %v5355 = vadd.f32 %v5299, %v5327
      %v5356 = vadd.f32 %v5300, %v5328
      %v5357 = vadd.f32 %v5301, %v5329
      %v5358 = vadd.f32 %v5302, %v5330
      %v5359 = vadd.f32 %v5303, %v5331
      %v5360 = vadd.f32 %v5304, %v5332
      %v5361 = vadd.f32 %v5305, %v5333
      %v5362 = vadd.f32 %v5306, %v5334
      %v5363 = vadd.f32 %v5307, %v5335
      %v5364 = vadd.f32 %v5308, %v5336
      %v5365 = vadd.f32 %v5309, %v5337
      %v5366 = vadd.f32 %v5310, %v5338
      %v5367 = vmul.f32 %v222, %v716
      %v5368 = vmul.f32 %v222, %v717
      %v5369 = vmul.f32 %v222, %v718
      %v5370 = vmul.f32 %v222, %v719
      %v5371 = vmul.f32 %v222, %v720
      %v5372 = vmul.f32 %v222, %v721
      %v5373 = vmul.f32 %v222, %v722
      %v5374 = vmul.f32 %v222, %v723
      %v5375 = vmul.f32 %v222, %v724
      %v5376 = vmul.f32 %v222, %v725
      %v5377 = vmul.f32 %v222, %v726
      %v5378 = vmul.f32 %v222, %v727
      %v5379 = vmul.f32 %v222, %v728
      %v5380 = vmul.f32 %v222, %v729
      %v5381 = vmul.f32 %v222, %v730
      %v5382 = vmul.f32 %v222, %v731
      %v5383 = vmul.f32 %v222, %v732
      %v5384 = vmul.f32 %v222, %v733
      %v5385 = vmul.f32 %v222, %v734
      %v5386 = vmul.f32 %v222, %v735
      %v5387 = vmul.f32 %v222, %v736
      %v5388 = vmul.f32 %v222, %v737
      %v5389 = vmul.f32 %v222, %v738
      %v5390 = vmul.f32 %v222, %v739
      %v5391 = vmul.f32 %v222, %v740
      %v5392 = vmul.f32 %v222, %v741
      %v5393 = vmul.f32 %v222, %v742
      %v5394 = vmul.f32 %v222, %v743
      %v5395 = vadd.f32 %v5339, %v5367
      %v5396 = vadd.f32 %v5340, %v5368
      %v5397 = vadd.f32 %v5341, %v5369
      %v5398 = vadd.f32 %v5342, %v5370
      %v5399 = vadd.f32 %v5343, %v5371
      %v5400 = vadd.f32 %v5344, %v5372
      %v5401 = vadd.f32 %v5345, %v5373
      %v5402 = vadd.f32 %v5346, %v5374
      %v5403 = vadd.f32 %v5347, %v5375
      %v5404 = vadd.f32 %v5348, %v5376
      %v5405 = vadd.f32 %v5349, %v5377
      %v5406 = vadd.f32 %v5350, %v5378
      %v5407 = vadd.f32 %v5351, %v5379
      %v5408 = vadd.f32 %v5352, %v5380
      %v5409 = vadd.f32 %v5353, %v5381
      %v5410 = vadd.f32 %v5354, %v5382
      %v5411 = vadd.f32 %v5355, %v5383
      %v5412 = vadd.f32 %v5356, %v5384
      %v5413 = vadd.f32 %v5357, %v5385
      %v5414 = vadd.f32 %v5358, %v5386
      %v5415 = vadd.f32 %v5359, %v5387
      %v5416 = vadd.f32 %v5360, %v5388
      %v5417 = vadd.f32 %v5361, %v5389
      %v5418 = vadd.f32 %v5362, %v5390
      %v5419 = vadd.f32 %v5363, %v5391
      %v5420 = vadd.f32 %v5364, %v5392
      %v5421 = vadd.f32 %v5365, %v5393
      %v5422 = vadd.f32 %v5366, %v5394
      %v5423 = vmul.f32 %v309, %v803
      %v5424 = vmul.f32 %v309, %v804
      %v5425 = vmul.f32 %v309, %v805
      %v5426 = vmul.f32 %v309, %v806
      %v5427 = vmul.f32 %v309, %v807
      %v5428 = vmul.f32 %v309, %v808
      %v5429 = vmul.f32 %v309, %v809
      %v5430 = vmul.f32 %v309, %v810
      %v5431 = vmul.f32 %v309, %v811
      %v5432 = vmul.f32 %v309, %v812
      %v5433 = vmul.f32 %v309, %v813
      %v5434 = vmul.f32 %v309, %v814
      %v5435 = vmul.f32 %v309, %v815
      %v5436 = vmul.f32 %v309, %v816
      %v5437 = vmul.f32 %v309, %v817
      %v5438 = vmul.f32 %v309, %v818
      %v5439 = vmul.f32 %v309, %v819
      %v5440 = vmul.f32 %v309, %v820
      %v5441 = vmul.f32 %v309, %v821
      %v5442 = vmul.f32 %v309, %v822
      %v5443 = vmul.f32 %v309, %v823
      %v5444 = vmul.f32 %v309, %v824
      %v5445 = vmul.f32 %v309, %v825
      %v5446 = vmul.f32 %v309, %v826
      %v5447 = vmul.f32 %v309, %v827
      %v5448 = vmul.f32 %v309, %v828
      %v5449 = vmul.f32 %v309, %v829
      %v5450 = vmul.f32 %v309, %v830
      %v5451 = vadd.f32 %v5395, %v5423
      %v5452 = vadd.f32 %v5396, %v5424
      %v5453 = vadd.f32 %v5397, %v5425
      %v5454 = vadd.f32 %v5398, %v5426
      %v5455 = vadd.f32 %v5399, %v5427
      %v5456 = vadd.f32 %v5400, %v5428
      %v5457 = vadd.f32 %v5401, %v5429
      %v5458 = vadd.f32 %v5402, %v5430
      %v5459 = vadd.f32 %v5403, %v5431
      %v5460 = vadd.f32 %v5404, %v5432
      %v5461 = vadd.f32 %v5405, %v5433
      %v5462 = vadd.f32 %v5406, %v5434
      %v5463 = vadd.f32 %v5407, %v5435
      %v5464 = vadd.f32 %v5408, %v5436
      %v5465 = vadd.f32 %v5409, %v5437
      %v5466 = vadd.f32 %v5410, %v5438
      %v5467 = vadd.f32 %v5411, %v5439
      %v5468 = vadd.f32 %v5412, %v5440
      %v5469 = vadd.f32 %v5413, %v5441
      %v5470 = vadd.f32 %v5414, %v5442
      %v5471 = vadd.f32 %v5415, %v5443
      %v5472 = vadd.f32 %v5416, %v5444
      %v5473 = vadd.f32 %v5417, %v5445
      %v5474 = vadd.f32 %v5418, %v5446
      %v5475 = vadd.f32 %v5419, %v5447
      %v5476 = vadd.f32 %v5420, %v5448
      %v5477 = vadd.f32 %v5421, %v5449
      %v5478 = vadd.f32 %v5422, %v5450
      %v5479 = vmul.f32 %v396, %v2705
      %v5480 = vmul.f32 %v396, %v2706
      %v5481 = vmul.f32 %v396, %v2707
      %v5482 = vmul.f32 %v396, %v2708
      %v5483 = vmul.f32 %v396, %v2709
      %v5484 = vmul.f32 %v396, %v2710
      %v5485 = vmul.f32 %v396, %v2711
      %v5486 = vmul.f32 %v396, %v2712
      %v5487 = vmul.f32 %v396, %v2713
      %v5488 = vmul.f32 %v396, %v2714
      %v5489 = vmul.f32 %v396, %v2715
      %v5490 = vmul.f32 %v396, %v2716
      %v5491 = vmul.f32 %v396, %v2717
      %v5492 = vmul.f32 %v396, %v2718
      %v5493 = vmul.f32 %v396, %v2719
      %v5494 = vmul.f32 %v396, %v2720
      %v5495 = vmul.f32 %v396, %v2721
      %v5496 = vmul.f32 %v396, %v2722
      %v5497 = vmul.f32 %v396, %v2723
      %v5498 = vmul.f32 %v396, %v2724
      %v5499 = vmul.f32 %v396, %v2725
      %v5500 = vmul.f32 %v396, %v2726
      %v5501 = vmul.f32 %v396, %v2727
      %v5502 = vmul.f32 %v396, %v2728
      %v5503 = vmul.f32 %v396, %v2729
      %v5504 = vmul.f32 %v396, %v2730
      %v5505 = vmul.f32 %v396, %v2731
      %v5506 = vmul.f32 %v396, %v2732
      %v5507 = vadd.f32 %v5451, %v5479
      %v5508 = vadd.f32 %v5452, %v5480
      %v5509 = vadd.f32 %v5453, %v5481
      %v5510 = vadd.f32 %v5454, %v5482
      %v5511 = vadd.f32 %v5455, %v5483
      %v5512 = vadd.f32 %v5456, %v5484
      %v5513 = vadd.f32 %v5457, %v5485
      %v5514 = vadd.f32 %v5458, %v5486
      %v5515 = vadd.f32 %v5459, %v5487
      %v5516 = vadd.f32 %v5460, %v5488
      %v5517 = vadd.f32 %v5461, %v5489
      %v5518 = vadd.f32 %v5462, %v5490
      %v5519 = vadd.f32 %v5463, %v5491
      %v5520 = vadd.f32 %v5464, %v5492
      %v5521 = vadd.f32 %v5465, %v5493
      %v5522 = vadd.f32 %v5466, %v5494
      %v5523 = vadd.f32 %v5467, %v5495
      %v5524 = vadd.f32 %v5468, %v5496
      %v5525 = vadd.f32 %v5469, %v5497
      %v5526 = vadd.f32 %v5470, %v5498
      %v5527 = vadd.f32 %v5471, %v5499
      %v5528 = vadd.f32 %v5472, %v5500
      %v5529 = vadd.f32 %v5473, %v5501
      %v5530 = vadd.f32 %v5474, %v5502
      %v5531 = vadd.f32 %v5475, %v5503
      %v5532 = vadd.f32 %v5476, %v5504
      %v5533 = vadd.f32 %v5477, %v5505
      %v5534 = vadd.f32 %v5478, %v5506
      %v5535 = vmul.f32 %v484, %v979
      %v5536 = vmul.f32 %v484, %v980
      %v5537 = vmul.f32 %v484, %v981
      %v5538 = vmul.f32 %v484, %v982
      %v5539 = vmul.f32 %v484, %v983
      %v5540 = vmul.f32 %v484, %v984
      %v5541 = vmul.f32 %v484, %v985
      %v5542 = vmul.f32 %v484, %v986
      %v5543 = vmul.f32 %v484, %v987
      %v5544 = vmul.f32 %v484, %v988
      %v5545 = vmul.f32 %v484, %v989
      %v5546 = vmul.f32 %v484, %v990
      %v5547 = vmul.f32 %v484, %v991
      %v5548 = vmul.f32 %v484, %v992
      %v5549 = vmul.f32 %v484, %v993
      %v5550 = vmul.f32 %v484, %v994
      %v5551 = vmul.f32 %v484, %v995
      %v5552 = vmul.f32 %v484, %v996
      %v5553 = vmul.f32 %v484, %v997
      %v5554 = vmul.f32 %v484, %v998
      %v5555 = vmul.f32 %v484, %v999
      %v5556 = vmul.f32 %v484, %v1000
      %v5557 = vmul.f32 %v484, %v1001
      %v5558 = vmul.f32 %v484, %v1002
      %v5559 = vmul.f32 %v484, %v1003
      %v5560 = vmul.f32 %v484, %v1004
      %v5561 = vmul.f32 %v484, %v1005
      %v5562 = vmul.f32 %v484, %v1006
      %v5563 = vadd.f32 %v5507, %v5535
      %v5564 = vadd.f32 %v5508, %v5536
      %v5565 = vadd.f32 %v5509, %v5537
      %v5566 = vadd.f32 %v5510, %v5538
      %v5567 = vadd.f32 %v5511, %v5539
      %v5568 = vadd.f32 %v5512, %v5540
      %v5569 = vadd.f32 %v5513, %v5541
      %v5570 = vadd.f32 %v5514, %v5542
      %v5571 = vadd.f32 %v5515, %v5543
      %v5572 = vadd.f32 %v5516, %v5544
      %v5573 = vadd.f32 %v5517, %v5545
      %v5574 = vadd.f32 %v5518, %v5546
      %v5575 = vadd.f32 %v5519, %v5547
      %v5576 = vadd.f32 %v5520, %v5548
      %v5577 = vadd.f32 %v5521, %v5549
      %v5578 = vadd.f32 %v5522, %v5550
      %v5579 = vadd.f32 %v5523, %v5551
      %v5580 = vadd.f32 %v5524, %v5552
      %v5581 = vadd.f32 %v5525, %v5553
      %v5582 = vadd.f32 %v5526, %v5554
      %v5583 = vadd.f32 %v5527, %v5555
      %v5584 = vadd.f32 %v5528, %v5556
      %v5585 = vadd.f32 %v5529, %v5557
      %v5586 = vadd.f32 %v5530, %v5558
      %v5587 = vadd.f32 %v5531, %v5559
      %v5588 = vadd.f32 %v5532, %v5560
      %v5589 = vadd.f32 %v5533, %v5561
      %v5590 = vadd.f32 %v5534, %v5562
      %v5591 = vmul.f32 %v572, %v1066
      %v5592 = vmul.f32 %v572, %v1067
      %v5593 = vmul.f32 %v572, %v1068
      %v5594 = vmul.f32 %v572, %v1069
      %v5595 = vmul.f32 %v572, %v1070
      %v5596 = vmul.f32 %v572, %v1071
      %v5597 = vmul.f32 %v572, %v1072
      %v5598 = vmul.f32 %v572, %v1073
      %v5599 = vmul.f32 %v572, %v1074
      %v5600 = vmul.f32 %v572, %v1075
      %v5601 = vmul.f32 %v572, %v1076
      %v5602 = vmul.f32 %v572, %v1077
      %v5603 = vmul.f32 %v572, %v1078
      %v5604 = vmul.f32 %v572, %v1079
      %v5605 = vmul.f32 %v572, %v1080
      %v5606 = vmul.f32 %v572, %v1081
      %v5607 = vmul.f32 %v572, %v1082
      %v5608 = vmul.f32 %v572, %v1083
      %v5609 = vmul.f32 %v572, %v1084
      %v5610 = vmul.f32 %v572, %v1085
      %v5611 = vmul.f32 %v572, %v1086
      %v5612 = vmul.f32 %v572, %v1087
      %v5613 = vmul.f32 %v572, %v1088
      %v5614 = vmul.f32 %v572, %v1089
      %v5615 = vmul.f32 %v572, %v1090
      %v5616 = vmul.f32 %v572, %v1091
      %v5617 = vmul.f32 %v572, %v1092
      %v5618 = vmul.f32 %v572, %v1093
      %v5619 = vadd.f32 %v5563, %v5591
      %v5620 = vadd.f32 %v5564, %v5592
      %v5621 = vadd.f32 %v5565, %v5593
      %v5622 = vadd.f32 %v5566, %v5594
      %v5623 = vadd.f32 %v5567, %v5595
      %v5624 = vadd.f32 %v5568, %v5596
      %v5625 = vadd.f32 %v5569, %v5597
      %v5626 = vadd.f32 %v5570, %v5598
      %v5627 = vadd.f32 %v5571, %v5599
      %v5628 = vadd.f32 %v5572, %v5600
      %v5629 = vadd.f32 %v5573, %v5601
      %v5630 = vadd.f32 %v5574, %v5602
      %v5631 = vadd.f32 %v5575, %v5603
      %v5632 = vadd.f32 %v5576, %v5604
      %v5633 = vadd.f32 %v5577, %v5605
      %v5634 = vadd.f32 %v5578, %v5606
      %v5635 = vadd.f32 %v5579, %v5607
      %v5636 = vadd.f32 %v5580, %v5608
      %v5637 = vadd.f32 %v5581, %v5609
      %v5638 = vadd.f32 %v5582, %v5610
      %v5639 = vadd.f32 %v5583, %v5611
      %v5640 = vadd.f32 %v5584, %v5612
      %v5641 = vadd.f32 %v5585, %v5613
      %v5642 = vadd.f32 %v5586, %v5614
      %v5643 = vadd.f32 %v5587, %v5615
      %v5644 = vadd.f32 %v5588, %v5616
      %v5645 = vadd.f32 %v5589, %v5617
      %v5646 = vadd.f32 %v5590, %v5618
      %v5647 = vmul.f32 %v659, %v1153
      %v5648 = vmul.f32 %v659, %v1154
      %v5649 = vmul.f32 %v659, %v1155
      %v5650 = vmul.f32 %v659, %v1156
      %v5651 = vmul.f32 %v659, %v1157
      %v5652 = vmul.f32 %v659, %v1158
      %v5653 = vmul.f32 %v659, %v1159
      %v5654 = vmul.f32 %v659, %v1160
      %v5655 = vmul.f32 %v659, %v1161
      %v5656 = vmul.f32 %v659, %v1162
      %v5657 = vmul.f32 %v659, %v1163
      %v5658 = vmul.f32 %v659, %v1164
      %v5659 = vmul.f32 %v659, %v1165
      %v5660 = vmul.f32 %v659, %v1166
      %v5661 = vmul.f32 %v659, %v1167
      %v5662 = vmul.f32 %v659, %v1168
      %v5663 = vmul.f32 %v659, %v1169
      %v5664 = vmul.f32 %v659, %v1170
      %v5665 = vmul.f32 %v659, %v1171
      %v5666 = vmul.f32 %v659, %v1172
      %v5667 = vmul.f32 %v659, %v1173
      %v5668 = vmul.f32 %v659, %v1174
      %v5669 = vmul.f32 %v659, %v1175
      %v5670 = vmul.f32 %v659, %v1176
      %v5671 = vmul.f32 %v659, %v1177
      %v5672 = vmul.f32 %v659, %v1178
      %v5673 = vmul.f32 %v659, %v1179
      %v5674 = vmul.f32 %v659, %v1180
      %v5675 = vadd.f32 %v5619, %v5647
      %v5676 = vadd.f32 %v5620, %v5648
      %v5677 = vadd.f32 %v5621, %v5649
      %v5678 = vadd.f32 %v5622, %v5650
      %v5679 = vadd.f32 %v5623, %v5651
      %v5680 = vadd.f32 %v5624, %v5652
      %v5681 = vadd.f32 %v5625, %v5653
      %v5682 = vadd.f32 %v5626, %v5654
      %v5683 = vadd.f32 %v5627, %v5655
      %v5684 = vadd.f32 %v5628, %v5656
      %v5685 = vadd.f32 %v5629, %v5657
      %v5686 = vadd.f32 %v5630, %v5658
      %v5687 = vadd.f32 %v5631, %v5659
      %v5688 = vadd.f32 %v5632, %v5660
      %v5689 = vadd.f32 %v5633, %v5661
      %v5690 = vadd.f32 %v5634, %v5662
      %v5691 = vadd.f32 %v5635, %v5663
      %v5692 = vadd.f32 %v5636, %v5664
      %v5693 = vadd.f32 %v5637, %v5665
      %v5694 = vadd.f32 %v5638, %v5666
      %v5695 = vadd.f32 %v5639, %v5667
      %v5696 = vadd.f32 %v5640, %v5668
      %v5697 = vadd.f32 %v5641, %v5669
      %v5698 = vadd.f32 %v5642, %v5670
      %v5699 = vadd.f32 %v5643, %v5671
      %v5700 = vadd.f32 %v5644, %v5672
      %v5701 = vadd.f32 %v5645, %v5673
      %v5702 = vadd.f32 %v5646, %v5674
      %v5703 = vmul.f32 %v746, %v1240
      %v5704 = vmul.f32 %v746, %v1241
      %v5705 = vmul.f32 %v746, %v1242
      %v5706 = vmul.f32 %v746, %v1243
      %v5707 = vmul.f32 %v746, %v1244
      %v5708 = vmul.f32 %v746, %v1245
      %v5709 = vmul.f32 %v746, %v1246
      %v5710 = vmul.f32 %v746, %v1247
      %v5711 = vmul.f32 %v746, %v1248
      %v5712 = vmul.f32 %v746, %v1249
      %v5713 = vmul.f32 %v746, %v1250
      %v5714 = vmul.f32 %v746, %v1251
      %v5715 = vmul.f32 %v746, %v1252
      %v5716 = vmul.f32 %v746, %v1253
      %v5717 = vmul.f32 %v746, %v1254
      %v5718 = vmul.f32 %v746, %v1255
      %v5719 = vmul.f32 %v746, %v1256
      %v5720 = vmul.f32 %v746, %v1257
      %v5721 = vmul.f32 %v746, %v1258
      %v5722 = vmul.f32 %v746, %v1259
      %v5723 = vmul.f32 %v746, %v1260
      %v5724 = vmul.f32 %v746, %v1261
      %v5725 = vmul.f32 %v746, %v1262
      %v5726 = vmul.f32 %v746, %v1263
      %v5727 = vmul.f32 %v746, %v1264
      %v5728 = vmul.f32 %v746, %v1265
      %v5729 = vmul.f32 %v746, %v1266
      %v5730 = vmul.f32 %v746, %v1267
      %v5731 = vadd.f32 %v5675, %v5703
      %v5732 = vadd.f32 %v5676, %v5704
      %v5733 = vadd.f32 %v5677, %v5705
      %v5734 = vadd.f32 %v5678, %v5706
      %v5735 = vadd.f32 %v5679, %v5707
      %v5736 = vadd.f32 %v5680, %v5708
      %v5737 = vadd.f32 %v5681, %v5709
      %v5738 = vadd.f32 %v5682, %v5710
      %v5739 = vadd.f32 %v5683, %v5711
      %v5740 = vadd.f32 %v5684, %v5712
      %v5741 = vadd.f32 %v5685, %v5713
      %v5742 = vadd.f32 %v5686, %v5714
      %v5743 = vadd.f32 %v5687, %v5715
      %v5744 = vadd.f32 %v5688, %v5716
      %v5745 = vadd.f32 %v5689, %v5717
      %v5746 = vadd.f32 %v5690, %v5718
      %v5747 = vadd.f32 %v5691, %v5719
      %v5748 = vadd.f32 %v5692, %v5720
      %v5749 = vadd.f32 %v5693, %v5721
      %v5750 = vadd.f32 %v5694, %v5722
      %v5751 = vadd.f32 %v5695, %v5723
      %v5752 = vadd.f32 %v5696, %v5724
      %v5753 = vadd.f32 %v5697, %v5725
      %v5754 = vadd.f32 %v5698, %v5726
      %v5755 = vadd.f32 %v5699, %v5727
      %v5756 = vadd.f32 %v5700, %v5728
      %v5757 = vadd.f32 %v5701, %v5729
      %v5758 = vadd.f32 %v5702, %v5730
      %v5759 = vmul.f32 %v833, %v3013
      %v5760 = vmul.f32 %v833, %v3014
      %v5761 = vmul.f32 %v833, %v3015
      %v5762 = vmul.f32 %v833, %v3016
      %v5763 = vmul.f32 %v833, %v3017
      %v5764 = vmul.f32 %v833, %v3018
      %v5765 = vmul.f32 %v833, %v3019
      %v5766 = vmul.f32 %v833, %v3020
      %v5767 = vmul.f32 %v833, %v3021
      %v5768 = vmul.f32 %v833, %v3022
      %v5769 = vmul.f32 %v833, %v3023
      %v5770 = vmul.f32 %v833, %v3024
      %v5771 = vmul.f32 %v833, %v3025
      %v5772 = vmul.f32 %v833, %v3026
      %v5773 = vmul.f32 %v833, %v3027
      %v5774 = vmul.f32 %v833, %v3028
      %v5775 = vmul.f32 %v833, %v3029
      %v5776 = vmul.f32 %v833, %v3030
      %v5777 = vmul.f32 %v833, %v3031
      %v5778 = vmul.f32 %v833, %v3032
      %v5779 = vmul.f32 %v833, %v3033
      %v5780 = vmul.f32 %v833, %v3034
      %v5781 = vmul.f32 %v833, %v3035
      %v5782 = vmul.f32 %v833, %v3036
      %v5783 = vmul.f32 %v833, %v3037
      %v5784 = vmul.f32 %v833, %v3038
      %v5785 = vmul.f32 %v833, %v3039
      %v5786 = vmul.f32 %v833, %v3040
      %v5787 = vadd.f32 %v5731, %v5759
      %v5788 = vadd.f32 %v5732, %v5760
      %v5789 = vadd.f32 %v5733, %v5761
      %v5790 = vadd.f32 %v5734, %v5762
      %v5791 = vadd.f32 %v5735, %v5763
      %v5792 = vadd.f32 %v5736, %v5764
      %v5793 = vadd.f32 %v5737, %v5765
      %v5794 = vadd.f32 %v5738, %v5766
      %v5795 = vadd.f32 %v5739, %v5767
      %v5796 = vadd.f32 %v5740, %v5768
      %v5797 = vadd.f32 %v5741, %v5769
      %v5798 = vadd.f32 %v5742, %v5770
      %v5799 = vadd.f32 %v5743, %v5771
      %v5800 = vadd.f32 %v5744, %v5772
      %v5801 = vadd.f32 %v5745, %v5773
      %v5802 = vadd.f32 %v5746, %v5774
      %v5803 = vadd.f32 %v5747, %v5775
      %v5804 = vadd.f32 %v5748, %v5776
      %v5805 = vadd.f32 %v5749, %v5777
      %v5806 = vadd.f32 %v5750, %v5778
      %v5807 = vadd.f32 %v5751, %v5779
      %v5808 = vadd.f32 %v5752, %v5780
      %v5809 = vadd.f32 %v5753, %v5781
      %v5810 = vadd.f32 %v5754, %v5782
      %v5811 = vadd.f32 %v5755, %v5783
      %v5812 = vadd.f32 %v5756, %v5784
      %v5813 = vadd.f32 %v5757, %v5785
      %v5814 = vadd.f32 %v5758, %v5786
      %v5815 = vmul.f32 %v921, %v1416
      %v5816 = vmul.f32 %v921, %v1417
      %v5817 = vmul.f32 %v921, %v1418
      %v5818 = vmul.f32 %v921, %v1419
      %v5819 = vmul.f32 %v921, %v1420
      %v5820 = vmul.f32 %v921, %v1421
      %v5821 = vmul.f32 %v921, %v1422
      %v5822 = vmul.f32 %v921, %v1423
      %v5823 = vmul.f32 %v921, %v1424
      %v5824 = vmul.f32 %v921, %v1425
      %v5825 = vmul.f32 %v921, %v1426
      %v5826 = vmul.f32 %v921, %v1427
      %v5827 = vmul.f32 %v921, %v1428
      %v5828 = vmul.f32 %v921, %v1429
      %v5829 = vmul.f32 %v921, %v1430
      %v5830 = vmul.f32 %v921, %v1431
      %v5831 = vmul.f32 %v921, %v1432
      %v5832 = vmul.f32 %v921, %v1433
      %v5833 = vmul.f32 %v921, %v1434
      %v5834 = vmul.f32 %v921, %v1435
      %v5835 = vmul.f32 %v921, %v1436
      %v5836 = vmul.f32 %v921, %v1437
      %v5837 = vmul.f32 %v921, %v1438
      %v5838 = vmul.f32 %v921, %v1439
      %v5839 = vmul.f32 %v921, %v1440
      %v5840 = vmul.f32 %v921, %v1441
      %v5841 = vmul.f32 %v921, %v1442
      %v5842 = vmul.f32 %v921, %v1443
      %v5843 = vadd.f32 %v5787, %v5815
      %v5844 = vadd.f32 %v5788, %v5816
      %v5845 = vadd.f32 %v5789, %v5817
      %v5846 = vadd.f32 %v5790, %v5818
      %v5847 = vadd.f32 %v5791, %v5819
      %v5848 = vadd.f32 %v5792, %v5820
      %v5849 = vadd.f32 %v5793, %v5821
      %v5850 = vadd.f32 %v5794, %v5822
      %v5851 = vadd.f32 %v5795, %v5823
      %v5852 = vadd.f32 %v5796, %v5824
      %v5853 = vadd.f32 %v5797, %v5825
      %v5854 = vadd.f32 %v5798, %v5826
      %v5855 = vadd.f32 %v5799, %v5827
      %v5856 = vadd.f32 %v5800, %v5828
      %v5857 = vadd.f32 %v5801, %v5829
      %v5858 = vadd.f32 %v5802, %v5830
      %v5859 = vadd.f32 %v5803, %v5831
      %v5860 = vadd.f32 %v5804, %v5832
      %v5861 = vadd.f32 %v5805, %v5833
      %v5862 = vadd.f32 %v5806, %v5834
      %v5863 = vadd.f32 %v5807, %v5835
      %v5864 = vadd.f32 %v5808, %v5836
      %v5865 = vadd.f32 %v5809, %v5837
      %v5866 = vadd.f32 %v5810, %v5838
      %v5867 = vadd.f32 %v5811, %v5839
      %v5868 = vadd.f32 %v5812, %v5840
      %v5869 = vadd.f32 %v5813, %v5841
      %v5870 = vadd.f32 %v5814, %v5842
      %v5871 = vmul.f32 %v1009, %v1503
      %v5872 = vmul.f32 %v1009, %v1504
      %v5873 = vmul.f32 %v1009, %v1505
      %v5874 = vmul.f32 %v1009, %v1506
      %v5875 = vmul.f32 %v1009, %v1507
      %v5876 = vmul.f32 %v1009, %v1508
      %v5877 = vmul.f32 %v1009, %v1509
      %v5878 = vmul.f32 %v1009, %v1510
      %v5879 = vmul.f32 %v1009, %v1511
      %v5880 = vmul.f32 %v1009, %v1512
      %v5881 = vmul.f32 %v1009, %v1513
      %v5882 = vmul.f32 %v1009, %v1514
      %v5883 = vmul.f32 %v1009, %v1515
      %v5884 = vmul.f32 %v1009, %v1516
      %v5885 = vmul.f32 %v1009, %v1517
      %v5886 = vmul.f32 %v1009, %v1518
      %v5887 = vmul.f32 %v1009, %v1519
      %v5888 = vmul.f32 %v1009, %v1520
      %v5889 = vmul.f32 %v1009, %v1521
      %v5890 = vmul.f32 %v1009, %v1522
      %v5891 = vmul.f32 %v1009, %v1523
      %v5892 = vmul.f32 %v1009, %v1524
      %v5893 = vmul.f32 %v1009, %v1525
      %v5894 = vmul.f32 %v1009, %v1526
      %v5895 = vmul.f32 %v1009, %v1527
      %v5896 = vmul.f32 %v1009, %v1528
      %v5897 = vmul.f32 %v1009, %v1529
      %v5898 = vmul.f32 %v1009, %v1530
      %v5899 = vadd.f32 %v5843, %v5871
      %v5900 = vadd.f32 %v5844, %v5872
      %v5901 = vadd.f32 %v5845, %v5873
      %v5902 = vadd.f32 %v5846, %v5874
      %v5903 = vadd.f32 %v5847, %v5875
      %v5904 = vadd.f32 %v5848, %v5876
      %v5905 = vadd.f32 %v5849, %v5877
      %v5906 = vadd.f32 %v5850, %v5878
      %v5907 = vadd.f32 %v5851, %v5879
      %v5908 = vadd.f32 %v5852, %v5880
      %v5909 = vadd.f32 %v5853, %v5881
      %v5910 = vadd.f32 %v5854, %v5882
      %v5911 = vadd.f32 %v5855, %v5883
      %v5912 = vadd.f32 %v5856, %v5884
      %v5913 = vadd.f32 %v5857, %v5885
      %v5914 = vadd.f32 %v5858, %v5886
      %v5915 = vadd.f32 %v5859, %v5887
      %v5916 = vadd.f32 %v5860, %v5888
      %v5917 = vadd.f32 %v5861, %v5889
      %v5918 = vadd.f32 %v5862, %v5890
      %v5919 = vadd.f32 %v5863, %v5891
      %v5920 = vadd.f32 %v5864, %v5892
      %v5921 = vadd.f32 %v5865, %v5893
      %v5922 = vadd.f32 %v5866, %v5894
      %v5923 = vadd.f32 %v5867, %v5895
      %v5924 = vadd.f32 %v5868, %v5896
      %v5925 = vadd.f32 %v5869, %v5897
      %v5926 = vadd.f32 %v5870, %v5898
      %v5927 = vmul.f32 %v1096, %v1590
      %v5928 = vmul.f32 %v1096, %v1591
      %v5929 = vmul.f32 %v1096, %v1592
      %v5930 = vmul.f32 %v1096, %v1593
      %v5931 = vmul.f32 %v1096, %v1594
      %v5932 = vmul.f32 %v1096, %v1595
      %v5933 = vmul.f32 %v1096, %v1596
      %v5934 = vmul.f32 %v1096, %v1597
      %v5935 = vmul.f32 %v1096, %v1598
      %v5936 = vmul.f32 %v1096, %v1599
      %v5937 = vmul.f32 %v1096, %v1600
      %v5938 = vmul.f32 %v1096, %v1601
      %v5939 = vmul.f32 %v1096, %v1602
      %v5940 = vmul.f32 %v1096, %v1603
      %v5941 = vmul.f32 %v1096, %v1604
      %v5942 = vmul.f32 %v1096, %v1605
      %v5943 = vmul.f32 %v1096, %v1606
      %v5944 = vmul.f32 %v1096, %v1607
      %v5945 = vmul.f32 %v1096, %v1608
      %v5946 = vmul.f32 %v1096, %v1609
      %v5947 = vmul.f32 %v1096, %v1610
      %v5948 = vmul.f32 %v1096, %v1611
      %v5949 = vmul.f32 %v1096, %v1612
      %v5950 = vmul.f32 %v1096, %v1613
      %v5951 = vmul.f32 %v1096, %v1614
      %v5952 = vmul.f32 %v1096, %v1615
      %v5953 = vmul.f32 %v1096, %v1616
      %v5954 = vmul.f32 %v1096, %v1617
      %v5955 = vadd.f32 %v5899, %v5927
      %v5956 = vadd.f32 %v5900, %v5928
      %v5957 = vadd.f32 %v5901, %v5929
      %v5958 = vadd.f32 %v5902, %v5930
      %v5959 = vadd.f32 %v5903, %v5931
      %v5960 = vadd.f32 %v5904, %v5932
      %v5961 = vadd.f32 %v5905, %v5933
      %v5962 = vadd.f32 %v5906, %v5934
      %v5963 = vadd.f32 %v5907, %v5935
      %v5964 = vadd.f32 %v5908, %v5936
      %v5965 = vadd.f32 %v5909, %v5937
      %v5966 = vadd.f32 %v5910, %v5938
      %v5967 = vadd.f32 %v5911, %v5939
      %v5968 = vadd.f32 %v5912, %v5940
      %v5969 = vadd.f32 %v5913, %v5941
      %v5970 = vadd.f32 %v5914, %v5942
      %v5971 = vadd.f32 %v5915, %v5943
      %v5972 = vadd.f32 %v5916, %v5944
      %v5973 = vadd.f32 %v5917, %v5945
      %v5974 = vadd.f32 %v5918, %v5946
      %v5975 = vadd.f32 %v5919, %v5947
      %v5976 = vadd.f32 %v5920, %v5948
      %v5977 = vadd.f32 %v5921, %v5949
      %v5978 = vadd.f32 %v5922, %v5950
      %v5979 = vadd.f32 %v5923, %v5951
      %v5980 = vadd.f32 %v5924, %v5952
      %v5981 = vadd.f32 %v5925, %v5953
      %v5982 = vadd.f32 %v5926, %v5954
      %v5983 = vmul.f32 %v1183, %v1677
      %v5984 = vmul.f32 %v1183, %v1678
      %v5985 = vmul.f32 %v1183, %v1679
      %v5986 = vmul.f32 %v1183, %v1680
      %v5987 = vmul.f32 %v1183, %v1681
      %v5988 = vmul.f32 %v1183, %v1682
      %v5989 = vmul.f32 %v1183, %v1683
      %v5990 = vmul.f32 %v1183, %v1684
      %v5991 = vmul.f32 %v1183, %v1685
      %v5992 = vmul.f32 %v1183, %v1686
      %v5993 = vmul.f32 %v1183, %v1687
      %v5994 = vmul.f32 %v1183, %v1688
      %v5995 = vmul.f32 %v1183, %v1689
      %v5996 = vmul.f32 %v1183, %v1690
      %v5997 = vmul.f32 %v1183, %v1691
      %v5998 = vmul.f32 %v1183, %v1692
      %v5999 = vmul.f32 %v1183, %v1693
      %v6000 = vmul.f32 %v1183, %v1694
      %v6001 = vmul.f32 %v1183, %v1695
      %v6002 = vmul.f32 %v1183, %v1696
      %v6003 = vmul.f32 %v1183, %v1697
      %v6004 = vmul.f32 %v1183, %v1698
      %v6005 = vmul.f32 %v1183, %v1699
      %v6006 = vmul.f32 %v1183, %v1700
      %v6007 = vmul.f32 %v1183, %v1701
      %v6008 = vmul.f32 %v1183, %v1702
      %v6009 = vmul.f32 %v1183, %v1703
      %v6010 = vmul.f32 %v1183, %v1704
      %v6011 = vadd.f32 %v5955, %v5983
      %v6012 = vadd.f32 %v5956, %v5984
      %v6013 = vadd.f32 %v5957, %v5985
      %v6014 = vadd.f32 %v5958, %v5986
      %v6015 = vadd.f32 %v5959, %v5987
      %v6016 = vadd.f32 %v5960, %v5988
      %v6017 = vadd.f32 %v5961, %v5989
      %v6018 = vadd.f32 %v5962, %v5990
      %v6019 = vadd.f32 %v5963, %v5991
      %v6020 = vadd.f32 %v5964, %v5992
      %v6021 = vadd.f32 %v5965, %v5993
      %v6022 = vadd.f32 %v5966, %v5994
      %v6023 = vadd.f32 %v5967, %v5995
      %v6024 = vadd.f32 %v5968, %v5996
      %v6025 = vadd.f32 %v5969, %v5997
      %v6026 = vadd.f32 %v5970, %v5998
      %v6027 = vadd.f32 %v5971, %v5999
      %v6028 = vadd.f32 %v5972, %v6000
      %v6029 = vadd.f32 %v5973, %v6001
      %v6030 = vadd.f32 %v5974, %v6002
      %v6031 = vadd.f32 %v5975, %v6003
      %v6032 = vadd.f32 %v5976, %v6004
      %v6033 = vadd.f32 %v5977, %v6005
      %v6034 = vadd.f32 %v5978, %v6006
      %v6035 = vadd.f32 %v5979, %v6007
      %v6036 = vadd.f32 %v5980, %v6008
      %v6037 = vadd.f32 %v5981, %v6009
      %v6038 = vadd.f32 %v5982, %v6010
      %v6039 = vmul.f32 %v1270, %v3321
      %v6040 = vmul.f32 %v1270, %v3322
      %v6041 = vmul.f32 %v1270, %v3323
      %v6042 = vmul.f32 %v1270, %v3324
      %v6043 = vmul.f32 %v1270, %v3325
      %v6044 = vmul.f32 %v1270, %v3326
      %v6045 = vmul.f32 %v1270, %v3327
      %v6046 = vmul.f32 %v1270, %v3328
      %v6047 = vmul.f32 %v1270, %v3329
      %v6048 = vmul.f32 %v1270, %v3330
      %v6049 = vmul.f32 %v1270, %v3331
      %v6050 = vmul.f32 %v1270, %v3332
      %v6051 = vmul.f32 %v1270, %v3333
      %v6052 = vmul.f32 %v1270, %v3334
      %v6053 = vmul.f32 %v1270, %v3335
      %v6054 = vmul.f32 %v1270, %v3336
      %v6055 = vmul.f32 %v1270, %v3337
      %v6056 = vmul.f32 %v1270, %v3338
      %v6057 = vmul.f32 %v1270, %v3339
      %v6058 = vmul.f32 %v1270, %v3340
      %v6059 = vmul.f32 %v1270, %v3341
      %v6060 = vmul.f32 %v1270, %v3342
      %v6061 = vmul.f32 %v1270, %v3343
      %v6062 = vmul.f32 %v1270, %v3344
      %v6063 = vmul.f32 %v1270, %v3345
      %v6064 = vmul.f32 %v1270, %v3346
      %v6065 = vmul.f32 %v1270, %v3347
      %v6066 = vmul.f32 %v1270, %v3348
      %v6067 = vadd.f32 %v6011, %v6039
      %v6068 = vadd.f32 %v6012, %v6040
      %v6069 = vadd.f32 %v6013, %v6041
      %v6070 = vadd.f32 %v6014, %v6042
      %v6071 = vadd.f32 %v6015, %v6043
      %v6072 = vadd.f32 %v6016, %v6044
      %v6073 = vadd.f32 %v6017, %v6045
      %v6074 = vadd.f32 %v6018, %v6046
      %v6075 = vadd.f32 %v6019, %v6047
      %v6076 = vadd.f32 %v6020, %v6048
      %v6077 = vadd.f32 %v6021, %v6049
      %v6078 = vadd.f32 %v6022, %v6050
      %v6079 = vadd.f32 %v6023, %v6051
      %v6080 = vadd.f32 %v6024, %v6052
      %v6081 = vadd.f32 %v6025, %v6053
      %v6082 = vadd.f32 %v6026, %v6054
      %v6083 = vadd.f32 %v6027, %v6055
      %v6084 = vadd.f32 %v6028, %v6056
      %v6085 = vadd.f32 %v6029, %v6057
      %v6086 = vadd.f32 %v6030, %v6058
      %v6087 = vadd.f32 %v6031, %v6059
      %v6088 = vadd.f32 %v6032, %v6060
      %v6089 = vadd.f32 %v6033, %v6061
      %v6090 = vadd.f32 %v6034, %v6062
      %v6091 = vadd.f32 %v6035, %v6063
      %v6092 = vadd.f32 %v6036, %v6064
      %v6093 = vadd.f32 %v6037, %v6065
      %v6094 = vadd.f32 %v6038, %v6066
      %v6095 = vmul.f32 %v1358, %v1853
      %v6096 = vmul.f32 %v1358, %v1854
      %v6097 = vmul.f32 %v1358, %v1855
      %v6098 = vmul.f32 %v1358, %v1856
      %v6099 = vmul.f32 %v1358, %v1857
      %v6100 = vmul.f32 %v1358, %v1858
      %v6101 = vmul.f32 %v1358, %v1859
      %v6102 = vmul.f32 %v1358, %v1860
      %v6103 = vmul.f32 %v1358, %v1861
      %v6104 = vmul.f32 %v1358, %v1862
      %v6105 = vmul.f32 %v1358, %v1863
      %v6106 = vmul.f32 %v1358, %v1864
      %v6107 = vmul.f32 %v1358, %v1865
      %v6108 = vmul.f32 %v1358, %v1866
      %v6109 = vmul.f32 %v1358, %v1867
      %v6110 = vmul.f32 %v1358, %v1868
      %v6111 = vmul.f32 %v1358, %v1869
      %v6112 = vmul.f32 %v1358, %v1870
      %v6113 = vmul.f32 %v1358, %v1871
      %v6114 = vmul.f32 %v1358, %v1872
      %v6115 = vmul.f32 %v1358, %v1873
      %v6116 = vmul.f32 %v1358, %v1874
      %v6117 = vmul.f32 %v1358, %v1875
      %v6118 = vmul.f32 %v1358, %v1876
      %v6119 = vmul.f32 %v1358, %v1877
      %v6120 = vmul.f32 %v1358, %v1878
      %v6121 = vmul.f32 %v1358, %v1879
      %v6122 = vmul.f32 %v1358, %v1880
      %v6123 = vadd.f32 %v6067, %v6095
      %v6124 = vadd.f32 %v6068, %v6096
      %v6125 = vadd.f32 %v6069, %v6097
      %v6126 = vadd.f32 %v6070, %v6098
      %v6127 = vadd.f32 %v6071, %v6099
      %v6128 = vadd.f32 %v6072, %v6100
      %v6129 = vadd.f32 %v6073, %v6101
      %v6130 = vadd.f32 %v6074, %v6102
      %v6131 = vadd.f32 %v6075, %v6103
      %v6132 = vadd.f32 %v6076, %v6104
      %v6133 = vadd.f32 %v6077, %v6105
      %v6134 = vadd.f32 %v6078, %v6106
      %v6135 = vadd.f32 %v6079, %v6107
      %v6136 = vadd.f32 %v6080, %v6108
      %v6137 = vadd.f32 %v6081, %v6109
      %v6138 = vadd.f32 %v6082, %v6110
      %v6139 = vadd.f32 %v6083, %v6111
      %v6140 = vadd.f32 %v6084, %v6112
      %v6141 = vadd.f32 %v6085, %v6113
      %v6142 = vadd.f32 %v6086, %v6114
      %v6143 = vadd.f32 %v6087, %v6115
      %v6144 = vadd.f32 %v6088, %v6116
      %v6145 = vadd.f32 %v6089, %v6117
      %v6146 = vadd.f32 %v6090, %v6118
      %v6147 = vadd.f32 %v6091, %v6119
      %v6148 = vadd.f32 %v6092, %v6120
      %v6149 = vadd.f32 %v6093, %v6121
      %v6150 = vadd.f32 %v6094, %v6122
      %v6151 = vmul.f32 %v1446, %v1940
      %v6152 = vmul.f32 %v1446, %v1941
      %v6153 = vmul.f32 %v1446, %v1942
      %v6154 = vmul.f32 %v1446, %v1943
      %v6155 = vmul.f32 %v1446, %v1944
      %v6156 = vmul.f32 %v1446, %v1945
      %v6157 = vmul.f32 %v1446, %v1946
      %v6158 = vmul.f32 %v1446, %v1947
      %v6159 = vmul.f32 %v1446, %v1948
      %v6160 = vmul.f32 %v1446, %v1949
      %v6161 = vmul.f32 %v1446, %v1950
      %v6162 = vmul.f32 %v1446, %v1951
      %v6163 = vmul.f32 %v1446, %v1952
      %v6164 = vmul.f32 %v1446, %v1953
      %v6165 = vmul.f32 %v1446, %v1954
      %v6166 = vmul.f32 %v1446, %v1955
      %v6167 = vmul.f32 %v1446, %v1956
      %v6168 = vmul.f32 %v1446, %v1957
      %v6169 = vmul.f32 %v1446, %v1958
      %v6170 = vmul.f32 %v1446, %v1959
      %v6171 = vmul.f32 %v1446, %v1960
      %v6172 = vmul.f32 %v1446, %v1961
      %v6173 = vmul.f32 %v1446, %v1962
      %v6174 = vmul.f32 %v1446, %v1963
      %v6175 = vmul.f32 %v1446, %v1964
      %v6176 = vmul.f32 %v1446, %v1965
      %v6177 = vmul.f32 %v1446, %v1966
      %v6178 = vmul.f32 %v1446, %v1967
      %v6179 = vadd.f32 %v6123, %v6151
      %v6180 = vadd.f32 %v6124, %v6152
      %v6181 = vadd.f32 %v6125, %v6153
      %v6182 = vadd.f32 %v6126, %v6154
      %v6183 = vadd.f32 %v6127, %v6155
      %v6184 = vadd.f32 %v6128, %v6156
      %v6185 = vadd.f32 %v6129, %v6157
      %v6186 = vadd.f32 %v6130, %v6158
      %v6187 = vadd.f32 %v6131, %v6159
      %v6188 = vadd.f32 %v6132, %v6160
      %v6189 = vadd.f32 %v6133, %v6161
      %v6190 = vadd.f32 %v6134, %v6162
      %v6191 = vadd.f32 %v6135, %v6163
      %v6192 = vadd.f32 %v6136, %v6164
      %v6193 = vadd.f32 %v6137, %v6165
      %v6194 = vadd.f32 %v6138, %v6166
      %v6195 = vadd.f32 %v6139, %v6167
      %v6196 = vadd.f32 %v6140, %v6168
      %v6197 = vadd.f32 %v6141, %v6169
      %v6198 = vadd.f32 %v6142, %v6170
      %v6199 = vadd.f32 %v6143, %v6171
      %v6200 = vadd.f32 %v6144, %v6172
      %v6201 = vadd.f32 %v6145, %v6173
      %v6202 = vadd.f32 %v6146, %v6174
      %v6203 = vadd.f32 %v6147, %v6175
      %v6204 = vadd.f32 %v6148, %v6176
      %v6205 = vadd.f32 %v6149, %v6177
      %v6206 = vadd.f32 %v6150, %v6178
      %v6207 = vmul.f32 %v1533, %v2027
      %v6208 = vmul.f32 %v1533, %v2028
      %v6209 = vmul.f32 %v1533, %v2029
      %v6210 = vmul.f32 %v1533, %v2030
      %v6211 = vmul.f32 %v1533, %v2031
      %v6212 = vmul.f32 %v1533, %v2032
      %v6213 = vmul.f32 %v1533, %v2033
      %v6214 = vmul.f32 %v1533, %v2034
      %v6215 = vmul.f32 %v1533, %v2035
      %v6216 = vmul.f32 %v1533, %v2036
      %v6217 = vmul.f32 %v1533, %v2037
      %v6218 = vmul.f32 %v1533, %v2038
      %v6219 = vmul.f32 %v1533, %v2039
      %v6220 = vmul.f32 %v1533, %v2040
      %v6221 = vmul.f32 %v1533, %v2041
      %v6222 = vmul.f32 %v1533, %v2042
      %v6223 = vmul.f32 %v1533, %v2043
      %v6224 = vmul.f32 %v1533, %v2044
      %v6225 = vmul.f32 %v1533, %v2045
      %v6226 = vmul.f32 %v1533, %v2046
      %v6227 = vmul.f32 %v1533, %v2047
      %v6228 = vmul.f32 %v1533, %v2048
      %v6229 = vmul.f32 %v1533, %v2049
      %v6230 = vmul.f32 %v1533, %v2050
      %v6231 = vmul.f32 %v1533, %v2051
      %v6232 = vmul.f32 %v1533, %v2052
      %v6233 = vmul.f32 %v1533, %v2053
      %v6234 = vmul.f32 %v1533, %v2054
      %v6235 = vadd.f32 %v6179, %v6207
      %v6236 = vadd.f32 %v6180, %v6208
      %v6237 = vadd.f32 %v6181, %v6209
      %v6238 = vadd.f32 %v6182, %v6210
      %v6239 = vadd.f32 %v6183, %v6211
      %v6240 = vadd.f32 %v6184, %v6212
      %v6241 = vadd.f32 %v6185, %v6213
      %v6242 = vadd.f32 %v6186, %v6214
      %v6243 = vadd.f32 %v6187, %v6215
      %v6244 = vadd.f32 %v6188, %v6216
      %v6245 = vadd.f32 %v6189, %v6217
      %v6246 = vadd.f32 %v6190, %v6218
      %v6247 = vadd.f32 %v6191, %v6219
      %v6248 = vadd.f32 %v6192, %v6220
      %v6249 = vadd.f32 %v6193, %v6221
      %v6250 = vadd.f32 %v6194, %v6222
      %v6251 = vadd.f32 %v6195, %v6223
      %v6252 = vadd.f32 %v6196, %v6224
      %v6253 = vadd.f32 %v6197, %v6225
      %v6254 = vadd.f32 %v6198, %v6226
      %v6255 = vadd.f32 %v6199, %v6227
      %v6256 = vadd.f32 %v6200, %v6228
      %v6257 = vadd.f32 %v6201, %v6229
      %v6258 = vadd.f32 %v6202, %v6230
      %v6259 = vadd.f32 %v6203, %v6231
      %v6260 = vadd.f32 %v6204, %v6232
      %v6261 = vadd.f32 %v6205, %v6233
      %v6262 = vadd.f32 %v6206, %v6234
      %v6263 = vmul.f32 %v1620, %v2114
      %v6264 = vmul.f32 %v1620, %v2115
      %v6265 = vmul.f32 %v1620, %v2116
      %v6266 = vmul.f32 %v1620, %v2117
      %v6267 = vmul.f32 %v1620, %v2118
      %v6268 = vmul.f32 %v1620, %v2119
      %v6269 = vmul.f32 %v1620, %v2120
      %v6270 = vmul.f32 %v1620, %v2121
      %v6271 = vmul.f32 %v1620, %v2122
      %v6272 = vmul.f32 %v1620, %v2123
      %v6273 = vmul.f32 %v1620, %v2124
      %v6274 = vmul.f32 %v1620, %v2125
      %v6275 = vmul.f32 %v1620, %v2126
      %v6276 = vmul.f32 %v1620, %v2127
      %v6277 = vmul.f32 %v1620, %v2128
      %v6278 = vmul.f32 %v1620, %v2129
      %v6279 = vmul.f32 %v1620, %v2130
      %v6280 = vmul.f32 %v1620, %v2131
      %v6281 = vmul.f32 %v1620, %v2132
      %v6282 = vmul.f32 %v1620, %v2133
      %v6283 = vmul.f32 %v1620, %v2134
      %v6284 = vmul.f32 %v1620, %v2135
      %v6285 = vmul.f32 %v1620, %v2136
      %v6286 = vmul.f32 %v1620, %v2137
      %v6287 = vmul.f32 %v1620, %v2138
      %v6288 = vmul.f32 %v1620, %v2139
      %v6289 = vmul.f32 %v1620, %v2140
      %v6290 = vmul.f32 %v1620, %v2141
      %v6291 = vadd.f32 %v6235, %v6263
      %v6292 = vadd.f32 %v6236, %v6264
      %v6293 = vadd.f32 %v6237, %v6265
      %v6294 = vadd.f32 %v6238, %v6266
      %v6295 = vadd.f32 %v6239, %v6267
      %v6296 = vadd.f32 %v6240, %v6268
      %v6297 = vadd.f32 %v6241, %v6269
      %v6298 = vadd.f32 %v6242, %v6270
      %v6299 = vadd.f32 %v6243, %v6271
      %v6300 = vadd.f32 %v6244, %v6272
      %v6301 = vadd.f32 %v6245, %v6273
      %v6302 = vadd.f32 %v6246, %v6274
      %v6303 = vadd.f32 %v6247, %v6275
      %v6304 = vadd.f32 %v6248, %v6276
      %v6305 = vadd.f32 %v6249, %v6277
      %v6306 = vadd.f32 %v6250, %v6278
      %v6307 = vadd.f32 %v6251, %v6279
      %v6308 = vadd.f32 %v6252, %v6280
      %v6309 = vadd.f32 %v6253, %v6281
      %v6310 = vadd.f32 %v6254, %v6282
      %v6311 = vadd.f32 %v6255, %v6283
      %v6312 = vadd.f32 %v6256, %v6284
      %v6313 = vadd.f32 %v6257, %v6285
      %v6314 = vadd.f32 %v6258, %v6286
      %v6315 = vadd.f32 %v6259, %v6287
      %v6316 = vadd.f32 %v6260, %v6288
      %v6317 = vadd.f32 %v6261, %v6289
      %v6318 = vadd.f32 %v6262, %v6290
      %v6319 = vmul.f32 %v1707, %v3629
      %v6320 = vmul.f32 %v1707, %v3630
      %v6321 = vmul.f32 %v1707, %v3631
      %v6322 = vmul.f32 %v1707, %v3632
      %v6323 = vmul.f32 %v1707, %v3633
      %v6324 = vmul.f32 %v1707, %v3634
      %v6325 = vmul.f32 %v1707, %v3635
      %v6326 = vmul.f32 %v1707, %v3636
      %v6327 = vmul.f32 %v1707, %v3637
      %v6328 = vmul.f32 %v1707, %v3638
      %v6329 = vmul.f32 %v1707, %v3639
      %v6330 = vmul.f32 %v1707, %v3640
      %v6331 = vmul.f32 %v1707, %v3641
      %v6332 = vmul.f32 %v1707, %v3642
      %v6333 = vmul.f32 %v1707, %v3643
      %v6334 = vmul.f32 %v1707, %v3644
      %v6335 = vmul.f32 %v1707, %v3645
      %v6336 = vmul.f32 %v1707, %v3646
      %v6337 = vmul.f32 %v1707, %v3647
      %v6338 = vmul.f32 %v1707, %v3648
      %v6339 = vmul.f32 %v1707, %v3649
      %v6340 = vmul.f32 %v1707, %v3650
      %v6341 = vmul.f32 %v1707, %v3651
      %v6342 = vmul.f32 %v1707, %v3652
      %v6343 = vmul.f32 %v1707, %v3653
      %v6344 = vmul.f32 %v1707, %v3654
      %v6345 = vmul.f32 %v1707, %v3655
      %v6346 = vmul.f32 %v1707, %v3656
      %v6347 = vadd.f32 %v6291, %v6319
      %v6348 = vadd.f32 %v6292, %v6320
      %v6349 = vadd.f32 %v6293, %v6321
      %v6350 = vadd.f32 %v6294, %v6322
      %v6351 = vadd.f32 %v6295, %v6323
      %v6352 = vadd.f32 %v6296, %v6324
      %v6353 = vadd.f32 %v6297, %v6325
      %v6354 = vadd.f32 %v6298, %v6326
      %v6355 = vadd.f32 %v6299, %v6327
      %v6356 = vadd.f32 %v6300, %v6328
      %v6357 = vadd.f32 %v6301, %v6329
      %v6358 = vadd.f32 %v6302, %v6330
      %v6359 = vadd.f32 %v6303, %v6331
      %v6360 = vadd.f32 %v6304, %v6332
      %v6361 = vadd.f32 %v6305, %v6333
      %v6362 = vadd.f32 %v6306, %v6334
      %v6363 = vadd.f32 %v6307, %v6335
      %v6364 = vadd.f32 %v6308, %v6336
      %v6365 = vadd.f32 %v6309, %v6337
      %v6366 = vadd.f32 %v6310, %v6338
      %v6367 = vadd.f32 %v6311, %v6339
      %v6368 = vadd.f32 %v6312, %v6340
      %v6369 = vadd.f32 %v6313, %v6341
      %v6370 = vadd.f32 %v6314, %v6342
      %v6371 = vadd.f32 %v6315, %v6343
      %v6372 = vadd.f32 %v6316, %v6344
      %v6373 = vadd.f32 %v6317, %v6345
      %v6374 = vadd.f32 %v6318, %v6346
      %v6375 = vmul.f32 %v1795, %v4919
      %v6376 = vmul.f32 %v1795, %v4920
      %v6377 = vmul.f32 %v1795, %v4921
      %v6378 = vmul.f32 %v1795, %v4922
      %v6379 = vmul.f32 %v1795, %v4923
      %v6380 = vmul.f32 %v1795, %v4924
      %v6381 = vmul.f32 %v1795, %v4925
      %v6382 = vmul.f32 %v1795, %v4926
      %v6383 = vmul.f32 %v1795, %v4927
      %v6384 = vmul.f32 %v1795, %v4928
      %v6385 = vmul.f32 %v1795, %v4929
      %v6386 = vmul.f32 %v1795, %v4930
      %v6387 = vmul.f32 %v1795, %v4931
      %v6388 = vmul.f32 %v1795, %v4932
      %v6389 = vmul.f32 %v1795, %v4933
      %v6390 = vmul.f32 %v1795, %v4934
      %v6391 = vmul.f32 %v1795, %v4935
      %v6392 = vmul.f32 %v1795, %v4936
      %v6393 = vmul.f32 %v1795, %v4937
      %v6394 = vmul.f32 %v1795, %v4938
      %v6395 = vmul.f32 %v1795, %v4939
      %v6396 = vmul.f32 %v1795, %v4940
      %v6397 = vmul.f32 %v1795, %v4941
      %v6398 = vmul.f32 %v1795, %v4942
      %v6399 = vmul.f32 %v1795, %v4943
      %v6400 = vmul.f32 %v1795, %v4944
      %v6401 = vmul.f32 %v1795, %v4945
      %v6402 = vmul.f32 %v1795, %v4946
      %v6403 = vadd.f32 %v6347, %v6375
      %v6404 = vadd.f32 %v6348, %v6376
      %v6405 = vadd.f32 %v6349, %v6377
      %v6406 = vadd.f32 %v6350, %v6378
      %v6407 = vadd.f32 %v6351, %v6379
      %v6408 = vadd.f32 %v6352, %v6380
      %v6409 = vadd.f32 %v6353, %v6381
      %v6410 = vadd.f32 %v6354, %v6382
      %v6411 = vadd.f32 %v6355, %v6383
      %v6412 = vadd.f32 %v6356, %v6384
      %v6413 = vadd.f32 %v6357, %v6385
      %v6414 = vadd.f32 %v6358, %v6386
      %v6415 = vadd.f32 %v6359, %v6387
      %v6416 = vadd.f32 %v6360, %v6388
      %v6417 = vadd.f32 %v6361, %v6389
      %v6418 = vadd.f32 %v6362, %v6390
      %v6419 = vadd.f32 %v6363, %v6391
      %v6420 = vadd.f32 %v6364, %v6392
      %v6421 = vadd.f32 %v6365, %v6393
      %v6422 = vadd.f32 %v6366, %v6394
      %v6423 = vadd.f32 %v6367, %v6395
      %v6424 = vadd.f32 %v6368, %v6396
      %v6425 = vadd.f32 %v6369, %v6397
      %v6426 = vadd.f32 %v6370, %v6398
      %v6427 = vadd.f32 %v6371, %v6399
      %v6428 = vadd.f32 %v6372, %v6400
      %v6429 = vadd.f32 %v6373, %v6401
      %v6430 = vadd.f32 %v6374, %v6402
      %v6431 = vmul.f32 %v1883, %v5003
      %v6432 = vmul.f32 %v1883, %v5004
      %v6433 = vmul.f32 %v1883, %v5005
      %v6434 = vmul.f32 %v1883, %v5006
      %v6435 = vmul.f32 %v1883, %v5007
      %v6436 = vmul.f32 %v1883, %v5008
      %v6437 = vmul.f32 %v1883, %v5009
      %v6438 = vmul.f32 %v1883, %v5010
      %v6439 = vmul.f32 %v1883, %v5011
      %v6440 = vmul.f32 %v1883, %v5012
      %v6441 = vmul.f32 %v1883, %v5013
      %v6442 = vmul.f32 %v1883, %v5014
      %v6443 = vmul.f32 %v1883, %v5015
      %v6444 = vmul.f32 %v1883, %v5016
      %v6445 = vmul.f32 %v1883, %v5017
      %v6446 = vmul.f32 %v1883, %v5018
      %v6447 = vmul.f32 %v1883, %v5019
      %v6448 = vmul.f32 %v1883, %v5020
      %v6449 = vmul.f32 %v1883, %v5021
      %v6450 = vmul.f32 %v1883, %v5022
      %v6451 = vmul.f32 %v1883, %v5023
      %v6452 = vmul.f32 %v1883, %v5024
      %v6453 = vmul.f32 %v1883, %v5025
      %v6454 = vmul.f32 %v1883, %v5026
      %v6455 = vmul.f32 %v1883, %v5027
      %v6456 = vmul.f32 %v1883, %v5028
      %v6457 = vmul.f32 %v1883, %v5029
      %v6458 = vmul.f32 %v1883, %v5030
      %v6459 = vadd.f32 %v6403, %v6431
      %v6460 = vadd.f32 %v6404, %v6432
      %v6461 = vadd.f32 %v6405, %v6433
      %v6462 = vadd.f32 %v6406, %v6434
      %v6463 = vadd.f32 %v6407, %v6435
      %v6464 = vadd.f32 %v6408, %v6436
      %v6465 = vadd.f32 %v6409, %v6437
      %v6466 = vadd.f32 %v6410, %v6438
      %v6467 = vadd.f32 %v6411, %v6439
      %v6468 = vadd.f32 %v6412, %v6440
      %v6469 = vadd.f32 %v6413, %v6441
      %v6470 = vadd.f32 %v6414, %v6442
      %v6471 = vadd.f32 %v6415, %v6443
      %v6472 = vadd.f32 %v6416, %v6444
      %v6473 = vadd.f32 %v6417, %v6445
      %v6474 = vadd.f32 %v6418, %v6446
      %v6475 = vadd.f32 %v6419, %v6447
      %v6476 = vadd.f32 %v6420, %v6448
      %v6477 = vadd.f32 %v6421, %v6449
      %v6478 = vadd.f32 %v6422, %v6450
      %v6479 = vadd.f32 %v6423, %v6451
      %v6480 = vadd.f32 %v6424, %v6452
      %v6481 = vadd.f32 %v6425, %v6453
      %v6482 = vadd.f32 %v6426, %v6454
      %v6483 = vadd.f32 %v6427, %v6455
      %v6484 = vadd.f32 %v6428, %v6456
      %v6485 = vadd.f32 %v6429, %v6457
      %v6486 = vadd.f32 %v6430, %v6458
      %v6487 = vmul.f32 %v1970, %v5087
      %v6488 = vmul.f32 %v1970, %v5088
      %v6489 = vmul.f32 %v1970, %v5089
      %v6490 = vmul.f32 %v1970, %v5090
      %v6491 = vmul.f32 %v1970, %v5091
      %v6492 = vmul.f32 %v1970, %v5092
      %v6493 = vmul.f32 %v1970, %v5093
      %v6494 = vmul.f32 %v1970, %v5094
      %v6495 = vmul.f32 %v1970, %v5095
      %v6496 = vmul.f32 %v1970, %v5096
      %v6497 = vmul.f32 %v1970, %v5097
      %v6498 = vmul.f32 %v1970, %v5098
      %v6499 = vmul.f32 %v1970, %v5099
      %v6500 = vmul.f32 %v1970, %v5100
      %v6501 = vmul.f32 %v1970, %v5101
      %v6502 = vmul.f32 %v1970, %v5102
      %v6503 = vmul.f32 %v1970, %v5103
      %v6504 = vmul.f32 %v1970, %v5104
      %v6505 = vmul.f32 %v1970, %v5105
      %v6506 = vmul.f32 %v1970, %v5106
      %v6507 = vmul.f32 %v1970, %v5107
      %v6508 = vmul.f32 %v1970, %v5108
      %v6509 = vmul.f32 %v1970, %v5109
      %v6510 = vmul.f32 %v1970, %v5110
      %v6511 = vmul.f32 %v1970, %v5111
      %v6512 = vmul.f32 %v1970, %v5112
      %v6513 = vmul.f32 %v1970, %v5113
      %v6514 = vmul.f32 %v1970, %v5114
      %v6515 = vadd.f32 %v6459, %v6487
      %v6516 = vadd.f32 %v6460, %v6488
      %v6517 = vadd.f32 %v6461, %v6489
      %v6518 = vadd.f32 %v6462, %v6490
      %v6519 = vadd.f32 %v6463, %v6491
      %v6520 = vadd.f32 %v6464, %v6492
      %v6521 = vadd.f32 %v6465, %v6493
      %v6522 = vadd.f32 %v6466, %v6494
      %v6523 = vadd.f32 %v6467, %v6495
      %v6524 = vadd.f32 %v6468, %v6496
      %v6525 = vadd.f32 %v6469, %v6497
      %v6526 = vadd.f32 %v6470, %v6498
      %v6527 = vadd.f32 %v6471, %v6499
      %v6528 = vadd.f32 %v6472, %v6500
      %v6529 = vadd.f32 %v6473, %v6501
      %v6530 = vadd.f32 %v6474, %v6502
      %v6531 = vadd.f32 %v6475, %v6503
      %v6532 = vadd.f32 %v6476, %v6504
      %v6533 = vadd.f32 %v6477, %v6505
      %v6534 = vadd.f32 %v6478, %v6506
      %v6535 = vadd.f32 %v6479, %v6507
      %v6536 = vadd.f32 %v6480, %v6508
      %v6537 = vadd.f32 %v6481, %v6509
      %v6538 = vadd.f32 %v6482, %v6510
      %v6539 = vadd.f32 %v6483, %v6511
      %v6540 = vadd.f32 %v6484, %v6512
      %v6541 = vadd.f32 %v6485, %v6513
      %v6542 = vadd.f32 %v6486, %v6514
      %v6543 = vmul.f32 %v2057, %v5171
      %v6544 = vmul.f32 %v2057, %v5172
      %v6545 = vmul.f32 %v2057, %v5173
      %v6546 = vmul.f32 %v2057, %v5174
      %v6547 = vmul.f32 %v2057, %v5175
      %v6548 = vmul.f32 %v2057, %v5176
      %v6549 = vmul.f32 %v2057, %v5177
      %v6550 = vmul.f32 %v2057, %v5178
      %v6551 = vmul.f32 %v2057, %v5179
      %v6552 = vmul.f32 %v2057, %v5180
      %v6553 = vmul.f32 %v2057, %v5181
      %v6554 = vmul.f32 %v2057, %v5182
      %v6555 = vmul.f32 %v2057, %v5183
      %v6556 = vmul.f32 %v2057, %v5184
      %v6557 = vmul.f32 %v2057, %v5185
      %v6558 = vmul.f32 %v2057, %v5186
      %v6559 = vmul.f32 %v2057, %v5187
      %v6560 = vmul.f32 %v2057, %v5188
      %v6561 = vmul.f32 %v2057, %v5189
      %v6562 = vmul.f32 %v2057, %v5190
      %v6563 = vmul.f32 %v2057, %v5191
      %v6564 = vmul.f32 %v2057, %v5192
      %v6565 = vmul.f32 %v2057, %v5193
      %v6566 = vmul.f32 %v2057, %v5194
      %v6567 = vmul.f32 %v2057, %v5195
      %v6568 = vmul.f32 %v2057, %v5196
      %v6569 = vmul.f32 %v2057, %v5197
      %v6570 = vmul.f32 %v2057, %v5198
      %v6571 = vadd.f32 %v6515, %v6543
      %v6572 = vadd.f32 %v6516, %v6544
      %v6573 = vadd.f32 %v6517, %v6545
      %v6574 = vadd.f32 %v6518, %v6546
      %v6575 = vadd.f32 %v6519, %v6547
      %v6576 = vadd.f32 %v6520, %v6548
      %v6577 = vadd.f32 %v6521, %v6549
      %v6578 = vadd.f32 %v6522, %v6550
      %v6579 = vadd.f32 %v6523, %v6551
      %v6580 = vadd.f32 %v6524, %v6552
      %v6581 = vadd.f32 %v6525, %v6553
      %v6582 = vadd.f32 %v6526, %v6554
      %v6583 = vadd.f32 %v6527, %v6555
      %v6584 = vadd.f32 %v6528, %v6556
      %v6585 = vadd.f32 %v6529, %v6557
      %v6586 = vadd.f32 %v6530, %v6558
      %v6587 = vadd.f32 %v6531, %v6559
      %v6588 = vadd.f32 %v6532, %v6560
      %v6589 = vadd.f32 %v6533, %v6561
      %v6590 = vadd.f32 %v6534, %v6562
      %v6591 = vadd.f32 %v6535, %v6563
      %v6592 = vadd.f32 %v6536, %v6564
      %v6593 = vadd.f32 %v6537, %v6565
      %v6594 = vadd.f32 %v6538, %v6566
      %v6595 = vadd.f32 %v6539, %v6567
      %v6596 = vadd.f32 %v6540, %v6568
      %v6597 = vadd.f32 %v6541, %v6569
      %v6598 = vadd.f32 %v6542, %v6570
      %v6599 = vld [vmem:[%s4918 + $0x2] sm:$0xff]
      %v6600 = vld [vmem:[%s4918 + $0xa] sm:$0x3f]
      %v6601 = vld [vmem:[%s4918 + $0x12] sm:$0xff]
      %v6602 = vld [vmem:[%s4918 + $0x1a] sm:$0x3f]
      %v6603 = vld [vmem:[%s4918 + $0x22] sm:$0xff]
      %v6604 = vld [vmem:[%s4918 + $0x2a] sm:$0x3f]
      %v6605 = vld [vmem:[%s4918 + $0x32] sm:$0xff]
      %v6606 = vld [vmem:[%s4918 + $0x3a] sm:$0x3f]
      %v6607 = vld [vmem:[%s4918 + $0x42] sm:$0xff]
      %v6608 = vld [vmem:[%s4918 + $0x4a] sm:$0x3f]
      %v6609 = vld [vmem:[%s4918 + $0x52] sm:$0xff]
      %v6610 = vld [vmem:[%s4918 + $0x5a] sm:$0x3f]
      %v6611 = vld [vmem:[%s4918 + $0x62] sm:$0xff]
      %v6612 = vld [vmem:[%s4918 + $0x6a] sm:$0x3f]
      %v6613 = vld [vmem:[%s4918 + $0x72] sm:$0xff]
      %v6614 = vld [vmem:[%s4918 + $0x7a] sm:$0x3f]
      %v6615 = vld [vmem:[%s4918 + $0x82] sm:$0xff]
      %v6616 = vld [vmem:[%s4918 + $0x8a] sm:$0x3f]
      %v6617 = vld [vmem:[%s4918 + $0x92] sm:$0xff]
      %v6618 = vld [vmem:[%s4918 + $0x9a] sm:$0x3f]
      %v6619 = vld [vmem:[%s4918 + $0xa2] sm:$0xff]
      %v6620 = vld [vmem:[%s4918 + $0xaa] sm:$0x3f]
      %v6621 = vld [vmem:[%s4918 + $0xb2] sm:$0xff]
      %v6622 = vld [vmem:[%s4918 + $0xba] sm:$0x3f]
      %v6623 = vld [vmem:[%s4918 + $0xc2] sm:$0xff]
      %v6624 = vld [vmem:[%s4918 + $0xca] sm:$0x3f]
      %v6625 = vld [vmem:[%s4918 + $0xd2] sm:$0xff]
      %v6626 = vld [vmem:[%s4918 + $0xda] sm:$0x3f]
      %v6627 = vmul.f32 %v2144, %v6599
      %v6628 = vmul.f32 %v2144, %v6600
      %v6629 = vmul.f32 %v2144, %v6601
      %v6630 = vmul.f32 %v2144, %v6602
      %v6631 = vmul.f32 %v2144, %v6603
      %v6632 = vmul.f32 %v2144, %v6604
      %v6633 = vmul.f32 %v2144, %v6605
      %v6634 = vmul.f32 %v2144, %v6606
      %v6635 = vmul.f32 %v2144, %v6607
      %v6636 = vmul.f32 %v2144, %v6608
      %v6637 = vmul.f32 %v2144, %v6609
      %v6638 = vmul.f32 %v2144, %v6610
      %v6639 = vmul.f32 %v2144, %v6611
      %v6640 = vmul.f32 %v2144, %v6612
      %v6641 = vmul.f32 %v2144, %v6613
      %v6642 = vmul.f32 %v2144, %v6614
      %v6643 = vmul.f32 %v2144, %v6615
      %v6644 = vmul.f32 %v2144, %v6616
      %v6645 = vmul.f32 %v2144, %v6617
      %v6646 = vmul.f32 %v2144, %v6618
      %v6647 = vmul.f32 %v2144, %v6619
      %v6648 = vmul.f32 %v2144, %v6620
      %v6649 = vmul.f32 %v2144, %v6621
      %v6650 = vmul.f32 %v2144, %v6622
      %v6651 = vmul.f32 %v2144, %v6623
      %v6652 = vmul.f32 %v2144, %v6624
      %v6653 = vmul.f32 %v2144, %v6625
      %v6654 = vmul.f32 %v2144, %v6626
      %v6655 = vadd.f32 %v6571, %v6627
      %v6656 = vadd.f32 %v6572, %v6628
      %v6657 = vadd.f32 %v6573, %v6629
      %v6658 = vadd.f32 %v6574, %v6630
      %v6659 = vadd.f32 %v6575, %v6631
      %v6660 = vadd.f32 %v6576, %v6632
      %v6661 = vadd.f32 %v6577, %v6633
      %v6662 = vadd.f32 %v6578, %v6634
      %v6663 = vadd.f32 %v6579, %v6635
      %v6664 = vadd.f32 %v6580, %v6636
      %v6665 = vadd.f32 %v6581, %v6637
      %v6666 = vadd.f32 %v6582, %v6638
      %v6667 = vadd.f32 %v6583, %v6639
      %v6668 = vadd.f32 %v6584, %v6640
      %v6669 = vadd.f32 %v6585, %v6641
      %v6670 = vadd.f32 %v6586, %v6642
      %v6671 = vadd.f32 %v6587, %v6643
      %v6672 = vadd.f32 %v6588, %v6644
      %v6673 = vadd.f32 %v6589, %v6645
      %v6674 = vadd.f32 %v6590, %v6646
      %v6675 = vadd.f32 %v6591, %v6647
      %v6676 = vadd.f32 %v6592, %v6648
      %v6677 = vadd.f32 %v6593, %v6649
      %v6678 = vadd.f32 %v6594, %v6650
      %v6679 = vadd.f32 %v6595, %v6651
      %v6680 = vadd.f32 %v6596, %v6652
      %v6681 = vadd.f32 %v6597, %v6653
      %v6682 = vadd.f32 %v6598, %v6654
      %v6683 = vmax.f32 %v5255, %v6655
      %v6684 = vmax.f32 %v5256, %v6656
      %v6685 = vmax.f32 %v5257, %v6657
      %v6686 = vmax.f32 %v5258, %v6658
      %v6687 = vmax.f32 %v5259, %v6659
      %v6688 = vmax.f32 %v5260, %v6660
      %v6689 = vmax.f32 %v5261, %v6661
      %v6690 = vmax.f32 %v5262, %v6662
      %v6691 = vmax.f32 %v5263, %v6663
      %v6692 = vmax.f32 %v5264, %v6664
      %v6693 = vmax.f32 %v5265, %v6665
      %v6694 = vmax.f32 %v5266, %v6666
      %v6695 = vmax.f32 %v5267, %v6667
      %v6696 = vmax.f32 %v5268, %v6668
      %v6697 = vmax.f32 %v5269, %v6669
      %v6698 = vmax.f32 %v5270, %v6670
      %v6699 = vmax.f32 %v5271, %v6671
      %v6700 = vmax.f32 %v5272, %v6672
      %v6701 = vmax.f32 %v5273, %v6673
      %v6702 = vmax.f32 %v5274, %v6674
      %v6703 = vmax.f32 %v5275, %v6675
      %v6704 = vmax.f32 %v5276, %v6676
      %v6705 = vmax.f32 %v5277, %v6677
      %v6706 = vmax.f32 %v5278, %v6678
      %v6707 = vmax.f32 %v5279, %v6679
      %v6708 = vmax.f32 %v5280, %v6680
      %v6709 = vmax.f32 %v5281, %v6681
      %v6710 = vmax.f32 %v5282, %v6682
      %s6711 = sld [smem:[#allocation4 + %s40]]
      %v6712 = vstv %s6711
      %v6713 = vadd.f32 %v6683, %v6712
      %v6714 = vadd.f32 %v6684, %v6712
      %v6715 = vadd.f32 %v6685, %v6712
      %v6716 = vadd.f32 %v6686, %v6712
      %v6717 = vadd.f32 %v6687, %v6712
      %v6718 = vadd.f32 %v6688, %v6712
      %v6719 = vadd.f32 %v6689, %v6712
      %v6720 = vadd.f32 %v6690, %v6712
      %v6721 = vadd.f32 %v6691, %v6712
      %v6722 = vadd.f32 %v6692, %v6712
      %v6723 = vadd.f32 %v6693, %v6712
      %v6724 = vadd.f32 %v6694, %v6712
      %v6725 = vadd.f32 %v6695, %v6712
      %v6726 = vadd.f32 %v6696, %v6712
      %v6727 = vadd.f32 %v6697, %v6712
      %v6728 = vadd.f32 %v6698, %v6712
      %v6729 = vadd.f32 %v6699, %v6712
      %v6730 = vadd.f32 %v6700, %v6712
      %v6731 = vadd.f32 %v6701, %v6712
      %v6732 = vadd.f32 %v6702, %v6712
      %v6733 = vadd.f32 %v6703, %v6712
      %v6734 = vadd.f32 %v6704, %v6712
      %v6735 = vadd.f32 %v6705, %v6712
      %v6736 = vadd.f32 %v6706, %v6712
      %v6737 = vadd.f32 %v6707, %v6712
      %v6738 = vadd.f32 %v6708, %v6712
      %v6739 = vadd.f32 %v6709, %v6712
      %v6740 = vadd.f32 %v6710, %v6712
      %v6741 = vmax.f32 %v6713, 0.0
      %v6742 = vmax.f32 %v6714, 0.0
      %v6743 = vmax.f32 %v6715, 0.0
      %v6744 = vmax.f32 %v6716, 0.0
      %v6745 = vmax.f32 %v6717, 0.0
      %v6746 = vmax.f32 %v6718, 0.0
      %v6747 = vmax.f32 %v6719, 0.0
      %v6748 = vmax.f32 %v6720, 0.0
      %v6749 = vmax.f32 %v6721, 0.0
      %v6750 = vmax.f32 %v6722, 0.0
      %v6751 = vmax.f32 %v6723, 0.0
      %v6752 = vmax.f32 %v6724, 0.0
      %v6753 = vmax.f32 %v6725, 0.0
      %v6754 = vmax.f32 %v6726, 0.0
      %v6755 = vmax.f32 %v6727, 0.0
      %v6756 = vmax.f32 %v6728, 0.0
      %v6757 = vmax.f32 %v6729, 0.0
      %v6758 = vmax.f32 %v6730, 0.0
      %v6759 = vmax.f32 %v6731, 0.0
      %v6760 = vmax.f32 %v6732, 0.0
      %v6761 = vmax.f32 %v6733, 0.0
      %v6762 = vmax.f32 %v6734, 0.0
      %v6763 = vmax.f32 %v6735, 0.0
      %v6764 = vmax.f32 %v6736, 0.0
      %v6765 = vmax.f32 %v6737, 0.0
      %v6766 = vmax.f32 %v6738, 0.0
      %v6767 = vmax.f32 %v6739, 0.0
      %v6768 = vmax.f32 %v6740, 0.0
      %s6769 = smul.u32 %s40, 224
      %s6770 = scalar_lea.vmem %s3, %s6769
      %6771 = vst [vmem:[%s6770] sm:$0xff] %v6741
      %6772 = vst [vmem:[%s6770 + $0x8] sm:$0x3f] %v6742
      %6773 = vst [vmem:[%s6770 + $0x10] sm:$0xff] %v6743
      %6774 = vst [vmem:[%s6770 + $0x18] sm:$0x3f] %v6744
      %6775 = vst [vmem:[%s6770 + $0x20] sm:$0xff] %v6745
      %6776 = vst [vmem:[%s6770 + $0x28] sm:$0x3f] %v6746
      %6777 = vst [vmem:[%s6770 + $0x30] sm:$0xff] %v6747
      %6778 = vst [vmem:[%s6770 + $0x38] sm:$0x3f] %v6748
      %6779 = vst [vmem:[%s6770 + $0x40] sm:$0xff] %v6749
      %6780 = vst [vmem:[%s6770 + $0x48] sm:$0x3f] %v6750
      %6781 = vst [vmem:[%s6770 + $0x50] sm:$0xff] %v6751
      %6782 = vst [vmem:[%s6770 + $0x58] sm:$0x3f] %v6752
      %6783 = vst [vmem:[%s6770 + $0x60] sm:$0xff] %v6753
      %6784 = vst [vmem:[%s6770 + $0x68] sm:$0x3f] %v6754
      %6785 = vst [vmem:[%s6770 + $0x70] sm:$0xff] %v6755
      %6786 = vst [vmem:[%s6770 + $0x78] sm:$0x3f] %v6756
      %6787 = vst [vmem:[%s6770 + $0x80] sm:$0xff] %v6757
      %6788 = vst [vmem:[%s6770 + $0x88] sm:$0x3f] %v6758
      %6789 = vst [vmem:[%s6770 + $0x90] sm:$0xff] %v6759
      %6790 = vst [vmem:[%s6770 + $0x98] sm:$0x3f] %v6760
      %6791 = vst [vmem:[%s6770 + $0xa0] sm:$0xff] %v6761
      %6792 = vst [vmem:[%s6770 + $0xa8] sm:$0x3f] %v6762
      %6793 = vst [vmem:[%s6770 + $0xb0] sm:$0xff] %v6763
      %6794 = vst [vmem:[%s6770 + $0xb8] sm:$0x3f] %v6764
      %6795 = vst [vmem:[%s6770 + $0xc0] sm:$0xff] %v6765
      %6796 = vst [vmem:[%s6770 + $0xc8] sm:$0x3f] %v6766
      %6797 = vst [vmem:[%s6770 + $0xd0] sm:$0xff] %v6767
      %6798 = vst [vmem:[%s6770 + $0xd8] sm:$0x3f] %v6768
    $region26: #{feature_extractor_forward.1} parent=1 // loop_footer
      %s44 = sadd.s32 1, %s40
    $region27: #{feature_extractor_forward.1} parent=1 // loop_footer_branch
      %39 = sbr.rel target = $region23
    $region28: #{feature_extractor_forward.1} parent=1 // loop_exit
      _
    // Predicated region
    $region29: #{feature_extractor_forward.1} parent=1 // pred_check
      _
    $region30: #{feature_extractor_forward.1} parent=1 // pred_check_branch
      %6800 = sbr.rel (0) target = $region32
    $region31: #{feature_extractor_forward.1} parent=1 // pred_region
      _
    $region32: #{feature_extractor_forward.1} parent=1 // pred_fallthru
      _
    // Predicated region
    $region33: #{feature_extractor_forward.1} parent=1 // pred_check
      _
    $region34: #{feature_extractor_forward.1} parent=1 // pred_check_branch
      %6802 = sbr.rel (0) target = $region36
    $region35: #{feature_extractor_forward.1} parent=1 // pred_region
      _
    $region36: #{feature_extractor_forward.1} parent=1 // pred_fallthru
      _
    %6803 = vsyncpa [#allocation3], 1
    %6804 = vsyncpa [#allocation5], 1

</llo_original>
